<compile_context>
chip_gen: v5e
topology: v5e:2x2
jax: 0.10.0
libtpu: 0.0.40
codegen_flags: <defaults>
</compile_context>

<pallas_src>
import functools

import jax
import jax.numpy as jnp
from jax.experimental import pallas as pl
from jax.experimental.pallas import tpu as pltpu

F32 = jnp.float32
BF16 = jnp.bfloat16


def _rup(x, m):
    return (x + m - 1) // m * m


def _detect_vmem_limit():
    # v7x has 64 MiB physical VMEM per core, v5e/v6e 128 MiB; take ~70% and cap at 64 MiB.
    try:
        cap = int(getattr(pltpu.get_tpu_info(), "vmem_capacity_bytes", 128 * 1024 * 1024))
    except Exception:
        cap = 128 * 1024 * 1024
    return max(32 * 1024 * 1024, min(cap * 7 // 10, 64 * 1024 * 1024))


_VMEM_LIMIT = _detect_vmem_limit()


def _cparams(sem):
    return pltpu.CompilerParams(dimension_semantics=sem, vmem_limit_bytes=_VMEM_LIMIT)


def _fold(w, scale):
    """Fold a per-output-channel BN scale into the last (Cout) axis of a weight."""
    return w * scale


def _pick_divisor(n, max_val):
    best = 1
    for d in range(1, n + 1):
        if n % d == 0 and d <= max_val:
            best = d
    return best


# ----------------------------------------------------------------------------
# Row-block planning shared by the direct conv / maxpool / SAM-conv kernels.
# Each grid step produces TH output rows; the padded input is fetched as `nb`
# consecutive blocks of BH rows (blocks j .. j+nb-1) to cover the KH-1 halo.
# ----------------------------------------------------------------------------
def _plan_rows(Ho, halo, row_bytes, *, max_th=None, mult8=False,
               single_budget=4 << 20, tile_budget=2 << 20):
    Hp = Ho + halo
    if (max_th is None or Ho <= max_th) and Hp * row_bytes <= single_budget:
        return Ho, Hp, 1, 1                      # single block per image: TH, BH, nb, J
    best = None
    for d in range(1, Ho + 1):
        if Ho % d:
            continue
        if mult8 and d % 8:                      # 3-D blocks: H sits on sublanes -> need % 8
            continue
        if max_th is not None and d > max_th:
            continue
        if d * row_bytes <= tile_budget:
            best = d
    if best is None:
        return Ho, Hp, 1, 1                      # fallback (small / odd shapes)
    nb = -(-(best + halo) // best)
    return best, best, nb, Ho // best


def _row_segments(TH, off, BH):
    """Decompose padded-input rows [off, off+TH) into (stream, local_start, length, out_start)."""
    segs, done = [], 0
    while done < TH:
        r = off + done
        s, ls = divmod(r, BH)
        ln = min(BH - ls, TH - done)
        segs.append((s, ls, ln, done))
        done += ln
    return segs


# ----------------------------------------------------------------------------
# Fused GEMM kernel:  out = act( A @ B + shift [+ residual] )   (bf16 in, f32 VMEM acc)
# ----------------------------------------------------------------------------
def _mm_kernel(*refs, act, has_res):
    if has_res:
        a_ref, b_ref, s_ref, r_ref, o_ref, acc_ref = refs
    else:
        a_ref, b_ref, s_ref, o_ref, acc_ref = refs
    k = pl.program_id(2)

    @pl.when(k == 0)
    def _():
        acc_ref[...] = jnp.zeros_like(acc_ref)

    acc_ref[...] += jnp.dot(a_ref[...], b_ref[...], preferred_element_type=jnp.float32)

    @pl.when(k == pl.num_programs(2) - 1)
    def _():
        y = acc_ref[...] + s_ref[...]
        if has_res:
            y = y + r_ref[...].astype(jnp.float32)
        if act == "relu":
            y = jnp.maximum(y, 0.0)
        elif act == "sigmoid":
            y = jax.nn.sigmoid(y)
        o_ref[...] = y.astype(o_ref.dtype)


def matmul_fused(a, b, shift, act="none", residual=None, out_dtype=BF16):
    M, K = a.shape
    _, N = b.shape
    a = a.astype(BF16)
    b = b.astype(BF16)
    shift = shift.reshape(1, N).astype(F32)

    TM = min(M, 512)
    TN = N if N <= 512 else (512 if N % 512 == 0 else (256 if N % 256 == 0 else 128))
    if K <= 1024:
        TK = K
    elif K % 1024 == 0:
        TK = 1024
    elif K % 512 == 0:
        TK = 512
    elif K % 256 == 0:
        TK = 256
    elif K % 128 == 0:
        TK = 128
    else:                      # generic fallback, never hit in this network
        TK = 512
        Kp = _rup(K, TK)
        a = jnp.pad(a, ((0, 0), (0, Kp - K)))
        b = jnp.pad(b, ((0, Kp - K), (0, 0)))
        K = Kp

    grid = (pl.cdiv(M, TM), pl.cdiv(N, TN), K // TK)
    in_specs = [
        pl.BlockSpec((TM, TK), lambda i, j, k: (i, k)),
        pl.BlockSpec((TK, TN), lambda i, j, k: (k, j)),
        pl.BlockSpec((1, TN), lambda i, j, k: (0, j)),
    ]
    args = [a, b, shift]
    has_res = residual is not None
    if has_res:
        in_specs.append(pl.BlockSpec((TM, TN), lambda i, j, k: (i, j)))
        args.append(residual.astype(BF16))

    return pl.pallas_call(
        functools.partial(_mm_kernel, act=act, has_res=has_res),
        out_shape=jax.ShapeDtypeStruct((M, N), out_dtype),
        grid=grid,
        in_specs=in_specs,
        out_specs=pl.BlockSpec((TM, TN), lambda i, j, k: (i, j)),
        scratch_shapes=[pltpu.VMEM((TM, TN), jnp.float32)],
        compiler_params=_cparams(("parallel", "parallel", "arbitrary")),
    )(*args)


# ----------------------------------------------------------------------------
# 1x1 convolutions == GEMM (BN shift / ReLU / residual fused in the epilogue)
# ----------------------------------------------------------------------------
def conv1x1(x, w, shift=None, *, stride=1, act="none", residual=None, out_dtype=BF16):
    if stride > 1:
        x = x[:, ::stride, ::stride, :]   # TODO(synk): fold stride into the A BlockSpec
    N, H, W, Cin = x.shape
    Cout = w.shape[-1]
    wm = w.reshape(-1, Cout)
    if shift is None:
        shift = jnp.zeros((Cout,), F32)
    res = None if residual is None else residual.reshape(-1, Cout)
    y = matmul_fused(x.reshape(-1, Cin), wm, shift, act=act, residual=res, out_dtype=out_dtype)
    return y.reshape(N, H, W, Cout)


# ----------------------------------------------------------------------------
# Direct stride-1 KxK conv kernel: TH output rows per grid step, per-tap operands
# flattened to (rows*Wo, Cin) for large MXU M, f32 accumulator in VMEM scratch,
# weights VMEM-resident, input fetched as nb consecutive row blocks (halo trick).
# Supports a channel-concatenation of several inputs (fuses the decoder concat).
# ----------------------------------------------------------------------------
def _conv_kernel(*refs, G, nb, KH, KW, TH, BH, Wo, act):
    xs = refs[:G * nb]
    ws = refs[G * nb:G * nb + G]
    s_ref = refs[G * nb + G]
    o_ref = refs[G * nb + G + 1]
    acc = refs[G * nb + G + 2]

    acc[...] = jnp.broadcast_to(s_ref[...], acc.shape)     # init with the BN shift
    for g in range(G):
        w_ref = ws[g]
        streams = xs[g * nb:(g + 1) * nb]
        for kh in range(KH):
            segs = _row_segments(TH, kh, BH)
            for kw in range(KW):
                wv = w_ref[kh, kw]                          # (Cin_g, Cout)
                for (s, ls, ln, ot) in segs:
                    xf = streams[s][0, ls:ls + ln, kw:kw + Wo, :].reshape(ln * Wo, -1)
                    acc[ot * Wo:(ot + ln) * Wo, :] += jnp.dot(
                        xf, wv, preferred_element_type=jnp.float32)

    y = acc[...]
    if act == "relu":
        y = jnp.maximum(y, 0.0)
    elif act == "sigmoid":
        y = jax.nn.sigmoid(y)
    o_ref[0] = y.reshape(TH, Wo, -1).astype(o_ref.dtype)


def conv2d_kxk(xs, ws, shift, *, padding=0, act="none", out_dtype=BF16):
    """Direct stride-1 KxK conv over the channel-concat of xs (BN scale pre-folded into ws)."""
    N, H, W, _ = xs[0].shape
    KH, KW, _, Cout = ws[0].shape
    Ho = H + 2 * padding - KH + 1
    Wo = W + 2 * padding - KW + 1
    G = len(xs)

    row_bytes = sum((W + 2 * padding) * int(x.shape[-1]) * 2 for x in xs)
    TH, BH, nb, J = _plan_rows(Ho, KH - 1, row_bytes,
                               max_th=max(KH - 1, 1024 // max(1, Wo)))
    Hp_total = (J - 1 + nb) * BH
    extra = Hp_total - (H + 2 * padding)

    arrays, specs = [], []
    for x in xs:
        Cin = int(x.shape[-1])
        xp = jnp.pad(x.astype(BF16),
                     ((0, 0), (padding, padding + extra), (padding, padding), (0, 0)))
        Wp = xp.shape[2]
        for s in range(nb):
            arrays.append(xp)
            specs.append(pl.BlockSpec((1, BH, Wp, Cin),
                                      lambda n, j, s=s: (n, j + s, 0, 0)))
    for w in ws:
        wb = w.astype(BF16)
        arrays.append(wb)
        specs.append(pl.BlockSpec(wb.shape, lambda n, j: (0, 0, 0, 0)))
    shift2 = shift.reshape(1, Cout).astype(F32)
    arrays.append(shift2)
    specs.append(pl.BlockSpec((1, Cout), lambda n, j: (0, 0)))

    return pl.pallas_call(
        functools.partial(_conv_kernel, G=G, nb=nb, KH=KH, KW=KW,
                          TH=TH, BH=BH, Wo=Wo, act=act),
        out_shape=jax.ShapeDtypeStruct((N, Ho, Wo, Cout), out_dtype),
        grid=(N, J),
        in_specs=specs,
        out_specs=pl.BlockSpec((1, TH, Wo, Cout), lambda n, j: (n, j, 0, 0)),
        scratch_shapes=[pltpu.VMEM((TH * Wo, Cout), jnp.float32)],
        compiler_params=_cparams(("parallel", "parallel")),
    )(*arrays)


# ----------------------------------------------------------------------------
# Stride-2 convs as stride-1 convs on the 2x2 space-to-depth input.
# ----------------------------------------------------------------------------
def _s2d_input(x, padding):
    x = x.astype(BF16)
    N, H, W, C = x.shape
    Hp, Wp = H + 2 * padding, W + 2 * padding
    eh, ew = Hp % 2, Wp % 2
    xp = jnp.pad(x, ((0, 0), (padding, padding + eh), (padding, padding + ew), (0, 0)))
    Hp += eh
    Wp += ew
    xp = xp.reshape(N, Hp // 2, 2, Wp // 2, 2, C).transpose(0, 1, 3, 2, 4, 5)
    return xp.reshape(N, Hp // 2, Wp // 2, 4 * C)


def _s2d_weights(w):
    KH, KW, Cin, Cout = w.shape
    KH2, KW2 = _rup(KH, 2), _rup(KW, 2)
    wp = jnp.pad(w, ((0, KH2 - KH), (0, KW2 - KW), (0, 0), (0, 0)))
    wp = wp.reshape(KH2 // 2, 2, KW2 // 2, 2, Cin, Cout).transpose(0, 2, 1, 3, 4, 5)
    return wp.reshape(KH2 // 2, KW2 // 2, 4 * Cin, Cout)


def conv2d(x, w, shift, *, stride=1, padding=0, act="none", out_dtype=BF16):
    assert stride in (1, 2)
    if stride == 2:
        x = _s2d_input(x, padding)        # one XLA pass; replaces even/odd gather copies
        w = _s2d_weights(w)
        padding = 0
    return conv2d_kxk([x], [w], shift, padding=padding, act=act, out_dtype=out_dtype)


# ----------------------------------------------------------------------------
# ConvTranspose2d(k=2, s=2): GEMM whose output BlockSpec scatters the (kh,kw)
# taps straight into the upsampled NHWC layout (no XLA interleave transpose).
# ----------------------------------------------------------------------------
def _convT_kernel(x_ref, w_ref, b_ref, o_ref):
    TH, W, Cin = x_ref.shape[1], x_ref.shape[2], x_ref.shape[3]
    xf = x_ref[0].reshape(TH * W, Cin)
    b = b_ref[...]
    for p in range(2):
        y = jnp.dot(xf, w_ref[p], preferred_element_type=jnp.float32) + b
        o_ref[0, :, p, :, :] = y.astype(o_ref.dtype).reshape(TH, W, -1)


def conv_transpose2x2(x, w, bias):
    # w: (Cin, 2, 2, Cout)  (PyTorch ConvTranspose2d(Cin, Cout, 2, stride=2))
    N, H, W, Cin = x.shape
    Cout = w.shape[-1]
    wt = jnp.transpose(w, (1, 0, 2, 3)).reshape(2, Cin, 2 * Cout).astype(BF16)
    b2 = jnp.tile(bias, 2).reshape(1, 2 * Cout).astype(F32)
    max_th = max(1, min((2 << 20) // max(1, W * Cin * 2), 4096 // max(1, W)))
    TH = _pick_divisor(H, max_th)
    out = pl.pallas_call(
        _convT_kernel,
        out_shape=jax.ShapeDtypeStruct((N, H, 2, W, 2 * Cout), BF16),
        grid=(N, H // TH),
        in_specs=[pl.BlockSpec((1, TH, W, Cin), lambda n, j: (n, j, 0, 0)),
                  pl.BlockSpec((2, Cin, 2 * Cout), lambda n, j: (0, 0, 0)),
                  pl.BlockSpec((1, 2 * Cout), lambda n, j: (0, 0))],
        out_specs=pl.BlockSpec((1, TH, 2, W, 2 * Cout), lambda n, j: (n, j, 0, 0, 0)),
        compiler_params=_cparams(("parallel", "parallel")),
    )(x.astype(BF16), wt, b2)
    # (N, H, 2, W, 2*Cout) -> (N, 2H, 2W, Cout): pure metadata reshape
    return out.reshape(N, 2 * H, 2 * W, Cout)


# ----------------------------------------------------------------------------
# Max-pool 3x3 / stride 2 / pad 1 over the space-to-depth view (no parity copies).
# ----------------------------------------------------------------------------
def _maxpool_kernel(*refs, nb, TH, BH, Wo, C, taps):
    xs = refs[:nb]
    o_ref = refs[nb]
    acc = refs[nb + 1]
    acc[...] = jnp.full(acc.shape, -jnp.inf, acc.dtype)
    for (a, b, p, q) in taps:
        ch = (p * 2 + q) * C
        for (s, ls, ln, ot) in _row_segments(TH, a, BH):
            v = xs[s][0, ls:ls + ln, b:b + Wo, ch:ch + C].astype(jnp.float32)
            acc[ot:ot + ln, :, :] = jnp.maximum(acc[ot:ot + ln, :, :], v)
    o_ref[0] = acc[...].astype(o_ref.dtype)


def maxpool_3x3_s2(x):
    N, H, W, C = x.shape
    xs = _s2d_input(x, 1)                 # zero pad is safe: input is post-ReLU (>= 0)
    _, R, Rw, C4 = xs.shape
    Ho, Wo = R - 1, Rw - 1
    row_bytes = Rw * C4 * 2
    TH, BH, nb, J = _plan_rows(Ho, 1, row_bytes, max_th=max(1, 2048 // max(1, Wo)))
    extra = (J - 1 + nb) * BH - R
    if extra > 0:
        xs = jnp.pad(xs, ((0, 0), (0, extra), (0, 0), (0, 0)))
    arrays, specs = [], []
    for s in range(nb):
        arrays.append(xs)
        specs.append(pl.BlockSpec((1, BH, Rw, C4), lambda n, j, s=s: (n, j + s, 0, 0)))
    taps = [(kh // 2, kw // 2, kh % 2, kw % 2) for kh in range(3) for kw in range(3)]
    return pl.pallas_call(
        functools.partial(_maxpool_kernel, nb=nb, TH=TH, BH=BH, Wo=Wo, C=C, taps=taps),
        out_shape=jax.ShapeDtypeStruct((N, Ho, Wo, C), BF16),
        grid=(N, J),
        in_specs=specs,
        out_specs=pl.BlockSpec((1, TH, Wo, C), lambda n, j: (n, j, 0, 0)),
        scratch_shapes=[pltpu.VMEM((TH, Wo, C), jnp.float32)],
        compiler_params=_cparams(("parallel", "parallel")),
    )(*arrays)


# ----------------------------------------------------------------------------
# CBAM kernels (lane-dense spatial-attention path, ~8 MiB row tiles)
# ----------------------------------------------------------------------------
def _pick_cbam_rows(H, W, C, budget=8 << 20):
    # Row tiles must be either the full H or a multiple of 8 (the (N,H,W) maps put H on sublanes).
    cand = [d for d in range(1, H + 1) if H % d == 0 and (d == H or d % 8 == 0)]
    ok = [d for d in cand if d * W * C * 2 <= budget]
    return max(ok) if ok else min(cand)


def _cam_pool_kernel(x_ref, mx_ref, av_ref, *, inv_hw):
    j = pl.program_id(1)

    @pl.when(j == 0)
    def _():
        mx_ref[...] = jnp.full(mx_ref.shape, -3e38, mx_ref.dtype)
        av_ref[...] = jnp.zeros_like(av_ref)

    x = x_ref[0].astype(jnp.float32)                       # (TH, W, C)
    mx_ref[...] = jnp.maximum(mx_ref[...], jnp.max(x, axis=(0, 1), keepdims=True))
    av_ref[...] += jnp.sum(x, axis=(0, 1), keepdims=True) * inv_hw


def _cam_sam_pool_kernel(x_ref, a_ref, mx_ref, av_ref, *, inv_c):
    x = x_ref[0].astype(jnp.float32)                       # (TH, W, C)
    att = jax.nn.sigmoid(a_ref[0, 0, 0].astype(jnp.float32))
    y = x * att                                            # cam_out block (never stored)
    mx_ref[0] = jnp.max(y, axis=2)                         # (TH, W)  -- W on lanes
    av_ref[0] = jnp.sum(y, axis=2) * inv_c


def _sam_conv_kernel(*refs, nb, KH, KW, TH, BH, Wo):
    mx = refs[:nb]
    av = refs[nb:2 * nb]
    w_ref = refs[2 * nb]                                   # (2*KH*KW,) scalars in SMEM
    o_ref = refs[2 * nb + 1]
    acc = refs[2 * nb + 2]
    acc[...] = jnp.zeros_like(acc)
    for kh in range(KH):
        for (s, ls, ln, ot) in _row_segments(TH, kh, BH):
            for kw in range(KW):
                wm = w_ref[kh * KW + kw]
                wa = w_ref[KH * KW + kh * KW + kw]
                vm = mx[s][0, ls:ls + ln, kw:kw + Wo]
                va = av[s][0, ls:ls + ln, kw:kw + Wo]
                acc[ot:ot + ln, :] += vm * wm + va * wa
    o_ref[0] = jax.nn.sigmoid(acc[...]).astype(o_ref.dtype)


def _sam_conv(pmx, pav, sam_w):
    """7x7 spatial-attention conv over the 2 pooled maps, computed on (TH, W) vregs."""
    N, H, W = pmx.shape
    KH = KW = 7
    pad = 3
    row_bytes = 2 * (W + 2 * pad) * 4
    TH, BH, nb, J = _plan_rows(H, 2 * pad, row_bytes, mult8=True,
                               single_budget=8 << 20, tile_budget=4 << 20)
    extra = (J - 1 + nb) * BH - (H + 2 * pad)

    def padmap(m):
        return jnp.pad(m, ((0, 0), (pad, pad + extra), (pad, pad)))

    Wp = W + 2 * pad
    arrays, specs = [], []
    for m in (padmap(pmx), padmap(pav)):
        for s in range(nb):
            arrays.append(m)
            specs.append(pl.BlockSpec((1, BH, Wp), lambda n, j, s=s: (n, j + s, 0)))
    wflat = jnp.concatenate([sam_w[:, :, 0, 0].reshape(-1),
                             sam_w[:, :, 1, 0].reshape(-1)]).astype(F32)
    arrays.append(wflat)
    specs.append(pl.BlockSpec(memory_space=pltpu.MemorySpace.SMEM))

    return pl.pallas_call(
        functools.partial(_sam_conv_kernel, nb=nb, KH=KH, KW=KW, TH=TH, BH=BH, Wo=W),
        out_shape=jax.ShapeDtypeStruct((N, H, W), F32),
        grid=(N, J),
        in_specs=specs,
        out_specs=pl.BlockSpec((1, TH, W), lambda n, j: (n, j, 0)),
        scratch_shapes=[pltpu.VMEM((TH, W), jnp.float32)],
        compiler_params=_cparams(("parallel", "parallel")),
    )(*arrays)


def _cbam_out_kernel(x_ref, a_ref, s_ref, o_ref, *, skip):
    x = x_ref[0].astype(jnp.float32)                       # (TH, W, C)
    att = jax.nn.sigmoid(a_ref[0, 0, 0].astype(jnp.float32))
    y = x * att * s_ref[0][:, :, None]
    if skip:
        y = y + x
    o_ref[0] = y.astype(o_ref.dtype)


def cbam_fwd(x, cp, skip=False):
    N, H, W, C = x.shape
    x = x.astype(BF16)
    TH = _pick_cbam_rows(H, W, C)
    J = H // TH

    # channel attention: tiled global max / avg pool
    mx, av = pl.pallas_call(
        functools.partial(_cam_pool_kernel, inv_hw=1.0 / (H * W)),
        out_shape=(jax.ShapeDtypeStruct((N, 1, C), F32),
                   jax.ShapeDtypeStruct((N, 1, C), F32)),
        grid=(N, J),
        in_specs=[pl.BlockSpec((1, TH, W, C), lambda n, j: (n, j, 0, 0))],
        out_specs=(pl.BlockSpec((1, 1, C), lambda n, j: (n, 0, 0)),
                   pl.BlockSpec((1, 1, C), lambda n, j: (n, 0, 0))),
        compiler_params=_cparams(("parallel", "arbitrary")),
    )(x)

    z = jnp.concatenate([mx[:, 0, :], av[:, 0, :]], axis=0)   # (2N, C) shared-MLP trick
    h = matmul_fused(z, cp["w1"], cp["b1"], act="relu", out_dtype=BF16)
    h = matmul_fused(h, cp["w2"], cp["b2"], act="none", out_dtype=F32)
    att = (h[:N] + h[N:]).reshape(N, 1, 1, C)                 # pre-sigmoid

    # spatial-attention input: channel max/mean of x*sigmoid(att) as lane-dense (N,H,W) maps
    pmx, pav = pl.pallas_call(
        functools.partial(_cam_sam_pool_kernel, inv_c=1.0 / C),
        out_shape=(jax.ShapeDtypeStruct((N, H, W), F32),
                   jax.ShapeDtypeStruct((N, H, W), F32)),
        grid=(N, J),
        in_specs=[pl.BlockSpec((1, TH, W, C), lambda n, j: (n, j, 0, 0)),
                  pl.BlockSpec((1, 1, 1, C), lambda n, j: (n, 0, 0, 0))],
        out_specs=(pl.BlockSpec((1, TH, W), lambda n, j: (n, j, 0)),
                   pl.BlockSpec((1, TH, W), lambda n, j: (n, j, 0))),
        compiler_params=_cparams(("parallel", "parallel")),
    )(x, att)

    s = _sam_conv(pmx, pav, cp["sam_w"])

    return pl.pallas_call(
        functools.partial(_cbam_out_kernel, skip=skip),
        out_shape=jax.ShapeDtypeStruct((N, H, W, C), BF16),
        grid=(N, J),
        in_specs=[pl.BlockSpec((1, TH, W, C), lambda n, j: (n, j, 0, 0)),
                  pl.BlockSpec((1, 1, 1, C), lambda n, j: (n, 0, 0, 0)),
                  pl.BlockSpec((1, TH, W), lambda n, j: (n, j, 0))],
        out_specs=pl.BlockSpec((1, TH, W, C), lambda n, j: (n, j, 0, 0)),
        compiler_params=_cparams(("parallel", "parallel")),
    )(x, att, s)


# ----------------------------------------------------------------------------
# ResNet encoder blocks / decoder up-blocks
# ----------------------------------------------------------------------------
def bottleneck_fwd(x, bp):
    s = bp["stride"]
    sc1, sh1 = bp["bn1"]
    sc2, sh2 = bp["bn2"]
    sc3, sh3 = bp["bn3"]
    out = conv1x1(x, _fold(bp["c1_w"], sc1), sh1, act="relu")
    out = conv2d(out, _fold(bp["c2_w"], sc2), sh2, stride=s, padding=1, act="relu")
    if "down_w" in bp:
        dsc, dsh = bp["dbn"]
        identity = conv1x1(x, _fold(bp["down_w"], dsc), dsh, stride=s, act="none")
    else:
        identity = x
    # residual add + ReLU fused into the c3 GEMM epilogue
    return conv1x1(out, _fold(bp["c3_w"], sc3), sh3, act="relu", residual=identity)


def block_fwd(x, bparams):
    for bp in bparams["layers"]:
        x = bottleneck_fwd(x, bp)
    if "out_conv" in bparams:
        copy = conv1x1(x, bparams["out_conv"], act="none")
    else:
        copy = x
    return x, copy


def upblock_fwd(up, copy, p):
    up = conv_transpose2x2(up, p["upw"], p["upb"])
    scale, shift = p["bn"]
    w = _fold(p["cw"], scale)
    cc = copy.shape[-1]
    # concat([copy, up]) + conv3x3 fused: two channel groups, no concat materialization
    return conv2d_kxk([copy, up], [w[:, :, :cc, :], w[:, :, cc:, :]],
                      shift, padding=1, act="relu")


# ----------------------------------------------------------------------------
# Full forward (Encoder + Decoder), NCHW in / NCHW out
# ----------------------------------------------------------------------------
def dh_segment_cbam_forward(x_nchw, P, means, stds, cbam_skip_connection=False):
    x = jnp.transpose(x_nchw, (0, 2, 3, 1)).astype(F32)
    x = (x - means.reshape(1, 1, 1, -1)) / stds.reshape(1, 1, 1, -1)
    identity = x.astype(BF16)

    s1, t1 = P["bn1"]
    copy_0 = conv2d(identity, _fold(P["conv1_w"], s1), t1, stride=2, padding=3, act="relu")
    r = maxpool_3x3_s2(copy_0)

    r, copy_1 = block_fwd(r, P["block1"])
    copy_1 = cbam_fwd(copy_1, P["cbam1"], cbam_skip_connection)
    r, copy_2 = block_fwd(r, P["block2"])
    copy_2 = cbam_fwd(copy_2, P["cbam2"], cbam_skip_connection)
    r, copy_3 = block_fwd(r, P["block3"])
    copy_3 = cbam_fwd(copy_3, P["cbam3"], cbam_skip_connection)
    _, copy_4 = block_fwd(r, P["block4"])
    copy_4 = cbam_fwd(copy_4, P["cbam4"], cbam_skip_connection)

    y = upblock_fwd(copy_4, copy_3, P["up1"])
    y = upblock_fwd(y, copy_2, P["up2"])
    y = upblock_fwd(y, copy_1, P["up3"])
    y = upblock_fwd(y, copy_0, P["up4"])
    y = upblock_fwd(y, identity, P["up5"])
    y = conv1x1(y, P["conv2_w"], act="none", out_dtype=F32)
    return jnp.transpose(y, (0, 3, 1, 2))


# ----------------------------------------------------------------------------
# Deterministic synthetic parameters (inference-mode BN folded to scale/shift)
# ----------------------------------------------------------------------------
class _Init:
    def __init__(self, seed=0):
        self.key = jax.random.PRNGKey(seed)
        self.count = 0

    def _next(self):
        self.count += 1
        return jax.random.fold_in(self.key, self.count)

    def conv(self, kh, kw, cin, cout):
        fan_in = kh * kw * cin
        return jax.random.normal(self._next(), (kh, kw, cin, cout), F32) * (2.0 / fan_in) ** 0.5

    def convT(self, cin, cout):
        return jax.random.normal(self._next(), (cin, 2, 2, cout), F32) * (1.0 / (4 * cin)) ** 0.5

    def bn(self, c):
        gamma = 1.0 + 0.1 * jax.random.normal(self._next(), (c,), F32)
        beta = 0.1 * jax.random.normal(self._next(), (c,), F32)
        mean = 0.1 * jax.random.normal(self._next(), (c,), F32)
        var = 1.0 + jax.random.uniform(self._next(), (c,), F32)
        scale = gamma * jax.lax.rsqrt(var + 1e-5)
        shift = beta - mean * scale
        return scale, shift

    def vec(self, c, s=0.01):
        return s * jax.random.normal(self._next(), (c,), F32)

    def linear(self, cin, cout):
        w = jax.random.normal(self._next(), (cin, cout), F32) * (1.0 / cin) ** 0.5
        return w, self.vec(cout)


def build_params(in_channels=3, out_channel=3, layers=(3, 4, 6, 4)):
    g = _Init(0)
    P = {"conv1_w": g.conv(7, 7, in_channels, 64), "bn1": g.bn(64)}
    inplanes = [64]

    def make_block(planes, nblocks, stride):
        blist = []
        for bi in range(nblocks):
            s = stride if bi == 0 else 1
            bp = {
                "c1_w": g.conv(1, 1, inplanes[0], planes), "bn1": g.bn(planes),
                "c2_w": g.conv(3, 3, planes, planes), "bn2": g.bn(planes),
                "c3_w": g.conv(1, 1, planes, planes * 4), "bn3": g.bn(planes * 4),
                "stride": s,
            }
            if s != 1 or inplanes[0] != planes * 4:
                bp["down_w"] = g.conv(1, 1, inplanes[0], planes * 4)
                bp["dbn"] = g.bn(planes * 4)
            inplanes[0] = planes * 4
            blist.append(bp)
        return blist

    P["block1"] = {"layers": make_block(64, layers[0], 1)}
    P["block2"] = {"layers": make_block(128, layers[1], 2)}
    P["block3"] = {"layers": make_block(256, layers[2], 2), "out_conv": g.conv(1, 1, 1024, 512)}
    P["block4"] = {"layers": make_block(512, layers[3], 2), "out_conv": g.conv(1, 1, 2048, 512)}

    def cbam_p(c, r=2):
        w1, b1 = g.linear(c, c // r)
        w2, b2 = g.linear(c // r, c)
        return {"w1": w1, "b1": b1, "w2": w2, "b2": b2, "sam_w": g.conv(7, 7, 2, 1)}

    P["cbam1"] = cbam_p(256)
    P["cbam2"] = cbam_p(512)
    P["cbam3"] = cbam_p(512)
    P["cbam4"] = cbam_p(512)

    def up_p(in_up, in_copy, out):
        return {"upw": g.convT(in_up, in_up), "upb": g.vec(in_up),
                "cw": g.conv(3, 3, in_up + in_copy, out), "bn": g.bn(out)}

    P["up1"] = up_p(512, 512, 512)
    P["up2"] = up_p(512, 512, 256)
    P["up3"] = up_p(256, 256, 128)
    P["up4"] = up_p(128, 64, 64)
    P["up5"] = up_p(64, in_channels, 32)
    P["conv2_w"] = g.conv(1, 1, 32, out_channel)
    return P


# ----------------------------------------------------------------------------
if __name__ == "__main__":
    in_channels, out_channel = 3, 3
    x = jax.random.normal(jax.random.PRNGKey(0), (2, in_channels, 32, 32), jnp.float32)
    params = build_params(in_channels=in_channels, out_channel=out_channel)
    means = jnp.zeros((in_channels,), jnp.float32)
    stds = jnp.ones((in_channels,), jnp.float32)

    y = dh_segment_cbam_forward(x, params, means, stds)
    y = jax.block_until_ready(y)
    assert y.shape == (2, out_channel, 32, 32), y.shape
    assert bool(jnp.all(jnp.isfinite(y)))
    print("KERNEL_OK")
</pallas_src>

<mosaic_0001>
module attributes {stable_mosaic.version = 11 : i64} {
  func.func @_conv_kernel(%arg0: i32, %arg1: i32, %arg2: memref<1x19x19x12xbf16, #tpu.memory_space<vmem>>, %arg3: memref<4x4x12x64xbf16, #tpu.memory_space<vmem>>, %arg4: memref<1x64xf32, #tpu.memory_space<vmem>>, %arg5: memref<1x16x16x64xbf16, #tpu.memory_space<vmem>>, %arg6: memref<256x64xf32, #tpu.memory_space<vmem>>) attributes {dimension_semantics = [#tpu.dimension_semantics<parallel>, #tpu.dimension_semantics<parallel>], iteration_bounds = array<i64: 2, 1>, scalar_prefetch = 0 : i64, scratch_operands = 1 : i64, tpu.core_type = #tpu.core_type<tc>, window_params = [{transform_indices = @transform_0, window_bounds = array<i64: 1, 19, 19, 12>}, {pipeline_mode = #tpu.pipeline_mode<synchronous>, transform_indices = @transform_1, window_bounds = array<i64: 4, 4, 12, 64>}, {pipeline_mode = #tpu.pipeline_mode<synchronous>, transform_indices = @transform_2, window_bounds = array<i64: 1, 64>}, {transform_indices = @transform_3, window_bounds = array<i64: 1, 16, 16, 64>}]} {
    %c0 = arith.constant 0 : index
    %c0_0 = arith.constant 0 : index
    %0 = vector.load %arg4[%c0, %c0_0] : memref<1x64xf32, #tpu.memory_space<vmem>>, vector<1x64xf32>
    %1 = vector.shape_cast %0 : vector<1x64xf32> to vector<1x64xf32>
    %2 = vector.broadcast %1 : vector<1x64xf32> to vector<256x64xf32>
    %c0_1 = arith.constant 0 : index
    %c0_2 = arith.constant 0 : index
    %3 = vector.load %arg6[%c0_1, %c0_2] : memref<256x64xf32, #tpu.memory_space<vmem>>, vector<256x64xf32>
    tpu.vector_store %arg6[%c0_1, %c0_2], %2 {strides = array<i32>} : memref<256x64xf32, #tpu.memory_space<vmem>>, vector<256x64xf32>,
    %c0_3 = arith.constant 0 : index
    %c0_4 = arith.constant 0 : index
    %c0_5 = arith.constant 0 : index
    %c0_6 = arith.constant 0 : index
    %4 = vector.load %arg3[%c0_3, %c0_4, %c0_5, %c0_6] : memref<4x4x12x64xbf16, #tpu.memory_space<vmem>>, vector<1x1x12x64xbf16>
    %5 = vector.shape_cast %4 : vector<1x1x12x64xbf16> to vector<12x64xbf16>
    %c0_7 = arith.constant 0 : index
    %c0_8 = arith.constant 0 : index
    %c0_9 = arith.constant 0 : index
    %c0_10 = arith.constant 0 : index
    %6 = vector.load %arg2[%c0_7, %c0_8, %c0_9, %c0_10] : memref<1x19x19x12xbf16, #tpu.memory_space<vmem>>, vector<1x16x16x12xbf16>
    %7 = vector.shape_cast %6 : vector<1x16x16x12xbf16> to vector<16x16x12xbf16>
    %8 = vector.shape_cast %7 : vector<16x16x12xbf16> to vector<256x12xbf16>
    %c0_11 = arith.constant 0 : index
    %c0_12 = arith.constant 0 : index
    %9 = vector.load %arg6[%c0_11, %c0_12] : memref<256x64xf32, #tpu.memory_space<vmem>>, vector<256x64xf32>
    %cst = arith.constant dense<0.000000e+00> : vector<256x64xf32>
    %10 = tpu.matmul %8, %5, %cst {dimension_numbers = #tpu.dot_dimension_numbers<[1], [0], [0], [1], [0, 0, 1, 1], [], []>} : vector<256x12xbf16>, vector<12x64xbf16>, vector<256x64xf32> -> vector<256x64xf32>
    %11 = arith.addf %9, %10 : vector<256x64xf32>
    %c0_13 = arith.constant 0 : index
    %c0_14 = arith.constant 0 : index
    %12 = vector.load %arg6[%c0_13, %c0_14] : memref<256x64xf32, #tpu.memory_space<vmem>>, vector<256x64xf32>
    tpu.vector_store %arg6[%c0_13, %c0_14], %11 {strides = array<i32>} : memref<256x64xf32, #tpu.memory_space<vmem>>, vector<256x64xf32>,
    %c0_15 = arith.constant 0 : index
    %c1 = arith.constant 1 : index
    %c0_16 = arith.constant 0 : index
    %c0_17 = arith.constant 0 : index
    %13 = vector.load %arg3[%c0_15, %c1, %c0_16, %c0_17] : memref<4x4x12x64xbf16, #tpu.memory_space<vmem>>, vector<1x1x12x64xbf16>
    %14 = vector.shape_cast %13 : vector<1x1x12x64xbf16> to vector<12x64xbf16>
    %c0_18 = arith.constant 0 : index
    %c0_19 = arith.constant 0 : index
    %c1_20 = arith.constant 1 : index
    %c0_21 = arith.constant 0 : index
    %15 = vector.load %arg2[%c0_18, %c0_19, %c1_20, %c0_21] : memref<1x19x19x12xbf16, #tpu.memory_space<vmem>>, vector<1x16x16x12xbf16>
    %16 = vector.shape_cast %15 : vector<1x16x16x12xbf16> to vector<16x16x12xbf16>
    %17 = vector.shape_cast %16 : vector<16x16x12xbf16> to vector<256x12xbf16>
    %c0_22 = arith.constant 0 : index
    %c0_23 = arith.constant 0 : index
    %18 = vector.load %arg6[%c0_22, %c0_23] : memref<256x64xf32, #tpu.memory_space<vmem>>, vector<256x64xf32>
    %cst_24 = arith.constant dense<0.000000e+00> : vector<256x64xf32>
    %19 = tpu.matmul %17, %14, %cst_24 {dimension_numbers = #tpu.dot_dimension_numbers<[1], [0], [0], [1], [0, 0, 1, 1], [], []>} : vector<256x12xbf16>, vector<12x64xbf16>, vector<256x64xf32> -> vector<256x64xf32>
    %20 = arith.addf %18, %19 : vector<256x64xf32>
    %c0_25 = arith.constant 0 : index
    %c0_26 = arith.constant 0 : index
    %21 = vector.load %arg6[%c0_25, %c0_26] : memref<256x64xf32, #tpu.memory_space<vmem>>, vector<256x64xf32>
    tpu.vector_store %arg6[%c0_25, %c0_26], %20 {strides = array<i32>} : memref<256x64xf32, #tpu.memory_space<vmem>>, vector<256x64xf32>,
    %c0_27 = arith.constant 0 : index
    %c2 = arith.constant 2 : index
    %c0_28 = arith.constant 0 : index
    %c0_29 = arith.constant 0 : index
    %22 = vector.load %arg3[%c0_27, %c2, %c0_28, %c0_29] : memref<4x4x12x64xbf16, #tpu.memory_space<vmem>>, vector<1x1x12x64xbf16>
    %23 = vector.shape_cast %22 : vector<1x1x12x64xbf16> to vector<12x64xbf16>
    %c0_30 = arith.constant 0 : index
    %c0_31 = arith.constant 0 : index
    %c2_32 = arith.constant 2 : index
    %c0_33 = arith.constant 0 : index
    %24 = vector.load %arg2[%c0_30, %c0_31, %c2_32, %c0_33] : memref<1x19x19x12xbf16, #tpu.memory_space<vmem>>, vector<1x16x16x12xbf16>
    %25 = vector.shape_cast %24 : vector<1x16x16x12xbf16> to vector<16x16x12xbf16>
    %26 = vector.shape_cast %25 : vector<16x16x12xbf16> to vector<256x12xbf16>
    %c0_34 = arith.constant 0 : index
    %c0_35 = arith.constant 0 : index
    %27 = vector.load %arg6[%c0_34, %c0_35] : memref<256x64xf32, #tpu.memory_space<vmem>>, vector<256x64xf32>
    %cst_36 = arith.constant dense<0.000000e+00> : vector<256x64xf32>
    %28 = tpu.matmul %26, %23, %cst_36 {dimension_numbers = #tpu.dot_dimension_numbers<[1], [0], [0], [1], [0, 0, 1, 1], [], []>} : vector<256x12xbf16>, vector<12x64xbf16>, vector<256x64xf32> -> vector<256x64xf32>
    %29 = arith.addf %27, %28 : vector<256x64xf32>
    %c0_37 = arith.constant 0 : index
    %c0_38 = arith.constant 0 : index
    %30 = vector.load %arg6[%c0_37, %c0_38] : memref<256x64xf32, #tpu.memory_space<vmem>>, vector<256x64xf32>
    tpu.vector_store %arg6[%c0_37, %c0_38], %29 {strides = array<i32>} : memref<256x64xf32, #tpu.memory_space<vmem>>, vector<256x64xf32>,
    %c0_39 = arith.constant 0 : index
    %c3 = arith.constant 3 : index
    %c0_40 = arith.constant 0 : index
    %c0_41 = arith.constant 0 : index
    %31 = vector.load %arg3[%c0_39, %c3, %c0_40, %c0_41] : memref<4x4x12x64xbf16, #tpu.memory_space<vmem>>, vector<1x1x12x64xbf16>
    %32 = vector.shape_cast %31 : vector<1x1x12x64xbf16> to vector<12x64xbf16>
    %c0_42 = arith.constant 0 : index
    %c0_43 = arith.constant 0 : index
    %c3_44 = arith.constant 3 : index
    %c0_45 = arith.constant 0 : index
    %33 = vector.load %arg2[%c0_42, %c0_43, %c3_44, %c0_45] : memref<1x19x19x12xbf16, #tpu.memory_space<vmem>>, vector<1x16x16x12xbf16>
    %34 = vector.shape_cast %33 : vector<1x16x16x12xbf16> to vector<16x16x12xbf16>
    %35 = vector.shape_cast %34 : vector<16x16x12xbf16> to vector<256x12xbf16>
    %c0_46 = arith.constant 0 : index
    %c0_47 = arith.constant 0 : index
    %36 = vector.load %arg6[%c0_46, %c0_47] : memref<256x64xf32, #tpu.memory_space<vmem>>, vector<256x64xf32>
    %cst_48 = arith.constant dense<0.000000e+00> : vector<256x64xf32>
    %37 = tpu.matmul %35, %32, %cst_48 {dimension_numbers = #tpu.dot_dimension_numbers<[1], [0], [0], [1], [0, 0, 1, 1], [], []>} : vector<256x12xbf16>, vector<12x64xbf16>, vector<256x64xf32> -> vector<256x64xf32>
    %38 = arith.addf %36, %37 : vector<256x64xf32>
    %c0_49 = arith.constant 0 : index
    %c0_50 = arith.constant 0 : index
    %39 = vector.load %arg6[%c0_49, %c0_50] : memref<256x64xf32, #tpu.memory_space<vmem>>, vector<256x64xf32>
    tpu.vector_store %arg6[%c0_49, %c0_50], %38 {strides = array<i32>} : memref<256x64xf32, #tpu.memory_space<vmem>>, vector<256x64xf32>,
    %c1_51 = arith.constant 1 : index
    %c0_52 = arith.constant 0 : index
    %c0_53 = arith.constant 0 : index
    %c0_54 = arith.constant 0 : index
    %40 = vector.load %arg3[%c1_51, %c0_52, %c0_53, %c0_54] : memref<4x4x12x64xbf16, #tpu.memory_space<vmem>>, vector<1x1x12x64xbf16>
    %41 = vector.shape_cast %40 : vector<1x1x12x64xbf16> to vector<12x64xbf16>
    %c0_55 = arith.constant 0 : index
    %c1_56 = arith.constant 1 : index
    %c0_57 = arith.constant 0 : index
    %c0_58 = arith.constant 0 : index
    %42 = vector.load %arg2[%c0_55, %c1_56, %c0_57, %c0_58] : memref<1x19x19x12xbf16, #tpu.memory_space<vmem>>, vector<1x16x16x12xbf16>
    %43 = vector.shape_cast %42 : vector<1x16x16x12xbf16> to vector<16x16x12xbf16>
    %44 = vector.shape_cast %43 : vector<16x16x12xbf16> to vector<256x12xbf16>
    %c0_59 = arith.constant 0 : index
    %c0_60 = arith.constant 0 : index
    %45 = vector.load %arg6[%c0_59, %c0_60] : memref<256x64xf32, #tpu.memory_space<vmem>>, vector<256x64xf32>
    %cst_61 = arith.constant dense<0.000000e+00> : vector<256x64xf32>
    %46 = tpu.matmul %44, %41, %cst_61 {dimension_numbers = #tpu.dot_dimension_numbers<[1], [0], [0], [1], [0, 0, 1, 1], [], []>} : vector<256x12xbf16>, vector<12x64xbf16>, vector<256x64xf32> -> vector<256x64xf32>
    %47 = arith.addf %45, %46 : vector<256x64xf32>
    %c0_62 = arith.constant 0 : index
    %c0_63 = arith.constant 0 : index
    %48 = vector.load %arg6[%c0_62, %c0_63] : memref<256x64xf32, #tpu.memory_space<vmem>>, vector<256x64xf32>
    tpu.vector_store %arg6[%c0_62, %c0_63], %47 {strides = array<i32>} : memref<256x64xf32, #tpu.memory_space<vmem>>, vector<256x64xf32>,
    %c1_64 = arith.constant 1 : index
    %c1_65 = arith.constant 1 : index
    %c0_66 = arith.constant 0 : index
    %c0_67 = arith.constant 0 : index
    %49 = vector.load %arg3[%c1_64, %c1_65, %c0_66, %c0_67] : memref<4x4x12x64xbf16, #tpu.memory_space<vmem>>, vector<1x1x12x64xbf16>
    %50 = vector.shape_cast %49 : vector<1x1x12x64xbf16> to vector<12x64xbf16>
    %c0_68 = arith.constant 0 : index
    %c1_69 = arith.constant 1 : index
    %c1_70 = arith.constant 1 : index
    %c0_71 = arith.constant 0 : index
    %51 = vector.load %arg2[%c0_68, %c1_69, %c1_70, %c0_71] : memref<1x19x19x12xbf16, #tpu.memory_space<vmem>>, vector<1x16x16x12xbf16>
    %52 = vector.shape_cast %51 : vector<1x16x16x12xbf16> to vector<16x16x12xbf16>
    %53 = vector.shape_cast %52 : vector<16x16x12xbf16> to vector<256x12xbf16>
    %c0_72 = arith.constant 0 : index
    %c0_73 = arith.constant 0 : index
    %54 = vector.load %arg6[%c0_72, %c0_73] : memref<256x64xf32, #tpu.memory_space<vmem>>, vector<256x64xf32>
    %cst_74 = arith.constant dense<0.000000e+00> : vector<256x64xf32>
    %55 = tpu.matmul %53, %50, %cst_74 {dimension_numbers = #tpu.dot_dimension_numbers<[1], [0], [0], [1], [0, 0, 1, 1], [], []>} : vector<256x12xbf16>, vector<12x64xbf16>, vector<256x64xf32> -> vector<256x64xf32>
    %56 = arith.addf %54, %55 : vector<256x64xf32>
    %c0_75 = arith.constant 0 : index
    %c0_76 = arith.constant 0 : index
    %57 = vector.load %arg6[%c0_75, %c0_76] : memref<256x64xf32, #tpu.memory_space<vmem>>, vector<256x64xf32>
    tpu.vector_store %arg6[%c0_75, %c0_76], %56 {strides = array<i32>} : memref<256x64xf32, #tpu.memory_space<vmem>>, vector<256x64xf32>,
    %c1_77 = arith.constant 1 : index
    %c2_78 = arith.constant 2 : index
    %c0_79 = arith.constant 0 : index
    %c0_80 = arith.constant 0 : index
    %58 = vector.load %arg3[%c1_77, %c2_78, %c0_79, %c0_80] : memref<4x4x12x64xbf16, #tpu.memory_space<vmem>>, vector<1x1x12x64xbf16>
    %59 = vector.shape_cast %58 : vector<1x1x12x64xbf16> to vector<12x64xbf16>
    %c0_81 = arith.constant 0 : index
    %c1_82 = arith.constant 1 : index
    %c2_83 = arith.constant 2 : index
    %c0_84 = arith.constant 0 : index
    %60 = vector.load %arg2[%c0_81, %c1_82, %c2_83, %c0_84] : memref<1x19x19x12xbf16, #tpu.memory_space<vmem>>, vector<1x16x16x12xbf16>
    %61 = vector.shape_cast %60 : vector<1x16x16x12xbf16> to vector<16x16x12xbf16>
    %62 = vector.shape_cast %61 : vector<16x16x12xbf16> to vector<256x12xbf16>
    %c0_85 = arith.constant 0 : index
    %c0_86 = arith.constant 0 : index
    %63 = vector.load %arg6[%c0_85, %c0_86] : memref<256x64xf32, #tpu.memory_space<vmem>>, vector<256x64xf32>
    %cst_87 = arith.constant dense<0.000000e+00> : vector<256x64xf32>
    %64 = tpu.matmul %62, %59, %cst_87 {dimension_numbers = #tpu.dot_dimension_numbers<[1], [0], [0], [1], [0, 0, 1, 1], [], []>} : vector<256x12xbf16>, vector<12x64xbf16>, vector<256x64xf32> -> vector<256x64xf32>
    %65 = arith.addf %63, %64 : vector<256x64xf32>
    %c0_88 = arith.constant 0 : index
    %c0_89 = arith.constant 0 : index
    %66 = vector.load %arg6[%c0_88, %c0_89] : memref<256x64xf32, #tpu.memory_space<vmem>>, vector<256x64xf32>
    tpu.vector_store %arg6[%c0_88, %c0_89], %65 {strides = array<i32>} : memref<256x64xf32, #tpu.memory_space<vmem>>, vector<256x64xf32>,
    %c1_90 = arith.constant 1 : index
    %c3_91 = arith.constant 3 : index
    %c0_92 = arith.constant 0 : index
    %c0_93 = arith.constant 0 : index
    %67 = vector.load %arg3[%c1_90, %c3_91, %c0_92, %c0_93] : memref<4x4x12x64xbf16, #tpu.memory_space<vmem>>, vector<1x1x12x64xbf16>
    %68 = vector.shape_cast %67 : vector<1x1x12x64xbf16> to vector<12x64xbf16>
    %c0_94 = arith.constant 0 : index
    %c1_95 = arith.constant 1 : index
    %c3_96 = arith.constant 3 : index
    %c0_97 = arith.constant 0 : index
    %69 = vector.load %arg2[%c0_94, %c1_95, %c3_96, %c0_97] : memref<1x19x19x12xbf16, #tpu.memory_space<vmem>>, vector<1x16x16x12xbf16>
    %70 = vector.shape_cast %69 : vector<1x16x16x12xbf16> to vector<16x16x12xbf16>
    %71 = vector.shape_cast %70 : vector<16x16x12xbf16> to vector<256x12xbf16>
    %c0_98 = arith.constant 0 : index
    %c0_99 = arith.constant 0 : index
    %72 = vector.load %arg6[%c0_98, %c0_99] : memref<256x64xf32, #tpu.memory_space<vmem>>, vector<256x64xf32>
    %cst_100 = arith.constant dense<0.000000e+00> : vector<256x64xf32>
    %73 = tpu.matmul %71, %68, %cst_100 {dimension_numbers = #tpu.dot_dimension_numbers<[1], [0], [0], [1], [0, 0, 1, 1], [], []>} : vector<256x12xbf16>, vector<12x64xbf16>, vector<256x64xf32> -> vector<256x64xf32>
    %74 = arith.addf %72, %73 : vector<256x64xf32>
    %c0_101 = arith.constant 0 : index
    %c0_102 = arith.constant 0 : index
    %75 = vector.load %arg6[%c0_101, %c0_102] : memref<256x64xf32, #tpu.memory_space<vmem>>, vector<256x64xf32>
    tpu.vector_store %arg6[%c0_101, %c0_102], %74 {strides = array<i32>} : memref<256x64xf32, #tpu.memory_space<vmem>>, vector<256x64xf32>,
    %c2_103 = arith.constant 2 : index
    %c0_104 = arith.constant 0 : index
    %c0_105 = arith.constant 0 : index
    %c0_106 = arith.constant 0 : index
    %76 = vector.load %arg3[%c2_103, %c0_104, %c0_105, %c0_106] : memref<4x4x12x64xbf16, #tpu.memory_space<vmem>>, vector<1x1x12x64xbf16>
    %77 = vector.shape_cast %76 : vector<1x1x12x64xbf16> to vector<12x64xbf16>
    %c0_107 = arith.constant 0 : index
    %c2_108 = arith.constant 2 : index
    %c0_109 = arith.constant 0 : index
    %c0_110 = arith.constant 0 : index
    %78 = vector.load %arg2[%c0_107, %c2_108, %c0_109, %c0_110] : memref<1x19x19x12xbf16, #tpu.memory_space<vmem>>, vector<1x16x16x12xbf16>
    %79 = vector.shape_cast %78 : vector<1x16x16x12xbf16> to vector<16x16x12xbf16>
    %80 = vector.shape_cast %79 : vector<16x16x12xbf16> to vector<256x12xbf16>
    %c0_111 = arith.constant 0 : index
    %c0_112 = arith.constant 0 : index
    %81 = vector.load %arg6[%c0_111, %c0_112] : memref<256x64xf32, #tpu.memory_space<vmem>>, vector<256x64xf32>
    %cst_113 = arith.constant dense<0.000000e+00> : vector<256x64xf32>
    %82 = tpu.matmul %80, %77, %cst_113 {dimension_numbers = #tpu.dot_dimension_numbers<[1], [0], [0], [1], [0, 0, 1, 1], [], []>} : vector<256x12xbf16>, vector<12x64xbf16>, vector<256x64xf32> -> vector<256x64xf32>
    %83 = arith.addf %81, %82 : vector<256x64xf32>
    %c0_114 = arith.constant 0 : index
    %c0_115 = arith.constant 0 : index
    %84 = vector.load %arg6[%c0_114, %c0_115] : memref<256x64xf32, #tpu.memory_space<vmem>>, vector<256x64xf32>
    tpu.vector_store %arg6[%c0_114, %c0_115], %83 {strides = array<i32>} : memref<256x64xf32, #tpu.memory_space<vmem>>, vector<256x64xf32>,
    %c2_116 = arith.constant 2 : index
    %c1_117 = arith.constant 1 : index
    %c0_118 = arith.constant 0 : index
    %c0_119 = arith.constant 0 : index
    %85 = vector.load %arg3[%c2_116, %c1_117, %c0_118, %c0_119] : memref<4x4x12x64xbf16, #tpu.memory_space<vmem>>, vector<1x1x12x64xbf16>
    %86 = vector.shape_cast %85 : vector<1x1x12x64xbf16> to vector<12x64xbf16>
    %c0_120 = arith.constant 0 : index
    %c2_121 = arith.constant 2 : index
    %c1_122 = arith.constant 1 : index
    %c0_123 = arith.constant 0 : index
    %87 = vector.load %arg2[%c0_120, %c2_121, %c1_122, %c0_123] : memref<1x19x19x12xbf16, #tpu.memory_space<vmem>>, vector<1x16x16x12xbf16>
    %88 = vector.shape_cast %87 : vector<1x16x16x12xbf16> to vector<16x16x12xbf16>
    %89 = vector.shape_cast %88 : vector<16x16x12xbf16> to vector<256x12xbf16>
    %c0_124 = arith.constant 0 : index
    %c0_125 = arith.constant 0 : index
    %90 = vector.load %arg6[%c0_124, %c0_125] : memref<256x64xf32, #tpu.memory_space<vmem>>, vector<256x64xf32>
    %cst_126 = arith.constant dense<0.000000e+00> : vector<256x64xf32>
    %91 = tpu.matmul %89, %86, %cst_126 {dimension_numbers = #tpu.dot_dimension_numbers<[1], [0], [0], [1], [0, 0, 1, 1], [], []>} : vector<256x12xbf16>, vector<12x64xbf16>, vector<256x64xf32> -> vector<256x64xf32>
    %92 = arith.addf %90, %91 : vector<256x64xf32>
    %c0_127 = arith.constant 0 : index
    %c0_128 = arith.constant 0 : index
    %93 = vector.load %arg6[%c0_127, %c0_128] : memref<256x64xf32, #tpu.memory_space<vmem>>, vector<256x64xf32>
    tpu.vector_store %arg6[%c0_127, %c0_128], %92 {strides = array<i32>} : memref<256x64xf32, #tpu.memory_space<vmem>>, vector<256x64xf32>,
    %c2_129 = arith.constant 2 : index
    %c2_130 = arith.constant 2 : index
    %c0_131 = arith.constant 0 : index
    %c0_132 = arith.constant 0 : index
    %94 = vector.load %arg3[%c2_129, %c2_130, %c0_131, %c0_132] : memref<4x4x12x64xbf16, #tpu.memory_space<vmem>>, vector<1x1x12x64xbf16>
    %95 = vector.shape_cast %94 : vector<1x1x12x64xbf16> to vector<12x64xbf16>
    %c0_133 = arith.constant 0 : index
    %c2_134 = arith.constant 2 : index
    %c2_135 = arith.constant 2 : index
    %c0_136 = arith.constant 0 : index
    %96 = vector.load %arg2[%c0_133, %c2_134, %c2_135, %c0_136] : memref<1x19x19x12xbf16, #tpu.memory_space<vmem>>, vector<1x16x16x12xbf16>
    %97 = vector.shape_cast %96 : vector<1x16x16x12xbf16> to vector<16x16x12xbf16>
    %98 = vector.shape_cast %97 : vector<16x16x12xbf16> to vector<256x12xbf16>
    %c0_137 = arith.constant 0 : index
    %c0_138 = arith.constant 0 : index
    %99 = vector.load %arg6[%c0_137, %c0_138] : memref<256x64xf32, #tpu.memory_space<vmem>>, vector<256x64xf32>
    %cst_139 = arith.constant dense<0.000000e+00> : vector<256x64xf32>
    %100 = tpu.matmul %98, %95, %cst_139 {dimension_numbers = #tpu.dot_dimension_numbers<[1], [0], [0], [1], [0, 0, 1, 1], [], []>} : vector<256x12xbf16>, vector<12x64xbf16>, vector<256x64xf32> -> vector<256x64xf32>
    %101 = arith.addf %99, %100 : vector<256x64xf32>
    %c0_140 = arith.constant 0 : index
    %c0_141 = arith.constant 0 : index
    %102 = vector.load %arg6[%c0_140, %c0_141] : memref<256x64xf32, #tpu.memory_space<vmem>>, vector<256x64xf32>
    tpu.vector_store %arg6[%c0_140, %c0_141], %101 {strides = array<i32>} : memref<256x64xf32, #tpu.memory_space<vmem>>, vector<256x64xf32>,
    %c2_142 = arith.constant 2 : index
    %c3_143 = arith.constant 3 : index
    %c0_144 = arith.constant 0 : index
    %c0_145 = arith.constant 0 : index
    %103 = vector.load %arg3[%c2_142, %c3_143, %c0_144, %c0_145] : memref<4x4x12x64xbf16, #tpu.memory_space<vmem>>, vector<1x1x12x64xbf16>
    %104 = vector.shape_cast %103 : vector<1x1x12x64xbf16> to vector<12x64xbf16>
    %c0_146 = arith.constant 0 : index
    %c2_147 = arith.constant 2 : index
    %c3_148 = arith.constant 3 : index
    %c0_149 = arith.constant 0 : index
    %105 = vector.load %arg2[%c0_146, %c2_147, %c3_148, %c0_149] : memref<1x19x19x12xbf16, #tpu.memory_space<vmem>>, vector<1x16x16x12xbf16>
    %106 = vector.shape_cast %105 : vector<1x16x16x12xbf16> to vector<16x16x12xbf16>
    %107 = vector.shape_cast %106 : vector<16x16x12xbf16> to vector<256x12xbf16>
    %c0_150 = arith.constant 0 : index
    %c0_151 = arith.constant 0 : index
    %108 = vector.load %arg6[%c0_150, %c0_151] : memref<256x64xf32, #tpu.memory_space<vmem>>, vector<256x64xf32>
    %cst_152 = arith.constant dense<0.000000e+00> : vector<256x64xf32>
    %109 = tpu.matmul %107, %104, %cst_152 {dimension_numbers = #tpu.dot_dimension_numbers<[1], [0], [0], [1], [0, 0, 1, 1], [], []>} : vector<256x12xbf16>, vector<12x64xbf16>, vector<256x64xf32> -> vector<256x64xf32>
    %110 = arith.addf %108, %109 : vector<256x64xf32>
    %c0_153 = arith.constant 0 : index
    %c0_154 = arith.constant 0 : index
    %111 = vector.load %arg6[%c0_153, %c0_154] : memref<256x64xf32, #tpu.memory_space<vmem>>, vector<256x64xf32>
    tpu.vector_store %arg6[%c0_153, %c0_154], %110 {strides = array<i32>} : memref<256x64xf32, #tpu.memory_space<vmem>>, vector<256x64xf32>,
    %c3_155 = arith.constant 3 : index
    %c0_156 = arith.constant 0 : index
    %c0_157 = arith.constant 0 : index
    %c0_158 = arith.constant 0 : index
    %112 = vector.load %arg3[%c3_155, %c0_156, %c0_157, %c0_158] : memref<4x4x12x64xbf16, #tpu.memory_space<vmem>>, vector<1x1x12x64xbf16>
    %113 = vector.shape_cast %112 : vector<1x1x12x64xbf16> to vector<12x64xbf16>
    %c0_159 = arith.constant 0 : index
    %c3_160 = arith.constant 3 : index
    %c0_161 = arith.constant 0 : index
    %c0_162 = arith.constant 0 : index
    %114 = vector.load %arg2[%c0_159, %c3_160, %c0_161, %c0_162] : memref<1x19x19x12xbf16, #tpu.memory_space<vmem>>, vector<1x16x16x12xbf16>
    %115 = vector.shape_cast %114 : vector<1x16x16x12xbf16> to vector<16x16x12xbf16>
    %116 = vector.shape_cast %115 : vector<16x16x12xbf16> to vector<256x12xbf16>
    %c0_163 = arith.constant 0 : index
    %c0_164 = arith.constant 0 : index
    %117 = vector.load %arg6[%c0_163, %c0_164] : memref<256x64xf32, #tpu.memory_space<vmem>>, vector<256x64xf32>
    %cst_165 = arith.constant dense<0.000000e+00> : vector<256x64xf32>
    %118 = tpu.matmul %116, %113, %cst_165 {dimension_numbers = #tpu.dot_dimension_numbers<[1], [0], [0], [1], [0, 0, 1, 1], [], []>} : vector<256x12xbf16>, vector<12x64xbf16>, vector<256x64xf32> -> vector<256x64xf32>
    %119 = arith.addf %117, %118 : vector<256x64xf32>
    %c0_166 = arith.constant 0 : index
    %c0_167 = arith.constant 0 : index
    %120 = vector.load %arg6[%c0_166, %c0_167] : memref<256x64xf32, #tpu.memory_space<vmem>>, vector<256x64xf32>
    tpu.vector_store %arg6[%c0_166, %c0_167], %119 {strides = array<i32>} : memref<256x64xf32, #tpu.memory_space<vmem>>, vector<256x64xf32>,
    %c3_168 = arith.constant 3 : index
    %c1_169 = arith.constant 1 : index
    %c0_170 = arith.constant 0 : index
    %c0_171 = arith.constant 0 : index
    %121 = vector.load %arg3[%c3_168, %c1_169, %c0_170, %c0_171] : memref<4x4x12x64xbf16, #tpu.memory_space<vmem>>, vector<1x1x12x64xbf16>
    %122 = vector.shape_cast %121 : vector<1x1x12x64xbf16> to vector<12x64xbf16>
    %c0_172 = arith.constant 0 : index
    %c3_173 = arith.constant 3 : index
    %c1_174 = arith.constant 1 : index
    %c0_175 = arith.constant 0 : index
    %123 = vector.load %arg2[%c0_172, %c3_173, %c1_174, %c0_175] : memref<1x19x19x12xbf16, #tpu.memory_space<vmem>>, vector<1x16x16x12xbf16>
    %124 = vector.shape_cast %123 : vector<1x16x16x12xbf16> to vector<16x16x12xbf16>
    %125 = vector.shape_cast %124 : vector<16x16x12xbf16> to vector<256x12xbf16>
    %c0_176 = arith.constant 0 : index
    %c0_177 = arith.constant 0 : index
    %126 = vector.load %arg6[%c0_176, %c0_177] : memref<256x64xf32, #tpu.memory_space<vmem>>, vector<256x64xf32>
    %cst_178 = arith.constant dense<0.000000e+00> : vector<256x64xf32>
    %127 = tpu.matmul %125, %122, %cst_178 {dimension_numbers = #tpu.dot_dimension_numbers<[1], [0], [0], [1], [0, 0, 1, 1], [], []>} : vector<256x12xbf16>, vector<12x64xbf16>, vector<256x64xf32> -> vector<256x64xf32>
    %128 = arith.addf %126, %127 : vector<256x64xf32>
    %c0_179 = arith.constant 0 : index
    %c0_180 = arith.constant 0 : index
    %129 = vector.load %arg6[%c0_179, %c0_180] : memref<256x64xf32, #tpu.memory_space<vmem>>, vector<256x64xf32>
    tpu.vector_store %arg6[%c0_179, %c0_180], %128 {strides = array<i32>} : memref<256x64xf32, #tpu.memory_space<vmem>>, vector<256x64xf32>,
    %c3_181 = arith.constant 3 : index
    %c2_182 = arith.constant 2 : index
    %c0_183 = arith.constant 0 : index
    %c0_184 = arith.constant 0 : index
    %130 = vector.load %arg3[%c3_181, %c2_182, %c0_183, %c0_184] : memref<4x4x12x64xbf16, #tpu.memory_space<vmem>>, vector<1x1x12x64xbf16>
    %131 = vector.shape_cast %130 : vector<1x1x12x64xbf16> to vector<12x64xbf16>
    %c0_185 = arith.constant 0 : index
    %c3_186 = arith.constant 3 : index
    %c2_187 = arith.constant 2 : index
    %c0_188 = arith.constant 0 : index
    %132 = vector.load %arg2[%c0_185, %c3_186, %c2_187, %c0_188] : memref<1x19x19x12xbf16, #tpu.memory_space<vmem>>, vector<1x16x16x12xbf16>
    %133 = vector.shape_cast %132 : vector<1x16x16x12xbf16> to vector<16x16x12xbf16>
    %134 = vector.shape_cast %133 : vector<16x16x12xbf16> to vector<256x12xbf16>
    %c0_189 = arith.constant 0 : index
    %c0_190 = arith.constant 0 : index
    %135 = vector.load %arg6[%c0_189, %c0_190] : memref<256x64xf32, #tpu.memory_space<vmem>>, vector<256x64xf32>
    %cst_191 = arith.constant dense<0.000000e+00> : vector<256x64xf32>
    %136 = tpu.matmul %134, %131, %cst_191 {dimension_numbers = #tpu.dot_dimension_numbers<[1], [0], [0], [1], [0, 0, 1, 1], [], []>} : vector<256x12xbf16>, vector<12x64xbf16>, vector<256x64xf32> -> vector<256x64xf32>
    %137 = arith.addf %135, %136 : vector<256x64xf32>
    %c0_192 = arith.constant 0 : index
    %c0_193 = arith.constant 0 : index
    %138 = vector.load %arg6[%c0_192, %c0_193] : memref<256x64xf32, #tpu.memory_space<vmem>>, vector<256x64xf32>
    tpu.vector_store %arg6[%c0_192, %c0_193], %137 {strides = array<i32>} : memref<256x64xf32, #tpu.memory_space<vmem>>, vector<256x64xf32>,
    %c3_194 = arith.constant 3 : index
    %c3_195 = arith.constant 3 : index
    %c0_196 = arith.constant 0 : index
    %c0_197 = arith.constant 0 : index
    %139 = vector.load %arg3[%c3_194, %c3_195, %c0_196, %c0_197] : memref<4x4x12x64xbf16, #tpu.memory_space<vmem>>, vector<1x1x12x64xbf16>
    %140 = vector.shape_cast %139 : vector<1x1x12x64xbf16> to vector<12x64xbf16>
    %c0_198 = arith.constant 0 : index
    %c3_199 = arith.constant 3 : index
    %c3_200 = arith.constant 3 : index
    %c0_201 = arith.constant 0 : index
    %141 = vector.load %arg2[%c0_198, %c3_199, %c3_200, %c0_201] : memref<1x19x19x12xbf16, #tpu.memory_space<vmem>>, vector<1x16x16x12xbf16>
    %142 = vector.shape_cast %141 : vector<1x16x16x12xbf16> to vector<16x16x12xbf16>
    %143 = vector.shape_cast %142 : vector<16x16x12xbf16> to vector<256x12xbf16>
    %c0_202 = arith.constant 0 : index
    %c0_203 = arith.constant 0 : index
    %144 = vector.load %arg6[%c0_202, %c0_203] : memref<256x64xf32, #tpu.memory_space<vmem>>, vector<256x64xf32>
    %cst_204 = arith.constant dense<0.000000e+00> : vector<256x64xf32>
    %145 = tpu.matmul %143, %140, %cst_204 {dimension_numbers = #tpu.dot_dimension_numbers<[1], [0], [0], [1], [0, 0, 1, 1], [], []>} : vector<256x12xbf16>, vector<12x64xbf16>, vector<256x64xf32> -> vector<256x64xf32>
    %146 = arith.addf %144, %145 : vector<256x64xf32>
    %c0_205 = arith.constant 0 : index
    %c0_206 = arith.constant 0 : index
    %147 = vector.load %arg6[%c0_205, %c0_206] : memref<256x64xf32, #tpu.memory_space<vmem>>, vector<256x64xf32>
    tpu.vector_store %arg6[%c0_205, %c0_206], %146 {strides = array<i32>} : memref<256x64xf32, #tpu.memory_space<vmem>>, vector<256x64xf32>,
    %c0_207 = arith.constant 0 : index
    %c0_208 = arith.constant 0 : index
    %148 = vector.load %arg6[%c0_207, %c0_208] : memref<256x64xf32, #tpu.memory_space<vmem>>, vector<256x64xf32>
    %cst_209 = arith.constant 0.000000e+00 : f32
    %149 = vector.broadcast %cst_209 : f32 to vector<256x64xf32>
    %150 = arith.maximumf %148, %149 : vector<256x64xf32>
    %151 = vector.shape_cast %150 : vector<256x64xf32> to vector<16x16x64xf32>
    %152 = arith.truncf %151 : vector<16x16x64xf32> to vector<16x16x64xbf16>
    %c0_210 = arith.constant 0 : index
    %c0_211 = arith.constant 0 : index
    %c0_212 = arith.constant 0 : index
    %c0_213 = arith.constant 0 : index
    %153 = vector.load %arg5[%c0_210, %c0_211, %c0_212, %c0_213] : memref<1x16x16x64xbf16, #tpu.memory_space<vmem>>, vector<1x16x16x64xbf16>
    %154 = vector.shape_cast %153 : vector<1x16x16x64xbf16> to vector<16x16x64xbf16>
    %155 = vector.shape_cast %152 : vector<16x16x64xbf16> to vector<1x16x16x64xbf16>
    tpu.vector_store %arg5[%c0_210, %c0_211, %c0_212, %c0_213], %155 {strides = array<i32>} : memref<1x16x16x64xbf16, #tpu.memory_space<vmem>>, vector<1x16x16x64xbf16>,
    return
  }
  func.func @transform_0(%arg0: i32, %arg1: i32) -> (i32, i32, i32, i32) {
    %c0_i32 = arith.constant 0 : i32
    %0 = arith.addi %arg1, %c0_i32 : i32
    %c0_i32_0 = arith.constant 0 : i32
    %c0_i32_1 = arith.constant 0 : i32
    %c0_i32_2 = arith.constant 0 : i32
    return %arg0, %0, %c0_i32_0, %c0_i32_1 : i32, i32, i32, i32
  }
  func.func @transform_1(%arg0: i32, %arg1: i32) -> (i32, i32, i32, i32) {
    %c0_i32 = arith.constant 0 : i32
    %c0_i32_0 = arith.constant 0 : i32
    %c0_i32_1 = arith.constant 0 : i32
    %c0_i32_2 = arith.constant 0 : i32
    %c0_i32_3 = arith.constant 0 : i32
    return %c0_i32, %c0_i32_0, %c0_i32_1, %c0_i32_2 : i32, i32, i32, i32
  }
  func.func @transform_2(%arg0: i32, %arg1: i32) -> (i32, i32) {
    %c0_i32 = arith.constant 0 : i32
    %c0_i32_0 = arith.constant 0 : i32
    %c0_i32_1 = arith.constant 0 : i32
    return %c0_i32, %c0_i32_0 : i32, i32
  }
  func.func @transform_3(%arg0: i32, %arg1: i32) -> (i32, i32, i32, i32) {
    %c0_i32 = arith.constant 0 : i32
    %c0_i32_0 = arith.constant 0 : i32
    %c0_i32_1 = arith.constant 0 : i32
    return %arg0, %arg1, %c0_i32, %c0_i32_0 : i32, i32, i32, i32
  }
}

</mosaic_0001>

<llo_original>
// kernel: tpu_custom_call.1
$region0: #{tpu_custom_call.1}
  #allocation0 [shape = 'u32[]', space=smem, size = 0x4, offset = 0x4, fixed_abs, tag = 'smem constant byte address 0x4 - core index']
  #allocation1 [shape = 'u32[72,128]{1,0:T(1,128)}', space=vmem, size = 0x9000, scoped, tag = 'internal scratch']
  #allocation2 [shape = 'f32[256,64]{1,0:T(8,128)}', space=vmem, size = 0x20000, scoped, tag = 'scratch operand']
  %s0 = inlined_call_operand.vmem [shape: bf16[2,19,19,12], index: 0, kind: input, shape index: {}]
  %s1 = inlined_call_operand.vmem [shape: bf16[4,4,12,64], index: 1, kind: input, shape index: {}]
  %s2 = inlined_call_operand.vmem [shape: f32[1,64], index: 2, kind: input, shape index: {}]
  %s3 = inlined_call_operand.hbm [shape: bf16[2,16,16,64], index: 3, kind: output, shape index: {}]
  %s4 = sld [smem:[#allocation0]]
  $region45: #{tpu_custom_call.1} parent=0
    _
  %s6 = ssub.s32 1, %s4
  %s7 = scalar_select 0, %s6, %s4
  $region1: #{tpu_custom_call.1} parent=0
    #allocation3 [shape = 'u8[131072]{0}', space=vmem, size = 0x20000, scoped, tag = 'output window, operand 0']
    #allocation4 [shape = 's32[2]{0}', space=sflag, size = 0x8, scoped, tag = 'scoped memory for tpu_custom_call.1']
    %8 = vsyncpa [#allocation4], 0
    %s9 = scalar_lea.sflag [#allocation4], 1
    %10 = vsyncpa %s9, 0
    loop: start=0, step=1, limit=4
    $region2: #{tpu_custom_call.1} parent=1 // loop_pre_header
      _
    $region3: #{tpu_custom_call.1} parent=1 // loop_header
      %s12 = sphi 0, %s16
      %p13 = scmp.ge.s32.totalorder %s12, 4
      %s19 = sphi 0, %s31
      %s20 = sphi 0, %s27
      %s21 = sphi 0, %s19
      %s22 = sphi 0, %s20
      %s23 = sphi 0, %s21
      %s24 = sphi 0, %s22
      %s36 = sphi 0, %s38
      %s39 = sphi 0, %s36
      %s40 = sphi 0, %s39
      %s56 = sphi 0, %s40
      %s60 = sphi 0, %s60
      %s62 = sphi 0, %s60
      %s63 = sphi 0, %s62
      %s77 = sphi 0, %s63
      %s81 = sphi 0, %s81
      %s83 = sphi 0, %s81
      %s84 = sphi 0, %s83
      %s98 = sphi 0, %s84
      %s106 = sphi 0, %s108
      %s109 = sphi 0, %s106
      %s110 = sphi 0, %s109
      %s126 = sphi 0, %s110
    $region4: #{tpu_custom_call.1} parent=1 // loop_header_branch
      %15 = sbr.rel (%p13) target = $region8
    $region5: #{tpu_custom_call.1} parent=1 // loop_body
      %s17 = ssub.s32 %s12, 1
      %s18 = ssub.s32 %s12, 2
      %s25 = sadd.s32 1, %s20
      %p26 = scmp.ge.s32.totalorder %s25, 1
      %s27 = scalar_select %p26, 0, %s25
      %s28 = sadd.s32 1, %s19
      %s29 = scalar_select %p26, %s28, %s19
      %p30 = scmp.ge.s32.totalorder %s29, 2
      %s31 = scalar_select %p30, 0, %s29
      %s32 = ssub.s32 %s19, %s31
      %s33 = ssub.s32 %s20, %s27
      %s34 = sor.u32 %s32, %s33
      %p35 = scmp.eq.s32.totalorder %s34, 0
      %s37 = sadd.s32 %s36, 1
      %s38 = scalar_select %p35, %s36, %s37
      %p41 = pneg %p35
      %p42 = scmp.eq.s32.totalorder %s12, 1
      %p43 = por %p41, %p42
      %p44 = scmp.ne.s32.totalorder %s36, %s39
      %p45 = scmp.eq.s32.totalorder %s12, 0
      %p46 = por %p44, %p45
      %p47 = scmp.ne.s32.totalorder %s36, %s39
      %p48 = scmp.eq.s32.totalorder %s17, 1
      %p49 = por %p47, %p48
      %p50 = scmp.ne.s32.totalorder %s39, %s40
      %p51 = scmp.eq.s32.totalorder %s17, 0
      %p52 = por %p50, %p51
      %p53 = scmp.ne.s32.totalorder %s39, %s40
      %p54 = scmp.eq.s32.totalorder %s18, 1
      %p55 = por %p53, %p54
      %p57 = scmp.ne.s32.totalorder %s40, %s56
      %p58 = scmp.eq.s32.totalorder %s18, 0
      %p59 = por %p57, %p58
      %s61 = sadd.s32 %s60, 1
      %p64 = scmp.eq.s32.totalorder %s12, 1
      %p65 = scmp.ne.s32.totalorder %s60, %s62
      %p66 = scmp.eq.s32.totalorder %s12, 0
      %p67 = por %p65, %p66
      %p68 = scmp.ne.s32.totalorder %s60, %s62
      %p69 = scmp.eq.s32.totalorder %s17, 1
      %p70 = por %p68, %p69
      %p71 = scmp.ne.s32.totalorder %s62, %s63
      %p72 = scmp.eq.s32.totalorder %s17, 0
      %p73 = por %p71, %p72
      %p74 = scmp.ne.s32.totalorder %s62, %s63
      %p75 = scmp.eq.s32.totalorder %s18, 1
      %p76 = por %p74, %p75
      %p78 = scmp.ne.s32.totalorder %s63, %s77
      %p79 = scmp.eq.s32.totalorder %s18, 0
      %p80 = por %p78, %p79
      %s82 = sadd.s32 %s81, 1
      %p85 = scmp.eq.s32.totalorder %s12, 1
      %p86 = scmp.ne.s32.totalorder %s81, %s83
      %p87 = scmp.eq.s32.totalorder %s12, 0
      %p88 = por %p86, %p87
      %p89 = scmp.ne.s32.totalorder %s81, %s83
      %p90 = scmp.eq.s32.totalorder %s17, 1
      %p91 = por %p89, %p90
      %p92 = scmp.ne.s32.totalorder %s83, %s84
      %p93 = scmp.eq.s32.totalorder %s17, 0
      %p94 = por %p92, %p93
      %p95 = scmp.ne.s32.totalorder %s83, %s84
      %p96 = scmp.eq.s32.totalorder %s18, 1
      %p97 = por %p95, %p96
      %p99 = scmp.ne.s32.totalorder %s84, %s98
      %p100 = scmp.eq.s32.totalorder %s18, 0
      %p101 = por %p99, %p100
      %s102 = ssub.s32 %s19, %s31
      %s103 = ssub.s32 %s20, %s27
      %s104 = sor.u32 %s102, %s103
      %p105 = scmp.eq.s32.totalorder %s104, 0
      %s107 = sadd.s32 %s106, 1
      %s108 = scalar_select %p105, %s106, %s107
      %p111 = pneg %p105
      %p112 = scmp.eq.s32.totalorder %s12, 1
      %p113 = por %p111, %p112
      %p114 = scmp.ne.s32.totalorder %s106, %s109
      %p115 = scmp.eq.s32.totalorder %s12, 0
      %p116 = por %p114, %p115
      %p117 = scmp.ne.s32.totalorder %s106, %s109
      %p118 = scmp.eq.s32.totalorder %s17, 1
      %p119 = por %p117, %p118
      %p120 = scmp.ne.s32.totalorder %s109, %s110
      %p121 = scmp.eq.s32.totalorder %s17, 0
      %p122 = por %p120, %p121
      %p123 = scmp.ne.s32.totalorder %s109, %s110
      %p124 = scmp.eq.s32.totalorder %s18, 1
      %p125 = por %p123, %p124
      %p127 = scmp.ne.s32.totalorder %s110, %s126
      %p128 = scmp.eq.s32.totalorder %s18, 0
      %p129 = por %p127, %p128
      %p130 = scmp.le.s32.totalorder 1, %s12
      %p131 = scmp.lt.s32.totalorder %s12, 3
      %p132 = pnand %p130, %p131
      %p133 = pneg %p132
      // Predicated region
      $region9: #{tpu_custom_call.1} parent=5 // pred_check
        _
      $region10: #{tpu_custom_call.1} parent=5 // pred_check_branch
        %135 = sbr.rel (%p132) target = $region12
      $region11: #{tpu_custom_call.1} parent=5 // pred_region
        %s136 = ssub.s32 %s12, 1
        // Predicated region
        $region13: #{tpu_custom_call.1} parent=11 // pred_check
          %p137 = pneg %p73
        $region14: #{tpu_custom_call.1} parent=11 // pred_check_branch
          %139 = sbr.rel (%p137) target = $region16
        $region15: #{tpu_custom_call.1} parent=11 // pred_region
          _
        $region16: #{tpu_custom_call.1} parent=11 // pred_fallthru
          _
        // Predicated region
        $region17: #{tpu_custom_call.1} parent=11 // pred_check
          %p140 = pneg %p94
        $region18: #{tpu_custom_call.1} parent=11 // pred_check_branch
          %142 = sbr.rel (%p140) target = $region20
        $region19: #{tpu_custom_call.1} parent=11 // pred_region
          _
        $region20: #{tpu_custom_call.1} parent=11 // pred_fallthru
          _
      $region12: #{tpu_custom_call.1} parent=5 // pred_fallthru
        _
      %p143 = scmp.lt.s32.totalorder %s12, 2
      // Predicated region
      $region21: #{tpu_custom_call.1} parent=5 // pred_check
        %p144 = pneg %p143
      $region22: #{tpu_custom_call.1} parent=5 // pred_check_branch
        %146 = sbr.rel (%p144) target = $region24
      $region23: #{tpu_custom_call.1} parent=5 // pred_region
        // Predicated region
        $region25: #{tpu_custom_call.1} parent=23 // pred_check
          %p147 = pneg %p46
        $region26: #{tpu_custom_call.1} parent=23 // pred_check_branch
          %149 = sbr.rel (%p147) target = $region28
        $region27: #{tpu_custom_call.1} parent=23 // pred_region
          %s150 = smul.u32 19, %s20
          %p151 = scmp.lt.s32.totalorder %s19, 1
          %s152 = scalar_select %p151, %s19, 1
          %p153 = scmp.lt.s32.totalorder %s150, 18
          %s154 = scalar_select %p153, %s150, 18
          %s155 = smul.addr %s154, 3
          %s156 = smul.addr %s152, 57
          %s157 = sadd.s32 %s155, %s156
          %s158 = smul.addr %s157, 4
          %s159 = scalar_lea.vmem %s0, %s158
          %s160 = smul.u32 19, %s20
        $region28: #{tpu_custom_call.1} parent=23 // pred_fallthru
          _
      $region24: #{tpu_custom_call.1} parent=5 // pred_fallthru
        _
      %p161 = scmp.le.s32.totalorder 1, %s12
      %p162 = scmp.lt.s32.totalorder %s12, 3
      %p163 = pnand %p161, %p162
      %p164 = pneg %p163
      // Predicated region
      $region29: #{tpu_custom_call.1} parent=5 // pred_check
        _
      $region30: #{tpu_custom_call.1} parent=5 // pred_check_branch
        %166 = sbr.rel (%p163) target = $region32
      $region31: #{tpu_custom_call.1} parent=5 // pred_region
        %s167 = ssub.s32 %s12, 1
        %s168 = smul.u32 19, %s22
        %p169 = scmp.lt.s32.totalorder %s21, 1
        %s170 = scalar_select %p169, %s21, 1
        %p171 = scmp.lt.s32.totalorder %s168, 18
        %s172 = scalar_select %p171, %s168, 18
        %s173 = smul.addr %s172, 3
        %s174 = smul.addr %s170, 57
        %s175 = sadd.s32 %s173, %s174
        %s176 = smul.addr %s175, 4
        %s177 = scalar_lea.vmem %s0, %s176
        %p178 = pneg %p52
        %p179 = pneg %p49
        %p180 = pneg %p73
        %p181 = pneg %p70
        %p182 = pneg %p94
        %p183 = pneg %p91
        %p184 = pneg %p122
        %p185 = pneg %p119
        %s186 = sand.u32 %s109, 1
        %s187 = scalar_lea.sflag [#allocation4], %s186
        %s188 = sand.u32 %s109, 1
        %s189 = smul.addr %s188, 128
        %s190 = scalar_lea.vmem [#allocation3], %s189
        %s191 = smul.u32 19, %s22
        %p192 = scmp.lt.s32.totalorder %s21, 1
        %s193 = scalar_select %p192, %s21, 1
        %p194 = scmp.lt.s32.totalorder %s191, 18
        %s195 = scalar_select %p194, %s191, 18
        %s196 = smul.addr %s195, 3
        %s197 = smul.addr %s193, 57
        %s198 = sadd.s32 %s196, %s197
        %s199 = smul.addr %s198, 4
        %s200 = scalar_lea.vmem %s0, %s199
        %s201 = smul.u32 19, %s22
        %s202 = smul.u32 16, %s22
        %v204 = vld [vmem:[%s2] sm:$0x1]
        %v206 = vperm.slane %v204, 0
        %vm208 = vcmask 523264
        %209 = vst.msk [vmem:[#allocation2] sm:$0xff] %vm208, %v206
        %210 = vst.msk [vmem:[#allocation2 + $0x8] sm:$0xff] %vm208, %v206
        %211 = vst.msk [vmem:[#allocation2 + $0x10] sm:$0xff] %vm208, %v206
        %212 = vst.msk [vmem:[#allocation2 + $0x18] sm:$0xff] %vm208, %v206
        %213 = vst.msk [vmem:[#allocation2 + $0x20] sm:$0xff] %vm208, %v206
        %214 = vst.msk [vmem:[#allocation2 + $0x28] sm:$0xff] %vm208, %v206
        %215 = vst.msk [vmem:[#allocation2 + $0x30] sm:$0xff] %vm208, %v206
        %216 = vst.msk [vmem:[#allocation2 + $0x38] sm:$0xff] %vm208, %v206
        %217 = vst.msk [vmem:[#allocation2 + $0x40] sm:$0xff] %vm208, %v206
        %218 = vst.msk [vmem:[#allocation2 + $0x48] sm:$0xff] %vm208, %v206
        %219 = vst.msk [vmem:[#allocation2 + $0x50] sm:$0xff] %vm208, %v206
        %220 = vst.msk [vmem:[#allocation2 + $0x58] sm:$0xff] %vm208, %v206
        %221 = vst.msk [vmem:[#allocation2 + $0x60] sm:$0xff] %vm208, %v206
        %222 = vst.msk [vmem:[#allocation2 + $0x68] sm:$0xff] %vm208, %v206
        %223 = vst.msk [vmem:[#allocation2 + $0x70] sm:$0xff] %vm208, %v206
        %224 = vst.msk [vmem:[#allocation2 + $0x78] sm:$0xff] %vm208, %v206
        %225 = vst.msk [vmem:[#allocation2 + $0x80] sm:$0xff] %vm208, %v206
        %226 = vst.msk [vmem:[#allocation2 + $0x88] sm:$0xff] %vm208, %v206
        %227 = vst.msk [vmem:[#allocation2 + $0x90] sm:$0xff] %vm208, %v206
        %228 = vst.msk [vmem:[#allocation2 + $0x98] sm:$0xff] %vm208, %v206
        %229 = vst.msk [vmem:[#allocation2 + $0xa0] sm:$0xff] %vm208, %v206
        %230 = vst.msk [vmem:[#allocation2 + $0xa8] sm:$0xff] %vm208, %v206
        %231 = vst.msk [vmem:[#allocation2 + $0xb0] sm:$0xff] %vm208, %v206
        %232 = vst.msk [vmem:[#allocation2 + $0xb8] sm:$0xff] %vm208, %v206
        %233 = vst.msk [vmem:[#allocation2 + $0xc0] sm:$0xff] %vm208, %v206
        %234 = vst.msk [vmem:[#allocation2 + $0xc8] sm:$0xff] %vm208, %v206
        %235 = vst.msk [vmem:[#allocation2 + $0xd0] sm:$0xff] %vm208, %v206
        %236 = vst.msk [vmem:[#allocation2 + $0xd8] sm:$0xff] %vm208, %v206
        %237 = vst.msk [vmem:[#allocation2 + $0xe0] sm:$0xff] %vm208, %v206
        %238 = vst.msk [vmem:[#allocation2 + $0xe8] sm:$0xff] %vm208, %v206
        %239 = vst.msk [vmem:[#allocation2 + $0xf0] sm:$0xff] %vm208, %v206
        %240 = vst.msk [vmem:[#allocation2 + $0xf8] sm:$0xff] %vm208, %v206
        %v241 = vld [vmem:[%s1] sm:$0xf]
        %v242 = vld [vmem:[%s1 + $0x4] sm:$0x3]
        %v243 = vld [vmem:[%s200] sm:$0xf]
        %v244 = vld [vmem:[%s200 + $0x4] sm:$0xf]
        %v245 = vld [vmem:[%s200 + $0xc] sm:$0xf]
        %v246 = vld [vmem:[%s200 + $0x10] sm:$0xf]
        %v247 = vld [vmem:[%s200 + $0x18] sm:$0xf]
        %v248 = vld [vmem:[%s200 + $0x1c] sm:$0xf]
        %v249 = vld [vmem:[%s200 + $0x24] sm:$0xf]
        %v250 = vld [vmem:[%s200 + $0x28] sm:$0xf]
        %v251 = vld [vmem:[%s200 + $0x30] sm:$0xf]
        %v252 = vld [vmem:[%s200 + $0x34] sm:$0xf]
        %v253 = vld [vmem:[%s200 + $0x3c] sm:$0xf]
        %v254 = vld [vmem:[%s200 + $0x40] sm:$0xf]
        %v255 = vld [vmem:[%s200 + $0x48] sm:$0xf]
        %v256 = vld [vmem:[%s200 + $0x4c] sm:$0xf]
        %v257 = vld [vmem:[%s200 + $0x54] sm:$0xf]
        %v258 = vld [vmem:[%s200 + $0x58] sm:$0xf]
        %v259 = vld [vmem:[%s200 + $0x60] sm:$0xf]
        %v260 = vld [vmem:[%s200 + $0x64] sm:$0xf]
        %v261 = vld [vmem:[%s200 + $0x6c] sm:$0xf]
        %v262 = vld [vmem:[%s200 + $0x70] sm:$0xf]
        %v263 = vld [vmem:[%s200 + $0x78] sm:$0xf]
        %v264 = vld [vmem:[%s200 + $0x7c] sm:$0xf]
        %v265 = vld [vmem:[%s200 + $0x84] sm:$0xf]
        %v266 = vld [vmem:[%s200 + $0x88] sm:$0xf]
        %v267 = vld [vmem:[%s200 + $0x90] sm:$0xf]
        %v268 = vld [vmem:[%s200 + $0x94] sm:$0xf]
        %v269 = vld [vmem:[%s200 + $0x9c] sm:$0xf]
        %v270 = vld [vmem:[%s200 + $0xa0] sm:$0xf]
        %v271 = vld [vmem:[%s200 + $0xa8] sm:$0xf]
        %v272 = vld [vmem:[%s200 + $0xac] sm:$0xf]
        %v273 = vld [vmem:[%s200 + $0xb4] sm:$0xf]
        %v274 = vld [vmem:[%s200 + $0xb8] sm:$0xf]
        %v275 = vld [vmem:[#allocation2] sm:$0xff]
        %v276 = vld [vmem:[#allocation2 + $0x8] sm:$0xff]
        %v277 = vld [vmem:[#allocation2 + $0x10] sm:$0xff]
        %v278 = vld [vmem:[#allocation2 + $0x18] sm:$0xff]
        %v279 = vld [vmem:[#allocation2 + $0x20] sm:$0xff]
        %v280 = vld [vmem:[#allocation2 + $0x28] sm:$0xff]
        %v281 = vld [vmem:[#allocation2 + $0x30] sm:$0xff]
        %v282 = vld [vmem:[#allocation2 + $0x38] sm:$0xff]
        %v283 = vld [vmem:[#allocation2 + $0x40] sm:$0xff]
        %v284 = vld [vmem:[#allocation2 + $0x48] sm:$0xff]
        %v285 = vld [vmem:[#allocation2 + $0x50] sm:$0xff]
        %v286 = vld [vmem:[#allocation2 + $0x58] sm:$0xff]
        %v287 = vld [vmem:[#allocation2 + $0x60] sm:$0xff]
        %v288 = vld [vmem:[#allocation2 + $0x68] sm:$0xff]
        %v289 = vld [vmem:[#allocation2 + $0x70] sm:$0xff]
        %v290 = vld [vmem:[#allocation2 + $0x78] sm:$0xff]
        %v291 = vld [vmem:[#allocation2 + $0x80] sm:$0xff]
        %v292 = vld [vmem:[#allocation2 + $0x88] sm:$0xff]
        %v293 = vld [vmem:[#allocation2 + $0x90] sm:$0xff]
        %v294 = vld [vmem:[#allocation2 + $0x98] sm:$0xff]
        %v295 = vld [vmem:[#allocation2 + $0xa0] sm:$0xff]
        %v296 = vld [vmem:[#allocation2 + $0xa8] sm:$0xff]
        %v297 = vld [vmem:[#allocation2 + $0xb0] sm:$0xff]
        %v298 = vld [vmem:[#allocation2 + $0xb8] sm:$0xff]
        %v299 = vld [vmem:[#allocation2 + $0xc0] sm:$0xff]
        %v300 = vld [vmem:[#allocation2 + $0xc8] sm:$0xff]
        %v301 = vld [vmem:[#allocation2 + $0xd0] sm:$0xff]
        %v302 = vld [vmem:[#allocation2 + $0xd8] sm:$0xff]
        %v303 = vld [vmem:[#allocation2 + $0xe0] sm:$0xff]
        %v304 = vld [vmem:[#allocation2 + $0xe8] sm:$0xff]
        %v305 = vld [vmem:[#allocation2 + $0xf0] sm:$0xff]
        %v306 = vld [vmem:[#allocation2 + $0xf8] sm:$0xff]
        %v339 = vunpack.c.l.b16 %v243
        %v340 = vunpack.c.l.b16 %v244
        %v341 = vunpack.c.l.b16 %v245
        %v342 = vunpack.c.l.b16 %v246
        %v343 = vunpack.c.l.b16 %v247
        %v344 = vunpack.c.l.b16 %v248
        %v345 = vunpack.c.l.b16 %v249
        %v346 = vunpack.c.l.b16 %v250
        %v347 = vunpack.c.l.b16 %v251
        %v348 = vunpack.c.l.b16 %v252
        %v349 = vunpack.c.l.b16 %v253
        %v350 = vunpack.c.l.b16 %v254
        %v351 = vunpack.c.l.b16 %v255
        %v352 = vunpack.c.l.b16 %v256
        %v353 = vunpack.c.l.b16 %v257
        %v354 = vunpack.c.l.b16 %v258
        %v355 = vunpack.c.l.b16 %v259
        %v356 = vunpack.c.l.b16 %v260
        %v357 = vunpack.c.l.b16 %v261
        %v358 = vunpack.c.l.b16 %v262
        %v359 = vunpack.c.l.b16 %v263
        %v360 = vunpack.c.l.b16 %v264
        %v361 = vunpack.c.l.b16 %v265
        %v362 = vunpack.c.l.b16 %v266
        %v363 = vunpack.c.l.b16 %v267
        %v364 = vunpack.c.l.b16 %v268
        %v365 = vunpack.c.l.b16 %v269
        %v366 = vunpack.c.l.b16 %v270
        %v367 = vunpack.c.l.b16 %v271
        %v368 = vunpack.c.l.b16 %v272
        %v369 = vunpack.c.l.b16 %v273
        %v370 = vunpack.c.l.b16 %v274
        %v371 = vpack.c.b16 %v340, %v339
        %v372 = vpack.c.b16 %v342, %v341
        %v373 = vpack.c.b16 %v344, %v343
        %v374 = vpack.c.b16 %v346, %v345
        %v375 = vpack.c.b16 %v348, %v347
        %v376 = vpack.c.b16 %v350, %v349
        %v377 = vpack.c.b16 %v352, %v351
        %v378 = vpack.c.b16 %v354, %v353
        %v379 = vpack.c.b16 %v356, %v355
        %v380 = vpack.c.b16 %v358, %v357
        %v381 = vpack.c.b16 %v360, %v359
        %v382 = vpack.c.b16 %v362, %v361
        %v383 = vpack.c.b16 %v364, %v363
        %v384 = vpack.c.b16 %v366, %v365
        %v385 = vpack.c.b16 %v368, %v367
        %v386 = vpack.c.b16 %v370, %v369
        %v389 = vunpack.c.l.b16 %v241
        %v390 = vunpack.c.l.b16 %v242
        %v391 = vpack.c.b16 %v390, %v389
        %vm392 = vcmask 97280
        %v394 = vsel %vm392, %v371, 0
        %v397 = vsel %vm392, %v372, 0
        %v400 = vsel %vm392, %v373, 0
        %v403 = vsel %vm392, %v374, 0
        %v406 = vsel %vm392, %v375, 0
        %v409 = vsel %vm392, %v376, 0
        %v412 = vsel %vm392, %v377, 0
        %v415 = vsel %vm392, %v378, 0
        %v418 = vsel %vm392, %v379, 0
        %v421 = vsel %vm392, %v380, 0
        %v424 = vsel %vm392, %v381, 0
        %v427 = vsel %vm392, %v382, 0
        %v430 = vsel %vm392, %v383, 0
        %v433 = vsel %vm392, %v384, 0
        %v436 = vsel %vm392, %v385, 0
        %v439 = vsel %vm392, %v386, 0
        %vm441 = vcmask 1045504
        %v443 = vsel %vm441, %v391, 0
        %445 = vmatpush.bf16.msra.mxu0 0
        %446 = vmatpush.bf16.msra.mxu0 0
        %447 = vmatpush.bf16.msra.mxu0 0
        %448 = vmatpush.bf16.msra.mxu0 0
        %449 = vmatpush.bf16.msra.mxu0 0
        %450 = vmatpush.bf16.msra.mxu0 0
        %451 = vmatpush.bf16.msra.mxu0 0
        %452 = vmatpush.bf16.msra.mxu0 %v443
        %453 = vmatmul.bf16.gmra.mxu0 %v394
        %v454 = vpop.f32.mrf.mxu0
        %v455 = vadd.f32 0.0, %v454
        %v456 = vpop.f32.mrf.mxu0
        %v457 = vadd.f32 0.0, %v456
        %458 = vmatmul.bf16.gmra.mxu0 %v397
        %v459 = vpop.f32.mrf.mxu0
        %v460 = vadd.f32 0.0, %v459
        %v461 = vpop.f32.mrf.mxu0
        %v462 = vadd.f32 0.0, %v461
        %463 = vmatmul.bf16.gmra.mxu0 %v400
        %v464 = vpop.f32.mrf.mxu0
        %v465 = vadd.f32 0.0, %v464
        %v466 = vpop.f32.mrf.mxu0
        %v467 = vadd.f32 0.0, %v466
        %468 = vmatmul.bf16.gmra.mxu0 %v403
        %v469 = vpop.f32.mrf.mxu0
        %v470 = vadd.f32 0.0, %v469
        %v471 = vpop.f32.mrf.mxu0
        %v472 = vadd.f32 0.0, %v471
        %473 = vmatmul.bf16.gmra.mxu0 %v406
        %v474 = vpop.f32.mrf.mxu0
        %v475 = vadd.f32 0.0, %v474
        %v476 = vpop.f32.mrf.mxu0
        %v477 = vadd.f32 0.0, %v476
        %478 = vmatmul.bf16.gmra.mxu0 %v409
        %v479 = vpop.f32.mrf.mxu0
        %v480 = vadd.f32 0.0, %v479
        %v481 = vpop.f32.mrf.mxu0
        %v482 = vadd.f32 0.0, %v481
        %483 = vmatmul.bf16.gmra.mxu0 %v412
        %v484 = vpop.f32.mrf.mxu0
        %v485 = vadd.f32 0.0, %v484
        %v486 = vpop.f32.mrf.mxu0
        %v487 = vadd.f32 0.0, %v486
        %488 = vmatmul.bf16.gmra.mxu0 %v415
        %v489 = vpop.f32.mrf.mxu0
        %v490 = vadd.f32 0.0, %v489
        %v491 = vpop.f32.mrf.mxu0
        %v492 = vadd.f32 0.0, %v491
        %493 = vmatmul.bf16.gmra.mxu0 %v418
        %v494 = vpop.f32.mrf.mxu0
        %v495 = vadd.f32 0.0, %v494
        %v496 = vpop.f32.mrf.mxu0
        %v497 = vadd.f32 0.0, %v496
        %498 = vmatmul.bf16.gmra.mxu0 %v421
        %v499 = vpop.f32.mrf.mxu0
        %v500 = vadd.f32 0.0, %v499
        %v501 = vpop.f32.mrf.mxu0
        %v502 = vadd.f32 0.0, %v501
        %503 = vmatmul.bf16.gmra.mxu0 %v424
        %v504 = vpop.f32.mrf.mxu0
        %v505 = vadd.f32 0.0, %v504
        %v506 = vpop.f32.mrf.mxu0
        %v507 = vadd.f32 0.0, %v506
        %508 = vmatmul.bf16.gmra.mxu0 %v427
        %v509 = vpop.f32.mrf.mxu0
        %v510 = vadd.f32 0.0, %v509
        %v511 = vpop.f32.mrf.mxu0
        %v512 = vadd.f32 0.0, %v511
        %513 = vmatmul.bf16.gmra.mxu0 %v430
        %v514 = vpop.f32.mrf.mxu0
        %v515 = vadd.f32 0.0, %v514
        %v516 = vpop.f32.mrf.mxu0
        %v517 = vadd.f32 0.0, %v516
        %518 = vmatmul.bf16.gmra.mxu0 %v433
        %v519 = vpop.f32.mrf.mxu0
        %v520 = vadd.f32 0.0, %v519
        %v521 = vpop.f32.mrf.mxu0
        %v522 = vadd.f32 0.0, %v521
        %523 = vmatmul.bf16.gmra.mxu0 %v436
        %v524 = vpop.f32.mrf.mxu0
        %v525 = vadd.f32 0.0, %v524
        %v526 = vpop.f32.mrf.mxu0
        %v527 = vadd.f32 0.0, %v526
        %528 = vmatmul.bf16.gmra.mxu0 %v439
        %v529 = vpop.f32.mrf.mxu0
        %v530 = vadd.f32 0.0, %v529
        %v531 = vpop.f32.mrf.mxu0
        %v532 = vadd.f32 0.0, %v531
        %533 = vdwg.mxu0
        %v534 = vadd.f32 %v275, %v455
        %v535 = vadd.f32 %v276, %v457
        %v536 = vadd.f32 %v277, %v460
        %v537 = vadd.f32 %v278, %v462
        %v538 = vadd.f32 %v279, %v465
        %v539 = vadd.f32 %v280, %v467
        %v540 = vadd.f32 %v281, %v470
        %v541 = vadd.f32 %v282, %v472
        %v542 = vadd.f32 %v283, %v475
        %v543 = vadd.f32 %v284, %v477
        %v544 = vadd.f32 %v285, %v480
        %v545 = vadd.f32 %v286, %v482
        %v546 = vadd.f32 %v287, %v485
        %v547 = vadd.f32 %v288, %v487
        %v548 = vadd.f32 %v289, %v490
        %v549 = vadd.f32 %v290, %v492
        %v550 = vadd.f32 %v291, %v495
        %v551 = vadd.f32 %v292, %v497
        %v552 = vadd.f32 %v293, %v500
        %v553 = vadd.f32 %v294, %v502
        %v554 = vadd.f32 %v295, %v505
        %v555 = vadd.f32 %v296, %v507
        %v556 = vadd.f32 %v297, %v510
        %v557 = vadd.f32 %v298, %v512
        %v558 = vadd.f32 %v299, %v515
        %v559 = vadd.f32 %v300, %v517
        %v560 = vadd.f32 %v301, %v520
        %v561 = vadd.f32 %v302, %v522
        %v562 = vadd.f32 %v303, %v525
        %v563 = vadd.f32 %v304, %v527
        %v564 = vadd.f32 %v305, %v530
        %v565 = vadd.f32 %v306, %v532
        %566 = vst.msk [vmem:[#allocation2] sm:$0xff] %vm208, %v534
        %567 = vst.msk [vmem:[#allocation2 + $0x8] sm:$0xff] %vm208, %v535
        %568 = vst.msk [vmem:[#allocation2 + $0x10] sm:$0xff] %vm208, %v536
        %569 = vst.msk [vmem:[#allocation2 + $0x18] sm:$0xff] %vm208, %v537
        %570 = vst.msk [vmem:[#allocation2 + $0x20] sm:$0xff] %vm208, %v538
        %571 = vst.msk [vmem:[#allocation2 + $0x28] sm:$0xff] %vm208, %v539
        %572 = vst.msk [vmem:[#allocation2 + $0x30] sm:$0xff] %vm208, %v540
        %573 = vst.msk [vmem:[#allocation2 + $0x38] sm:$0xff] %vm208, %v541
        %574 = vst.msk [vmem:[#allocation2 + $0x40] sm:$0xff] %vm208, %v542
        %575 = vst.msk [vmem:[#allocation2 + $0x48] sm:$0xff] %vm208, %v543
        %576 = vst.msk [vmem:[#allocation2 + $0x50] sm:$0xff] %vm208, %v544
        %577 = vst.msk [vmem:[#allocation2 + $0x58] sm:$0xff] %vm208, %v545
        %578 = vst.msk [vmem:[#allocation2 + $0x60] sm:$0xff] %vm208, %v546
        %579 = vst.msk [vmem:[#allocation2 + $0x68] sm:$0xff] %vm208, %v547
        %580 = vst.msk [vmem:[#allocation2 + $0x70] sm:$0xff] %vm208, %v548
        %581 = vst.msk [vmem:[#allocation2 + $0x78] sm:$0xff] %vm208, %v549
        %582 = vst.msk [vmem:[#allocation2 + $0x80] sm:$0xff] %vm208, %v550
        %583 = vst.msk [vmem:[#allocation2 + $0x88] sm:$0xff] %vm208, %v551
        %584 = vst.msk [vmem:[#allocation2 + $0x90] sm:$0xff] %vm208, %v552
        %585 = vst.msk [vmem:[#allocation2 + $0x98] sm:$0xff] %vm208, %v553
        %586 = vst.msk [vmem:[#allocation2 + $0xa0] sm:$0xff] %vm208, %v554
        %587 = vst.msk [vmem:[#allocation2 + $0xa8] sm:$0xff] %vm208, %v555
        %588 = vst.msk [vmem:[#allocation2 + $0xb0] sm:$0xff] %vm208, %v556
        %589 = vst.msk [vmem:[#allocation2 + $0xb8] sm:$0xff] %vm208, %v557
        %590 = vst.msk [vmem:[#allocation2 + $0xc0] sm:$0xff] %vm208, %v558
        %591 = vst.msk [vmem:[#allocation2 + $0xc8] sm:$0xff] %vm208, %v559
        %592 = vst.msk [vmem:[#allocation2 + $0xd0] sm:$0xff] %vm208, %v560
        %593 = vst.msk [vmem:[#allocation2 + $0xd8] sm:$0xff] %vm208, %v561
        %594 = vst.msk [vmem:[#allocation2 + $0xe0] sm:$0xff] %vm208, %v562
        %595 = vst.msk [vmem:[#allocation2 + $0xe8] sm:$0xff] %vm208, %v563
        %596 = vst.msk [vmem:[#allocation2 + $0xf0] sm:$0xff] %vm208, %v564
        %597 = vst.msk [vmem:[#allocation2 + $0xf8] sm:$0xff] %vm208, %v565
        %s598 = scalar_lea.vmem %s1, 8
        %v599 = vld [vmem:[%s598] sm:$0xf]
        %v600 = vld [vmem:[%s598 + $0x4] sm:$0x3]
        %v601 = vld [vmem:[%s200] sm:$0xf]
        %v602 = vld [vmem:[%s200 + $0x4] sm:$0xf]
        %v603 = vld [vmem:[%s200 + $0x8] sm:$0x1]
        %v604 = vld [vmem:[%s200 + $0xc] sm:$0xf]
        %v605 = vld [vmem:[%s200 + $0x10] sm:$0xf]
        %v606 = vld [vmem:[%s200 + $0x14] sm:$0x1]
        %v607 = vld [vmem:[%s200 + $0x18] sm:$0xf]
        %v608 = vld [vmem:[%s200 + $0x1c] sm:$0xf]
        %v609 = vld [vmem:[%s200 + $0x20] sm:$0x1]
        %v610 = vld [vmem:[%s200 + $0x24] sm:$0xf]
        %v611 = vld [vmem:[%s200 + $0x28] sm:$0xf]
        %v612 = vld [vmem:[%s200 + $0x2c] sm:$0x1]
        %v613 = vld [vmem:[%s200 + $0x30] sm:$0xf]
        %v614 = vld [vmem:[%s200 + $0x34] sm:$0xf]
        %v615 = vld [vmem:[%s200 + $0x38] sm:$0x1]
        %v616 = vld [vmem:[%s200 + $0x3c] sm:$0xf]
        %v617 = vld [vmem:[%s200 + $0x40] sm:$0xf]
        %v618 = vld [vmem:[%s200 + $0x44] sm:$0x1]
        %v619 = vld [vmem:[%s200 + $0x48] sm:$0xf]
        %v620 = vld [vmem:[%s200 + $0x4c] sm:$0xf]
        %v621 = vld [vmem:[%s200 + $0x50] sm:$0x1]
        %v622 = vld [vmem:[%s200 + $0x54] sm:$0xf]
        %v623 = vld [vmem:[%s200 + $0x58] sm:$0xf]
        %v624 = vld [vmem:[%s200 + $0x5c] sm:$0x1]
        %v625 = vld [vmem:[%s200 + $0x60] sm:$0xf]
        %v626 = vld [vmem:[%s200 + $0x64] sm:$0xf]
        %v627 = vld [vmem:[%s200 + $0x68] sm:$0x1]
        %v628 = vld [vmem:[%s200 + $0x6c] sm:$0xf]
        %v629 = vld [vmem:[%s200 + $0x70] sm:$0xf]
        %v630 = vld [vmem:[%s200 + $0x74] sm:$0x1]
        %v631 = vld [vmem:[%s200 + $0x78] sm:$0xf]
        %v632 = vld [vmem:[%s200 + $0x7c] sm:$0xf]
        %v633 = vld [vmem:[%s200 + $0x80] sm:$0x1]
        %v634 = vld [vmem:[%s200 + $0x84] sm:$0xf]
        %v635 = vld [vmem:[%s200 + $0x88] sm:$0xf]
        %v636 = vld [vmem:[%s200 + $0x8c] sm:$0x1]
        %v637 = vld [vmem:[%s200 + $0x90] sm:$0xf]
        %v638 = vld [vmem:[%s200 + $0x94] sm:$0xf]
        %v639 = vld [vmem:[%s200 + $0x98] sm:$0x1]
        %v640 = vld [vmem:[%s200 + $0x9c] sm:$0xf]
        %v641 = vld [vmem:[%s200 + $0xa0] sm:$0xf]
        %v642 = vld [vmem:[%s200 + $0xa4] sm:$0x1]
        %v643 = vld [vmem:[%s200 + $0xa8] sm:$0xf]
        %v644 = vld [vmem:[%s200 + $0xac] sm:$0xf]
        %v645 = vld [vmem:[%s200 + $0xb0] sm:$0x1]
        %v646 = vld [vmem:[%s200 + $0xb4] sm:$0xf]
        %v647 = vld [vmem:[%s200 + $0xb8] sm:$0xf]
        %v648 = vld [vmem:[%s200 + $0xbc] sm:$0x1]
        %vm649 = vsmask.f32 3328
        %vm650 = vsmask.f32 7440
        %vm651 = vmor %vm649, %vm650
        %v653 = vshrl.u32 %v601, 16
        %v655 = vrot.slane %v653, 4
        %v656 = vshll.u32 %v601, 16
        %v658 = vrot.slane %v656, 5
        %v659 = vor.u32 %v655, %v658
        %v660 = vrot.slane %v659, 4
        %v662 = vshll.u32 %v602, 16
        %v664 = vrot.slane %v662, 5
        %v665 = vsel %vm651, %v660, %v664
        %v666 = vshrl.u32 %v602, 16
        %v668 = vrot.slane %v666, 4
        %v669 = vor.u32 %v668, %v664
        %v670 = vrot.slane %v669, 4
        %v672 = vshll.u32 %v603, 16
        %v674 = vrot.slane %v672, 5
        %v675 = vsel %vm651, %v670, %v674
        %v677 = vshrl.u32 %v604, 16
        %v679 = vrot.slane %v677, 4
        %v680 = vshll.u32 %v604, 16
        %v682 = vrot.slane %v680, 5
        %v683 = vor.u32 %v679, %v682
        %v684 = vrot.slane %v683, 4
        %v686 = vshll.u32 %v605, 16
        %v688 = vrot.slane %v686, 5
        %v689 = vsel %vm651, %v684, %v688
        %v690 = vshrl.u32 %v605, 16
        %v692 = vrot.slane %v690, 4
        %v693 = vor.u32 %v692, %v688
        %v694 = vrot.slane %v693, 4
        %v696 = vshll.u32 %v606, 16
        %v698 = vrot.slane %v696, 5
        %v699 = vsel %vm651, %v694, %v698
        %v701 = vshrl.u32 %v607, 16
        %v703 = vrot.slane %v701, 4
        %v704 = vshll.u32 %v607, 16
        %v706 = vrot.slane %v704, 5
        %v707 = vor.u32 %v703, %v706
        %v708 = vrot.slane %v707, 4
        %v710 = vshll.u32 %v608, 16
        %v712 = vrot.slane %v710, 5
        %v713 = vsel %vm651, %v708, %v712
        %v714 = vshrl.u32 %v608, 16
        %v716 = vrot.slane %v714, 4
        %v717 = vor.u32 %v716, %v712
        %v718 = vrot.slane %v717, 4
        %v720 = vshll.u32 %v609, 16
        %v722 = vrot.slane %v720, 5
        %v723 = vsel %vm651, %v718, %v722
        %v725 = vshrl.u32 %v610, 16
        %v727 = vrot.slane %v725, 4
        %v728 = vshll.u32 %v610, 16
        %v730 = vrot.slane %v728, 5
        %v731 = vor.u32 %v727, %v730
        %v732 = vrot.slane %v731, 4
        %v734 = vshll.u32 %v611, 16
        %v736 = vrot.slane %v734, 5
        %v737 = vsel %vm651, %v732, %v736
        %v738 = vshrl.u32 %v611, 16
        %v740 = vrot.slane %v738, 4
        %v741 = vor.u32 %v740, %v736
        %v742 = vrot.slane %v741, 4
        %v744 = vshll.u32 %v612, 16
        %v746 = vrot.slane %v744, 5
        %v747 = vsel %vm651, %v742, %v746
        %v749 = vshrl.u32 %v613, 16
        %v751 = vrot.slane %v749, 4
        %v752 = vshll.u32 %v613, 16
        %v754 = vrot.slane %v752, 5
        %v755 = vor.u32 %v751, %v754
        %v756 = vrot.slane %v755, 4
        %v758 = vshll.u32 %v614, 16
        %v760 = vrot.slane %v758, 5
        %v761 = vsel %vm651, %v756, %v760
        %v762 = vshrl.u32 %v614, 16
        %v764 = vrot.slane %v762, 4
        %v765 = vor.u32 %v764, %v760
        %v766 = vrot.slane %v765, 4
        %v768 = vshll.u32 %v615, 16
        %v770 = vrot.slane %v768, 5
        %v771 = vsel %vm651, %v766, %v770
        %v773 = vshrl.u32 %v616, 16
        %v775 = vrot.slane %v773, 4
        %v776 = vshll.u32 %v616, 16
        %v778 = vrot.slane %v776, 5
        %v779 = vor.u32 %v775, %v778
        %v780 = vrot.slane %v779, 4
        %v782 = vshll.u32 %v617, 16
        %v784 = vrot.slane %v782, 5
        %v785 = vsel %vm651, %v780, %v784
        %v786 = vshrl.u32 %v617, 16
        %v788 = vrot.slane %v786, 4
        %v789 = vor.u32 %v788, %v784
        %v790 = vrot.slane %v789, 4
        %v792 = vshll.u32 %v618, 16
        %v794 = vrot.slane %v792, 5
        %v795 = vsel %vm651, %v790, %v794
        %v797 = vshrl.u32 %v619, 16
        %v799 = vrot.slane %v797, 4
        %v800 = vshll.u32 %v619, 16
        %v802 = vrot.slane %v800, 5
        %v803 = vor.u32 %v799, %v802
        %v804 = vrot.slane %v803, 4
        %v806 = vshll.u32 %v620, 16
        %v808 = vrot.slane %v806, 5
        %v809 = vsel %vm651, %v804, %v808
        %v810 = vshrl.u32 %v620, 16
        %v812 = vrot.slane %v810, 4
        %v813 = vor.u32 %v812, %v808
        %v814 = vrot.slane %v813, 4
        %v816 = vshll.u32 %v621, 16
        %v818 = vrot.slane %v816, 5
        %v819 = vsel %vm651, %v814, %v818
        %v821 = vshrl.u32 %v622, 16
        %v823 = vrot.slane %v821, 4
        %v824 = vshll.u32 %v622, 16
        %v826 = vrot.slane %v824, 5
        %v827 = vor.u32 %v823, %v826
        %v828 = vrot.slane %v827, 4
        %v830 = vshll.u32 %v623, 16
        %v832 = vrot.slane %v830, 5
        %v833 = vsel %vm651, %v828, %v832
        %v834 = vshrl.u32 %v623, 16
        %v836 = vrot.slane %v834, 4
        %v837 = vor.u32 %v836, %v832
        %v838 = vrot.slane %v837, 4
        %v840 = vshll.u32 %v624, 16
        %v842 = vrot.slane %v840, 5
        %v843 = vsel %vm651, %v838, %v842
        %v845 = vshrl.u32 %v625, 16
        %v847 = vrot.slane %v845, 4
        %v848 = vshll.u32 %v625, 16
        %v850 = vrot.slane %v848, 5
        %v851 = vor.u32 %v847, %v850
        %v852 = vrot.slane %v851, 4
        %v854 = vshll.u32 %v626, 16
        %v856 = vrot.slane %v854, 5
        %v857 = vsel %vm651, %v852, %v856
        %v858 = vshrl.u32 %v626, 16
        %v860 = vrot.slane %v858, 4
        %v861 = vor.u32 %v860, %v856
        %v862 = vrot.slane %v861, 4
        %v864 = vshll.u32 %v627, 16
        %v866 = vrot.slane %v864, 5
        %v867 = vsel %vm651, %v862, %v866
        %v869 = vshrl.u32 %v628, 16
        %v871 = vrot.slane %v869, 4
        %v872 = vshll.u32 %v628, 16
        %v874 = vrot.slane %v872, 5
        %v875 = vor.u32 %v871, %v874
        %v876 = vrot.slane %v875, 4
        %v878 = vshll.u32 %v629, 16
        %v880 = vrot.slane %v878, 5
        %v881 = vsel %vm651, %v876, %v880
        %v882 = vshrl.u32 %v629, 16
        %v884 = vrot.slane %v882, 4
        %v885 = vor.u32 %v884, %v880
        %v886 = vrot.slane %v885, 4
        %v888 = vshll.u32 %v630, 16
        %v890 = vrot.slane %v888, 5
        %v891 = vsel %vm651, %v886, %v890
        %v893 = vshrl.u32 %v631, 16
        %v895 = vrot.slane %v893, 4
        %v896 = vshll.u32 %v631, 16
        %v898 = vrot.slane %v896, 5
        %v899 = vor.u32 %v895, %v898
        %v900 = vrot.slane %v899, 4
        %v902 = vshll.u32 %v632, 16
        %v904 = vrot.slane %v902, 5
        %v905 = vsel %vm651, %v900, %v904
        %v906 = vshrl.u32 %v632, 16
        %v908 = vrot.slane %v906, 4
        %v909 = vor.u32 %v908, %v904
        %v910 = vrot.slane %v909, 4
        %v912 = vshll.u32 %v633, 16
        %v914 = vrot.slane %v912, 5
        %v915 = vsel %vm651, %v910, %v914
        %v917 = vshrl.u32 %v634, 16
        %v919 = vrot.slane %v917, 4
        %v920 = vshll.u32 %v634, 16
        %v922 = vrot.slane %v920, 5
        %v923 = vor.u32 %v919, %v922
        %v924 = vrot.slane %v923, 4
        %v926 = vshll.u32 %v635, 16
        %v928 = vrot.slane %v926, 5
        %v929 = vsel %vm651, %v924, %v928
        %v930 = vshrl.u32 %v635, 16
        %v932 = vrot.slane %v930, 4
        %v933 = vor.u32 %v932, %v928
        %v934 = vrot.slane %v933, 4
        %v936 = vshll.u32 %v636, 16
        %v938 = vrot.slane %v936, 5
        %v939 = vsel %vm651, %v934, %v938
        %v941 = vshrl.u32 %v637, 16
        %v943 = vrot.slane %v941, 4
        %v944 = vshll.u32 %v637, 16
        %v946 = vrot.slane %v944, 5
        %v947 = vor.u32 %v943, %v946
        %v948 = vrot.slane %v947, 4
        %v950 = vshll.u32 %v638, 16
        %v952 = vrot.slane %v950, 5
        %v953 = vsel %vm651, %v948, %v952
        %v954 = vshrl.u32 %v638, 16
        %v956 = vrot.slane %v954, 4
        %v957 = vor.u32 %v956, %v952
        %v958 = vrot.slane %v957, 4
        %v960 = vshll.u32 %v639, 16
        %v962 = vrot.slane %v960, 5
        %v963 = vsel %vm651, %v958, %v962
        %v965 = vshrl.u32 %v640, 16
        %v967 = vrot.slane %v965, 4
        %v968 = vshll.u32 %v640, 16
        %v970 = vrot.slane %v968, 5
        %v971 = vor.u32 %v967, %v970
        %v972 = vrot.slane %v971, 4
        %v974 = vshll.u32 %v641, 16
        %v976 = vrot.slane %v974, 5
        %v977 = vsel %vm651, %v972, %v976
        %v978 = vshrl.u32 %v641, 16
        %v980 = vrot.slane %v978, 4
        %v981 = vor.u32 %v980, %v976
        %v982 = vrot.slane %v981, 4
        %v984 = vshll.u32 %v642, 16
        %v986 = vrot.slane %v984, 5
        %v987 = vsel %vm651, %v982, %v986
        %v989 = vshrl.u32 %v643, 16
        %v991 = vrot.slane %v989, 4
        %v992 = vshll.u32 %v643, 16
        %v994 = vrot.slane %v992, 5
        %v995 = vor.u32 %v991, %v994
        %v996 = vrot.slane %v995, 4
        %v998 = vshll.u32 %v644, 16
        %v1000 = vrot.slane %v998, 5
        %v1001 = vsel %vm651, %v996, %v1000
        %v1002 = vshrl.u32 %v644, 16
        %v1004 = vrot.slane %v1002, 4
        %v1005 = vor.u32 %v1004, %v1000
        %v1006 = vrot.slane %v1005, 4
        %v1008 = vshll.u32 %v645, 16
        %v1010 = vrot.slane %v1008, 5
        %v1011 = vsel %vm651, %v1006, %v1010
        %v1013 = vshrl.u32 %v646, 16
        %v1015 = vrot.slane %v1013, 4
        %v1016 = vshll.u32 %v646, 16
        %v1018 = vrot.slane %v1016, 5
        %v1019 = vor.u32 %v1015, %v1018
        %v1020 = vrot.slane %v1019, 4
        %v1022 = vshll.u32 %v647, 16
        %v1024 = vrot.slane %v1022, 5
        %v1025 = vsel %vm651, %v1020, %v1024
        %v1026 = vshrl.u32 %v647, 16
        %v1028 = vrot.slane %v1026, 4
        %v1029 = vor.u32 %v1028, %v1024
        %v1030 = vrot.slane %v1029, 4
        %v1032 = vshll.u32 %v648, 16
        %v1034 = vrot.slane %v1032, 5
        %v1035 = vsel %vm651, %v1030, %v1034
        %v1036 = vld [vmem:[#allocation2] sm:$0xff]
        %v1037 = vld [vmem:[#allocation2 + $0x8] sm:$0xff]
        %v1038 = vld [vmem:[#allocation2 + $0x10] sm:$0xff]
        %v1039 = vld [vmem:[#allocation2 + $0x18] sm:$0xff]
        %v1040 = vld [vmem:[#allocation2 + $0x20] sm:$0xff]
        %v1041 = vld [vmem:[#allocation2 + $0x28] sm:$0xff]
        %v1042 = vld [vmem:[#allocation2 + $0x30] sm:$0xff]
        %v1043 = vld [vmem:[#allocation2 + $0x38] sm:$0xff]
        %v1044 = vld [vmem:[#allocation2 + $0x40] sm:$0xff]
        %v1045 = vld [vmem:[#allocation2 + $0x48] sm:$0xff]
        %v1046 = vld [vmem:[#allocation2 + $0x50] sm:$0xff]
        %v1047 = vld [vmem:[#allocation2 + $0x58] sm:$0xff]
        %v1048 = vld [vmem:[#allocation2 + $0x60] sm:$0xff]
        %v1049 = vld [vmem:[#allocation2 + $0x68] sm:$0xff]
        %v1050 = vld [vmem:[#allocation2 + $0x70] sm:$0xff]
        %v1051 = vld [vmem:[#allocation2 + $0x78] sm:$0xff]
        %v1052 = vld [vmem:[#allocation2 + $0x80] sm:$0xff]
        %v1053 = vld [vmem:[#allocation2 + $0x88] sm:$0xff]
        %v1054 = vld [vmem:[#allocation2 + $0x90] sm:$0xff]
        %v1055 = vld [vmem:[#allocation2 + $0x98] sm:$0xff]
        %v1056 = vld [vmem:[#allocation2 + $0xa0] sm:$0xff]
        %v1057 = vld [vmem:[#allocation2 + $0xa8] sm:$0xff]
        %v1058 = vld [vmem:[#allocation2 + $0xb0] sm:$0xff]
        %v1059 = vld [vmem:[#allocation2 + $0xb8] sm:$0xff]
        %v1060 = vld [vmem:[#allocation2 + $0xc0] sm:$0xff]
        %v1061 = vld [vmem:[#allocation2 + $0xc8] sm:$0xff]
        %v1062 = vld [vmem:[#allocation2 + $0xd0] sm:$0xff]
        %v1063 = vld [vmem:[#allocation2 + $0xd8] sm:$0xff]
        %v1064 = vld [vmem:[#allocation2 + $0xe0] sm:$0xff]
        %v1065 = vld [vmem:[#allocation2 + $0xe8] sm:$0xff]
        %v1066 = vld [vmem:[#allocation2 + $0xf0] sm:$0xff]
        %v1067 = vld [vmem:[#allocation2 + $0xf8] sm:$0xff]
        %v1068 = vunpack.c.l.b16 %v665
        %v1069 = vunpack.c.l.b16 %v675
        %v1070 = vunpack.c.l.b16 %v689
        %v1071 = vunpack.c.l.b16 %v699
        %v1072 = vunpack.c.l.b16 %v713
        %v1073 = vunpack.c.l.b16 %v723
        %v1074 = vunpack.c.l.b16 %v737
        %v1075 = vunpack.c.l.b16 %v747
        %v1076 = vunpack.c.l.b16 %v761
        %v1077 = vunpack.c.l.b16 %v771
        %v1078 = vunpack.c.l.b16 %v785
        %v1079 = vunpack.c.l.b16 %v795
        %v1080 = vunpack.c.l.b16 %v809
        %v1081 = vunpack.c.l.b16 %v819
        %v1082 = vunpack.c.l.b16 %v833
        %v1083 = vunpack.c.l.b16 %v843
        %v1084 = vunpack.c.l.b16 %v857
        %v1085 = vunpack.c.l.b16 %v867
        %v1086 = vunpack.c.l.b16 %v881
        %v1087 = vunpack.c.l.b16 %v891
        %v1088 = vunpack.c.l.b16 %v905
        %v1089 = vunpack.c.l.b16 %v915
        %v1090 = vunpack.c.l.b16 %v929
        %v1091 = vunpack.c.l.b16 %v939
        %v1092 = vunpack.c.l.b16 %v953
        %v1093 = vunpack.c.l.b16 %v963
        %v1094 = vunpack.c.l.b16 %v977
        %v1095 = vunpack.c.l.b16 %v987
        %v1096 = vunpack.c.l.b16 %v1001
        %v1097 = vunpack.c.l.b16 %v1011
        %v1098 = vunpack.c.l.b16 %v1025
        %v1099 = vunpack.c.l.b16 %v1035
        %v1100 = vpack.c.b16 %v1069, %v1068
        %v1101 = vpack.c.b16 %v1071, %v1070
        %v1102 = vpack.c.b16 %v1073, %v1072
        %v1103 = vpack.c.b16 %v1075, %v1074
        %v1104 = vpack.c.b16 %v1077, %v1076
        %v1105 = vpack.c.b16 %v1079, %v1078
        %v1106 = vpack.c.b16 %v1081, %v1080
        %v1107 = vpack.c.b16 %v1083, %v1082
        %v1108 = vpack.c.b16 %v1085, %v1084
        %v1109 = vpack.c.b16 %v1087, %v1086
        %v1110 = vpack.c.b16 %v1089, %v1088
        %v1111 = vpack.c.b16 %v1091, %v1090
        %v1112 = vpack.c.b16 %v1093, %v1092
        %v1113 = vpack.c.b16 %v1095, %v1094
        %v1114 = vpack.c.b16 %v1097, %v1096
        %v1115 = vpack.c.b16 %v1099, %v1098
        %v1118 = vunpack.c.l.b16 %v599
        %v1119 = vunpack.c.l.b16 %v600
        %v1120 = vpack.c.b16 %v1119, %v1118
        %v1122 = vsel %vm392, %v1100, 0
        %v1125 = vsel %vm392, %v1101, 0
        %v1128 = vsel %vm392, %v1102, 0
        %v1131 = vsel %vm392, %v1103, 0
        %v1134 = vsel %vm392, %v1104, 0
        %v1137 = vsel %vm392, %v1105, 0
        %v1140 = vsel %vm392, %v1106, 0
        %v1143 = vsel %vm392, %v1107, 0
        %v1146 = vsel %vm392, %v1108, 0
        %v1149 = vsel %vm392, %v1109, 0
        %v1152 = vsel %vm392, %v1110, 0
        %v1155 = vsel %vm392, %v1111, 0
        %v1158 = vsel %vm392, %v1112, 0
        %v1161 = vsel %vm392, %v1113, 0
        %v1164 = vsel %vm392, %v1114, 0
        %v1167 = vsel %vm392, %v1115, 0
        %v1170 = vsel %vm441, %v1120, 0
        %1172 = vmatpush.bf16.msra.mxu0 0
        %1173 = vmatpush.bf16.msra.mxu0 0
        %1174 = vmatpush.bf16.msra.mxu0 0
        %1175 = vmatpush.bf16.msra.mxu0 0
        %1176 = vmatpush.bf16.msra.mxu0 0
        %1177 = vmatpush.bf16.msra.mxu0 0
        %1178 = vmatpush.bf16.msra.mxu0 0
        %1179 = vmatpush.bf16.msra.mxu0 %v1170
        %1180 = vmatmul.bf16.gmra.mxu0 %v1122
        %v1181 = vpop.f32.mrf.mxu0
        %v1182 = vadd.f32 0.0, %v1181
        %v1183 = vpop.f32.mrf.mxu0
        %v1184 = vadd.f32 0.0, %v1183
        %1185 = vmatmul.bf16.gmra.mxu0 %v1125
        %v1186 = vpop.f32.mrf.mxu0
        %v1187 = vadd.f32 0.0, %v1186
        %v1188 = vpop.f32.mrf.mxu0
        %v1189 = vadd.f32 0.0, %v1188
        %1190 = vmatmul.bf16.gmra.mxu0 %v1128
        %v1191 = vpop.f32.mrf.mxu0
        %v1192 = vadd.f32 0.0, %v1191
        %v1193 = vpop.f32.mrf.mxu0
        %v1194 = vadd.f32 0.0, %v1193
        %1195 = vmatmul.bf16.gmra.mxu0 %v1131
        %v1196 = vpop.f32.mrf.mxu0
        %v1197 = vadd.f32 0.0, %v1196
        %v1198 = vpop.f32.mrf.mxu0
        %v1199 = vadd.f32 0.0, %v1198
        %1200 = vmatmul.bf16.gmra.mxu0 %v1134
        %v1201 = vpop.f32.mrf.mxu0
        %v1202 = vadd.f32 0.0, %v1201
        %v1203 = vpop.f32.mrf.mxu0
        %v1204 = vadd.f32 0.0, %v1203
        %1205 = vmatmul.bf16.gmra.mxu0 %v1137
        %v1206 = vpop.f32.mrf.mxu0
        %v1207 = vadd.f32 0.0, %v1206
        %v1208 = vpop.f32.mrf.mxu0
        %v1209 = vadd.f32 0.0, %v1208
        %1210 = vmatmul.bf16.gmra.mxu0 %v1140
        %v1211 = vpop.f32.mrf.mxu0
        %v1212 = vadd.f32 0.0, %v1211
        %v1213 = vpop.f32.mrf.mxu0
        %v1214 = vadd.f32 0.0, %v1213
        %1215 = vmatmul.bf16.gmra.mxu0 %v1143
        %v1216 = vpop.f32.mrf.mxu0
        %v1217 = vadd.f32 0.0, %v1216
        %v1218 = vpop.f32.mrf.mxu0
        %v1219 = vadd.f32 0.0, %v1218
        %1220 = vmatmul.bf16.gmra.mxu0 %v1146
        %v1221 = vpop.f32.mrf.mxu0
        %v1222 = vadd.f32 0.0, %v1221
        %v1223 = vpop.f32.mrf.mxu0
        %v1224 = vadd.f32 0.0, %v1223
        %1225 = vmatmul.bf16.gmra.mxu0 %v1149
        %v1226 = vpop.f32.mrf.mxu0
        %v1227 = vadd.f32 0.0, %v1226
        %v1228 = vpop.f32.mrf.mxu0
        %v1229 = vadd.f32 0.0, %v1228
        %1230 = vmatmul.bf16.gmra.mxu0 %v1152
        %v1231 = vpop.f32.mrf.mxu0
        %v1232 = vadd.f32 0.0, %v1231
        %v1233 = vpop.f32.mrf.mxu0
        %v1234 = vadd.f32 0.0, %v1233
        %1235 = vmatmul.bf16.gmra.mxu0 %v1155
        %v1236 = vpop.f32.mrf.mxu0
        %v1237 = vadd.f32 0.0, %v1236
        %v1238 = vpop.f32.mrf.mxu0
        %v1239 = vadd.f32 0.0, %v1238
        %1240 = vmatmul.bf16.gmra.mxu0 %v1158
        %v1241 = vpop.f32.mrf.mxu0
        %v1242 = vadd.f32 0.0, %v1241
        %v1243 = vpop.f32.mrf.mxu0
        %v1244 = vadd.f32 0.0, %v1243
        %1245 = vmatmul.bf16.gmra.mxu0 %v1161
        %v1246 = vpop.f32.mrf.mxu0
        %v1247 = vadd.f32 0.0, %v1246
        %v1248 = vpop.f32.mrf.mxu0
        %v1249 = vadd.f32 0.0, %v1248
        %1250 = vmatmul.bf16.gmra.mxu0 %v1164
        %v1251 = vpop.f32.mrf.mxu0
        %v1252 = vadd.f32 0.0, %v1251
        %v1253 = vpop.f32.mrf.mxu0
        %v1254 = vadd.f32 0.0, %v1253
        %1255 = vmatmul.bf16.gmra.mxu0 %v1167
        %v1256 = vpop.f32.mrf.mxu0
        %v1257 = vadd.f32 0.0, %v1256
        %v1258 = vpop.f32.mrf.mxu0
        %v1259 = vadd.f32 0.0, %v1258
        %1260 = vdwg.mxu0
        %v1261 = vadd.f32 %v1036, %v1182
        %v1262 = vadd.f32 %v1037, %v1184
        %v1263 = vadd.f32 %v1038, %v1187
        %v1264 = vadd.f32 %v1039, %v1189
        %v1265 = vadd.f32 %v1040, %v1192
        %v1266 = vadd.f32 %v1041, %v1194
        %v1267 = vadd.f32 %v1042, %v1197
        %v1268 = vadd.f32 %v1043, %v1199
        %v1269 = vadd.f32 %v1044, %v1202
        %v1270 = vadd.f32 %v1045, %v1204
        %v1271 = vadd.f32 %v1046, %v1207
        %v1272 = vadd.f32 %v1047, %v1209
        %v1273 = vadd.f32 %v1048, %v1212
        %v1274 = vadd.f32 %v1049, %v1214
        %v1275 = vadd.f32 %v1050, %v1217
        %v1276 = vadd.f32 %v1051, %v1219
        %v1277 = vadd.f32 %v1052, %v1222
        %v1278 = vadd.f32 %v1053, %v1224
        %v1279 = vadd.f32 %v1054, %v1227
        %v1280 = vadd.f32 %v1055, %v1229
        %v1281 = vadd.f32 %v1056, %v1232
        %v1282 = vadd.f32 %v1057, %v1234
        %v1283 = vadd.f32 %v1058, %v1237
        %v1284 = vadd.f32 %v1059, %v1239
        %v1285 = vadd.f32 %v1060, %v1242
        %v1286 = vadd.f32 %v1061, %v1244
        %v1287 = vadd.f32 %v1062, %v1247
        %v1288 = vadd.f32 %v1063, %v1249
        %v1289 = vadd.f32 %v1064, %v1252
        %v1290 = vadd.f32 %v1065, %v1254
        %v1291 = vadd.f32 %v1066, %v1257
        %v1292 = vadd.f32 %v1067, %v1259
        %1293 = vst.msk [vmem:[#allocation2] sm:$0xff] %vm208, %v1261
        %1294 = vst.msk [vmem:[#allocation2 + $0x8] sm:$0xff] %vm208, %v1262
        %1295 = vst.msk [vmem:[#allocation2 + $0x10] sm:$0xff] %vm208, %v1263
        %1296 = vst.msk [vmem:[#allocation2 + $0x18] sm:$0xff] %vm208, %v1264
        %1297 = vst.msk [vmem:[#allocation2 + $0x20] sm:$0xff] %vm208, %v1265
        %1298 = vst.msk [vmem:[#allocation2 + $0x28] sm:$0xff] %vm208, %v1266
        %1299 = vst.msk [vmem:[#allocation2 + $0x30] sm:$0xff] %vm208, %v1267
        %1300 = vst.msk [vmem:[#allocation2 + $0x38] sm:$0xff] %vm208, %v1268
        %1301 = vst.msk [vmem:[#allocation2 + $0x40] sm:$0xff] %vm208, %v1269
        %1302 = vst.msk [vmem:[#allocation2 + $0x48] sm:$0xff] %vm208, %v1270
        %1303 = vst.msk [vmem:[#allocation2 + $0x50] sm:$0xff] %vm208, %v1271
        %1304 = vst.msk [vmem:[#allocation2 + $0x58] sm:$0xff] %vm208, %v1272
        %1305 = vst.msk [vmem:[#allocation2 + $0x60] sm:$0xff] %vm208, %v1273
        %1306 = vst.msk [vmem:[#allocation2 + $0x68] sm:$0xff] %vm208, %v1274
        %1307 = vst.msk [vmem:[#allocation2 + $0x70] sm:$0xff] %vm208, %v1275
        %1308 = vst.msk [vmem:[#allocation2 + $0x78] sm:$0xff] %vm208, %v1276
        %1309 = vst.msk [vmem:[#allocation2 + $0x80] sm:$0xff] %vm208, %v1277
        %1310 = vst.msk [vmem:[#allocation2 + $0x88] sm:$0xff] %vm208, %v1278
        %1311 = vst.msk [vmem:[#allocation2 + $0x90] sm:$0xff] %vm208, %v1279
        %1312 = vst.msk [vmem:[#allocation2 + $0x98] sm:$0xff] %vm208, %v1280
        %1313 = vst.msk [vmem:[#allocation2 + $0xa0] sm:$0xff] %vm208, %v1281
        %1314 = vst.msk [vmem:[#allocation2 + $0xa8] sm:$0xff] %vm208, %v1282
        %1315 = vst.msk [vmem:[#allocation2 + $0xb0] sm:$0xff] %vm208, %v1283
        %1316 = vst.msk [vmem:[#allocation2 + $0xb8] sm:$0xff] %vm208, %v1284
        %1317 = vst.msk [vmem:[#allocation2 + $0xc0] sm:$0xff] %vm208, %v1285
        %1318 = vst.msk [vmem:[#allocation2 + $0xc8] sm:$0xff] %vm208, %v1286
        %1319 = vst.msk [vmem:[#allocation2 + $0xd0] sm:$0xff] %vm208, %v1287
        %1320 = vst.msk [vmem:[#allocation2 + $0xd8] sm:$0xff] %vm208, %v1288
        %1321 = vst.msk [vmem:[#allocation2 + $0xe0] sm:$0xff] %vm208, %v1289
        %1322 = vst.msk [vmem:[#allocation2 + $0xe8] sm:$0xff] %vm208, %v1290
        %1323 = vst.msk [vmem:[#allocation2 + $0xf0] sm:$0xff] %vm208, %v1291
        %1324 = vst.msk [vmem:[#allocation2 + $0xf8] sm:$0xff] %vm208, %v1292
        %s1325 = scalar_lea.vmem %s1, 16
        %v1326 = vld [vmem:[%s1325] sm:$0xf]
        %v1327 = vld [vmem:[%s1325 + $0x4] sm:$0x3]
        %v1328 = vld [vmem:[%s200] sm:$0xe]
        %v1329 = vld [vmem:[%s200 + $0x4] sm:$0xf]
        %v1330 = vld [vmem:[%s200 + $0x8] sm:$0x1]
        %v1331 = vld [vmem:[%s200 + $0xc] sm:$0xe]
        %v1332 = vld [vmem:[%s200 + $0x10] sm:$0xf]
        %v1333 = vld [vmem:[%s200 + $0x14] sm:$0x1]
        %v1334 = vld [vmem:[%s200 + $0x18] sm:$0xe]
        %v1335 = vld [vmem:[%s200 + $0x1c] sm:$0xf]
        %v1336 = vld [vmem:[%s200 + $0x20] sm:$0x1]
        %v1337 = vld [vmem:[%s200 + $0x24] sm:$0xe]
        %v1338 = vld [vmem:[%s200 + $0x28] sm:$0xf]
        %v1339 = vld [vmem:[%s200 + $0x2c] sm:$0x1]
        %v1340 = vld [vmem:[%s200 + $0x30] sm:$0xe]
        %v1341 = vld [vmem:[%s200 + $0x34] sm:$0xf]
        %v1342 = vld [vmem:[%s200 + $0x38] sm:$0x1]
        %v1343 = vld [vmem:[%s200 + $0x3c] sm:$0xe]
        %v1344 = vld [vmem:[%s200 + $0x40] sm:$0xf]
        %v1345 = vld [vmem:[%s200 + $0x44] sm:$0x1]
        %v1346 = vld [vmem:[%s200 + $0x48] sm:$0xe]
        %v1347 = vld [vmem:[%s200 + $0x4c] sm:$0xf]
        %v1348 = vld [vmem:[%s200 + $0x50] sm:$0x1]
        %v1349 = vld [vmem:[%s200 + $0x54] sm:$0xe]
        %v1350 = vld [vmem:[%s200 + $0x58] sm:$0xf]
        %v1351 = vld [vmem:[%s200 + $0x5c] sm:$0x1]
        %v1352 = vld [vmem:[%s200 + $0x60] sm:$0xe]
        %v1353 = vld [vmem:[%s200 + $0x64] sm:$0xf]
        %v1354 = vld [vmem:[%s200 + $0x68] sm:$0x1]
        %v1355 = vld [vmem:[%s200 + $0x6c] sm:$0xe]
        %v1356 = vld [vmem:[%s200 + $0x70] sm:$0xf]
        %v1357 = vld [vmem:[%s200 + $0x74] sm:$0x1]
        %v1358 = vld [vmem:[%s200 + $0x78] sm:$0xe]
        %v1359 = vld [vmem:[%s200 + $0x7c] sm:$0xf]
        %v1360 = vld [vmem:[%s200 + $0x80] sm:$0x1]
        %v1361 = vld [vmem:[%s200 + $0x84] sm:$0xe]
        %v1362 = vld [vmem:[%s200 + $0x88] sm:$0xf]
        %v1363 = vld [vmem:[%s200 + $0x8c] sm:$0x1]
        %v1364 = vld [vmem:[%s200 + $0x90] sm:$0xe]
        %v1365 = vld [vmem:[%s200 + $0x94] sm:$0xf]
        %v1366 = vld [vmem:[%s200 + $0x98] sm:$0x1]
        %v1367 = vld [vmem:[%s200 + $0x9c] sm:$0xe]
        %v1368 = vld [vmem:[%s200 + $0xa0] sm:$0xf]
        %v1369 = vld [vmem:[%s200 + $0xa4] sm:$0x1]
        %v1370 = vld [vmem:[%s200 + $0xa8] sm:$0xe]
        %v1371 = vld [vmem:[%s200 + $0xac] sm:$0xf]
        %v1372 = vld [vmem:[%s200 + $0xb0] sm:$0x1]
        %v1373 = vld [vmem:[%s200 + $0xb4] sm:$0xe]
        %v1374 = vld [vmem:[%s200 + $0xb8] sm:$0xf]
        %v1375 = vld [vmem:[%s200 + $0xbc] sm:$0x1]
        %vm1424 = vcmask 1042432
        %vm1425 = vcmask 1046532
        %vm1426 = vmor %vm1424, %vm1425
        %v1427 = vrot.slane %v1328, 5
        %v1428 = vrot.slane %v1427, 4
        %v1429 = vrot.slane %v1329, 5
        %v1430 = vsel %vm1426, %v1428, %v1429
        %v1431 = vrot.slane %v1429, 4
        %v1432 = vrot.slane %v1330, 5
        %v1433 = vsel %vm1426, %v1431, %v1432
        %v1434 = vrot.slane %v1331, 5
        %v1435 = vrot.slane %v1434, 4
        %v1436 = vrot.slane %v1332, 5
        %v1437 = vsel %vm1426, %v1435, %v1436
        %v1438 = vrot.slane %v1436, 4
        %v1439 = vrot.slane %v1333, 5
        %v1440 = vsel %vm1426, %v1438, %v1439
        %v1441 = vrot.slane %v1334, 5
        %v1442 = vrot.slane %v1441, 4
        %v1443 = vrot.slane %v1335, 5
        %v1444 = vsel %vm1426, %v1442, %v1443
        %v1445 = vrot.slane %v1443, 4
        %v1446 = vrot.slane %v1336, 5
        %v1447 = vsel %vm1426, %v1445, %v1446
        %v1448 = vrot.slane %v1337, 5
        %v1449 = vrot.slane %v1448, 4
        %v1450 = vrot.slane %v1338, 5
        %v1451 = vsel %vm1426, %v1449, %v1450
        %v1452 = vrot.slane %v1450, 4
        %v1453 = vrot.slane %v1339, 5
        %v1454 = vsel %vm1426, %v1452, %v1453
        %v1455 = vrot.slane %v1340, 5
        %v1456 = vrot.slane %v1455, 4
        %v1457 = vrot.slane %v1341, 5
        %v1458 = vsel %vm1426, %v1456, %v1457
        %v1459 = vrot.slane %v1457, 4
        %v1460 = vrot.slane %v1342, 5
        %v1461 = vsel %vm1426, %v1459, %v1460
        %v1462 = vrot.slane %v1343, 5
        %v1463 = vrot.slane %v1462, 4
        %v1464 = vrot.slane %v1344, 5
        %v1465 = vsel %vm1426, %v1463, %v1464
        %v1466 = vrot.slane %v1464, 4
        %v1467 = vrot.slane %v1345, 5
        %v1468 = vsel %vm1426, %v1466, %v1467
        %v1469 = vrot.slane %v1346, 5
        %v1470 = vrot.slane %v1469, 4
        %v1471 = vrot.slane %v1347, 5
        %v1472 = vsel %vm1426, %v1470, %v1471
        %v1473 = vrot.slane %v1471, 4
        %v1474 = vrot.slane %v1348, 5
        %v1475 = vsel %vm1426, %v1473, %v1474
        %v1476 = vrot.slane %v1349, 5
        %v1477 = vrot.slane %v1476, 4
        %v1478 = vrot.slane %v1350, 5
        %v1479 = vsel %vm1426, %v1477, %v1478
        %v1480 = vrot.slane %v1478, 4
        %v1481 = vrot.slane %v1351, 5
        %v1482 = vsel %vm1426, %v1480, %v1481
        %v1483 = vrot.slane %v1352, 5
        %v1484 = vrot.slane %v1483, 4
        %v1485 = vrot.slane %v1353, 5
        %v1486 = vsel %vm1426, %v1484, %v1485
        %v1487 = vrot.slane %v1485, 4
        %v1488 = vrot.slane %v1354, 5
        %v1489 = vsel %vm1426, %v1487, %v1488
        %v1490 = vrot.slane %v1355, 5
        %v1491 = vrot.slane %v1490, 4
        %v1492 = vrot.slane %v1356, 5
        %v1493 = vsel %vm1426, %v1491, %v1492
        %v1494 = vrot.slane %v1492, 4
        %v1495 = vrot.slane %v1357, 5
        %v1496 = vsel %vm1426, %v1494, %v1495
        %v1497 = vrot.slane %v1358, 5
        %v1498 = vrot.slane %v1497, 4
        %v1499 = vrot.slane %v1359, 5
        %v1500 = vsel %vm1426, %v1498, %v1499
        %v1501 = vrot.slane %v1499, 4
        %v1502 = vrot.slane %v1360, 5
        %v1503 = vsel %vm1426, %v1501, %v1502
        %v1504 = vrot.slane %v1361, 5
        %v1505 = vrot.slane %v1504, 4
        %v1506 = vrot.slane %v1362, 5
        %v1507 = vsel %vm1426, %v1505, %v1506
        %v1508 = vrot.slane %v1506, 4
        %v1509 = vrot.slane %v1363, 5
        %v1510 = vsel %vm1426, %v1508, %v1509
        %v1511 = vrot.slane %v1364, 5
        %v1512 = vrot.slane %v1511, 4
        %v1513 = vrot.slane %v1365, 5
        %v1514 = vsel %vm1426, %v1512, %v1513
        %v1515 = vrot.slane %v1513, 4
        %v1516 = vrot.slane %v1366, 5
        %v1517 = vsel %vm1426, %v1515, %v1516
        %v1518 = vrot.slane %v1367, 5
        %v1519 = vrot.slane %v1518, 4
        %v1520 = vrot.slane %v1368, 5
        %v1521 = vsel %vm1426, %v1519, %v1520
        %v1522 = vrot.slane %v1520, 4
        %v1523 = vrot.slane %v1369, 5
        %v1524 = vsel %vm1426, %v1522, %v1523
        %v1525 = vrot.slane %v1370, 5
        %v1526 = vrot.slane %v1525, 4
        %v1527 = vrot.slane %v1371, 5
        %v1528 = vsel %vm1426, %v1526, %v1527
        %v1529 = vrot.slane %v1527, 4
        %v1530 = vrot.slane %v1372, 5
        %v1531 = vsel %vm1426, %v1529, %v1530
        %v1532 = vrot.slane %v1373, 5
        %v1533 = vrot.slane %v1532, 4
        %v1534 = vrot.slane %v1374, 5
        %v1535 = vsel %vm1426, %v1533, %v1534
        %v1536 = vrot.slane %v1534, 4
        %v1537 = vrot.slane %v1375, 5
        %v1538 = vsel %vm1426, %v1536, %v1537
        %v1539 = vld [vmem:[#allocation2] sm:$0xff]
        %v1540 = vld [vmem:[#allocation2 + $0x8] sm:$0xff]
        %v1541 = vld [vmem:[#allocation2 + $0x10] sm:$0xff]
        %v1542 = vld [vmem:[#allocation2 + $0x18] sm:$0xff]
        %v1543 = vld [vmem:[#allocation2 + $0x20] sm:$0xff]
        %v1544 = vld [vmem:[#allocation2 + $0x28] sm:$0xff]
        %v1545 = vld [vmem:[#allocation2 + $0x30] sm:$0xff]
        %v1546 = vld [vmem:[#allocation2 + $0x38] sm:$0xff]
        %v1547 = vld [vmem:[#allocation2 + $0x40] sm:$0xff]
        %v1548 = vld [vmem:[#allocation2 + $0x48] sm:$0xff]
        %v1549 = vld [vmem:[#allocation2 + $0x50] sm:$0xff]
        %v1550 = vld [vmem:[#allocation2 + $0x58] sm:$0xff]
        %v1551 = vld [vmem:[#allocation2 + $0x60] sm:$0xff]
        %v1552 = vld [vmem:[#allocation2 + $0x68] sm:$0xff]
        %v1553 = vld [vmem:[#allocation2 + $0x70] sm:$0xff]
        %v1554 = vld [vmem:[#allocation2 + $0x78] sm:$0xff]
        %v1555 = vld [vmem:[#allocation2 + $0x80] sm:$0xff]
        %v1556 = vld [vmem:[#allocation2 + $0x88] sm:$0xff]
        %v1557 = vld [vmem:[#allocation2 + $0x90] sm:$0xff]
        %v1558 = vld [vmem:[#allocation2 + $0x98] sm:$0xff]
        %v1559 = vld [vmem:[#allocation2 + $0xa0] sm:$0xff]
        %v1560 = vld [vmem:[#allocation2 + $0xa8] sm:$0xff]
        %v1561 = vld [vmem:[#allocation2 + $0xb0] sm:$0xff]
        %v1562 = vld [vmem:[#allocation2 + $0xb8] sm:$0xff]
        %v1563 = vld [vmem:[#allocation2 + $0xc0] sm:$0xff]
        %v1564 = vld [vmem:[#allocation2 + $0xc8] sm:$0xff]
        %v1565 = vld [vmem:[#allocation2 + $0xd0] sm:$0xff]
        %v1566 = vld [vmem:[#allocation2 + $0xd8] sm:$0xff]
        %v1567 = vld [vmem:[#allocation2 + $0xe0] sm:$0xff]
        %v1568 = vld [vmem:[#allocation2 + $0xe8] sm:$0xff]
        %v1569 = vld [vmem:[#allocation2 + $0xf0] sm:$0xff]
        %v1570 = vld [vmem:[#allocation2 + $0xf8] sm:$0xff]
        %v1571 = vunpack.c.l.b16 %v1430
        %v1572 = vunpack.c.l.b16 %v1433
        %v1573 = vunpack.c.l.b16 %v1437
        %v1574 = vunpack.c.l.b16 %v1440
        %v1575 = vunpack.c.l.b16 %v1444
        %v1576 = vunpack.c.l.b16 %v1447
        %v1577 = vunpack.c.l.b16 %v1451
        %v1578 = vunpack.c.l.b16 %v1454
        %v1579 = vunpack.c.l.b16 %v1458
        %v1580 = vunpack.c.l.b16 %v1461
        %v1581 = vunpack.c.l.b16 %v1465
        %v1582 = vunpack.c.l.b16 %v1468
        %v1583 = vunpack.c.l.b16 %v1472
        %v1584 = vunpack.c.l.b16 %v1475
        %v1585 = vunpack.c.l.b16 %v1479
        %v1586 = vunpack.c.l.b16 %v1482
        %v1587 = vunpack.c.l.b16 %v1486
        %v1588 = vunpack.c.l.b16 %v1489
        %v1589 = vunpack.c.l.b16 %v1493
        %v1590 = vunpack.c.l.b16 %v1496
        %v1591 = vunpack.c.l.b16 %v1500
        %v1592 = vunpack.c.l.b16 %v1503
        %v1593 = vunpack.c.l.b16 %v1507
        %v1594 = vunpack.c.l.b16 %v1510
        %v1595 = vunpack.c.l.b16 %v1514
        %v1596 = vunpack.c.l.b16 %v1517
        %v1597 = vunpack.c.l.b16 %v1521
        %v1598 = vunpack.c.l.b16 %v1524
        %v1599 = vunpack.c.l.b16 %v1528
        %v1600 = vunpack.c.l.b16 %v1531
        %v1601 = vunpack.c.l.b16 %v1535
        %v1602 = vunpack.c.l.b16 %v1538
        %v1603 = vpack.c.b16 %v1572, %v1571
        %v1604 = vpack.c.b16 %v1574, %v1573
        %v1605 = vpack.c.b16 %v1576, %v1575
        %v1606 = vpack.c.b16 %v1578, %v1577
        %v1607 = vpack.c.b16 %v1580, %v1579
        %v1608 = vpack.c.b16 %v1582, %v1581
        %v1609 = vpack.c.b16 %v1584, %v1583
        %v1610 = vpack.c.b16 %v1586, %v1585
        %v1611 = vpack.c.b16 %v1588, %v1587
        %v1612 = vpack.c.b16 %v1590, %v1589
        %v1613 = vpack.c.b16 %v1592, %v1591
        %v1614 = vpack.c.b16 %v1594, %v1593
        %v1615 = vpack.c.b16 %v1596, %v1595
        %v1616 = vpack.c.b16 %v1598, %v1597
        %v1617 = vpack.c.b16 %v1600, %v1599
        %v1618 = vpack.c.b16 %v1602, %v1601
        %v1621 = vunpack.c.l.b16 %v1326
        %v1622 = vunpack.c.l.b16 %v1327
        %v1623 = vpack.c.b16 %v1622, %v1621
        %v1625 = vsel %vm392, %v1603, 0
        %v1628 = vsel %vm392, %v1604, 0
        %v1631 = vsel %vm392, %v1605, 0
        %v1634 = vsel %vm392, %v1606, 0
        %v1637 = vsel %vm392, %v1607, 0
        %v1640 = vsel %vm392, %v1608, 0
        %v1643 = vsel %vm392, %v1609, 0
        %v1646 = vsel %vm392, %v1610, 0
        %v1649 = vsel %vm392, %v1611, 0
        %v1652 = vsel %vm392, %v1612, 0
        %v1655 = vsel %vm392, %v1613, 0
        %v1658 = vsel %vm392, %v1614, 0
        %v1661 = vsel %vm392, %v1615, 0
        %v1664 = vsel %vm392, %v1616, 0
        %v1667 = vsel %vm392, %v1617, 0
        %v1670 = vsel %vm392, %v1618, 0
        %v1673 = vsel %vm441, %v1623, 0
        %1675 = vmatpush.bf16.msra.mxu0 0
        %1676 = vmatpush.bf16.msra.mxu0 0
        %1677 = vmatpush.bf16.msra.mxu0 0
        %1678 = vmatpush.bf16.msra.mxu0 0
        %1679 = vmatpush.bf16.msra.mxu0 0
        %1680 = vmatpush.bf16.msra.mxu0 0
        %1681 = vmatpush.bf16.msra.mxu0 0
        %1682 = vmatpush.bf16.msra.mxu0 %v1673
        %1683 = vmatmul.bf16.gmra.mxu0 %v1625
        %v1684 = vpop.f32.mrf.mxu0
        %v1685 = vadd.f32 0.0, %v1684
        %v1686 = vpop.f32.mrf.mxu0
        %v1687 = vadd.f32 0.0, %v1686
        %1688 = vmatmul.bf16.gmra.mxu0 %v1628
        %v1689 = vpop.f32.mrf.mxu0
        %v1690 = vadd.f32 0.0, %v1689
        %v1691 = vpop.f32.mrf.mxu0
        %v1692 = vadd.f32 0.0, %v1691
        %1693 = vmatmul.bf16.gmra.mxu0 %v1631
        %v1694 = vpop.f32.mrf.mxu0
        %v1695 = vadd.f32 0.0, %v1694
        %v1696 = vpop.f32.mrf.mxu0
        %v1697 = vadd.f32 0.0, %v1696
        %1698 = vmatmul.bf16.gmra.mxu0 %v1634
        %v1699 = vpop.f32.mrf.mxu0
        %v1700 = vadd.f32 0.0, %v1699
        %v1701 = vpop.f32.mrf.mxu0
        %v1702 = vadd.f32 0.0, %v1701
        %1703 = vmatmul.bf16.gmra.mxu0 %v1637
        %v1704 = vpop.f32.mrf.mxu0
        %v1705 = vadd.f32 0.0, %v1704
        %v1706 = vpop.f32.mrf.mxu0
        %v1707 = vadd.f32 0.0, %v1706
        %1708 = vmatmul.bf16.gmra.mxu0 %v1640
        %v1709 = vpop.f32.mrf.mxu0
        %v1710 = vadd.f32 0.0, %v1709
        %v1711 = vpop.f32.mrf.mxu0
        %v1712 = vadd.f32 0.0, %v1711
        %1713 = vmatmul.bf16.gmra.mxu0 %v1643
        %v1714 = vpop.f32.mrf.mxu0
        %v1715 = vadd.f32 0.0, %v1714
        %v1716 = vpop.f32.mrf.mxu0
        %v1717 = vadd.f32 0.0, %v1716
        %1718 = vmatmul.bf16.gmra.mxu0 %v1646
        %v1719 = vpop.f32.mrf.mxu0
        %v1720 = vadd.f32 0.0, %v1719
        %v1721 = vpop.f32.mrf.mxu0
        %v1722 = vadd.f32 0.0, %v1721
        %1723 = vmatmul.bf16.gmra.mxu0 %v1649
        %v1724 = vpop.f32.mrf.mxu0
        %v1725 = vadd.f32 0.0, %v1724
        %v1726 = vpop.f32.mrf.mxu0
        %v1727 = vadd.f32 0.0, %v1726
        %1728 = vmatmul.bf16.gmra.mxu0 %v1652
        %v1729 = vpop.f32.mrf.mxu0
        %v1730 = vadd.f32 0.0, %v1729
        %v1731 = vpop.f32.mrf.mxu0
        %v1732 = vadd.f32 0.0, %v1731
        %1733 = vmatmul.bf16.gmra.mxu0 %v1655
        %v1734 = vpop.f32.mrf.mxu0
        %v1735 = vadd.f32 0.0, %v1734
        %v1736 = vpop.f32.mrf.mxu0
        %v1737 = vadd.f32 0.0, %v1736
        %1738 = vmatmul.bf16.gmra.mxu0 %v1658
        %v1739 = vpop.f32.mrf.mxu0
        %v1740 = vadd.f32 0.0, %v1739
        %v1741 = vpop.f32.mrf.mxu0
        %v1742 = vadd.f32 0.0, %v1741
        %1743 = vmatmul.bf16.gmra.mxu0 %v1661
        %v1744 = vpop.f32.mrf.mxu0
        %v1745 = vadd.f32 0.0, %v1744
        %v1746 = vpop.f32.mrf.mxu0
        %v1747 = vadd.f32 0.0, %v1746
        %1748 = vmatmul.bf16.gmra.mxu0 %v1664
        %v1749 = vpop.f32.mrf.mxu0
        %v1750 = vadd.f32 0.0, %v1749
        %v1751 = vpop.f32.mrf.mxu0
        %v1752 = vadd.f32 0.0, %v1751
        %1753 = vmatmul.bf16.gmra.mxu0 %v1667
        %v1754 = vpop.f32.mrf.mxu0
        %v1755 = vadd.f32 0.0, %v1754
        %v1756 = vpop.f32.mrf.mxu0
        %v1757 = vadd.f32 0.0, %v1756
        %1758 = vmatmul.bf16.gmra.mxu0 %v1670
        %v1759 = vpop.f32.mrf.mxu0
        %v1760 = vadd.f32 0.0, %v1759
        %v1761 = vpop.f32.mrf.mxu0
        %v1762 = vadd.f32 0.0, %v1761
        %1763 = vdwg.mxu0
        %v1764 = vadd.f32 %v1539, %v1685
        %v1765 = vadd.f32 %v1540, %v1687
        %v1766 = vadd.f32 %v1541, %v1690
        %v1767 = vadd.f32 %v1542, %v1692
        %v1768 = vadd.f32 %v1543, %v1695
        %v1769 = vadd.f32 %v1544, %v1697
        %v1770 = vadd.f32 %v1545, %v1700
        %v1771 = vadd.f32 %v1546, %v1702
        %v1772 = vadd.f32 %v1547, %v1705
        %v1773 = vadd.f32 %v1548, %v1707
        %v1774 = vadd.f32 %v1549, %v1710
        %v1775 = vadd.f32 %v1550, %v1712
        %v1776 = vadd.f32 %v1551, %v1715
        %v1777 = vadd.f32 %v1552, %v1717
        %v1778 = vadd.f32 %v1553, %v1720
        %v1779 = vadd.f32 %v1554, %v1722
        %v1780 = vadd.f32 %v1555, %v1725
        %v1781 = vadd.f32 %v1556, %v1727
        %v1782 = vadd.f32 %v1557, %v1730
        %v1783 = vadd.f32 %v1558, %v1732
        %v1784 = vadd.f32 %v1559, %v1735
        %v1785 = vadd.f32 %v1560, %v1737
        %v1786 = vadd.f32 %v1561, %v1740
        %v1787 = vadd.f32 %v1562, %v1742
        %v1788 = vadd.f32 %v1563, %v1745
        %v1789 = vadd.f32 %v1564, %v1747
        %v1790 = vadd.f32 %v1565, %v1750
        %v1791 = vadd.f32 %v1566, %v1752
        %v1792 = vadd.f32 %v1567, %v1755
        %v1793 = vadd.f32 %v1568, %v1757
        %v1794 = vadd.f32 %v1569, %v1760
        %v1795 = vadd.f32 %v1570, %v1762
        %1796 = vst.msk [vmem:[#allocation2] sm:$0xff] %vm208, %v1764
        %1797 = vst.msk [vmem:[#allocation2 + $0x8] sm:$0xff] %vm208, %v1765
        %1798 = vst.msk [vmem:[#allocation2 + $0x10] sm:$0xff] %vm208, %v1766
        %1799 = vst.msk [vmem:[#allocation2 + $0x18] sm:$0xff] %vm208, %v1767
        %1800 = vst.msk [vmem:[#allocation2 + $0x20] sm:$0xff] %vm208, %v1768
        %1801 = vst.msk [vmem:[#allocation2 + $0x28] sm:$0xff] %vm208, %v1769
        %1802 = vst.msk [vmem:[#allocation2 + $0x30] sm:$0xff] %vm208, %v1770
        %1803 = vst.msk [vmem:[#allocation2 + $0x38] sm:$0xff] %vm208, %v1771
        %1804 = vst.msk [vmem:[#allocation2 + $0x40] sm:$0xff] %vm208, %v1772
        %1805 = vst.msk [vmem:[#allocation2 + $0x48] sm:$0xff] %vm208, %v1773
        %1806 = vst.msk [vmem:[#allocation2 + $0x50] sm:$0xff] %vm208, %v1774
        %1807 = vst.msk [vmem:[#allocation2 + $0x58] sm:$0xff] %vm208, %v1775
        %1808 = vst.msk [vmem:[#allocation2 + $0x60] sm:$0xff] %vm208, %v1776
        %1809 = vst.msk [vmem:[#allocation2 + $0x68] sm:$0xff] %vm208, %v1777
        %1810 = vst.msk [vmem:[#allocation2 + $0x70] sm:$0xff] %vm208, %v1778
        %1811 = vst.msk [vmem:[#allocation2 + $0x78] sm:$0xff] %vm208, %v1779
        %1812 = vst.msk [vmem:[#allocation2 + $0x80] sm:$0xff] %vm208, %v1780
        %1813 = vst.msk [vmem:[#allocation2 + $0x88] sm:$0xff] %vm208, %v1781
        %1814 = vst.msk [vmem:[#allocation2 + $0x90] sm:$0xff] %vm208, %v1782
        %1815 = vst.msk [vmem:[#allocation2 + $0x98] sm:$0xff] %vm208, %v1783
        %1816 = vst.msk [vmem:[#allocation2 + $0xa0] sm:$0xff] %vm208, %v1784
        %1817 = vst.msk [vmem:[#allocation2 + $0xa8] sm:$0xff] %vm208, %v1785
        %1818 = vst.msk [vmem:[#allocation2 + $0xb0] sm:$0xff] %vm208, %v1786
        %1819 = vst.msk [vmem:[#allocation2 + $0xb8] sm:$0xff] %vm208, %v1787
        %1820 = vst.msk [vmem:[#allocation2 + $0xc0] sm:$0xff] %vm208, %v1788
        %1821 = vst.msk [vmem:[#allocation2 + $0xc8] sm:$0xff] %vm208, %v1789
        %1822 = vst.msk [vmem:[#allocation2 + $0xd0] sm:$0xff] %vm208, %v1790
        %1823 = vst.msk [vmem:[#allocation2 + $0xd8] sm:$0xff] %vm208, %v1791
        %1824 = vst.msk [vmem:[#allocation2 + $0xe0] sm:$0xff] %vm208, %v1792
        %1825 = vst.msk [vmem:[#allocation2 + $0xe8] sm:$0xff] %vm208, %v1793
        %1826 = vst.msk [vmem:[#allocation2 + $0xf0] sm:$0xff] %vm208, %v1794
        %1827 = vst.msk [vmem:[#allocation2 + $0xf8] sm:$0xff] %vm208, %v1795
        %s1828 = scalar_lea.vmem %s1, 24
        %v1829 = vld [vmem:[%s1828] sm:$0xf]
        %v1830 = vld [vmem:[%s1828 + $0x4] sm:$0x3]
        %v1831 = vld [vmem:[%s200] sm:$0xe]
        %v1832 = vld [vmem:[%s200 + $0x4] sm:$0xf]
        %v1833 = vld [vmem:[%s200 + $0x8] sm:$0x3]
        %v1834 = vld [vmem:[%s200 + $0xc] sm:$0xe]
        %v1835 = vld [vmem:[%s200 + $0x10] sm:$0xf]
        %v1836 = vld [vmem:[%s200 + $0x14] sm:$0x3]
        %v1837 = vld [vmem:[%s200 + $0x18] sm:$0xe]
        %v1838 = vld [vmem:[%s200 + $0x1c] sm:$0xf]
        %v1839 = vld [vmem:[%s200 + $0x20] sm:$0x3]
        %v1840 = vld [vmem:[%s200 + $0x24] sm:$0xe]
        %v1841 = vld [vmem:[%s200 + $0x28] sm:$0xf]
        %v1842 = vld [vmem:[%s200 + $0x2c] sm:$0x3]
        %v1843 = vld [vmem:[%s200 + $0x30] sm:$0xe]
        %v1844 = vld [vmem:[%s200 + $0x34] sm:$0xf]
        %v1845 = vld [vmem:[%s200 + $0x38] sm:$0x3]
        %v1846 = vld [vmem:[%s200 + $0x3c] sm:$0xe]
        %v1847 = vld [vmem:[%s200 + $0x40] sm:$0xf]
        %v1848 = vld [vmem:[%s200 + $0x44] sm:$0x3]
        %v1849 = vld [vmem:[%s200 + $0x48] sm:$0xe]
        %v1850 = vld [vmem:[%s200 + $0x4c] sm:$0xf]
        %v1851 = vld [vmem:[%s200 + $0x50] sm:$0x3]
        %v1852 = vld [vmem:[%s200 + $0x54] sm:$0xe]
        %v1853 = vld [vmem:[%s200 + $0x58] sm:$0xf]
        %v1854 = vld [vmem:[%s200 + $0x5c] sm:$0x3]
        %v1855 = vld [vmem:[%s200 + $0x60] sm:$0xe]
        %v1856 = vld [vmem:[%s200 + $0x64] sm:$0xf]
        %v1857 = vld [vmem:[%s200 + $0x68] sm:$0x3]
        %v1858 = vld [vmem:[%s200 + $0x6c] sm:$0xe]
        %v1859 = vld [vmem:[%s200 + $0x70] sm:$0xf]
        %v1860 = vld [vmem:[%s200 + $0x74] sm:$0x3]
        %v1861 = vld [vmem:[%s200 + $0x78] sm:$0xe]
        %v1862 = vld [vmem:[%s200 + $0x7c] sm:$0xf]
        %v1863 = vld [vmem:[%s200 + $0x80] sm:$0x3]
        %v1864 = vld [vmem:[%s200 + $0x84] sm:$0xe]
        %v1865 = vld [vmem:[%s200 + $0x88] sm:$0xf]
        %v1866 = vld [vmem:[%s200 + $0x8c] sm:$0x3]
        %v1867 = vld [vmem:[%s200 + $0x90] sm:$0xe]
        %v1868 = vld [vmem:[%s200 + $0x94] sm:$0xf]
        %v1869 = vld [vmem:[%s200 + $0x98] sm:$0x3]
        %v1870 = vld [vmem:[%s200 + $0x9c] sm:$0xe]
        %v1871 = vld [vmem:[%s200 + $0xa0] sm:$0xf]
        %v1872 = vld [vmem:[%s200 + $0xa4] sm:$0x3]
        %v1873 = vld [vmem:[%s200 + $0xa8] sm:$0xe]
        %v1874 = vld [vmem:[%s200 + $0xac] sm:$0xf]
        %v1875 = vld [vmem:[%s200 + $0xb0] sm:$0x3]
        %v1876 = vld [vmem:[%s200 + $0xb4] sm:$0xe]
        %v1877 = vld [vmem:[%s200 + $0xb8] sm:$0xf]
        %v1878 = vld [vmem:[%s200 + $0xbc] sm:$0x3]
        %vm1879 = vsmask.f32 2304
        %vm1880 = vsmask.f32 6416
        %vm1881 = vmor %vm1879, %vm1880
        %v1883 = vshrl.u32 %v1831, 16
        %v1885 = vrot.slane %v1883, 5
        %v1886 = vshll.u32 %v1831, 16
        %v1888 = vrot.slane %v1886, 6
        %v1889 = vor.u32 %v1885, %v1888
        %v1890 = vrot.slane %v1889, 4
        %v1892 = vshrl.u32 %v1832, 16
        %v1894 = vrot.slane %v1892, 5
        %v1895 = vshll.u32 %v1832, 16
        %v1897 = vrot.slane %v1895, 6
        %v1898 = vor.u32 %v1894, %v1897
        %v1899 = vsel %vm1881, %v1890, %v1898
        %v1900 = vrot.slane %v1898, 4
        %v1902 = vshrl.u32 %v1833, 16
        %v1904 = vrot.slane %v1902, 5
        %v1905 = vshll.u32 %v1833, 16
        %v1907 = vrot.slane %v1905, 6
        %v1908 = vor.u32 %v1904, %v1907
        %v1909 = vsel %vm1881, %v1900, %v1908
        %v1911 = vshrl.u32 %v1834, 16
        %v1913 = vrot.slane %v1911, 5
        %v1914 = vshll.u32 %v1834, 16
        %v1916 = vrot.slane %v1914, 6
        %v1917 = vor.u32 %v1913, %v1916
        %v1918 = vrot.slane %v1917, 4
        %v1920 = vshrl.u32 %v1835, 16
        %v1922 = vrot.slane %v1920, 5
        %v1923 = vshll.u32 %v1835, 16
        %v1925 = vrot.slane %v1923, 6
        %v1926 = vor.u32 %v1922, %v1925
        %v1927 = vsel %vm1881, %v1918, %v1926
        %v1928 = vrot.slane %v1926, 4
        %v1930 = vshrl.u32 %v1836, 16
        %v1932 = vrot.slane %v1930, 5
        %v1933 = vshll.u32 %v1836, 16
        %v1935 = vrot.slane %v1933, 6
        %v1936 = vor.u32 %v1932, %v1935
        %v1937 = vsel %vm1881, %v1928, %v1936
        %v1939 = vshrl.u32 %v1837, 16
        %v1941 = vrot.slane %v1939, 5
        %v1942 = vshll.u32 %v1837, 16
        %v1944 = vrot.slane %v1942, 6
        %v1945 = vor.u32 %v1941, %v1944
        %v1946 = vrot.slane %v1945, 4
        %v1948 = vshrl.u32 %v1838, 16
        %v1950 = vrot.slane %v1948, 5
        %v1951 = vshll.u32 %v1838, 16
        %v1953 = vrot.slane %v1951, 6
        %v1954 = vor.u32 %v1950, %v1953
        %v1955 = vsel %vm1881, %v1946, %v1954
        %v1956 = vrot.slane %v1954, 4
        %v1958 = vshrl.u32 %v1839, 16
        %v1960 = vrot.slane %v1958, 5
        %v1961 = vshll.u32 %v1839, 16
        %v1963 = vrot.slane %v1961, 6
        %v1964 = vor.u32 %v1960, %v1963
        %v1965 = vsel %vm1881, %v1956, %v1964
        %v1967 = vshrl.u32 %v1840, 16
        %v1969 = vrot.slane %v1967, 5
        %v1970 = vshll.u32 %v1840, 16
        %v1972 = vrot.slane %v1970, 6
        %v1973 = vor.u32 %v1969, %v1972
        %v1974 = vrot.slane %v1973, 4
        %v1976 = vshrl.u32 %v1841, 16
        %v1978 = vrot.slane %v1976, 5
        %v1979 = vshll.u32 %v1841, 16
        %v1981 = vrot.slane %v1979, 6
        %v1982 = vor.u32 %v1978, %v1981
        %v1983 = vsel %vm1881, %v1974, %v1982
        %v1984 = vrot.slane %v1982, 4
        %v1986 = vshrl.u32 %v1842, 16
        %v1988 = vrot.slane %v1986, 5
        %v1989 = vshll.u32 %v1842, 16
        %v1991 = vrot.slane %v1989, 6
        %v1992 = vor.u32 %v1988, %v1991
        %v1993 = vsel %vm1881, %v1984, %v1992
        %v1995 = vshrl.u32 %v1843, 16
        %v1997 = vrot.slane %v1995, 5
        %v1998 = vshll.u32 %v1843, 16
        %v2000 = vrot.slane %v1998, 6
        %v2001 = vor.u32 %v1997, %v2000
        %v2002 = vrot.slane %v2001, 4
        %v2004 = vshrl.u32 %v1844, 16
        %v2006 = vrot.slane %v2004, 5
        %v2007 = vshll.u32 %v1844, 16
        %v2009 = vrot.slane %v2007, 6
        %v2010 = vor.u32 %v2006, %v2009
        %v2011 = vsel %vm1881, %v2002, %v2010
        %v2012 = vrot.slane %v2010, 4
        %v2014 = vshrl.u32 %v1845, 16
        %v2016 = vrot.slane %v2014, 5
        %v2017 = vshll.u32 %v1845, 16
        %v2019 = vrot.slane %v2017, 6
        %v2020 = vor.u32 %v2016, %v2019
        %v2021 = vsel %vm1881, %v2012, %v2020
        %v2023 = vshrl.u32 %v1846, 16
        %v2025 = vrot.slane %v2023, 5
        %v2026 = vshll.u32 %v1846, 16
        %v2028 = vrot.slane %v2026, 6
        %v2029 = vor.u32 %v2025, %v2028
        %v2030 = vrot.slane %v2029, 4
        %v2032 = vshrl.u32 %v1847, 16
        %v2034 = vrot.slane %v2032, 5
        %v2035 = vshll.u32 %v1847, 16
        %v2037 = vrot.slane %v2035, 6
        %v2038 = vor.u32 %v2034, %v2037
        %v2039 = vsel %vm1881, %v2030, %v2038
        %v2040 = vrot.slane %v2038, 4
        %v2042 = vshrl.u32 %v1848, 16
        %v2044 = vrot.slane %v2042, 5
        %v2045 = vshll.u32 %v1848, 16
        %v2047 = vrot.slane %v2045, 6
        %v2048 = vor.u32 %v2044, %v2047
        %v2049 = vsel %vm1881, %v2040, %v2048
        %v2051 = vshrl.u32 %v1849, 16
        %v2053 = vrot.slane %v2051, 5
        %v2054 = vshll.u32 %v1849, 16
        %v2056 = vrot.slane %v2054, 6
        %v2057 = vor.u32 %v2053, %v2056
        %v2058 = vrot.slane %v2057, 4
        %v2060 = vshrl.u32 %v1850, 16
        %v2062 = vrot.slane %v2060, 5
        %v2063 = vshll.u32 %v1850, 16
        %v2065 = vrot.slane %v2063, 6
        %v2066 = vor.u32 %v2062, %v2065
        %v2067 = vsel %vm1881, %v2058, %v2066
        %v2068 = vrot.slane %v2066, 4
        %v2070 = vshrl.u32 %v1851, 16
        %v2072 = vrot.slane %v2070, 5
        %v2073 = vshll.u32 %v1851, 16
        %v2075 = vrot.slane %v2073, 6
        %v2076 = vor.u32 %v2072, %v2075
        %v2077 = vsel %vm1881, %v2068, %v2076
        %v2079 = vshrl.u32 %v1852, 16
        %v2081 = vrot.slane %v2079, 5
        %v2082 = vshll.u32 %v1852, 16
        %v2084 = vrot.slane %v2082, 6
        %v2085 = vor.u32 %v2081, %v2084
        %v2086 = vrot.slane %v2085, 4
        %v2088 = vshrl.u32 %v1853, 16
        %v2090 = vrot.slane %v2088, 5
        %v2091 = vshll.u32 %v1853, 16
        %v2093 = vrot.slane %v2091, 6
        %v2094 = vor.u32 %v2090, %v2093
        %v2095 = vsel %vm1881, %v2086, %v2094
        %v2096 = vrot.slane %v2094, 4
        %v2098 = vshrl.u32 %v1854, 16
        %v2100 = vrot.slane %v2098, 5
        %v2101 = vshll.u32 %v1854, 16
        %v2103 = vrot.slane %v2101, 6
        %v2104 = vor.u32 %v2100, %v2103
        %v2105 = vsel %vm1881, %v2096, %v2104
        %v2107 = vshrl.u32 %v1855, 16
        %v2109 = vrot.slane %v2107, 5
        %v2110 = vshll.u32 %v1855, 16
        %v2112 = vrot.slane %v2110, 6
        %v2113 = vor.u32 %v2109, %v2112
        %v2114 = vrot.slane %v2113, 4
        %v2116 = vshrl.u32 %v1856, 16
        %v2118 = vrot.slane %v2116, 5
        %v2119 = vshll.u32 %v1856, 16
        %v2121 = vrot.slane %v2119, 6
        %v2122 = vor.u32 %v2118, %v2121
        %v2123 = vsel %vm1881, %v2114, %v2122
        %v2124 = vrot.slane %v2122, 4
        %v2126 = vshrl.u32 %v1857, 16
        %v2128 = vrot.slane %v2126, 5
        %v2129 = vshll.u32 %v1857, 16
        %v2131 = vrot.slane %v2129, 6
        %v2132 = vor.u32 %v2128, %v2131
        %v2133 = vsel %vm1881, %v2124, %v2132
        %v2135 = vshrl.u32 %v1858, 16
        %v2137 = vrot.slane %v2135, 5
        %v2138 = vshll.u32 %v1858, 16
        %v2140 = vrot.slane %v2138, 6
        %v2141 = vor.u32 %v2137, %v2140
        %v2142 = vrot.slane %v2141, 4
        %v2144 = vshrl.u32 %v1859, 16
        %v2146 = vrot.slane %v2144, 5
        %v2147 = vshll.u32 %v1859, 16
        %v2149 = vrot.slane %v2147, 6
        %v2150 = vor.u32 %v2146, %v2149
        %v2151 = vsel %vm1881, %v2142, %v2150
        %v2152 = vrot.slane %v2150, 4
        %v2154 = vshrl.u32 %v1860, 16
        %v2156 = vrot.slane %v2154, 5
        %v2157 = vshll.u32 %v1860, 16
        %v2159 = vrot.slane %v2157, 6
        %v2160 = vor.u32 %v2156, %v2159
        %v2161 = vsel %vm1881, %v2152, %v2160
        %v2163 = vshrl.u32 %v1861, 16
        %v2165 = vrot.slane %v2163, 5
        %v2166 = vshll.u32 %v1861, 16
        %v2168 = vrot.slane %v2166, 6
        %v2169 = vor.u32 %v2165, %v2168
        %v2170 = vrot.slane %v2169, 4
        %v2172 = vshrl.u32 %v1862, 16
        %v2174 = vrot.slane %v2172, 5
        %v2175 = vshll.u32 %v1862, 16
        %v2177 = vrot.slane %v2175, 6
        %v2178 = vor.u32 %v2174, %v2177
        %v2179 = vsel %vm1881, %v2170, %v2178
        %v2180 = vrot.slane %v2178, 4
        %v2182 = vshrl.u32 %v1863, 16
        %v2184 = vrot.slane %v2182, 5
        %v2185 = vshll.u32 %v1863, 16
        %v2187 = vrot.slane %v2185, 6
        %v2188 = vor.u32 %v2184, %v2187
        %v2189 = vsel %vm1881, %v2180, %v2188
        %v2191 = vshrl.u32 %v1864, 16
        %v2193 = vrot.slane %v2191, 5
        %v2194 = vshll.u32 %v1864, 16
        %v2196 = vrot.slane %v2194, 6
        %v2197 = vor.u32 %v2193, %v2196
        %v2198 = vrot.slane %v2197, 4
        %v2200 = vshrl.u32 %v1865, 16
        %v2202 = vrot.slane %v2200, 5
        %v2203 = vshll.u32 %v1865, 16
        %v2205 = vrot.slane %v2203, 6
        %v2206 = vor.u32 %v2202, %v2205
        %v2207 = vsel %vm1881, %v2198, %v2206
        %v2208 = vrot.slane %v2206, 4
        %v2210 = vshrl.u32 %v1866, 16
        %v2212 = vrot.slane %v2210, 5
        %v2213 = vshll.u32 %v1866, 16
        %v2215 = vrot.slane %v2213, 6
        %v2216 = vor.u32 %v2212, %v2215
        %v2217 = vsel %vm1881, %v2208, %v2216
        %v2219 = vshrl.u32 %v1867, 16
        %v2221 = vrot.slane %v2219, 5
        %v2222 = vshll.u32 %v1867, 16
        %v2224 = vrot.slane %v2222, 6
        %v2225 = vor.u32 %v2221, %v2224
        %v2226 = vrot.slane %v2225, 4
        %v2228 = vshrl.u32 %v1868, 16
        %v2230 = vrot.slane %v2228, 5
        %v2231 = vshll.u32 %v1868, 16
        %v2233 = vrot.slane %v2231, 6
        %v2234 = vor.u32 %v2230, %v2233
        %v2235 = vsel %vm1881, %v2226, %v2234
        %v2236 = vrot.slane %v2234, 4
        %v2238 = vshrl.u32 %v1869, 16
        %v2240 = vrot.slane %v2238, 5
        %v2241 = vshll.u32 %v1869, 16
        %v2243 = vrot.slane %v2241, 6
        %v2244 = vor.u32 %v2240, %v2243
        %v2245 = vsel %vm1881, %v2236, %v2244
        %v2247 = vshrl.u32 %v1870, 16
        %v2249 = vrot.slane %v2247, 5
        %v2250 = vshll.u32 %v1870, 16
        %v2252 = vrot.slane %v2250, 6
        %v2253 = vor.u32 %v2249, %v2252
        %v2254 = vrot.slane %v2253, 4
        %v2256 = vshrl.u32 %v1871, 16
        %v2258 = vrot.slane %v2256, 5
        %v2259 = vshll.u32 %v1871, 16
        %v2261 = vrot.slane %v2259, 6
        %v2262 = vor.u32 %v2258, %v2261
        %v2263 = vsel %vm1881, %v2254, %v2262
        %v2264 = vrot.slane %v2262, 4
        %v2266 = vshrl.u32 %v1872, 16
        %v2268 = vrot.slane %v2266, 5
        %v2269 = vshll.u32 %v1872, 16
        %v2271 = vrot.slane %v2269, 6
        %v2272 = vor.u32 %v2268, %v2271
        %v2273 = vsel %vm1881, %v2264, %v2272
        %v2275 = vshrl.u32 %v1873, 16
        %v2277 = vrot.slane %v2275, 5
        %v2278 = vshll.u32 %v1873, 16
        %v2280 = vrot.slane %v2278, 6
        %v2281 = vor.u32 %v2277, %v2280
        %v2282 = vrot.slane %v2281, 4
        %v2284 = vshrl.u32 %v1874, 16
        %v2286 = vrot.slane %v2284, 5
        %v2287 = vshll.u32 %v1874, 16
        %v2289 = vrot.slane %v2287, 6
        %v2290 = vor.u32 %v2286, %v2289
        %v2291 = vsel %vm1881, %v2282, %v2290
        %v2292 = vrot.slane %v2290, 4
        %v2294 = vshrl.u32 %v1875, 16
        %v2296 = vrot.slane %v2294, 5
        %v2297 = vshll.u32 %v1875, 16
        %v2299 = vrot.slane %v2297, 6
        %v2300 = vor.u32 %v2296, %v2299
        %v2301 = vsel %vm1881, %v2292, %v2300
        %v2303 = vshrl.u32 %v1876, 16
        %v2305 = vrot.slane %v2303, 5
        %v2306 = vshll.u32 %v1876, 16
        %v2308 = vrot.slane %v2306, 6
        %v2309 = vor.u32 %v2305, %v2308
        %v2310 = vrot.slane %v2309, 4
        %v2312 = vshrl.u32 %v1877, 16
        %v2314 = vrot.slane %v2312, 5
        %v2315 = vshll.u32 %v1877, 16
        %v2317 = vrot.slane %v2315, 6
        %v2318 = vor.u32 %v2314, %v2317
        %v2319 = vsel %vm1881, %v2310, %v2318
        %v2320 = vrot.slane %v2318, 4
        %v2322 = vshrl.u32 %v1878, 16
        %v2324 = vrot.slane %v2322, 5
        %v2325 = vshll.u32 %v1878, 16
        %v2327 = vrot.slane %v2325, 6
        %v2328 = vor.u32 %v2324, %v2327
        %v2329 = vsel %vm1881, %v2320, %v2328
        %v2330 = vld [vmem:[#allocation2] sm:$0xff]
        %v2331 = vld [vmem:[#allocation2 + $0x8] sm:$0xff]
        %v2332 = vld [vmem:[#allocation2 + $0x10] sm:$0xff]
        %v2333 = vld [vmem:[#allocation2 + $0x18] sm:$0xff]
        %v2334 = vld [vmem:[#allocation2 + $0x20] sm:$0xff]
        %v2335 = vld [vmem:[#allocation2 + $0x28] sm:$0xff]
        %v2336 = vld [vmem:[#allocation2 + $0x30] sm:$0xff]
        %v2337 = vld [vmem:[#allocation2 + $0x38] sm:$0xff]
        %v2338 = vld [vmem:[#allocation2 + $0x40] sm:$0xff]
        %v2339 = vld [vmem:[#allocation2 + $0x48] sm:$0xff]
        %v2340 = vld [vmem:[#allocation2 + $0x50] sm:$0xff]
        %v2341 = vld [vmem:[#allocation2 + $0x58] sm:$0xff]
        %v2342 = vld [vmem:[#allocation2 + $0x60] sm:$0xff]
        %v2343 = vld [vmem:[#allocation2 + $0x68] sm:$0xff]
        %v2344 = vld [vmem:[#allocation2 + $0x70] sm:$0xff]
        %v2345 = vld [vmem:[#allocation2 + $0x78] sm:$0xff]
        %v2346 = vld [vmem:[#allocation2 + $0x80] sm:$0xff]
        %v2347 = vld [vmem:[#allocation2 + $0x88] sm:$0xff]
        %v2348 = vld [vmem:[#allocation2 + $0x90] sm:$0xff]
        %v2349 = vld [vmem:[#allocation2 + $0x98] sm:$0xff]
        %v2350 = vld [vmem:[#allocation2 + $0xa0] sm:$0xff]
        %v2351 = vld [vmem:[#allocation2 + $0xa8] sm:$0xff]
        %v2352 = vld [vmem:[#allocation2 + $0xb0] sm:$0xff]
        %v2353 = vld [vmem:[#allocation2 + $0xb8] sm:$0xff]
        %v2354 = vld [vmem:[#allocation2 + $0xc0] sm:$0xff]
        %v2355 = vld [vmem:[#allocation2 + $0xc8] sm:$0xff]
        %v2356 = vld [vmem:[#allocation2 + $0xd0] sm:$0xff]
        %v2357 = vld [vmem:[#allocation2 + $0xd8] sm:$0xff]
        %v2358 = vld [vmem:[#allocation2 + $0xe0] sm:$0xff]
        %v2359 = vld [vmem:[#allocation2 + $0xe8] sm:$0xff]
        %v2360 = vld [vmem:[#allocation2 + $0xf0] sm:$0xff]
        %v2361 = vld [vmem:[#allocation2 + $0xf8] sm:$0xff]
        %v2362 = vunpack.c.l.b16 %v1899
        %v2363 = vunpack.c.l.b16 %v1909
        %v2364 = vunpack.c.l.b16 %v1927
        %v2365 = vunpack.c.l.b16 %v1937
        %v2366 = vunpack.c.l.b16 %v1955
        %v2367 = vunpack.c.l.b16 %v1965
        %v2368 = vunpack.c.l.b16 %v1983
        %v2369 = vunpack.c.l.b16 %v1993
        %v2370 = vunpack.c.l.b16 %v2011
        %v2371 = vunpack.c.l.b16 %v2021
        %v2372 = vunpack.c.l.b16 %v2039
        %v2373 = vunpack.c.l.b16 %v2049
        %v2374 = vunpack.c.l.b16 %v2067
        %v2375 = vunpack.c.l.b16 %v2077
        %v2376 = vunpack.c.l.b16 %v2095
        %v2377 = vunpack.c.l.b16 %v2105
        %v2378 = vunpack.c.l.b16 %v2123
        %v2379 = vunpack.c.l.b16 %v2133
        %v2380 = vunpack.c.l.b16 %v2151
        %v2381 = vunpack.c.l.b16 %v2161
        %v2382 = vunpack.c.l.b16 %v2179
        %v2383 = vunpack.c.l.b16 %v2189
        %v2384 = vunpack.c.l.b16 %v2207
        %v2385 = vunpack.c.l.b16 %v2217
        %v2386 = vunpack.c.l.b16 %v2235
        %v2387 = vunpack.c.l.b16 %v2245
        %v2388 = vunpack.c.l.b16 %v2263
        %v2389 = vunpack.c.l.b16 %v2273
        %v2390 = vunpack.c.l.b16 %v2291
        %v2391 = vunpack.c.l.b16 %v2301
        %v2392 = vunpack.c.l.b16 %v2319
        %v2393 = vunpack.c.l.b16 %v2329
        %v2394 = vpack.c.b16 %v2363, %v2362
        %v2395 = vpack.c.b16 %v2365, %v2364
        %v2396 = vpack.c.b16 %v2367, %v2366
        %v2397 = vpack.c.b16 %v2369, %v2368
        %v2398 = vpack.c.b16 %v2371, %v2370
        %v2399 = vpack.c.b16 %v2373, %v2372
        %v2400 = vpack.c.b16 %v2375, %v2374
        %v2401 = vpack.c.b16 %v2377, %v2376
        %v2402 = vpack.c.b16 %v2379, %v2378
        %v2403 = vpack.c.b16 %v2381, %v2380
        %v2404 = vpack.c.b16 %v2383, %v2382
        %v2405 = vpack.c.b16 %v2385, %v2384
        %v2406 = vpack.c.b16 %v2387, %v2386
        %v2407 = vpack.c.b16 %v2389, %v2388
        %v2408 = vpack.c.b16 %v2391, %v2390
        %v2409 = vpack.c.b16 %v2393, %v2392
        %v2412 = vunpack.c.l.b16 %v1829
        %v2413 = vunpack.c.l.b16 %v1830
        %v2414 = vpack.c.b16 %v2413, %v2412
        %v2416 = vsel %vm392, %v2394, 0
        %v2419 = vsel %vm392, %v2395, 0
        %v2422 = vsel %vm392, %v2396, 0
        %v2425 = vsel %vm392, %v2397, 0
        %v2428 = vsel %vm392, %v2398, 0
        %v2431 = vsel %vm392, %v2399, 0
        %v2434 = vsel %vm392, %v2400, 0
        %v2437 = vsel %vm392, %v2401, 0
        %v2440 = vsel %vm392, %v2402, 0
        %v2443 = vsel %vm392, %v2403, 0
        %v2446 = vsel %vm392, %v2404, 0
        %v2449 = vsel %vm392, %v2405, 0
        %v2452 = vsel %vm392, %v2406, 0
        %v2455 = vsel %vm392, %v2407, 0
        %v2458 = vsel %vm392, %v2408, 0
        %v2461 = vsel %vm392, %v2409, 0
        %v2464 = vsel %vm441, %v2414, 0
        %2466 = vmatpush.bf16.msra.mxu0 0
        %2467 = vmatpush.bf16.msra.mxu0 0
        %2468 = vmatpush.bf16.msra.mxu0 0
        %2469 = vmatpush.bf16.msra.mxu0 0
        %2470 = vmatpush.bf16.msra.mxu0 0
        %2471 = vmatpush.bf16.msra.mxu0 0
        %2472 = vmatpush.bf16.msra.mxu0 0
        %2473 = vmatpush.bf16.msra.mxu0 %v2464
        %2474 = vmatmul.bf16.gmra.mxu0 %v2416
        %v2475 = vpop.f32.mrf.mxu0
        %v2476 = vadd.f32 0.0, %v2475
        %v2477 = vpop.f32.mrf.mxu0
        %v2478 = vadd.f32 0.0, %v2477
        %2479 = vmatmul.bf16.gmra.mxu0 %v2419
        %v2480 = vpop.f32.mrf.mxu0
        %v2481 = vadd.f32 0.0, %v2480
        %v2482 = vpop.f32.mrf.mxu0
        %v2483 = vadd.f32 0.0, %v2482
        %2484 = vmatmul.bf16.gmra.mxu0 %v2422
        %v2485 = vpop.f32.mrf.mxu0
        %v2486 = vadd.f32 0.0, %v2485
        %v2487 = vpop.f32.mrf.mxu0
        %v2488 = vadd.f32 0.0, %v2487
        %2489 = vmatmul.bf16.gmra.mxu0 %v2425
        %v2490 = vpop.f32.mrf.mxu0
        %v2491 = vadd.f32 0.0, %v2490
        %v2492 = vpop.f32.mrf.mxu0
        %v2493 = vadd.f32 0.0, %v2492
        %2494 = vmatmul.bf16.gmra.mxu0 %v2428
        %v2495 = vpop.f32.mrf.mxu0
        %v2496 = vadd.f32 0.0, %v2495
        %v2497 = vpop.f32.mrf.mxu0
        %v2498 = vadd.f32 0.0, %v2497
        %2499 = vmatmul.bf16.gmra.mxu0 %v2431
        %v2500 = vpop.f32.mrf.mxu0
        %v2501 = vadd.f32 0.0, %v2500
        %v2502 = vpop.f32.mrf.mxu0
        %v2503 = vadd.f32 0.0, %v2502
        %2504 = vmatmul.bf16.gmra.mxu0 %v2434
        %v2505 = vpop.f32.mrf.mxu0
        %v2506 = vadd.f32 0.0, %v2505
        %v2507 = vpop.f32.mrf.mxu0
        %v2508 = vadd.f32 0.0, %v2507
        %2509 = vmatmul.bf16.gmra.mxu0 %v2437
        %v2510 = vpop.f32.mrf.mxu0
        %v2511 = vadd.f32 0.0, %v2510
        %v2512 = vpop.f32.mrf.mxu0
        %v2513 = vadd.f32 0.0, %v2512
        %2514 = vmatmul.bf16.gmra.mxu0 %v2440
        %v2515 = vpop.f32.mrf.mxu0
        %v2516 = vadd.f32 0.0, %v2515
        %v2517 = vpop.f32.mrf.mxu0
        %v2518 = vadd.f32 0.0, %v2517
        %2519 = vmatmul.bf16.gmra.mxu0 %v2443
        %v2520 = vpop.f32.mrf.mxu0
        %v2521 = vadd.f32 0.0, %v2520
        %v2522 = vpop.f32.mrf.mxu0
        %v2523 = vadd.f32 0.0, %v2522
        %2524 = vmatmul.bf16.gmra.mxu0 %v2446
        %v2525 = vpop.f32.mrf.mxu0
        %v2526 = vadd.f32 0.0, %v2525
        %v2527 = vpop.f32.mrf.mxu0
        %v2528 = vadd.f32 0.0, %v2527
        %2529 = vmatmul.bf16.gmra.mxu0 %v2449
        %v2530 = vpop.f32.mrf.mxu0
        %v2531 = vadd.f32 0.0, %v2530
        %v2532 = vpop.f32.mrf.mxu0
        %v2533 = vadd.f32 0.0, %v2532
        %2534 = vmatmul.bf16.gmra.mxu0 %v2452
        %v2535 = vpop.f32.mrf.mxu0
        %v2536 = vadd.f32 0.0, %v2535
        %v2537 = vpop.f32.mrf.mxu0
        %v2538 = vadd.f32 0.0, %v2537
        %2539 = vmatmul.bf16.gmra.mxu0 %v2455
        %v2540 = vpop.f32.mrf.mxu0
        %v2541 = vadd.f32 0.0, %v2540
        %v2542 = vpop.f32.mrf.mxu0
        %v2543 = vadd.f32 0.0, %v2542
        %2544 = vmatmul.bf16.gmra.mxu0 %v2458
        %v2545 = vpop.f32.mrf.mxu0
        %v2546 = vadd.f32 0.0, %v2545
        %v2547 = vpop.f32.mrf.mxu0
        %v2548 = vadd.f32 0.0, %v2547
        %2549 = vmatmul.bf16.gmra.mxu0 %v2461
        %v2550 = vpop.f32.mrf.mxu0
        %v2551 = vadd.f32 0.0, %v2550
        %v2552 = vpop.f32.mrf.mxu0
        %v2553 = vadd.f32 0.0, %v2552
        %2554 = vdwg.mxu0
        %v2555 = vadd.f32 %v2330, %v2476
        %v2556 = vadd.f32 %v2331, %v2478
        %v2557 = vadd.f32 %v2332, %v2481
        %v2558 = vadd.f32 %v2333, %v2483
        %v2559 = vadd.f32 %v2334, %v2486
        %v2560 = vadd.f32 %v2335, %v2488
        %v2561 = vadd.f32 %v2336, %v2491
        %v2562 = vadd.f32 %v2337, %v2493
        %v2563 = vadd.f32 %v2338, %v2496
        %v2564 = vadd.f32 %v2339, %v2498
        %v2565 = vadd.f32 %v2340, %v2501
        %v2566 = vadd.f32 %v2341, %v2503
        %v2567 = vadd.f32 %v2342, %v2506
        %v2568 = vadd.f32 %v2343, %v2508
        %v2569 = vadd.f32 %v2344, %v2511
        %v2570 = vadd.f32 %v2345, %v2513
        %v2571 = vadd.f32 %v2346, %v2516
        %v2572 = vadd.f32 %v2347, %v2518
        %v2573 = vadd.f32 %v2348, %v2521
        %v2574 = vadd.f32 %v2349, %v2523
        %v2575 = vadd.f32 %v2350, %v2526
        %v2576 = vadd.f32 %v2351, %v2528
        %v2577 = vadd.f32 %v2352, %v2531
        %v2578 = vadd.f32 %v2353, %v2533
        %v2579 = vadd.f32 %v2354, %v2536
        %v2580 = vadd.f32 %v2355, %v2538
        %v2581 = vadd.f32 %v2356, %v2541
        %v2582 = vadd.f32 %v2357, %v2543
        %v2583 = vadd.f32 %v2358, %v2546
        %v2584 = vadd.f32 %v2359, %v2548
        %v2585 = vadd.f32 %v2360, %v2551
        %v2586 = vadd.f32 %v2361, %v2553
        %2587 = vst.msk [vmem:[#allocation2] sm:$0xff] %vm208, %v2555
        %2588 = vst.msk [vmem:[#allocation2 + $0x8] sm:$0xff] %vm208, %v2556
        %2589 = vst.msk [vmem:[#allocation2 + $0x10] sm:$0xff] %vm208, %v2557
        %2590 = vst.msk [vmem:[#allocation2 + $0x18] sm:$0xff] %vm208, %v2558
        %2591 = vst.msk [vmem:[#allocation2 + $0x20] sm:$0xff] %vm208, %v2559
        %2592 = vst.msk [vmem:[#allocation2 + $0x28] sm:$0xff] %vm208, %v2560
        %2593 = vst.msk [vmem:[#allocation2 + $0x30] sm:$0xff] %vm208, %v2561
        %2594 = vst.msk [vmem:[#allocation2 + $0x38] sm:$0xff] %vm208, %v2562
        %2595 = vst.msk [vmem:[#allocation2 + $0x40] sm:$0xff] %vm208, %v2563
        %2596 = vst.msk [vmem:[#allocation2 + $0x48] sm:$0xff] %vm208, %v2564
        %2597 = vst.msk [vmem:[#allocation2 + $0x50] sm:$0xff] %vm208, %v2565
        %2598 = vst.msk [vmem:[#allocation2 + $0x58] sm:$0xff] %vm208, %v2566
        %2599 = vst.msk [vmem:[#allocation2 + $0x60] sm:$0xff] %vm208, %v2567
        %2600 = vst.msk [vmem:[#allocation2 + $0x68] sm:$0xff] %vm208, %v2568
        %2601 = vst.msk [vmem:[#allocation2 + $0x70] sm:$0xff] %vm208, %v2569
        %2602 = vst.msk [vmem:[#allocation2 + $0x78] sm:$0xff] %vm208, %v2570
        %2603 = vst.msk [vmem:[#allocation2 + $0x80] sm:$0xff] %vm208, %v2571
        %2604 = vst.msk [vmem:[#allocation2 + $0x88] sm:$0xff] %vm208, %v2572
        %2605 = vst.msk [vmem:[#allocation2 + $0x90] sm:$0xff] %vm208, %v2573
        %2606 = vst.msk [vmem:[#allocation2 + $0x98] sm:$0xff] %vm208, %v2574
        %2607 = vst.msk [vmem:[#allocation2 + $0xa0] sm:$0xff] %vm208, %v2575
        %2608 = vst.msk [vmem:[#allocation2 + $0xa8] sm:$0xff] %vm208, %v2576
        %2609 = vst.msk [vmem:[#allocation2 + $0xb0] sm:$0xff] %vm208, %v2577
        %2610 = vst.msk [vmem:[#allocation2 + $0xb8] sm:$0xff] %vm208, %v2578
        %2611 = vst.msk [vmem:[#allocation2 + $0xc0] sm:$0xff] %vm208, %v2579
        %2612 = vst.msk [vmem:[#allocation2 + $0xc8] sm:$0xff] %vm208, %v2580
        %2613 = vst.msk [vmem:[#allocation2 + $0xd0] sm:$0xff] %vm208, %v2581
        %2614 = vst.msk [vmem:[#allocation2 + $0xd8] sm:$0xff] %vm208, %v2582
        %2615 = vst.msk [vmem:[#allocation2 + $0xe0] sm:$0xff] %vm208, %v2583
        %2616 = vst.msk [vmem:[#allocation2 + $0xe8] sm:$0xff] %vm208, %v2584
        %2617 = vst.msk [vmem:[#allocation2 + $0xf0] sm:$0xff] %vm208, %v2585
        %2618 = vst.msk [vmem:[#allocation2 + $0xf8] sm:$0xff] %vm208, %v2586
        %s2619 = scalar_lea.vmem %s1, 32
        %v2620 = vld [vmem:[%s2619] sm:$0xf]
        %v2621 = vld [vmem:[%s2619 + $0x4] sm:$0x3]
        %s2622 = scalar_lea.vmem %s200, 12
        %v2623 = vld [vmem:[%s2622] sm:$0xf]
        %v2624 = vld [vmem:[%s2622 + $0x4] sm:$0xf]
        %v2625 = vld [vmem:[%s2622 + $0xc] sm:$0xf]
        %v2626 = vld [vmem:[%s2622 + $0x10] sm:$0xf]
        %v2627 = vld [vmem:[%s2622 + $0x18] sm:$0xf]
        %v2628 = vld [vmem:[%s2622 + $0x1c] sm:$0xf]
        %v2629 = vld [vmem:[%s2622 + $0x24] sm:$0xf]
        %v2630 = vld [vmem:[%s2622 + $0x28] sm:$0xf]
        %v2631 = vld [vmem:[%s2622 + $0x30] sm:$0xf]
        %v2632 = vld [vmem:[%s2622 + $0x34] sm:$0xf]
        %v2633 = vld [vmem:[%s2622 + $0x3c] sm:$0xf]
        %v2634 = vld [vmem:[%s2622 + $0x40] sm:$0xf]
        %v2635 = vld [vmem:[%s2622 + $0x48] sm:$0xf]
        %v2636 = vld [vmem:[%s2622 + $0x4c] sm:$0xf]
        %v2637 = vld [vmem:[%s2622 + $0x54] sm:$0xf]
        %v2638 = vld [vmem:[%s2622 + $0x58] sm:$0xf]
        %v2639 = vld [vmem:[%s2622 + $0x60] sm:$0xf]
        %v2640 = vld [vmem:[%s2622 + $0x64] sm:$0xf]
        %v2641 = vld [vmem:[%s2622 + $0x6c] sm:$0xf]
        %v2642 = vld [vmem:[%s2622 + $0x70] sm:$0xf]
        %v2643 = vld [vmem:[%s2622 + $0x78] sm:$0xf]
        %v2644 = vld [vmem:[%s2622 + $0x7c] sm:$0xf]
        %v2645 = vld [vmem:[%s2622 + $0x84] sm:$0xf]
        %v2646 = vld [vmem:[%s2622 + $0x88] sm:$0xf]
        %v2647 = vld [vmem:[%s2622 + $0x90] sm:$0xf]
        %v2648 = vld [vmem:[%s2622 + $0x94] sm:$0xf]
        %v2649 = vld [vmem:[%s2622 + $0x9c] sm:$0xf]
        %v2650 = vld [vmem:[%s2622 + $0xa0] sm:$0xf]
        %v2651 = vld [vmem:[%s2622 + $0xa8] sm:$0xf]
        %v2652 = vld [vmem:[%s2622 + $0xac] sm:$0xf]
        %v2653 = vld [vmem:[%s2622 + $0xb4] sm:$0xf]
        %v2654 = vld [vmem:[%s2622 + $0xb8] sm:$0xf]
        %v2655 = vld [vmem:[#allocation2] sm:$0xff]
        %v2656 = vld [vmem:[#allocation2 + $0x8] sm:$0xff]
        %v2657 = vld [vmem:[#allocation2 + $0x10] sm:$0xff]
        %v2658 = vld [vmem:[#allocation2 + $0x18] sm:$0xff]
        %v2659 = vld [vmem:[#allocation2 + $0x20] sm:$0xff]
        %v2660 = vld [vmem:[#allocation2 + $0x28] sm:$0xff]
        %v2661 = vld [vmem:[#allocation2 + $0x30] sm:$0xff]
        %v2662 = vld [vmem:[#allocation2 + $0x38] sm:$0xff]
        %v2663 = vld [vmem:[#allocation2 + $0x40] sm:$0xff]
        %v2664 = vld [vmem:[#allocation2 + $0x48] sm:$0xff]
        %v2665 = vld [vmem:[#allocation2 + $0x50] sm:$0xff]
        %v2666 = vld [vmem:[#allocation2 + $0x58] sm:$0xff]
        %v2667 = vld [vmem:[#allocation2 + $0x60] sm:$0xff]
        %v2668 = vld [vmem:[#allocation2 + $0x68] sm:$0xff]
        %v2669 = vld [vmem:[#allocation2 + $0x70] sm:$0xff]
        %v2670 = vld [vmem:[#allocation2 + $0x78] sm:$0xff]
        %v2671 = vld [vmem:[#allocation2 + $0x80] sm:$0xff]
        %v2672 = vld [vmem:[#allocation2 + $0x88] sm:$0xff]
        %v2673 = vld [vmem:[#allocation2 + $0x90] sm:$0xff]
        %v2674 = vld [vmem:[#allocation2 + $0x98] sm:$0xff]
        %v2675 = vld [vmem:[#allocation2 + $0xa0] sm:$0xff]
        %v2676 = vld [vmem:[#allocation2 + $0xa8] sm:$0xff]
        %v2677 = vld [vmem:[#allocation2 + $0xb0] sm:$0xff]
        %v2678 = vld [vmem:[#allocation2 + $0xb8] sm:$0xff]
        %v2679 = vld [vmem:[#allocation2 + $0xc0] sm:$0xff]
        %v2680 = vld [vmem:[#allocation2 + $0xc8] sm:$0xff]
        %v2681 = vld [vmem:[#allocation2 + $0xd0] sm:$0xff]
        %v2682 = vld [vmem:[#allocation2 + $0xd8] sm:$0xff]
        %v2683 = vld [vmem:[#allocation2 + $0xe0] sm:$0xff]
        %v2684 = vld [vmem:[#allocation2 + $0xe8] sm:$0xff]
        %v2685 = vld [vmem:[#allocation2 + $0xf0] sm:$0xff]
        %v2686 = vld [vmem:[#allocation2 + $0xf8] sm:$0xff]
        %v2719 = vunpack.c.l.b16 %v2623
        %v2720 = vunpack.c.l.b16 %v2624
        %v2721 = vunpack.c.l.b16 %v2625
        %v2722 = vunpack.c.l.b16 %v2626
        %v2723 = vunpack.c.l.b16 %v2627
        %v2724 = vunpack.c.l.b16 %v2628
        %v2725 = vunpack.c.l.b16 %v2629
        %v2726 = vunpack.c.l.b16 %v2630
        %v2727 = vunpack.c.l.b16 %v2631
        %v2728 = vunpack.c.l.b16 %v2632
        %v2729 = vunpack.c.l.b16 %v2633
        %v2730 = vunpack.c.l.b16 %v2634
        %v2731 = vunpack.c.l.b16 %v2635
        %v2732 = vunpack.c.l.b16 %v2636
        %v2733 = vunpack.c.l.b16 %v2637
        %v2734 = vunpack.c.l.b16 %v2638
        %v2735 = vunpack.c.l.b16 %v2639
        %v2736 = vunpack.c.l.b16 %v2640
        %v2737 = vunpack.c.l.b16 %v2641
        %v2738 = vunpack.c.l.b16 %v2642
        %v2739 = vunpack.c.l.b16 %v2643
        %v2740 = vunpack.c.l.b16 %v2644
        %v2741 = vunpack.c.l.b16 %v2645
        %v2742 = vunpack.c.l.b16 %v2646
        %v2743 = vunpack.c.l.b16 %v2647
        %v2744 = vunpack.c.l.b16 %v2648
        %v2745 = vunpack.c.l.b16 %v2649
        %v2746 = vunpack.c.l.b16 %v2650
        %v2747 = vunpack.c.l.b16 %v2651
        %v2748 = vunpack.c.l.b16 %v2652
        %v2749 = vunpack.c.l.b16 %v2653
        %v2750 = vunpack.c.l.b16 %v2654
        %v2751 = vpack.c.b16 %v2720, %v2719
        %v2752 = vpack.c.b16 %v2722, %v2721
        %v2753 = vpack.c.b16 %v2724, %v2723
        %v2754 = vpack.c.b16 %v2726, %v2725
        %v2755 = vpack.c.b16 %v2728, %v2727
        %v2756 = vpack.c.b16 %v2730, %v2729
        %v2757 = vpack.c.b16 %v2732, %v2731
        %v2758 = vpack.c.b16 %v2734, %v2733
        %v2759 = vpack.c.b16 %v2736, %v2735
        %v2760 = vpack.c.b16 %v2738, %v2737
        %v2761 = vpack.c.b16 %v2740, %v2739
        %v2762 = vpack.c.b16 %v2742, %v2741
        %v2763 = vpack.c.b16 %v2744, %v2743
        %v2764 = vpack.c.b16 %v2746, %v2745
        %v2765 = vpack.c.b16 %v2748, %v2747
        %v2766 = vpack.c.b16 %v2750, %v2749
        %v2769 = vunpack.c.l.b16 %v2620
        %v2770 = vunpack.c.l.b16 %v2621
        %v2771 = vpack.c.b16 %v2770, %v2769
        %v2773 = vsel %vm392, %v2751, 0
        %v2776 = vsel %vm392, %v2752, 0
        %v2779 = vsel %vm392, %v2753, 0
        %v2782 = vsel %vm392, %v2754, 0
        %v2785 = vsel %vm392, %v2755, 0
        %v2788 = vsel %vm392, %v2756, 0
        %v2791 = vsel %vm392, %v2757, 0
        %v2794 = vsel %vm392, %v2758, 0
        %v2797 = vsel %vm392, %v2759, 0
        %v2800 = vsel %vm392, %v2760, 0
        %v2803 = vsel %vm392, %v2761, 0
        %v2806 = vsel %vm392, %v2762, 0
        %v2809 = vsel %vm392, %v2763, 0
        %v2812 = vsel %vm392, %v2764, 0
        %v2815 = vsel %vm392, %v2765, 0
        %v2818 = vsel %vm392, %v2766, 0
        %v2821 = vsel %vm441, %v2771, 0
        %2823 = vmatpush.bf16.msra.mxu0 0
        %2824 = vmatpush.bf16.msra.mxu0 0
        %2825 = vmatpush.bf16.msra.mxu0 0
        %2826 = vmatpush.bf16.msra.mxu0 0
        %2827 = vmatpush.bf16.msra.mxu0 0
        %2828 = vmatpush.bf16.msra.mxu0 0
        %2829 = vmatpush.bf16.msra.mxu0 0
        %2830 = vmatpush.bf16.msra.mxu0 %v2821
        %2831 = vmatmul.bf16.gmra.mxu0 %v2773
        %v2832 = vpop.f32.mrf.mxu0
        %v2833 = vadd.f32 0.0, %v2832
        %v2834 = vpop.f32.mrf.mxu0
        %v2835 = vadd.f32 0.0, %v2834
        %2836 = vmatmul.bf16.gmra.mxu0 %v2776
        %v2837 = vpop.f32.mrf.mxu0
        %v2838 = vadd.f32 0.0, %v2837
        %v2839 = vpop.f32.mrf.mxu0
        %v2840 = vadd.f32 0.0, %v2839
        %2841 = vmatmul.bf16.gmra.mxu0 %v2779
        %v2842 = vpop.f32.mrf.mxu0
        %v2843 = vadd.f32 0.0, %v2842
        %v2844 = vpop.f32.mrf.mxu0
        %v2845 = vadd.f32 0.0, %v2844
        %2846 = vmatmul.bf16.gmra.mxu0 %v2782
        %v2847 = vpop.f32.mrf.mxu0
        %v2848 = vadd.f32 0.0, %v2847
        %v2849 = vpop.f32.mrf.mxu0
        %v2850 = vadd.f32 0.0, %v2849
        %2851 = vmatmul.bf16.gmra.mxu0 %v2785
        %v2852 = vpop.f32.mrf.mxu0
        %v2853 = vadd.f32 0.0, %v2852
        %v2854 = vpop.f32.mrf.mxu0
        %v2855 = vadd.f32 0.0, %v2854
        %2856 = vmatmul.bf16.gmra.mxu0 %v2788
        %v2857 = vpop.f32.mrf.mxu0
        %v2858 = vadd.f32 0.0, %v2857
        %v2859 = vpop.f32.mrf.mxu0
        %v2860 = vadd.f32 0.0, %v2859
        %2861 = vmatmul.bf16.gmra.mxu0 %v2791
        %v2862 = vpop.f32.mrf.mxu0
        %v2863 = vadd.f32 0.0, %v2862
        %v2864 = vpop.f32.mrf.mxu0
        %v2865 = vadd.f32 0.0, %v2864
        %2866 = vmatmul.bf16.gmra.mxu0 %v2794
        %v2867 = vpop.f32.mrf.mxu0
        %v2868 = vadd.f32 0.0, %v2867
        %v2869 = vpop.f32.mrf.mxu0
        %v2870 = vadd.f32 0.0, %v2869
        %2871 = vmatmul.bf16.gmra.mxu0 %v2797
        %v2872 = vpop.f32.mrf.mxu0
        %v2873 = vadd.f32 0.0, %v2872
        %v2874 = vpop.f32.mrf.mxu0
        %v2875 = vadd.f32 0.0, %v2874
        %2876 = vmatmul.bf16.gmra.mxu0 %v2800
        %v2877 = vpop.f32.mrf.mxu0
        %v2878 = vadd.f32 0.0, %v2877
        %v2879 = vpop.f32.mrf.mxu0
        %v2880 = vadd.f32 0.0, %v2879
        %2881 = vmatmul.bf16.gmra.mxu0 %v2803
        %v2882 = vpop.f32.mrf.mxu0
        %v2883 = vadd.f32 0.0, %v2882
        %v2884 = vpop.f32.mrf.mxu0
        %v2885 = vadd.f32 0.0, %v2884
        %2886 = vmatmul.bf16.gmra.mxu0 %v2806
        %v2887 = vpop.f32.mrf.mxu0
        %v2888 = vadd.f32 0.0, %v2887
        %v2889 = vpop.f32.mrf.mxu0
        %v2890 = vadd.f32 0.0, %v2889
        %2891 = vmatmul.bf16.gmra.mxu0 %v2809
        %v2892 = vpop.f32.mrf.mxu0
        %v2893 = vadd.f32 0.0, %v2892
        %v2894 = vpop.f32.mrf.mxu0
        %v2895 = vadd.f32 0.0, %v2894
        %2896 = vmatmul.bf16.gmra.mxu0 %v2812
        %v2897 = vpop.f32.mrf.mxu0
        %v2898 = vadd.f32 0.0, %v2897
        %v2899 = vpop.f32.mrf.mxu0
        %v2900 = vadd.f32 0.0, %v2899
        %2901 = vmatmul.bf16.gmra.mxu0 %v2815
        %v2902 = vpop.f32.mrf.mxu0
        %v2903 = vadd.f32 0.0, %v2902
        %v2904 = vpop.f32.mrf.mxu0
        %v2905 = vadd.f32 0.0, %v2904
        %2906 = vmatmul.bf16.gmra.mxu0 %v2818
        %v2907 = vpop.f32.mrf.mxu0
        %v2908 = vadd.f32 0.0, %v2907
        %v2909 = vpop.f32.mrf.mxu0
        %v2910 = vadd.f32 0.0, %v2909
        %2911 = vdwg.mxu0
        %v2912 = vadd.f32 %v2655, %v2833
        %v2913 = vadd.f32 %v2656, %v2835
        %v2914 = vadd.f32 %v2657, %v2838
        %v2915 = vadd.f32 %v2658, %v2840
        %v2916 = vadd.f32 %v2659, %v2843
        %v2917 = vadd.f32 %v2660, %v2845
        %v2918 = vadd.f32 %v2661, %v2848
        %v2919 = vadd.f32 %v2662, %v2850
        %v2920 = vadd.f32 %v2663, %v2853
        %v2921 = vadd.f32 %v2664, %v2855
        %v2922 = vadd.f32 %v2665, %v2858
        %v2923 = vadd.f32 %v2666, %v2860
        %v2924 = vadd.f32 %v2667, %v2863
        %v2925 = vadd.f32 %v2668, %v2865
        %v2926 = vadd.f32 %v2669, %v2868
        %v2927 = vadd.f32 %v2670, %v2870
        %v2928 = vadd.f32 %v2671, %v2873
        %v2929 = vadd.f32 %v2672, %v2875
        %v2930 = vadd.f32 %v2673, %v2878
        %v2931 = vadd.f32 %v2674, %v2880
        %v2932 = vadd.f32 %v2675, %v2883
        %v2933 = vadd.f32 %v2676, %v2885
        %v2934 = vadd.f32 %v2677, %v2888
        %v2935 = vadd.f32 %v2678, %v2890
        %v2936 = vadd.f32 %v2679, %v2893
        %v2937 = vadd.f32 %v2680, %v2895
        %v2938 = vadd.f32 %v2681, %v2898
        %v2939 = vadd.f32 %v2682, %v2900
        %v2940 = vadd.f32 %v2683, %v2903
        %v2941 = vadd.f32 %v2684, %v2905
        %v2942 = vadd.f32 %v2685, %v2908
        %v2943 = vadd.f32 %v2686, %v2910
        %2944 = vst.msk [vmem:[#allocation2] sm:$0xff] %vm208, %v2912
        %2945 = vst.msk [vmem:[#allocation2 + $0x8] sm:$0xff] %vm208, %v2913
        %2946 = vst.msk [vmem:[#allocation2 + $0x10] sm:$0xff] %vm208, %v2914
        %2947 = vst.msk [vmem:[#allocation2 + $0x18] sm:$0xff] %vm208, %v2915
        %2948 = vst.msk [vmem:[#allocation2 + $0x20] sm:$0xff] %vm208, %v2916
        %2949 = vst.msk [vmem:[#allocation2 + $0x28] sm:$0xff] %vm208, %v2917
        %2950 = vst.msk [vmem:[#allocation2 + $0x30] sm:$0xff] %vm208, %v2918
        %2951 = vst.msk [vmem:[#allocation2 + $0x38] sm:$0xff] %vm208, %v2919
        %2952 = vst.msk [vmem:[#allocation2 + $0x40] sm:$0xff] %vm208, %v2920
        %2953 = vst.msk [vmem:[#allocation2 + $0x48] sm:$0xff] %vm208, %v2921
        %2954 = vst.msk [vmem:[#allocation2 + $0x50] sm:$0xff] %vm208, %v2922
        %2955 = vst.msk [vmem:[#allocation2 + $0x58] sm:$0xff] %vm208, %v2923
        %2956 = vst.msk [vmem:[#allocation2 + $0x60] sm:$0xff] %vm208, %v2924
        %2957 = vst.msk [vmem:[#allocation2 + $0x68] sm:$0xff] %vm208, %v2925
        %2958 = vst.msk [vmem:[#allocation2 + $0x70] sm:$0xff] %vm208, %v2926
        %2959 = vst.msk [vmem:[#allocation2 + $0x78] sm:$0xff] %vm208, %v2927
        %2960 = vst.msk [vmem:[#allocation2 + $0x80] sm:$0xff] %vm208, %v2928
        %2961 = vst.msk [vmem:[#allocation2 + $0x88] sm:$0xff] %vm208, %v2929
        %2962 = vst.msk [vmem:[#allocation2 + $0x90] sm:$0xff] %vm208, %v2930
        %2963 = vst.msk [vmem:[#allocation2 + $0x98] sm:$0xff] %vm208, %v2931
        %2964 = vst.msk [vmem:[#allocation2 + $0xa0] sm:$0xff] %vm208, %v2932
        %2965 = vst.msk [vmem:[#allocation2 + $0xa8] sm:$0xff] %vm208, %v2933
        %2966 = vst.msk [vmem:[#allocation2 + $0xb0] sm:$0xff] %vm208, %v2934
        %2967 = vst.msk [vmem:[#allocation2 + $0xb8] sm:$0xff] %vm208, %v2935
        %2968 = vst.msk [vmem:[#allocation2 + $0xc0] sm:$0xff] %vm208, %v2936
        %2969 = vst.msk [vmem:[#allocation2 + $0xc8] sm:$0xff] %vm208, %v2937
        %2970 = vst.msk [vmem:[#allocation2 + $0xd0] sm:$0xff] %vm208, %v2938
        %2971 = vst.msk [vmem:[#allocation2 + $0xd8] sm:$0xff] %vm208, %v2939
        %2972 = vst.msk [vmem:[#allocation2 + $0xe0] sm:$0xff] %vm208, %v2940
        %2973 = vst.msk [vmem:[#allocation2 + $0xe8] sm:$0xff] %vm208, %v2941
        %2974 = vst.msk [vmem:[#allocation2 + $0xf0] sm:$0xff] %vm208, %v2942
        %2975 = vst.msk [vmem:[#allocation2 + $0xf8] sm:$0xff] %vm208, %v2943
        %s2976 = scalar_lea.vmem %s1, 40
        %v2977 = vld [vmem:[%s2976] sm:$0xf]
        %v2978 = vld [vmem:[%s2976 + $0x4] sm:$0x3]
        %v2979 = vld [vmem:[%s2622] sm:$0xf]
        %v2980 = vld [vmem:[%s2622 + $0x4] sm:$0xf]
        %v2981 = vld [vmem:[%s2622 + $0x8] sm:$0x1]
        %v2982 = vld [vmem:[%s2622 + $0xc] sm:$0xf]
        %v2983 = vld [vmem:[%s2622 + $0x10] sm:$0xf]
        %v2984 = vld [vmem:[%s2622 + $0x14] sm:$0x1]
        %v2985 = vld [vmem:[%s2622 + $0x18] sm:$0xf]
        %v2986 = vld [vmem:[%s2622 + $0x1c] sm:$0xf]
        %v2987 = vld [vmem:[%s2622 + $0x20] sm:$0x1]
        %v2988 = vld [vmem:[%s2622 + $0x24] sm:$0xf]
        %v2989 = vld [vmem:[%s2622 + $0x28] sm:$0xf]
        %v2990 = vld [vmem:[%s2622 + $0x2c] sm:$0x1]
        %v2991 = vld [vmem:[%s2622 + $0x30] sm:$0xf]
        %v2992 = vld [vmem:[%s2622 + $0x34] sm:$0xf]
        %v2993 = vld [vmem:[%s2622 + $0x38] sm:$0x1]
        %v2994 = vld [vmem:[%s2622 + $0x3c] sm:$0xf]
        %v2995 = vld [vmem:[%s2622 + $0x40] sm:$0xf]
        %v2996 = vld [vmem:[%s2622 + $0x44] sm:$0x1]
        %v2997 = vld [vmem:[%s2622 + $0x48] sm:$0xf]
        %v2998 = vld [vmem:[%s2622 + $0x4c] sm:$0xf]
        %v2999 = vld [vmem:[%s2622 + $0x50] sm:$0x1]
        %v3000 = vld [vmem:[%s2622 + $0x54] sm:$0xf]
        %v3001 = vld [vmem:[%s2622 + $0x58] sm:$0xf]
        %v3002 = vld [vmem:[%s2622 + $0x5c] sm:$0x1]
        %v3003 = vld [vmem:[%s2622 + $0x60] sm:$0xf]
        %v3004 = vld [vmem:[%s2622 + $0x64] sm:$0xf]
        %v3005 = vld [vmem:[%s2622 + $0x68] sm:$0x1]
        %v3006 = vld [vmem:[%s2622 + $0x6c] sm:$0xf]
        %v3007 = vld [vmem:[%s2622 + $0x70] sm:$0xf]
        %v3008 = vld [vmem:[%s2622 + $0x74] sm:$0x1]
        %v3009 = vld [vmem:[%s2622 + $0x78] sm:$0xf]
        %v3010 = vld [vmem:[%s2622 + $0x7c] sm:$0xf]
        %v3011 = vld [vmem:[%s2622 + $0x80] sm:$0x1]
        %v3012 = vld [vmem:[%s2622 + $0x84] sm:$0xf]
        %v3013 = vld [vmem:[%s2622 + $0x88] sm:$0xf]
        %v3014 = vld [vmem:[%s2622 + $0x8c] sm:$0x1]
        %v3015 = vld [vmem:[%s2622 + $0x90] sm:$0xf]
        %v3016 = vld [vmem:[%s2622 + $0x94] sm:$0xf]
        %v3017 = vld [vmem:[%s2622 + $0x98] sm:$0x1]
        %v3018 = vld [vmem:[%s2622 + $0x9c] sm:$0xf]
        %v3019 = vld [vmem:[%s2622 + $0xa0] sm:$0xf]
        %v3020 = vld [vmem:[%s2622 + $0xa4] sm:$0x1]
        %v3021 = vld [vmem:[%s2622 + $0xa8] sm:$0xf]
        %v3022 = vld [vmem:[%s2622 + $0xac] sm:$0xf]
        %v3023 = vld [vmem:[%s2622 + $0xb0] sm:$0x1]
        %v3024 = vld [vmem:[%s2622 + $0xb4] sm:$0xf]
        %v3025 = vld [vmem:[%s2622 + $0xb8] sm:$0xf]
        %v3026 = vld [vmem:[%s2622 + $0xbc] sm:$0x1]
        %v3028 = vshrl.u32 %v2979, 16
        %v3030 = vrot.slane %v3028, 4
        %v3031 = vshll.u32 %v2979, 16
        %v3033 = vrot.slane %v3031, 5
        %v3034 = vor.u32 %v3030, %v3033
        %v3035 = vrot.slane %v3034, 4
        %v3037 = vshll.u32 %v2980, 16
        %v3039 = vrot.slane %v3037, 5
        %v3040 = vsel %vm651, %v3035, %v3039
        %v3041 = vshrl.u32 %v2980, 16
        %v3043 = vrot.slane %v3041, 4
        %v3044 = vor.u32 %v3043, %v3039
        %v3045 = vrot.slane %v3044, 4
        %v3047 = vshll.u32 %v2981, 16
        %v3049 = vrot.slane %v3047, 5
        %v3050 = vsel %vm651, %v3045, %v3049
        %v3052 = vshrl.u32 %v2982, 16
        %v3054 = vrot.slane %v3052, 4
        %v3055 = vshll.u32 %v2982, 16
        %v3057 = vrot.slane %v3055, 5
        %v3058 = vor.u32 %v3054, %v3057
        %v3059 = vrot.slane %v3058, 4
        %v3061 = vshll.u32 %v2983, 16
        %v3063 = vrot.slane %v3061, 5
        %v3064 = vsel %vm651, %v3059, %v3063
        %v3065 = vshrl.u32 %v2983, 16
        %v3067 = vrot.slane %v3065, 4
        %v3068 = vor.u32 %v3067, %v3063
        %v3069 = vrot.slane %v3068, 4
        %v3071 = vshll.u32 %v2984, 16
        %v3073 = vrot.slane %v3071, 5
        %v3074 = vsel %vm651, %v3069, %v3073
        %v3076 = vshrl.u32 %v2985, 16
        %v3078 = vrot.slane %v3076, 4
        %v3079 = vshll.u32 %v2985, 16
        %v3081 = vrot.slane %v3079, 5
        %v3082 = vor.u32 %v3078, %v3081
        %v3083 = vrot.slane %v3082, 4
        %v3085 = vshll.u32 %v2986, 16
        %v3087 = vrot.slane %v3085, 5
        %v3088 = vsel %vm651, %v3083, %v3087
        %v3089 = vshrl.u32 %v2986, 16
        %v3091 = vrot.slane %v3089, 4
        %v3092 = vor.u32 %v3091, %v3087
        %v3093 = vrot.slane %v3092, 4
        %v3095 = vshll.u32 %v2987, 16
        %v3097 = vrot.slane %v3095, 5
        %v3098 = vsel %vm651, %v3093, %v3097
        %v3100 = vshrl.u32 %v2988, 16
        %v3102 = vrot.slane %v3100, 4
        %v3103 = vshll.u32 %v2988, 16
        %v3105 = vrot.slane %v3103, 5
        %v3106 = vor.u32 %v3102, %v3105
        %v3107 = vrot.slane %v3106, 4
        %v3109 = vshll.u32 %v2989, 16
        %v3111 = vrot.slane %v3109, 5
        %v3112 = vsel %vm651, %v3107, %v3111
        %v3113 = vshrl.u32 %v2989, 16
        %v3115 = vrot.slane %v3113, 4
        %v3116 = vor.u32 %v3115, %v3111
        %v3117 = vrot.slane %v3116, 4
        %v3119 = vshll.u32 %v2990, 16
        %v3121 = vrot.slane %v3119, 5
        %v3122 = vsel %vm651, %v3117, %v3121
        %v3124 = vshrl.u32 %v2991, 16
        %v3126 = vrot.slane %v3124, 4
        %v3127 = vshll.u32 %v2991, 16
        %v3129 = vrot.slane %v3127, 5
        %v3130 = vor.u32 %v3126, %v3129
        %v3131 = vrot.slane %v3130, 4
        %v3133 = vshll.u32 %v2992, 16
        %v3135 = vrot.slane %v3133, 5
        %v3136 = vsel %vm651, %v3131, %v3135
        %v3137 = vshrl.u32 %v2992, 16
        %v3139 = vrot.slane %v3137, 4
        %v3140 = vor.u32 %v3139, %v3135
        %v3141 = vrot.slane %v3140, 4
        %v3143 = vshll.u32 %v2993, 16
        %v3145 = vrot.slane %v3143, 5
        %v3146 = vsel %vm651, %v3141, %v3145
        %v3148 = vshrl.u32 %v2994, 16
        %v3150 = vrot.slane %v3148, 4
        %v3151 = vshll.u32 %v2994, 16
        %v3153 = vrot.slane %v3151, 5
        %v3154 = vor.u32 %v3150, %v3153
        %v3155 = vrot.slane %v3154, 4
        %v3157 = vshll.u32 %v2995, 16
        %v3159 = vrot.slane %v3157, 5
        %v3160 = vsel %vm651, %v3155, %v3159
        %v3161 = vshrl.u32 %v2995, 16
        %v3163 = vrot.slane %v3161, 4
        %v3164 = vor.u32 %v3163, %v3159
        %v3165 = vrot.slane %v3164, 4
        %v3167 = vshll.u32 %v2996, 16
        %v3169 = vrot.slane %v3167, 5
        %v3170 = vsel %vm651, %v3165, %v3169
        %v3172 = vshrl.u32 %v2997, 16
        %v3174 = vrot.slane %v3172, 4
        %v3175 = vshll.u32 %v2997, 16
        %v3177 = vrot.slane %v3175, 5
        %v3178 = vor.u32 %v3174, %v3177
        %v3179 = vrot.slane %v3178, 4
        %v3181 = vshll.u32 %v2998, 16
        %v3183 = vrot.slane %v3181, 5
        %v3184 = vsel %vm651, %v3179, %v3183
        %v3185 = vshrl.u32 %v2998, 16
        %v3187 = vrot.slane %v3185, 4
        %v3188 = vor.u32 %v3187, %v3183
        %v3189 = vrot.slane %v3188, 4
        %v3191 = vshll.u32 %v2999, 16
        %v3193 = vrot.slane %v3191, 5
        %v3194 = vsel %vm651, %v3189, %v3193
        %v3196 = vshrl.u32 %v3000, 16
        %v3198 = vrot.slane %v3196, 4
        %v3199 = vshll.u32 %v3000, 16
        %v3201 = vrot.slane %v3199, 5
        %v3202 = vor.u32 %v3198, %v3201
        %v3203 = vrot.slane %v3202, 4
        %v3205 = vshll.u32 %v3001, 16
        %v3207 = vrot.slane %v3205, 5
        %v3208 = vsel %vm651, %v3203, %v3207
        %v3209 = vshrl.u32 %v3001, 16
        %v3211 = vrot.slane %v3209, 4
        %v3212 = vor.u32 %v3211, %v3207
        %v3213 = vrot.slane %v3212, 4
        %v3215 = vshll.u32 %v3002, 16
        %v3217 = vrot.slane %v3215, 5
        %v3218 = vsel %vm651, %v3213, %v3217
        %v3220 = vshrl.u32 %v3003, 16
        %v3222 = vrot.slane %v3220, 4
        %v3223 = vshll.u32 %v3003, 16
        %v3225 = vrot.slane %v3223, 5
        %v3226 = vor.u32 %v3222, %v3225
        %v3227 = vrot.slane %v3226, 4
        %v3229 = vshll.u32 %v3004, 16
        %v3231 = vrot.slane %v3229, 5
        %v3232 = vsel %vm651, %v3227, %v3231
        %v3233 = vshrl.u32 %v3004, 16
        %v3235 = vrot.slane %v3233, 4
        %v3236 = vor.u32 %v3235, %v3231
        %v3237 = vrot.slane %v3236, 4
        %v3239 = vshll.u32 %v3005, 16
        %v3241 = vrot.slane %v3239, 5
        %v3242 = vsel %vm651, %v3237, %v3241
        %v3244 = vshrl.u32 %v3006, 16
        %v3246 = vrot.slane %v3244, 4
        %v3247 = vshll.u32 %v3006, 16
        %v3249 = vrot.slane %v3247, 5
        %v3250 = vor.u32 %v3246, %v3249
        %v3251 = vrot.slane %v3250, 4
        %v3253 = vshll.u32 %v3007, 16
        %v3255 = vrot.slane %v3253, 5
        %v3256 = vsel %vm651, %v3251, %v3255
        %v3257 = vshrl.u32 %v3007, 16
        %v3259 = vrot.slane %v3257, 4
        %v3260 = vor.u32 %v3259, %v3255
        %v3261 = vrot.slane %v3260, 4
        %v3263 = vshll.u32 %v3008, 16
        %v3265 = vrot.slane %v3263, 5
        %v3266 = vsel %vm651, %v3261, %v3265
        %v3268 = vshrl.u32 %v3009, 16
        %v3270 = vrot.slane %v3268, 4
        %v3271 = vshll.u32 %v3009, 16
        %v3273 = vrot.slane %v3271, 5
        %v3274 = vor.u32 %v3270, %v3273
        %v3275 = vrot.slane %v3274, 4
        %v3277 = vshll.u32 %v3010, 16
        %v3279 = vrot.slane %v3277, 5
        %v3280 = vsel %vm651, %v3275, %v3279
        %v3281 = vshrl.u32 %v3010, 16
        %v3283 = vrot.slane %v3281, 4
        %v3284 = vor.u32 %v3283, %v3279
        %v3285 = vrot.slane %v3284, 4
        %v3287 = vshll.u32 %v3011, 16
        %v3289 = vrot.slane %v3287, 5
        %v3290 = vsel %vm651, %v3285, %v3289
        %v3292 = vshrl.u32 %v3012, 16
        %v3294 = vrot.slane %v3292, 4
        %v3295 = vshll.u32 %v3012, 16
        %v3297 = vrot.slane %v3295, 5
        %v3298 = vor.u32 %v3294, %v3297
        %v3299 = vrot.slane %v3298, 4
        %v3301 = vshll.u32 %v3013, 16
        %v3303 = vrot.slane %v3301, 5
        %v3304 = vsel %vm651, %v3299, %v3303
        %v3305 = vshrl.u32 %v3013, 16
        %v3307 = vrot.slane %v3305, 4
        %v3308 = vor.u32 %v3307, %v3303
        %v3309 = vrot.slane %v3308, 4
        %v3311 = vshll.u32 %v3014, 16
        %v3313 = vrot.slane %v3311, 5
        %v3314 = vsel %vm651, %v3309, %v3313
        %v3316 = vshrl.u32 %v3015, 16
        %v3318 = vrot.slane %v3316, 4
        %v3319 = vshll.u32 %v3015, 16
        %v3321 = vrot.slane %v3319, 5
        %v3322 = vor.u32 %v3318, %v3321
        %v3323 = vrot.slane %v3322, 4
        %v3325 = vshll.u32 %v3016, 16
        %v3327 = vrot.slane %v3325, 5
        %v3328 = vsel %vm651, %v3323, %v3327
        %v3329 = vshrl.u32 %v3016, 16
        %v3331 = vrot.slane %v3329, 4
        %v3332 = vor.u32 %v3331, %v3327
        %v3333 = vrot.slane %v3332, 4
        %v3335 = vshll.u32 %v3017, 16
        %v3337 = vrot.slane %v3335, 5
        %v3338 = vsel %vm651, %v3333, %v3337
        %v3340 = vshrl.u32 %v3018, 16
        %v3342 = vrot.slane %v3340, 4
        %v3343 = vshll.u32 %v3018, 16
        %v3345 = vrot.slane %v3343, 5
        %v3346 = vor.u32 %v3342, %v3345
        %v3347 = vrot.slane %v3346, 4
        %v3349 = vshll.u32 %v3019, 16
        %v3351 = vrot.slane %v3349, 5
        %v3352 = vsel %vm651, %v3347, %v3351
        %v3353 = vshrl.u32 %v3019, 16
        %v3355 = vrot.slane %v3353, 4
        %v3356 = vor.u32 %v3355, %v3351
        %v3357 = vrot.slane %v3356, 4
        %v3359 = vshll.u32 %v3020, 16
        %v3361 = vrot.slane %v3359, 5
        %v3362 = vsel %vm651, %v3357, %v3361
        %v3364 = vshrl.u32 %v3021, 16
        %v3366 = vrot.slane %v3364, 4
        %v3367 = vshll.u32 %v3021, 16
        %v3369 = vrot.slane %v3367, 5
        %v3370 = vor.u32 %v3366, %v3369
        %v3371 = vrot.slane %v3370, 4
        %v3373 = vshll.u32 %v3022, 16
        %v3375 = vrot.slane %v3373, 5
        %v3376 = vsel %vm651, %v3371, %v3375
        %v3377 = vshrl.u32 %v3022, 16
        %v3379 = vrot.slane %v3377, 4
        %v3380 = vor.u32 %v3379, %v3375
        %v3381 = vrot.slane %v3380, 4
        %v3383 = vshll.u32 %v3023, 16
        %v3385 = vrot.slane %v3383, 5
        %v3386 = vsel %vm651, %v3381, %v3385
        %v3388 = vshrl.u32 %v3024, 16
        %v3390 = vrot.slane %v3388, 4
        %v3391 = vshll.u32 %v3024, 16
        %v3393 = vrot.slane %v3391, 5
        %v3394 = vor.u32 %v3390, %v3393
        %v3395 = vrot.slane %v3394, 4
        %v3397 = vshll.u32 %v3025, 16
        %v3399 = vrot.slane %v3397, 5
        %v3400 = vsel %vm651, %v3395, %v3399
        %v3401 = vshrl.u32 %v3025, 16
        %v3403 = vrot.slane %v3401, 4
        %v3404 = vor.u32 %v3403, %v3399
        %v3405 = vrot.slane %v3404, 4
        %v3407 = vshll.u32 %v3026, 16
        %v3409 = vrot.slane %v3407, 5
        %v3410 = vsel %vm651, %v3405, %v3409
        %v3411 = vld [vmem:[#allocation2] sm:$0xff]
        %v3412 = vld [vmem:[#allocation2 + $0x8] sm:$0xff]
        %v3413 = vld [vmem:[#allocation2 + $0x10] sm:$0xff]
        %v3414 = vld [vmem:[#allocation2 + $0x18] sm:$0xff]
        %v3415 = vld [vmem:[#allocation2 + $0x20] sm:$0xff]
        %v3416 = vld [vmem:[#allocation2 + $0x28] sm:$0xff]
        %v3417 = vld [vmem:[#allocation2 + $0x30] sm:$0xff]
        %v3418 = vld [vmem:[#allocation2 + $0x38] sm:$0xff]
        %v3419 = vld [vmem:[#allocation2 + $0x40] sm:$0xff]
        %v3420 = vld [vmem:[#allocation2 + $0x48] sm:$0xff]
        %v3421 = vld [vmem:[#allocation2 + $0x50] sm:$0xff]
        %v3422 = vld [vmem:[#allocation2 + $0x58] sm:$0xff]
        %v3423 = vld [vmem:[#allocation2 + $0x60] sm:$0xff]
        %v3424 = vld [vmem:[#allocation2 + $0x68] sm:$0xff]
        %v3425 = vld [vmem:[#allocation2 + $0x70] sm:$0xff]
        %v3426 = vld [vmem:[#allocation2 + $0x78] sm:$0xff]
        %v3427 = vld [vmem:[#allocation2 + $0x80] sm:$0xff]
        %v3428 = vld [vmem:[#allocation2 + $0x88] sm:$0xff]
        %v3429 = vld [vmem:[#allocation2 + $0x90] sm:$0xff]
        %v3430 = vld [vmem:[#allocation2 + $0x98] sm:$0xff]
        %v3431 = vld [vmem:[#allocation2 + $0xa0] sm:$0xff]
        %v3432 = vld [vmem:[#allocation2 + $0xa8] sm:$0xff]
        %v3433 = vld [vmem:[#allocation2 + $0xb0] sm:$0xff]
        %v3434 = vld [vmem:[#allocation2 + $0xb8] sm:$0xff]
        %v3435 = vld [vmem:[#allocation2 + $0xc0] sm:$0xff]
        %v3436 = vld [vmem:[#allocation2 + $0xc8] sm:$0xff]
        %v3437 = vld [vmem:[#allocation2 + $0xd0] sm:$0xff]
        %v3438 = vld [vmem:[#allocation2 + $0xd8] sm:$0xff]
        %v3439 = vld [vmem:[#allocation2 + $0xe0] sm:$0xff]
        %v3440 = vld [vmem:[#allocation2 + $0xe8] sm:$0xff]
        %v3441 = vld [vmem:[#allocation2 + $0xf0] sm:$0xff]
        %v3442 = vld [vmem:[#allocation2 + $0xf8] sm:$0xff]
        %v3443 = vunpack.c.l.b16 %v3040
        %v3444 = vunpack.c.l.b16 %v3050
        %v3445 = vunpack.c.l.b16 %v3064
        %v3446 = vunpack.c.l.b16 %v3074
        %v3447 = vunpack.c.l.b16 %v3088
        %v3448 = vunpack.c.l.b16 %v3098
        %v3449 = vunpack.c.l.b16 %v3112
        %v3450 = vunpack.c.l.b16 %v3122
        %v3451 = vunpack.c.l.b16 %v3136
        %v3452 = vunpack.c.l.b16 %v3146
        %v3453 = vunpack.c.l.b16 %v3160
        %v3454 = vunpack.c.l.b16 %v3170
        %v3455 = vunpack.c.l.b16 %v3184
        %v3456 = vunpack.c.l.b16 %v3194
        %v3457 = vunpack.c.l.b16 %v3208
        %v3458 = vunpack.c.l.b16 %v3218
        %v3459 = vunpack.c.l.b16 %v3232
        %v3460 = vunpack.c.l.b16 %v3242
        %v3461 = vunpack.c.l.b16 %v3256
        %v3462 = vunpack.c.l.b16 %v3266
        %v3463 = vunpack.c.l.b16 %v3280
        %v3464 = vunpack.c.l.b16 %v3290
        %v3465 = vunpack.c.l.b16 %v3304
        %v3466 = vunpack.c.l.b16 %v3314
        %v3467 = vunpack.c.l.b16 %v3328
        %v3468 = vunpack.c.l.b16 %v3338
        %v3469 = vunpack.c.l.b16 %v3352
        %v3470 = vunpack.c.l.b16 %v3362
        %v3471 = vunpack.c.l.b16 %v3376
        %v3472 = vunpack.c.l.b16 %v3386
        %v3473 = vunpack.c.l.b16 %v3400
        %v3474 = vunpack.c.l.b16 %v3410
        %v3475 = vpack.c.b16 %v3444, %v3443
        %v3476 = vpack.c.b16 %v3446, %v3445
        %v3477 = vpack.c.b16 %v3448, %v3447
        %v3478 = vpack.c.b16 %v3450, %v3449
        %v3479 = vpack.c.b16 %v3452, %v3451
        %v3480 = vpack.c.b16 %v3454, %v3453
        %v3481 = vpack.c.b16 %v3456, %v3455
        %v3482 = vpack.c.b16 %v3458, %v3457
        %v3483 = vpack.c.b16 %v3460, %v3459
        %v3484 = vpack.c.b16 %v3462, %v3461
        %v3485 = vpack.c.b16 %v3464, %v3463
        %v3486 = vpack.c.b16 %v3466, %v3465
        %v3487 = vpack.c.b16 %v3468, %v3467
        %v3488 = vpack.c.b16 %v3470, %v3469
        %v3489 = vpack.c.b16 %v3472, %v3471
        %v3490 = vpack.c.b16 %v3474, %v3473
        %v3493 = vunpack.c.l.b16 %v2977
        %v3494 = vunpack.c.l.b16 %v2978
        %v3495 = vpack.c.b16 %v3494, %v3493
        %v3497 = vsel %vm392, %v3475, 0
        %v3500 = vsel %vm392, %v3476, 0
        %v3503 = vsel %vm392, %v3477, 0
        %v3506 = vsel %vm392, %v3478, 0
        %v3509 = vsel %vm392, %v3479, 0
        %v3512 = vsel %vm392, %v3480, 0
        %v3515 = vsel %vm392, %v3481, 0
        %v3518 = vsel %vm392, %v3482, 0
        %v3521 = vsel %vm392, %v3483, 0
        %v3524 = vsel %vm392, %v3484, 0
        %v3527 = vsel %vm392, %v3485, 0
        %v3530 = vsel %vm392, %v3486, 0
        %v3533 = vsel %vm392, %v3487, 0
        %v3536 = vsel %vm392, %v3488, 0
        %v3539 = vsel %vm392, %v3489, 0
        %v3542 = vsel %vm392, %v3490, 0
        %v3545 = vsel %vm441, %v3495, 0
        %3547 = vmatpush.bf16.msra.mxu0 0
        %3548 = vmatpush.bf16.msra.mxu0 0
        %3549 = vmatpush.bf16.msra.mxu0 0
        %3550 = vmatpush.bf16.msra.mxu0 0
        %3551 = vmatpush.bf16.msra.mxu0 0
        %3552 = vmatpush.bf16.msra.mxu0 0
        %3553 = vmatpush.bf16.msra.mxu0 0
        %3554 = vmatpush.bf16.msra.mxu0 %v3545
        %3555 = vmatmul.bf16.gmra.mxu0 %v3497
        %v3556 = vpop.f32.mrf.mxu0
        %v3557 = vadd.f32 0.0, %v3556
        %v3558 = vpop.f32.mrf.mxu0
        %v3559 = vadd.f32 0.0, %v3558
        %3560 = vmatmul.bf16.gmra.mxu0 %v3500
        %v3561 = vpop.f32.mrf.mxu0
        %v3562 = vadd.f32 0.0, %v3561
        %v3563 = vpop.f32.mrf.mxu0
        %v3564 = vadd.f32 0.0, %v3563
        %3565 = vmatmul.bf16.gmra.mxu0 %v3503
        %v3566 = vpop.f32.mrf.mxu0
        %v3567 = vadd.f32 0.0, %v3566
        %v3568 = vpop.f32.mrf.mxu0
        %v3569 = vadd.f32 0.0, %v3568
        %3570 = vmatmul.bf16.gmra.mxu0 %v3506
        %v3571 = vpop.f32.mrf.mxu0
        %v3572 = vadd.f32 0.0, %v3571
        %v3573 = vpop.f32.mrf.mxu0
        %v3574 = vadd.f32 0.0, %v3573
        %3575 = vmatmul.bf16.gmra.mxu0 %v3509
        %v3576 = vpop.f32.mrf.mxu0
        %v3577 = vadd.f32 0.0, %v3576
        %v3578 = vpop.f32.mrf.mxu0
        %v3579 = vadd.f32 0.0, %v3578
        %3580 = vmatmul.bf16.gmra.mxu0 %v3512
        %v3581 = vpop.f32.mrf.mxu0
        %v3582 = vadd.f32 0.0, %v3581
        %v3583 = vpop.f32.mrf.mxu0
        %v3584 = vadd.f32 0.0, %v3583
        %3585 = vmatmul.bf16.gmra.mxu0 %v3515
        %v3586 = vpop.f32.mrf.mxu0
        %v3587 = vadd.f32 0.0, %v3586
        %v3588 = vpop.f32.mrf.mxu0
        %v3589 = vadd.f32 0.0, %v3588
        %3590 = vmatmul.bf16.gmra.mxu0 %v3518
        %v3591 = vpop.f32.mrf.mxu0
        %v3592 = vadd.f32 0.0, %v3591
        %v3593 = vpop.f32.mrf.mxu0
        %v3594 = vadd.f32 0.0, %v3593
        %3595 = vmatmul.bf16.gmra.mxu0 %v3521
        %v3596 = vpop.f32.mrf.mxu0
        %v3597 = vadd.f32 0.0, %v3596
        %v3598 = vpop.f32.mrf.mxu0
        %v3599 = vadd.f32 0.0, %v3598
        %3600 = vmatmul.bf16.gmra.mxu0 %v3524
        %v3601 = vpop.f32.mrf.mxu0
        %v3602 = vadd.f32 0.0, %v3601
        %v3603 = vpop.f32.mrf.mxu0
        %v3604 = vadd.f32 0.0, %v3603
        %3605 = vmatmul.bf16.gmra.mxu0 %v3527
        %v3606 = vpop.f32.mrf.mxu0
        %v3607 = vadd.f32 0.0, %v3606
        %v3608 = vpop.f32.mrf.mxu0
        %v3609 = vadd.f32 0.0, %v3608
        %3610 = vmatmul.bf16.gmra.mxu0 %v3530
        %v3611 = vpop.f32.mrf.mxu0
        %v3612 = vadd.f32 0.0, %v3611
        %v3613 = vpop.f32.mrf.mxu0
        %v3614 = vadd.f32 0.0, %v3613
        %3615 = vmatmul.bf16.gmra.mxu0 %v3533
        %v3616 = vpop.f32.mrf.mxu0
        %v3617 = vadd.f32 0.0, %v3616
        %v3618 = vpop.f32.mrf.mxu0
        %v3619 = vadd.f32 0.0, %v3618
        %3620 = vmatmul.bf16.gmra.mxu0 %v3536
        %v3621 = vpop.f32.mrf.mxu0
        %v3622 = vadd.f32 0.0, %v3621
        %v3623 = vpop.f32.mrf.mxu0
        %v3624 = vadd.f32 0.0, %v3623
        %3625 = vmatmul.bf16.gmra.mxu0 %v3539
        %v3626 = vpop.f32.mrf.mxu0
        %v3627 = vadd.f32 0.0, %v3626
        %v3628 = vpop.f32.mrf.mxu0
        %v3629 = vadd.f32 0.0, %v3628
        %3630 = vmatmul.bf16.gmra.mxu0 %v3542
        %v3631 = vpop.f32.mrf.mxu0
        %v3632 = vadd.f32 0.0, %v3631
        %v3633 = vpop.f32.mrf.mxu0
        %v3634 = vadd.f32 0.0, %v3633
        %3635 = vdwg.mxu0
        %v3636 = vadd.f32 %v3411, %v3557
        %v3637 = vadd.f32 %v3412, %v3559
        %v3638 = vadd.f32 %v3413, %v3562
        %v3639 = vadd.f32 %v3414, %v3564
        %v3640 = vadd.f32 %v3415, %v3567
        %v3641 = vadd.f32 %v3416, %v3569
        %v3642 = vadd.f32 %v3417, %v3572
        %v3643 = vadd.f32 %v3418, %v3574
        %v3644 = vadd.f32 %v3419, %v3577
        %v3645 = vadd.f32 %v3420, %v3579
        %v3646 = vadd.f32 %v3421, %v3582
        %v3647 = vadd.f32 %v3422, %v3584
        %v3648 = vadd.f32 %v3423, %v3587
        %v3649 = vadd.f32 %v3424, %v3589
        %v3650 = vadd.f32 %v3425, %v3592
        %v3651 = vadd.f32 %v3426, %v3594
        %v3652 = vadd.f32 %v3427, %v3597
        %v3653 = vadd.f32 %v3428, %v3599
        %v3654 = vadd.f32 %v3429, %v3602
        %v3655 = vadd.f32 %v3430, %v3604
        %v3656 = vadd.f32 %v3431, %v3607
        %v3657 = vadd.f32 %v3432, %v3609
        %v3658 = vadd.f32 %v3433, %v3612
        %v3659 = vadd.f32 %v3434, %v3614
        %v3660 = vadd.f32 %v3435, %v3617
        %v3661 = vadd.f32 %v3436, %v3619
        %v3662 = vadd.f32 %v3437, %v3622
        %v3663 = vadd.f32 %v3438, %v3624
        %v3664 = vadd.f32 %v3439, %v3627
        %v3665 = vadd.f32 %v3440, %v3629
        %v3666 = vadd.f32 %v3441, %v3632
        %v3667 = vadd.f32 %v3442, %v3634
        %3668 = vst.msk [vmem:[#allocation2] sm:$0xff] %vm208, %v3636
        %3669 = vst.msk [vmem:[#allocation2 + $0x8] sm:$0xff] %vm208, %v3637
        %3670 = vst.msk [vmem:[#allocation2 + $0x10] sm:$0xff] %vm208, %v3638
        %3671 = vst.msk [vmem:[#allocation2 + $0x18] sm:$0xff] %vm208, %v3639
        %3672 = vst.msk [vmem:[#allocation2 + $0x20] sm:$0xff] %vm208, %v3640
        %3673 = vst.msk [vmem:[#allocation2 + $0x28] sm:$0xff] %vm208, %v3641
        %3674 = vst.msk [vmem:[#allocation2 + $0x30] sm:$0xff] %vm208, %v3642
        %3675 = vst.msk [vmem:[#allocation2 + $0x38] sm:$0xff] %vm208, %v3643
        %3676 = vst.msk [vmem:[#allocation2 + $0x40] sm:$0xff] %vm208, %v3644
        %3677 = vst.msk [vmem:[#allocation2 + $0x48] sm:$0xff] %vm208, %v3645
        %3678 = vst.msk [vmem:[#allocation2 + $0x50] sm:$0xff] %vm208, %v3646
        %3679 = vst.msk [vmem:[#allocation2 + $0x58] sm:$0xff] %vm208, %v3647
        %3680 = vst.msk [vmem:[#allocation2 + $0x60] sm:$0xff] %vm208, %v3648
        %3681 = vst.msk [vmem:[#allocation2 + $0x68] sm:$0xff] %vm208, %v3649
        %3682 = vst.msk [vmem:[#allocation2 + $0x70] sm:$0xff] %vm208, %v3650
        %3683 = vst.msk [vmem:[#allocation2 + $0x78] sm:$0xff] %vm208, %v3651
        %3684 = vst.msk [vmem:[#allocation2 + $0x80] sm:$0xff] %vm208, %v3652
        %3685 = vst.msk [vmem:[#allocation2 + $0x88] sm:$0xff] %vm208, %v3653
        %3686 = vst.msk [vmem:[#allocation2 + $0x90] sm:$0xff] %vm208, %v3654
        %3687 = vst.msk [vmem:[#allocation2 + $0x98] sm:$0xff] %vm208, %v3655
        %3688 = vst.msk [vmem:[#allocation2 + $0xa0] sm:$0xff] %vm208, %v3656
        %3689 = vst.msk [vmem:[#allocation2 + $0xa8] sm:$0xff] %vm208, %v3657
        %3690 = vst.msk [vmem:[#allocation2 + $0xb0] sm:$0xff] %vm208, %v3658
        %3691 = vst.msk [vmem:[#allocation2 + $0xb8] sm:$0xff] %vm208, %v3659
        %3692 = vst.msk [vmem:[#allocation2 + $0xc0] sm:$0xff] %vm208, %v3660
        %3693 = vst.msk [vmem:[#allocation2 + $0xc8] sm:$0xff] %vm208, %v3661
        %3694 = vst.msk [vmem:[#allocation2 + $0xd0] sm:$0xff] %vm208, %v3662
        %3695 = vst.msk [vmem:[#allocation2 + $0xd8] sm:$0xff] %vm208, %v3663
        %3696 = vst.msk [vmem:[#allocation2 + $0xe0] sm:$0xff] %vm208, %v3664
        %3697 = vst.msk [vmem:[#allocation2 + $0xe8] sm:$0xff] %vm208, %v3665
        %3698 = vst.msk [vmem:[#allocation2 + $0xf0] sm:$0xff] %vm208, %v3666
        %3699 = vst.msk [vmem:[#allocation2 + $0xf8] sm:$0xff] %vm208, %v3667
        %s3700 = scalar_lea.vmem %s1, 48
        %v3701 = vld [vmem:[%s3700] sm:$0xf]
        %v3702 = vld [vmem:[%s3700 + $0x4] sm:$0x3]
        %v3703 = vld [vmem:[%s2622] sm:$0xe]
        %v3704 = vld [vmem:[%s2622 + $0x4] sm:$0xf]
        %v3705 = vld [vmem:[%s2622 + $0x8] sm:$0x1]
        %v3706 = vld [vmem:[%s2622 + $0xc] sm:$0xe]
        %v3707 = vld [vmem:[%s2622 + $0x10] sm:$0xf]
        %v3708 = vld [vmem:[%s2622 + $0x14] sm:$0x1]
        %v3709 = vld [vmem:[%s2622 + $0x18] sm:$0xe]
        %v3710 = vld [vmem:[%s2622 + $0x1c] sm:$0xf]
        %v3711 = vld [vmem:[%s2622 + $0x20] sm:$0x1]
        %v3712 = vld [vmem:[%s2622 + $0x24] sm:$0xe]
        %v3713 = vld [vmem:[%s2622 + $0x28] sm:$0xf]
        %v3714 = vld [vmem:[%s2622 + $0x2c] sm:$0x1]
        %v3715 = vld [vmem:[%s2622 + $0x30] sm:$0xe]
        %v3716 = vld [vmem:[%s2622 + $0x34] sm:$0xf]
        %v3717 = vld [vmem:[%s2622 + $0x38] sm:$0x1]
        %v3718 = vld [vmem:[%s2622 + $0x3c] sm:$0xe]
        %v3719 = vld [vmem:[%s2622 + $0x40] sm:$0xf]
        %v3720 = vld [vmem:[%s2622 + $0x44] sm:$0x1]
        %v3721 = vld [vmem:[%s2622 + $0x48] sm:$0xe]
        %v3722 = vld [vmem:[%s2622 + $0x4c] sm:$0xf]
        %v3723 = vld [vmem:[%s2622 + $0x50] sm:$0x1]
        %v3724 = vld [vmem:[%s2622 + $0x54] sm:$0xe]
        %v3725 = vld [vmem:[%s2622 + $0x58] sm:$0xf]
        %v3726 = vld [vmem:[%s2622 + $0x5c] sm:$0x1]
        %v3727 = vld [vmem:[%s2622 + $0x60] sm:$0xe]
        %v3728 = vld [vmem:[%s2622 + $0x64] sm:$0xf]
        %v3729 = vld [vmem:[%s2622 + $0x68] sm:$0x1]
        %v3730 = vld [vmem:[%s2622 + $0x6c] sm:$0xe]
        %v3731 = vld [vmem:[%s2622 + $0x70] sm:$0xf]
        %v3732 = vld [vmem:[%s2622 + $0x74] sm:$0x1]
        %v3733 = vld [vmem:[%s2622 + $0x78] sm:$0xe]
        %v3734 = vld [vmem:[%s2622 + $0x7c] sm:$0xf]
        %v3735 = vld [vmem:[%s2622 + $0x80] sm:$0x1]
        %v3736 = vld [vmem:[%s2622 + $0x84] sm:$0xe]
        %v3737 = vld [vmem:[%s2622 + $0x88] sm:$0xf]
        %v3738 = vld [vmem:[%s2622 + $0x8c] sm:$0x1]
        %v3739 = vld [vmem:[%s2622 + $0x90] sm:$0xe]
        %v3740 = vld [vmem:[%s2622 + $0x94] sm:$0xf]
        %v3741 = vld [vmem:[%s2622 + $0x98] sm:$0x1]
        %v3742 = vld [vmem:[%s2622 + $0x9c] sm:$0xe]
        %v3743 = vld [vmem:[%s2622 + $0xa0] sm:$0xf]
        %v3744 = vld [vmem:[%s2622 + $0xa4] sm:$0x1]
        %v3745 = vld [vmem:[%s2622 + $0xa8] sm:$0xe]
        %v3746 = vld [vmem:[%s2622 + $0xac] sm:$0xf]
        %v3747 = vld [vmem:[%s2622 + $0xb0] sm:$0x1]
        %v3748 = vld [vmem:[%s2622 + $0xb4] sm:$0xe]
        %v3749 = vld [vmem:[%s2622 + $0xb8] sm:$0xf]
        %v3750 = vld [vmem:[%s2622 + $0xbc] sm:$0x1]
        %v3799 = vrot.slane %v3703, 5
        %v3800 = vrot.slane %v3799, 4
        %v3801 = vrot.slane %v3704, 5
        %v3802 = vsel %vm1426, %v3800, %v3801
        %v3803 = vrot.slane %v3801, 4
        %v3804 = vrot.slane %v3705, 5
        %v3805 = vsel %vm1426, %v3803, %v3804
        %v3806 = vrot.slane %v3706, 5
        %v3807 = vrot.slane %v3806, 4
        %v3808 = vrot.slane %v3707, 5
        %v3809 = vsel %vm1426, %v3807, %v3808
        %v3810 = vrot.slane %v3808, 4
        %v3811 = vrot.slane %v3708, 5
        %v3812 = vsel %vm1426, %v3810, %v3811
        %v3813 = vrot.slane %v3709, 5
        %v3814 = vrot.slane %v3813, 4
        %v3815 = vrot.slane %v3710, 5
        %v3816 = vsel %vm1426, %v3814, %v3815
        %v3817 = vrot.slane %v3815, 4
        %v3818 = vrot.slane %v3711, 5
        %v3819 = vsel %vm1426, %v3817, %v3818
        %v3820 = vrot.slane %v3712, 5
        %v3821 = vrot.slane %v3820, 4
        %v3822 = vrot.slane %v3713, 5
        %v3823 = vsel %vm1426, %v3821, %v3822
        %v3824 = vrot.slane %v3822, 4
        %v3825 = vrot.slane %v3714, 5
        %v3826 = vsel %vm1426, %v3824, %v3825
        %v3827 = vrot.slane %v3715, 5
        %v3828 = vrot.slane %v3827, 4
        %v3829 = vrot.slane %v3716, 5
        %v3830 = vsel %vm1426, %v3828, %v3829
        %v3831 = vrot.slane %v3829, 4
        %v3832 = vrot.slane %v3717, 5
        %v3833 = vsel %vm1426, %v3831, %v3832
        %v3834 = vrot.slane %v3718, 5
        %v3835 = vrot.slane %v3834, 4
        %v3836 = vrot.slane %v3719, 5
        %v3837 = vsel %vm1426, %v3835, %v3836
        %v3838 = vrot.slane %v3836, 4
        %v3839 = vrot.slane %v3720, 5
        %v3840 = vsel %vm1426, %v3838, %v3839
        %v3841 = vrot.slane %v3721, 5
        %v3842 = vrot.slane %v3841, 4
        %v3843 = vrot.slane %v3722, 5
        %v3844 = vsel %vm1426, %v3842, %v3843
        %v3845 = vrot.slane %v3843, 4
        %v3846 = vrot.slane %v3723, 5
        %v3847 = vsel %vm1426, %v3845, %v3846
        %v3848 = vrot.slane %v3724, 5
        %v3849 = vrot.slane %v3848, 4
        %v3850 = vrot.slane %v3725, 5
        %v3851 = vsel %vm1426, %v3849, %v3850
        %v3852 = vrot.slane %v3850, 4
        %v3853 = vrot.slane %v3726, 5
        %v3854 = vsel %vm1426, %v3852, %v3853
        %v3855 = vrot.slane %v3727, 5
        %v3856 = vrot.slane %v3855, 4
        %v3857 = vrot.slane %v3728, 5
        %v3858 = vsel %vm1426, %v3856, %v3857
        %v3859 = vrot.slane %v3857, 4
        %v3860 = vrot.slane %v3729, 5
        %v3861 = vsel %vm1426, %v3859, %v3860
        %v3862 = vrot.slane %v3730, 5
        %v3863 = vrot.slane %v3862, 4
        %v3864 = vrot.slane %v3731, 5
        %v3865 = vsel %vm1426, %v3863, %v3864
        %v3866 = vrot.slane %v3864, 4
        %v3867 = vrot.slane %v3732, 5
        %v3868 = vsel %vm1426, %v3866, %v3867
        %v3869 = vrot.slane %v3733, 5
        %v3870 = vrot.slane %v3869, 4
        %v3871 = vrot.slane %v3734, 5
        %v3872 = vsel %vm1426, %v3870, %v3871
        %v3873 = vrot.slane %v3871, 4
        %v3874 = vrot.slane %v3735, 5
        %v3875 = vsel %vm1426, %v3873, %v3874
        %v3876 = vrot.slane %v3736, 5
        %v3877 = vrot.slane %v3876, 4
        %v3878 = vrot.slane %v3737, 5
        %v3879 = vsel %vm1426, %v3877, %v3878
        %v3880 = vrot.slane %v3878, 4
        %v3881 = vrot.slane %v3738, 5
        %v3882 = vsel %vm1426, %v3880, %v3881
        %v3883 = vrot.slane %v3739, 5
        %v3884 = vrot.slane %v3883, 4
        %v3885 = vrot.slane %v3740, 5
        %v3886 = vsel %vm1426, %v3884, %v3885
        %v3887 = vrot.slane %v3885, 4
        %v3888 = vrot.slane %v3741, 5
        %v3889 = vsel %vm1426, %v3887, %v3888
        %v3890 = vrot.slane %v3742, 5
        %v3891 = vrot.slane %v3890, 4
        %v3892 = vrot.slane %v3743, 5
        %v3893 = vsel %vm1426, %v3891, %v3892
        %v3894 = vrot.slane %v3892, 4
        %v3895 = vrot.slane %v3744, 5
        %v3896 = vsel %vm1426, %v3894, %v3895
        %v3897 = vrot.slane %v3745, 5
        %v3898 = vrot.slane %v3897, 4
        %v3899 = vrot.slane %v3746, 5
        %v3900 = vsel %vm1426, %v3898, %v3899
        %v3901 = vrot.slane %v3899, 4
        %v3902 = vrot.slane %v3747, 5
        %v3903 = vsel %vm1426, %v3901, %v3902
        %v3904 = vrot.slane %v3748, 5
        %v3905 = vrot.slane %v3904, 4
        %v3906 = vrot.slane %v3749, 5
        %v3907 = vsel %vm1426, %v3905, %v3906
        %v3908 = vrot.slane %v3906, 4
        %v3909 = vrot.slane %v3750, 5
        %v3910 = vsel %vm1426, %v3908, %v3909
        %v3911 = vld [vmem:[#allocation2] sm:$0xff]
        %v3912 = vld [vmem:[#allocation2 + $0x8] sm:$0xff]
        %v3913 = vld [vmem:[#allocation2 + $0x10] sm:$0xff]
        %v3914 = vld [vmem:[#allocation2 + $0x18] sm:$0xff]
        %v3915 = vld [vmem:[#allocation2 + $0x20] sm:$0xff]
        %v3916 = vld [vmem:[#allocation2 + $0x28] sm:$0xff]
        %v3917 = vld [vmem:[#allocation2 + $0x30] sm:$0xff]
        %v3918 = vld [vmem:[#allocation2 + $0x38] sm:$0xff]
        %v3919 = vld [vmem:[#allocation2 + $0x40] sm:$0xff]
        %v3920 = vld [vmem:[#allocation2 + $0x48] sm:$0xff]
        %v3921 = vld [vmem:[#allocation2 + $0x50] sm:$0xff]
        %v3922 = vld [vmem:[#allocation2 + $0x58] sm:$0xff]
        %v3923 = vld [vmem:[#allocation2 + $0x60] sm:$0xff]
        %v3924 = vld [vmem:[#allocation2 + $0x68] sm:$0xff]
        %v3925 = vld [vmem:[#allocation2 + $0x70] sm:$0xff]
        %v3926 = vld [vmem:[#allocation2 + $0x78] sm:$0xff]
        %v3927 = vld [vmem:[#allocation2 + $0x80] sm:$0xff]
        %v3928 = vld [vmem:[#allocation2 + $0x88] sm:$0xff]
        %v3929 = vld [vmem:[#allocation2 + $0x90] sm:$0xff]
        %v3930 = vld [vmem:[#allocation2 + $0x98] sm:$0xff]
        %v3931 = vld [vmem:[#allocation2 + $0xa0] sm:$0xff]
        %v3932 = vld [vmem:[#allocation2 + $0xa8] sm:$0xff]
        %v3933 = vld [vmem:[#allocation2 + $0xb0] sm:$0xff]
        %v3934 = vld [vmem:[#allocation2 + $0xb8] sm:$0xff]
        %v3935 = vld [vmem:[#allocation2 + $0xc0] sm:$0xff]
        %v3936 = vld [vmem:[#allocation2 + $0xc8] sm:$0xff]
        %v3937 = vld [vmem:[#allocation2 + $0xd0] sm:$0xff]
        %v3938 = vld [vmem:[#allocation2 + $0xd8] sm:$0xff]
        %v3939 = vld [vmem:[#allocation2 + $0xe0] sm:$0xff]
        %v3940 = vld [vmem:[#allocation2 + $0xe8] sm:$0xff]
        %v3941 = vld [vmem:[#allocation2 + $0xf0] sm:$0xff]
        %v3942 = vld [vmem:[#allocation2 + $0xf8] sm:$0xff]
        %v3943 = vunpack.c.l.b16 %v3802
        %v3944 = vunpack.c.l.b16 %v3805
        %v3945 = vunpack.c.l.b16 %v3809
        %v3946 = vunpack.c.l.b16 %v3812
        %v3947 = vunpack.c.l.b16 %v3816
        %v3948 = vunpack.c.l.b16 %v3819
        %v3949 = vunpack.c.l.b16 %v3823
        %v3950 = vunpack.c.l.b16 %v3826
        %v3951 = vunpack.c.l.b16 %v3830
        %v3952 = vunpack.c.l.b16 %v3833
        %v3953 = vunpack.c.l.b16 %v3837
        %v3954 = vunpack.c.l.b16 %v3840
        %v3955 = vunpack.c.l.b16 %v3844
        %v3956 = vunpack.c.l.b16 %v3847
        %v3957 = vunpack.c.l.b16 %v3851
        %v3958 = vunpack.c.l.b16 %v3854
        %v3959 = vunpack.c.l.b16 %v3858
        %v3960 = vunpack.c.l.b16 %v3861
        %v3961 = vunpack.c.l.b16 %v3865
        %v3962 = vunpack.c.l.b16 %v3868
        %v3963 = vunpack.c.l.b16 %v3872
        %v3964 = vunpack.c.l.b16 %v3875
        %v3965 = vunpack.c.l.b16 %v3879
        %v3966 = vunpack.c.l.b16 %v3882
        %v3967 = vunpack.c.l.b16 %v3886
        %v3968 = vunpack.c.l.b16 %v3889
        %v3969 = vunpack.c.l.b16 %v3893
        %v3970 = vunpack.c.l.b16 %v3896
        %v3971 = vunpack.c.l.b16 %v3900
        %v3972 = vunpack.c.l.b16 %v3903
        %v3973 = vunpack.c.l.b16 %v3907
        %v3974 = vunpack.c.l.b16 %v3910
        %v3975 = vpack.c.b16 %v3944, %v3943
        %v3976 = vpack.c.b16 %v3946, %v3945
        %v3977 = vpack.c.b16 %v3948, %v3947
        %v3978 = vpack.c.b16 %v3950, %v3949
        %v3979 = vpack.c.b16 %v3952, %v3951
        %v3980 = vpack.c.b16 %v3954, %v3953
        %v3981 = vpack.c.b16 %v3956, %v3955
        %v3982 = vpack.c.b16 %v3958, %v3957
        %v3983 = vpack.c.b16 %v3960, %v3959
        %v3984 = vpack.c.b16 %v3962, %v3961
        %v3985 = vpack.c.b16 %v3964, %v3963
        %v3986 = vpack.c.b16 %v3966, %v3965
        %v3987 = vpack.c.b16 %v3968, %v3967
        %v3988 = vpack.c.b16 %v3970, %v3969
        %v3989 = vpack.c.b16 %v3972, %v3971
        %v3990 = vpack.c.b16 %v3974, %v3973
        %v3993 = vunpack.c.l.b16 %v3701
        %v3994 = vunpack.c.l.b16 %v3702
        %v3995 = vpack.c.b16 %v3994, %v3993
        %v3997 = vsel %vm392, %v3975, 0
        %v4000 = vsel %vm392, %v3976, 0
        %v4003 = vsel %vm392, %v3977, 0
        %v4006 = vsel %vm392, %v3978, 0
        %v4009 = vsel %vm392, %v3979, 0
        %v4012 = vsel %vm392, %v3980, 0
        %v4015 = vsel %vm392, %v3981, 0
        %v4018 = vsel %vm392, %v3982, 0
        %v4021 = vsel %vm392, %v3983, 0
        %v4024 = vsel %vm392, %v3984, 0
        %v4027 = vsel %vm392, %v3985, 0
        %v4030 = vsel %vm392, %v3986, 0
        %v4033 = vsel %vm392, %v3987, 0
        %v4036 = vsel %vm392, %v3988, 0
        %v4039 = vsel %vm392, %v3989, 0
        %v4042 = vsel %vm392, %v3990, 0
        %v4045 = vsel %vm441, %v3995, 0
        %4047 = vmatpush.bf16.msra.mxu0 0
        %4048 = vmatpush.bf16.msra.mxu0 0
        %4049 = vmatpush.bf16.msra.mxu0 0
        %4050 = vmatpush.bf16.msra.mxu0 0
        %4051 = vmatpush.bf16.msra.mxu0 0
        %4052 = vmatpush.bf16.msra.mxu0 0
        %4053 = vmatpush.bf16.msra.mxu0 0
        %4054 = vmatpush.bf16.msra.mxu0 %v4045
        %4055 = vmatmul.bf16.gmra.mxu0 %v3997
        %v4056 = vpop.f32.mrf.mxu0
        %v4057 = vadd.f32 0.0, %v4056
        %v4058 = vpop.f32.mrf.mxu0
        %v4059 = vadd.f32 0.0, %v4058
        %4060 = vmatmul.bf16.gmra.mxu0 %v4000
        %v4061 = vpop.f32.mrf.mxu0
        %v4062 = vadd.f32 0.0, %v4061
        %v4063 = vpop.f32.mrf.mxu0
        %v4064 = vadd.f32 0.0, %v4063
        %4065 = vmatmul.bf16.gmra.mxu0 %v4003
        %v4066 = vpop.f32.mrf.mxu0
        %v4067 = vadd.f32 0.0, %v4066
        %v4068 = vpop.f32.mrf.mxu0
        %v4069 = vadd.f32 0.0, %v4068
        %4070 = vmatmul.bf16.gmra.mxu0 %v4006
        %v4071 = vpop.f32.mrf.mxu0
        %v4072 = vadd.f32 0.0, %v4071
        %v4073 = vpop.f32.mrf.mxu0
        %v4074 = vadd.f32 0.0, %v4073
        %4075 = vmatmul.bf16.gmra.mxu0 %v4009
        %v4076 = vpop.f32.mrf.mxu0
        %v4077 = vadd.f32 0.0, %v4076
        %v4078 = vpop.f32.mrf.mxu0
        %v4079 = vadd.f32 0.0, %v4078
        %4080 = vmatmul.bf16.gmra.mxu0 %v4012
        %v4081 = vpop.f32.mrf.mxu0
        %v4082 = vadd.f32 0.0, %v4081
        %v4083 = vpop.f32.mrf.mxu0
        %v4084 = vadd.f32 0.0, %v4083
        %4085 = vmatmul.bf16.gmra.mxu0 %v4015
        %v4086 = vpop.f32.mrf.mxu0
        %v4087 = vadd.f32 0.0, %v4086
        %v4088 = vpop.f32.mrf.mxu0
        %v4089 = vadd.f32 0.0, %v4088
        %4090 = vmatmul.bf16.gmra.mxu0 %v4018
        %v4091 = vpop.f32.mrf.mxu0
        %v4092 = vadd.f32 0.0, %v4091
        %v4093 = vpop.f32.mrf.mxu0
        %v4094 = vadd.f32 0.0, %v4093
        %4095 = vmatmul.bf16.gmra.mxu0 %v4021
        %v4096 = vpop.f32.mrf.mxu0
        %v4097 = vadd.f32 0.0, %v4096
        %v4098 = vpop.f32.mrf.mxu0
        %v4099 = vadd.f32 0.0, %v4098
        %4100 = vmatmul.bf16.gmra.mxu0 %v4024
        %v4101 = vpop.f32.mrf.mxu0
        %v4102 = vadd.f32 0.0, %v4101
        %v4103 = vpop.f32.mrf.mxu0
        %v4104 = vadd.f32 0.0, %v4103
        %4105 = vmatmul.bf16.gmra.mxu0 %v4027
        %v4106 = vpop.f32.mrf.mxu0
        %v4107 = vadd.f32 0.0, %v4106
        %v4108 = vpop.f32.mrf.mxu0
        %v4109 = vadd.f32 0.0, %v4108
        %4110 = vmatmul.bf16.gmra.mxu0 %v4030
        %v4111 = vpop.f32.mrf.mxu0
        %v4112 = vadd.f32 0.0, %v4111
        %v4113 = vpop.f32.mrf.mxu0
        %v4114 = vadd.f32 0.0, %v4113
        %4115 = vmatmul.bf16.gmra.mxu0 %v4033
        %v4116 = vpop.f32.mrf.mxu0
        %v4117 = vadd.f32 0.0, %v4116
        %v4118 = vpop.f32.mrf.mxu0
        %v4119 = vadd.f32 0.0, %v4118
        %4120 = vmatmul.bf16.gmra.mxu0 %v4036
        %v4121 = vpop.f32.mrf.mxu0
        %v4122 = vadd.f32 0.0, %v4121
        %v4123 = vpop.f32.mrf.mxu0
        %v4124 = vadd.f32 0.0, %v4123
        %4125 = vmatmul.bf16.gmra.mxu0 %v4039
        %v4126 = vpop.f32.mrf.mxu0
        %v4127 = vadd.f32 0.0, %v4126
        %v4128 = vpop.f32.mrf.mxu0
        %v4129 = vadd.f32 0.0, %v4128
        %4130 = vmatmul.bf16.gmra.mxu0 %v4042
        %v4131 = vpop.f32.mrf.mxu0
        %v4132 = vadd.f32 0.0, %v4131
        %v4133 = vpop.f32.mrf.mxu0
        %v4134 = vadd.f32 0.0, %v4133
        %4135 = vdwg.mxu0
        %v4136 = vadd.f32 %v3911, %v4057
        %v4137 = vadd.f32 %v3912, %v4059
        %v4138 = vadd.f32 %v3913, %v4062
        %v4139 = vadd.f32 %v3914, %v4064
        %v4140 = vadd.f32 %v3915, %v4067
        %v4141 = vadd.f32 %v3916, %v4069
        %v4142 = vadd.f32 %v3917, %v4072
        %v4143 = vadd.f32 %v3918, %v4074
        %v4144 = vadd.f32 %v3919, %v4077
        %v4145 = vadd.f32 %v3920, %v4079
        %v4146 = vadd.f32 %v3921, %v4082
        %v4147 = vadd.f32 %v3922, %v4084
        %v4148 = vadd.f32 %v3923, %v4087
        %v4149 = vadd.f32 %v3924, %v4089
        %v4150 = vadd.f32 %v3925, %v4092
        %v4151 = vadd.f32 %v3926, %v4094
        %v4152 = vadd.f32 %v3927, %v4097
        %v4153 = vadd.f32 %v3928, %v4099
        %v4154 = vadd.f32 %v3929, %v4102
        %v4155 = vadd.f32 %v3930, %v4104
        %v4156 = vadd.f32 %v3931, %v4107
        %v4157 = vadd.f32 %v3932, %v4109
        %v4158 = vadd.f32 %v3933, %v4112
        %v4159 = vadd.f32 %v3934, %v4114
        %v4160 = vadd.f32 %v3935, %v4117
        %v4161 = vadd.f32 %v3936, %v4119
        %v4162 = vadd.f32 %v3937, %v4122
        %v4163 = vadd.f32 %v3938, %v4124
        %v4164 = vadd.f32 %v3939, %v4127
        %v4165 = vadd.f32 %v3940, %v4129
        %v4166 = vadd.f32 %v3941, %v4132
        %v4167 = vadd.f32 %v3942, %v4134
        %4168 = vst.msk [vmem:[#allocation2] sm:$0xff] %vm208, %v4136
        %4169 = vst.msk [vmem:[#allocation2 + $0x8] sm:$0xff] %vm208, %v4137
        %4170 = vst.msk [vmem:[#allocation2 + $0x10] sm:$0xff] %vm208, %v4138
        %4171 = vst.msk [vmem:[#allocation2 + $0x18] sm:$0xff] %vm208, %v4139
        %4172 = vst.msk [vmem:[#allocation2 + $0x20] sm:$0xff] %vm208, %v4140
        %4173 = vst.msk [vmem:[#allocation2 + $0x28] sm:$0xff] %vm208, %v4141
        %4174 = vst.msk [vmem:[#allocation2 + $0x30] sm:$0xff] %vm208, %v4142
        %4175 = vst.msk [vmem:[#allocation2 + $0x38] sm:$0xff] %vm208, %v4143
        %4176 = vst.msk [vmem:[#allocation2 + $0x40] sm:$0xff] %vm208, %v4144
        %4177 = vst.msk [vmem:[#allocation2 + $0x48] sm:$0xff] %vm208, %v4145
        %4178 = vst.msk [vmem:[#allocation2 + $0x50] sm:$0xff] %vm208, %v4146
        %4179 = vst.msk [vmem:[#allocation2 + $0x58] sm:$0xff] %vm208, %v4147
        %4180 = vst.msk [vmem:[#allocation2 + $0x60] sm:$0xff] %vm208, %v4148
        %4181 = vst.msk [vmem:[#allocation2 + $0x68] sm:$0xff] %vm208, %v4149
        %4182 = vst.msk [vmem:[#allocation2 + $0x70] sm:$0xff] %vm208, %v4150
        %4183 = vst.msk [vmem:[#allocation2 + $0x78] sm:$0xff] %vm208, %v4151
        %4184 = vst.msk [vmem:[#allocation2 + $0x80] sm:$0xff] %vm208, %v4152
        %4185 = vst.msk [vmem:[#allocation2 + $0x88] sm:$0xff] %vm208, %v4153
        %4186 = vst.msk [vmem:[#allocation2 + $0x90] sm:$0xff] %vm208, %v4154
        %4187 = vst.msk [vmem:[#allocation2 + $0x98] sm:$0xff] %vm208, %v4155
        %4188 = vst.msk [vmem:[#allocation2 + $0xa0] sm:$0xff] %vm208, %v4156
        %4189 = vst.msk [vmem:[#allocation2 + $0xa8] sm:$0xff] %vm208, %v4157
        %4190 = vst.msk [vmem:[#allocation2 + $0xb0] sm:$0xff] %vm208, %v4158
        %4191 = vst.msk [vmem:[#allocation2 + $0xb8] sm:$0xff] %vm208, %v4159
        %4192 = vst.msk [vmem:[#allocation2 + $0xc0] sm:$0xff] %vm208, %v4160
        %4193 = vst.msk [vmem:[#allocation2 + $0xc8] sm:$0xff] %vm208, %v4161
        %4194 = vst.msk [vmem:[#allocation2 + $0xd0] sm:$0xff] %vm208, %v4162
        %4195 = vst.msk [vmem:[#allocation2 + $0xd8] sm:$0xff] %vm208, %v4163
        %4196 = vst.msk [vmem:[#allocation2 + $0xe0] sm:$0xff] %vm208, %v4164
        %4197 = vst.msk [vmem:[#allocation2 + $0xe8] sm:$0xff] %vm208, %v4165
        %4198 = vst.msk [vmem:[#allocation2 + $0xf0] sm:$0xff] %vm208, %v4166
        %4199 = vst.msk [vmem:[#allocation2 + $0xf8] sm:$0xff] %vm208, %v4167
        %s4200 = scalar_lea.vmem %s1, 56
        %v4201 = vld [vmem:[%s4200] sm:$0xf]
        %v4202 = vld [vmem:[%s4200 + $0x4] sm:$0x3]
        %v4203 = vld [vmem:[%s2622] sm:$0xe]
        %v4204 = vld [vmem:[%s2622 + $0x4] sm:$0xf]
        %v4205 = vld [vmem:[%s2622 + $0x8] sm:$0x3]
        %v4206 = vld [vmem:[%s2622 + $0xc] sm:$0xe]
        %v4207 = vld [vmem:[%s2622 + $0x10] sm:$0xf]
        %v4208 = vld [vmem:[%s2622 + $0x14] sm:$0x3]
        %v4209 = vld [vmem:[%s2622 + $0x18] sm:$0xe]
        %v4210 = vld [vmem:[%s2622 + $0x1c] sm:$0xf]
        %v4211 = vld [vmem:[%s2622 + $0x20] sm:$0x3]
        %v4212 = vld [vmem:[%s2622 + $0x24] sm:$0xe]
        %v4213 = vld [vmem:[%s2622 + $0x28] sm:$0xf]
        %v4214 = vld [vmem:[%s2622 + $0x2c] sm:$0x3]
        %v4215 = vld [vmem:[%s2622 + $0x30] sm:$0xe]
        %v4216 = vld [vmem:[%s2622 + $0x34] sm:$0xf]
        %v4217 = vld [vmem:[%s2622 + $0x38] sm:$0x3]
        %v4218 = vld [vmem:[%s2622 + $0x3c] sm:$0xe]
        %v4219 = vld [vmem:[%s2622 + $0x40] sm:$0xf]
        %v4220 = vld [vmem:[%s2622 + $0x44] sm:$0x3]
        %v4221 = vld [vmem:[%s2622 + $0x48] sm:$0xe]
        %v4222 = vld [vmem:[%s2622 + $0x4c] sm:$0xf]
        %v4223 = vld [vmem:[%s2622 + $0x50] sm:$0x3]
        %v4224 = vld [vmem:[%s2622 + $0x54] sm:$0xe]
        %v4225 = vld [vmem:[%s2622 + $0x58] sm:$0xf]
        %v4226 = vld [vmem:[%s2622 + $0x5c] sm:$0x3]
        %v4227 = vld [vmem:[%s2622 + $0x60] sm:$0xe]
        %v4228 = vld [vmem:[%s2622 + $0x64] sm:$0xf]
        %v4229 = vld [vmem:[%s2622 + $0x68] sm:$0x3]
        %v4230 = vld [vmem:[%s2622 + $0x6c] sm:$0xe]
        %v4231 = vld [vmem:[%s2622 + $0x70] sm:$0xf]
        %v4232 = vld [vmem:[%s2622 + $0x74] sm:$0x3]
        %v4233 = vld [vmem:[%s2622 + $0x78] sm:$0xe]
        %v4234 = vld [vmem:[%s2622 + $0x7c] sm:$0xf]
        %v4235 = vld [vmem:[%s2622 + $0x80] sm:$0x3]
        %v4236 = vld [vmem:[%s2622 + $0x84] sm:$0xe]
        %v4237 = vld [vmem:[%s2622 + $0x88] sm:$0xf]
        %v4238 = vld [vmem:[%s2622 + $0x8c] sm:$0x3]
        %v4239 = vld [vmem:[%s2622 + $0x90] sm:$0xe]
        %v4240 = vld [vmem:[%s2622 + $0x94] sm:$0xf]
        %v4241 = vld [vmem:[%s2622 + $0x98] sm:$0x3]
        %v4242 = vld [vmem:[%s2622 + $0x9c] sm:$0xe]
        %v4243 = vld [vmem:[%s2622 + $0xa0] sm:$0xf]
        %v4244 = vld [vmem:[%s2622 + $0xa4] sm:$0x3]
        %v4245 = vld [vmem:[%s2622 + $0xa8] sm:$0xe]
        %v4246 = vld [vmem:[%s2622 + $0xac] sm:$0xf]
        %v4247 = vld [vmem:[%s2622 + $0xb0] sm:$0x3]
        %v4248 = vld [vmem:[%s2622 + $0xb4] sm:$0xe]
        %v4249 = vld [vmem:[%s2622 + $0xb8] sm:$0xf]
        %v4250 = vld [vmem:[%s2622 + $0xbc] sm:$0x3]
        %v4252 = vshrl.u32 %v4203, 16
        %v4254 = vrot.slane %v4252, 5
        %v4255 = vshll.u32 %v4203, 16
        %v4257 = vrot.slane %v4255, 6
        %v4258 = vor.u32 %v4254, %v4257
        %v4259 = vrot.slane %v4258, 4
        %v4261 = vshrl.u32 %v4204, 16
        %v4263 = vrot.slane %v4261, 5
        %v4264 = vshll.u32 %v4204, 16
        %v4266 = vrot.slane %v4264, 6
        %v4267 = vor.u32 %v4263, %v4266
        %v4268 = vsel %vm1881, %v4259, %v4267
        %v4269 = vrot.slane %v4267, 4
        %v4271 = vshrl.u32 %v4205, 16
        %v4273 = vrot.slane %v4271, 5
        %v4274 = vshll.u32 %v4205, 16
        %v4276 = vrot.slane %v4274, 6
        %v4277 = vor.u32 %v4273, %v4276
        %v4278 = vsel %vm1881, %v4269, %v4277
        %v4280 = vshrl.u32 %v4206, 16
        %v4282 = vrot.slane %v4280, 5
        %v4283 = vshll.u32 %v4206, 16
        %v4285 = vrot.slane %v4283, 6
        %v4286 = vor.u32 %v4282, %v4285
        %v4287 = vrot.slane %v4286, 4
        %v4289 = vshrl.u32 %v4207, 16
        %v4291 = vrot.slane %v4289, 5
        %v4292 = vshll.u32 %v4207, 16
        %v4294 = vrot.slane %v4292, 6
        %v4295 = vor.u32 %v4291, %v4294
        %v4296 = vsel %vm1881, %v4287, %v4295
        %v4297 = vrot.slane %v4295, 4
        %v4299 = vshrl.u32 %v4208, 16
        %v4301 = vrot.slane %v4299, 5
        %v4302 = vshll.u32 %v4208, 16
        %v4304 = vrot.slane %v4302, 6
        %v4305 = vor.u32 %v4301, %v4304
        %v4306 = vsel %vm1881, %v4297, %v4305
        %v4308 = vshrl.u32 %v4209, 16
        %v4310 = vrot.slane %v4308, 5
        %v4311 = vshll.u32 %v4209, 16
        %v4313 = vrot.slane %v4311, 6
        %v4314 = vor.u32 %v4310, %v4313
        %v4315 = vrot.slane %v4314, 4
        %v4317 = vshrl.u32 %v4210, 16
        %v4319 = vrot.slane %v4317, 5
        %v4320 = vshll.u32 %v4210, 16
        %v4322 = vrot.slane %v4320, 6
        %v4323 = vor.u32 %v4319, %v4322
        %v4324 = vsel %vm1881, %v4315, %v4323
        %v4325 = vrot.slane %v4323, 4
        %v4327 = vshrl.u32 %v4211, 16
        %v4329 = vrot.slane %v4327, 5
        %v4330 = vshll.u32 %v4211, 16
        %v4332 = vrot.slane %v4330, 6
        %v4333 = vor.u32 %v4329, %v4332
        %v4334 = vsel %vm1881, %v4325, %v4333
        %v4336 = vshrl.u32 %v4212, 16
        %v4338 = vrot.slane %v4336, 5
        %v4339 = vshll.u32 %v4212, 16
        %v4341 = vrot.slane %v4339, 6
        %v4342 = vor.u32 %v4338, %v4341
        %v4343 = vrot.slane %v4342, 4
        %v4345 = vshrl.u32 %v4213, 16
        %v4347 = vrot.slane %v4345, 5
        %v4348 = vshll.u32 %v4213, 16
        %v4350 = vrot.slane %v4348, 6
        %v4351 = vor.u32 %v4347, %v4350
        %v4352 = vsel %vm1881, %v4343, %v4351
        %v4353 = vrot.slane %v4351, 4
        %v4355 = vshrl.u32 %v4214, 16
        %v4357 = vrot.slane %v4355, 5
        %v4358 = vshll.u32 %v4214, 16
        %v4360 = vrot.slane %v4358, 6
        %v4361 = vor.u32 %v4357, %v4360
        %v4362 = vsel %vm1881, %v4353, %v4361
        %v4364 = vshrl.u32 %v4215, 16
        %v4366 = vrot.slane %v4364, 5
        %v4367 = vshll.u32 %v4215, 16
        %v4369 = vrot.slane %v4367, 6
        %v4370 = vor.u32 %v4366, %v4369
        %v4371 = vrot.slane %v4370, 4
        %v4373 = vshrl.u32 %v4216, 16
        %v4375 = vrot.slane %v4373, 5
        %v4376 = vshll.u32 %v4216, 16
        %v4378 = vrot.slane %v4376, 6
        %v4379 = vor.u32 %v4375, %v4378
        %v4380 = vsel %vm1881, %v4371, %v4379
        %v4381 = vrot.slane %v4379, 4
        %v4383 = vshrl.u32 %v4217, 16
        %v4385 = vrot.slane %v4383, 5
        %v4386 = vshll.u32 %v4217, 16
        %v4388 = vrot.slane %v4386, 6
        %v4389 = vor.u32 %v4385, %v4388
        %v4390 = vsel %vm1881, %v4381, %v4389
        %v4392 = vshrl.u32 %v4218, 16
        %v4394 = vrot.slane %v4392, 5
        %v4395 = vshll.u32 %v4218, 16
        %v4397 = vrot.slane %v4395, 6
        %v4398 = vor.u32 %v4394, %v4397
        %v4399 = vrot.slane %v4398, 4
        %v4401 = vshrl.u32 %v4219, 16
        %v4403 = vrot.slane %v4401, 5
        %v4404 = vshll.u32 %v4219, 16
        %v4406 = vrot.slane %v4404, 6
        %v4407 = vor.u32 %v4403, %v4406
        %v4408 = vsel %vm1881, %v4399, %v4407
        %v4409 = vrot.slane %v4407, 4
        %v4411 = vshrl.u32 %v4220, 16
        %v4413 = vrot.slane %v4411, 5
        %v4414 = vshll.u32 %v4220, 16
        %v4416 = vrot.slane %v4414, 6
        %v4417 = vor.u32 %v4413, %v4416
        %v4418 = vsel %vm1881, %v4409, %v4417
        %v4420 = vshrl.u32 %v4221, 16
        %v4422 = vrot.slane %v4420, 5
        %v4423 = vshll.u32 %v4221, 16
        %v4425 = vrot.slane %v4423, 6
        %v4426 = vor.u32 %v4422, %v4425
        %v4427 = vrot.slane %v4426, 4
        %v4429 = vshrl.u32 %v4222, 16
        %v4431 = vrot.slane %v4429, 5
        %v4432 = vshll.u32 %v4222, 16
        %v4434 = vrot.slane %v4432, 6
        %v4435 = vor.u32 %v4431, %v4434
        %v4436 = vsel %vm1881, %v4427, %v4435
        %v4437 = vrot.slane %v4435, 4
        %v4439 = vshrl.u32 %v4223, 16
        %v4441 = vrot.slane %v4439, 5
        %v4442 = vshll.u32 %v4223, 16
        %v4444 = vrot.slane %v4442, 6
        %v4445 = vor.u32 %v4441, %v4444
        %v4446 = vsel %vm1881, %v4437, %v4445
        %v4448 = vshrl.u32 %v4224, 16
        %v4450 = vrot.slane %v4448, 5
        %v4451 = vshll.u32 %v4224, 16
        %v4453 = vrot.slane %v4451, 6
        %v4454 = vor.u32 %v4450, %v4453
        %v4455 = vrot.slane %v4454, 4
        %v4457 = vshrl.u32 %v4225, 16
        %v4459 = vrot.slane %v4457, 5
        %v4460 = vshll.u32 %v4225, 16
        %v4462 = vrot.slane %v4460, 6
        %v4463 = vor.u32 %v4459, %v4462
        %v4464 = vsel %vm1881, %v4455, %v4463
        %v4465 = vrot.slane %v4463, 4
        %v4467 = vshrl.u32 %v4226, 16
        %v4469 = vrot.slane %v4467, 5
        %v4470 = vshll.u32 %v4226, 16
        %v4472 = vrot.slane %v4470, 6
        %v4473 = vor.u32 %v4469, %v4472
        %v4474 = vsel %vm1881, %v4465, %v4473
        %v4476 = vshrl.u32 %v4227, 16
        %v4478 = vrot.slane %v4476, 5
        %v4479 = vshll.u32 %v4227, 16
        %v4481 = vrot.slane %v4479, 6
        %v4482 = vor.u32 %v4478, %v4481
        %v4483 = vrot.slane %v4482, 4
        %v4485 = vshrl.u32 %v4228, 16
        %v4487 = vrot.slane %v4485, 5
        %v4488 = vshll.u32 %v4228, 16
        %v4490 = vrot.slane %v4488, 6
        %v4491 = vor.u32 %v4487, %v4490
        %v4492 = vsel %vm1881, %v4483, %v4491
        %v4493 = vrot.slane %v4491, 4
        %v4495 = vshrl.u32 %v4229, 16
        %v4497 = vrot.slane %v4495, 5
        %v4498 = vshll.u32 %v4229, 16
        %v4500 = vrot.slane %v4498, 6
        %v4501 = vor.u32 %v4497, %v4500
        %v4502 = vsel %vm1881, %v4493, %v4501
        %v4504 = vshrl.u32 %v4230, 16
        %v4506 = vrot.slane %v4504, 5
        %v4507 = vshll.u32 %v4230, 16
        %v4509 = vrot.slane %v4507, 6
        %v4510 = vor.u32 %v4506, %v4509
        %v4511 = vrot.slane %v4510, 4
        %v4513 = vshrl.u32 %v4231, 16
        %v4515 = vrot.slane %v4513, 5
        %v4516 = vshll.u32 %v4231, 16
        %v4518 = vrot.slane %v4516, 6
        %v4519 = vor.u32 %v4515, %v4518
        %v4520 = vsel %vm1881, %v4511, %v4519
        %v4521 = vrot.slane %v4519, 4
        %v4523 = vshrl.u32 %v4232, 16
        %v4525 = vrot.slane %v4523, 5
        %v4526 = vshll.u32 %v4232, 16
        %v4528 = vrot.slane %v4526, 6
        %v4529 = vor.u32 %v4525, %v4528
        %v4530 = vsel %vm1881, %v4521, %v4529
        %v4532 = vshrl.u32 %v4233, 16
        %v4534 = vrot.slane %v4532, 5
        %v4535 = vshll.u32 %v4233, 16
        %v4537 = vrot.slane %v4535, 6
        %v4538 = vor.u32 %v4534, %v4537
        %v4539 = vrot.slane %v4538, 4
        %v4541 = vshrl.u32 %v4234, 16
        %v4543 = vrot.slane %v4541, 5
        %v4544 = vshll.u32 %v4234, 16
        %v4546 = vrot.slane %v4544, 6
        %v4547 = vor.u32 %v4543, %v4546
        %v4548 = vsel %vm1881, %v4539, %v4547
        %v4549 = vrot.slane %v4547, 4
        %v4551 = vshrl.u32 %v4235, 16
        %v4553 = vrot.slane %v4551, 5
        %v4554 = vshll.u32 %v4235, 16
        %v4556 = vrot.slane %v4554, 6
        %v4557 = vor.u32 %v4553, %v4556
        %v4558 = vsel %vm1881, %v4549, %v4557
        %v4560 = vshrl.u32 %v4236, 16
        %v4562 = vrot.slane %v4560, 5
        %v4563 = vshll.u32 %v4236, 16
        %v4565 = vrot.slane %v4563, 6
        %v4566 = vor.u32 %v4562, %v4565
        %v4567 = vrot.slane %v4566, 4
        %v4569 = vshrl.u32 %v4237, 16
        %v4571 = vrot.slane %v4569, 5
        %v4572 = vshll.u32 %v4237, 16
        %v4574 = vrot.slane %v4572, 6
        %v4575 = vor.u32 %v4571, %v4574
        %v4576 = vsel %vm1881, %v4567, %v4575
        %v4577 = vrot.slane %v4575, 4
        %v4579 = vshrl.u32 %v4238, 16
        %v4581 = vrot.slane %v4579, 5
        %v4582 = vshll.u32 %v4238, 16
        %v4584 = vrot.slane %v4582, 6
        %v4585 = vor.u32 %v4581, %v4584
        %v4586 = vsel %vm1881, %v4577, %v4585
        %v4588 = vshrl.u32 %v4239, 16
        %v4590 = vrot.slane %v4588, 5
        %v4591 = vshll.u32 %v4239, 16
        %v4593 = vrot.slane %v4591, 6
        %v4594 = vor.u32 %v4590, %v4593
        %v4595 = vrot.slane %v4594, 4
        %v4597 = vshrl.u32 %v4240, 16
        %v4599 = vrot.slane %v4597, 5
        %v4600 = vshll.u32 %v4240, 16
        %v4602 = vrot.slane %v4600, 6
        %v4603 = vor.u32 %v4599, %v4602
        %v4604 = vsel %vm1881, %v4595, %v4603
        %v4605 = vrot.slane %v4603, 4
        %v4607 = vshrl.u32 %v4241, 16
        %v4609 = vrot.slane %v4607, 5
        %v4610 = vshll.u32 %v4241, 16
        %v4612 = vrot.slane %v4610, 6
        %v4613 = vor.u32 %v4609, %v4612
        %v4614 = vsel %vm1881, %v4605, %v4613
        %v4616 = vshrl.u32 %v4242, 16
        %v4618 = vrot.slane %v4616, 5
        %v4619 = vshll.u32 %v4242, 16
        %v4621 = vrot.slane %v4619, 6
        %v4622 = vor.u32 %v4618, %v4621
        %v4623 = vrot.slane %v4622, 4
        %v4625 = vshrl.u32 %v4243, 16
        %v4627 = vrot.slane %v4625, 5
        %v4628 = vshll.u32 %v4243, 16
        %v4630 = vrot.slane %v4628, 6
        %v4631 = vor.u32 %v4627, %v4630
        %v4632 = vsel %vm1881, %v4623, %v4631
        %v4633 = vrot.slane %v4631, 4
        %v4635 = vshrl.u32 %v4244, 16
        %v4637 = vrot.slane %v4635, 5
        %v4638 = vshll.u32 %v4244, 16
        %v4640 = vrot.slane %v4638, 6
        %v4641 = vor.u32 %v4637, %v4640
        %v4642 = vsel %vm1881, %v4633, %v4641
        %v4644 = vshrl.u32 %v4245, 16
        %v4646 = vrot.slane %v4644, 5
        %v4647 = vshll.u32 %v4245, 16
        %v4649 = vrot.slane %v4647, 6
        %v4650 = vor.u32 %v4646, %v4649
        %v4651 = vrot.slane %v4650, 4
        %v4653 = vshrl.u32 %v4246, 16
        %v4655 = vrot.slane %v4653, 5
        %v4656 = vshll.u32 %v4246, 16
        %v4658 = vrot.slane %v4656, 6
        %v4659 = vor.u32 %v4655, %v4658
        %v4660 = vsel %vm1881, %v4651, %v4659
        %v4661 = vrot.slane %v4659, 4
        %v4663 = vshrl.u32 %v4247, 16
        %v4665 = vrot.slane %v4663, 5
        %v4666 = vshll.u32 %v4247, 16
        %v4668 = vrot.slane %v4666, 6
        %v4669 = vor.u32 %v4665, %v4668
        %v4670 = vsel %vm1881, %v4661, %v4669
        %v4672 = vshrl.u32 %v4248, 16
        %v4674 = vrot.slane %v4672, 5
        %v4675 = vshll.u32 %v4248, 16
        %v4677 = vrot.slane %v4675, 6
        %v4678 = vor.u32 %v4674, %v4677
        %v4679 = vrot.slane %v4678, 4
        %v4681 = vshrl.u32 %v4249, 16
        %v4683 = vrot.slane %v4681, 5
        %v4684 = vshll.u32 %v4249, 16
        %v4686 = vrot.slane %v4684, 6
        %v4687 = vor.u32 %v4683, %v4686
        %v4688 = vsel %vm1881, %v4679, %v4687
        %v4689 = vrot.slane %v4687, 4
        %v4691 = vshrl.u32 %v4250, 16
        %v4693 = vrot.slane %v4691, 5
        %v4694 = vshll.u32 %v4250, 16
        %v4696 = vrot.slane %v4694, 6
        %v4697 = vor.u32 %v4693, %v4696
        %v4698 = vsel %vm1881, %v4689, %v4697
        %v4699 = vld [vmem:[#allocation2] sm:$0xff]
        %v4700 = vld [vmem:[#allocation2 + $0x8] sm:$0xff]
        %v4701 = vld [vmem:[#allocation2 + $0x10] sm:$0xff]
        %v4702 = vld [vmem:[#allocation2 + $0x18] sm:$0xff]
        %v4703 = vld [vmem:[#allocation2 + $0x20] sm:$0xff]
        %v4704 = vld [vmem:[#allocation2 + $0x28] sm:$0xff]
        %v4705 = vld [vmem:[#allocation2 + $0x30] sm:$0xff]
        %v4706 = vld [vmem:[#allocation2 + $0x38] sm:$0xff]
        %v4707 = vld [vmem:[#allocation2 + $0x40] sm:$0xff]
        %v4708 = vld [vmem:[#allocation2 + $0x48] sm:$0xff]
        %v4709 = vld [vmem:[#allocation2 + $0x50] sm:$0xff]
        %v4710 = vld [vmem:[#allocation2 + $0x58] sm:$0xff]
        %v4711 = vld [vmem:[#allocation2 + $0x60] sm:$0xff]
        %v4712 = vld [vmem:[#allocation2 + $0x68] sm:$0xff]
        %v4713 = vld [vmem:[#allocation2 + $0x70] sm:$0xff]
        %v4714 = vld [vmem:[#allocation2 + $0x78] sm:$0xff]
        %v4715 = vld [vmem:[#allocation2 + $0x80] sm:$0xff]
        %v4716 = vld [vmem:[#allocation2 + $0x88] sm:$0xff]
        %v4717 = vld [vmem:[#allocation2 + $0x90] sm:$0xff]
        %v4718 = vld [vmem:[#allocation2 + $0x98] sm:$0xff]
        %v4719 = vld [vmem:[#allocation2 + $0xa0] sm:$0xff]
        %v4720 = vld [vmem:[#allocation2 + $0xa8] sm:$0xff]
        %v4721 = vld [vmem:[#allocation2 + $0xb0] sm:$0xff]
        %v4722 = vld [vmem:[#allocation2 + $0xb8] sm:$0xff]
        %v4723 = vld [vmem:[#allocation2 + $0xc0] sm:$0xff]
        %v4724 = vld [vmem:[#allocation2 + $0xc8] sm:$0xff]
        %v4725 = vld [vmem:[#allocation2 + $0xd0] sm:$0xff]
        %v4726 = vld [vmem:[#allocation2 + $0xd8] sm:$0xff]
        %v4727 = vld [vmem:[#allocation2 + $0xe0] sm:$0xff]
        %v4728 = vld [vmem:[#allocation2 + $0xe8] sm:$0xff]
        %v4729 = vld [vmem:[#allocation2 + $0xf0] sm:$0xff]
        %v4730 = vld [vmem:[#allocation2 + $0xf8] sm:$0xff]
        %v4731 = vunpack.c.l.b16 %v4268
        %v4732 = vunpack.c.l.b16 %v4278
        %v4733 = vunpack.c.l.b16 %v4296
        %v4734 = vunpack.c.l.b16 %v4306
        %v4735 = vunpack.c.l.b16 %v4324
        %v4736 = vunpack.c.l.b16 %v4334
        %v4737 = vunpack.c.l.b16 %v4352
        %v4738 = vunpack.c.l.b16 %v4362
        %v4739 = vunpack.c.l.b16 %v4380
        %v4740 = vunpack.c.l.b16 %v4390
        %v4741 = vunpack.c.l.b16 %v4408
        %v4742 = vunpack.c.l.b16 %v4418
        %v4743 = vunpack.c.l.b16 %v4436
        %v4744 = vunpack.c.l.b16 %v4446
        %v4745 = vunpack.c.l.b16 %v4464
        %v4746 = vunpack.c.l.b16 %v4474
        %v4747 = vunpack.c.l.b16 %v4492
        %v4748 = vunpack.c.l.b16 %v4502
        %v4749 = vunpack.c.l.b16 %v4520
        %v4750 = vunpack.c.l.b16 %v4530
        %v4751 = vunpack.c.l.b16 %v4548
        %v4752 = vunpack.c.l.b16 %v4558
        %v4753 = vunpack.c.l.b16 %v4576
        %v4754 = vunpack.c.l.b16 %v4586
        %v4755 = vunpack.c.l.b16 %v4604
        %v4756 = vunpack.c.l.b16 %v4614
        %v4757 = vunpack.c.l.b16 %v4632
        %v4758 = vunpack.c.l.b16 %v4642
        %v4759 = vunpack.c.l.b16 %v4660
        %v4760 = vunpack.c.l.b16 %v4670
        %v4761 = vunpack.c.l.b16 %v4688
        %v4762 = vunpack.c.l.b16 %v4698
        %v4763 = vpack.c.b16 %v4732, %v4731
        %v4764 = vpack.c.b16 %v4734, %v4733
        %v4765 = vpack.c.b16 %v4736, %v4735
        %v4766 = vpack.c.b16 %v4738, %v4737
        %v4767 = vpack.c.b16 %v4740, %v4739
        %v4768 = vpack.c.b16 %v4742, %v4741
        %v4769 = vpack.c.b16 %v4744, %v4743
        %v4770 = vpack.c.b16 %v4746, %v4745
        %v4771 = vpack.c.b16 %v4748, %v4747
        %v4772 = vpack.c.b16 %v4750, %v4749
        %v4773 = vpack.c.b16 %v4752, %v4751
        %v4774 = vpack.c.b16 %v4754, %v4753
        %v4775 = vpack.c.b16 %v4756, %v4755
        %v4776 = vpack.c.b16 %v4758, %v4757
        %v4777 = vpack.c.b16 %v4760, %v4759
        %v4778 = vpack.c.b16 %v4762, %v4761
        %v4781 = vunpack.c.l.b16 %v4201
        %v4782 = vunpack.c.l.b16 %v4202
        %v4783 = vpack.c.b16 %v4782, %v4781
        %v4785 = vsel %vm392, %v4763, 0
        %v4788 = vsel %vm392, %v4764, 0
        %v4791 = vsel %vm392, %v4765, 0
        %v4794 = vsel %vm392, %v4766, 0
        %v4797 = vsel %vm392, %v4767, 0
        %v4800 = vsel %vm392, %v4768, 0
        %v4803 = vsel %vm392, %v4769, 0
        %v4806 = vsel %vm392, %v4770, 0
        %v4809 = vsel %vm392, %v4771, 0
        %v4812 = vsel %vm392, %v4772, 0
        %v4815 = vsel %vm392, %v4773, 0
        %v4818 = vsel %vm392, %v4774, 0
        %v4821 = vsel %vm392, %v4775, 0
        %v4824 = vsel %vm392, %v4776, 0
        %v4827 = vsel %vm392, %v4777, 0
        %v4830 = vsel %vm392, %v4778, 0
        %v4833 = vsel %vm441, %v4783, 0
        %4835 = vmatpush.bf16.msra.mxu0 0
        %4836 = vmatpush.bf16.msra.mxu0 0
        %4837 = vmatpush.bf16.msra.mxu0 0
        %4838 = vmatpush.bf16.msra.mxu0 0
        %4839 = vmatpush.bf16.msra.mxu0 0
        %4840 = vmatpush.bf16.msra.mxu0 0
        %4841 = vmatpush.bf16.msra.mxu0 0
        %4842 = vmatpush.bf16.msra.mxu0 %v4833
        %4843 = vmatmul.bf16.gmra.mxu0 %v4785
        %v4844 = vpop.f32.mrf.mxu0
        %v4845 = vadd.f32 0.0, %v4844
        %v4846 = vpop.f32.mrf.mxu0
        %v4847 = vadd.f32 0.0, %v4846
        %4848 = vmatmul.bf16.gmra.mxu0 %v4788
        %v4849 = vpop.f32.mrf.mxu0
        %v4850 = vadd.f32 0.0, %v4849
        %v4851 = vpop.f32.mrf.mxu0
        %v4852 = vadd.f32 0.0, %v4851
        %4853 = vmatmul.bf16.gmra.mxu0 %v4791
        %v4854 = vpop.f32.mrf.mxu0
        %v4855 = vadd.f32 0.0, %v4854
        %v4856 = vpop.f32.mrf.mxu0
        %v4857 = vadd.f32 0.0, %v4856
        %4858 = vmatmul.bf16.gmra.mxu0 %v4794
        %v4859 = vpop.f32.mrf.mxu0
        %v4860 = vadd.f32 0.0, %v4859
        %v4861 = vpop.f32.mrf.mxu0
        %v4862 = vadd.f32 0.0, %v4861
        %4863 = vmatmul.bf16.gmra.mxu0 %v4797
        %v4864 = vpop.f32.mrf.mxu0
        %v4865 = vadd.f32 0.0, %v4864
        %v4866 = vpop.f32.mrf.mxu0
        %v4867 = vadd.f32 0.0, %v4866
        %4868 = vmatmul.bf16.gmra.mxu0 %v4800
        %v4869 = vpop.f32.mrf.mxu0
        %v4870 = vadd.f32 0.0, %v4869
        %v4871 = vpop.f32.mrf.mxu0
        %v4872 = vadd.f32 0.0, %v4871
        %4873 = vmatmul.bf16.gmra.mxu0 %v4803
        %v4874 = vpop.f32.mrf.mxu0
        %v4875 = vadd.f32 0.0, %v4874
        %v4876 = vpop.f32.mrf.mxu0
        %v4877 = vadd.f32 0.0, %v4876
        %4878 = vmatmul.bf16.gmra.mxu0 %v4806
        %v4879 = vpop.f32.mrf.mxu0
        %v4880 = vadd.f32 0.0, %v4879
        %v4881 = vpop.f32.mrf.mxu0
        %v4882 = vadd.f32 0.0, %v4881
        %4883 = vmatmul.bf16.gmra.mxu0 %v4809
        %v4884 = vpop.f32.mrf.mxu0
        %v4885 = vadd.f32 0.0, %v4884
        %v4886 = vpop.f32.mrf.mxu0
        %v4887 = vadd.f32 0.0, %v4886
        %4888 = vmatmul.bf16.gmra.mxu0 %v4812
        %v4889 = vpop.f32.mrf.mxu0
        %v4890 = vadd.f32 0.0, %v4889
        %v4891 = vpop.f32.mrf.mxu0
        %v4892 = vadd.f32 0.0, %v4891
        %4893 = vmatmul.bf16.gmra.mxu0 %v4815
        %v4894 = vpop.f32.mrf.mxu0
        %v4895 = vadd.f32 0.0, %v4894
        %v4896 = vpop.f32.mrf.mxu0
        %v4897 = vadd.f32 0.0, %v4896
        %4898 = vmatmul.bf16.gmra.mxu0 %v4818
        %v4899 = vpop.f32.mrf.mxu0
        %v4900 = vadd.f32 0.0, %v4899
        %v4901 = vpop.f32.mrf.mxu0
        %v4902 = vadd.f32 0.0, %v4901
        %4903 = vmatmul.bf16.gmra.mxu0 %v4821
        %v4904 = vpop.f32.mrf.mxu0
        %v4905 = vadd.f32 0.0, %v4904
        %v4906 = vpop.f32.mrf.mxu0
        %v4907 = vadd.f32 0.0, %v4906
        %4908 = vmatmul.bf16.gmra.mxu0 %v4824
        %v4909 = vpop.f32.mrf.mxu0
        %v4910 = vadd.f32 0.0, %v4909
        %v4911 = vpop.f32.mrf.mxu0
        %v4912 = vadd.f32 0.0, %v4911
        %4913 = vmatmul.bf16.gmra.mxu0 %v4827
        %v4914 = vpop.f32.mrf.mxu0
        %v4915 = vadd.f32 0.0, %v4914
        %v4916 = vpop.f32.mrf.mxu0
        %v4917 = vadd.f32 0.0, %v4916
        %4918 = vmatmul.bf16.gmra.mxu0 %v4830
        %v4919 = vpop.f32.mrf.mxu0
        %v4920 = vadd.f32 0.0, %v4919
        %v4921 = vpop.f32.mrf.mxu0
        %v4922 = vadd.f32 0.0, %v4921
        %4923 = vdwg.mxu0
        %v4924 = vadd.f32 %v4699, %v4845
        %v4925 = vadd.f32 %v4700, %v4847
        %v4926 = vadd.f32 %v4701, %v4850
        %v4927 = vadd.f32 %v4702, %v4852
        %v4928 = vadd.f32 %v4703, %v4855
        %v4929 = vadd.f32 %v4704, %v4857
        %v4930 = vadd.f32 %v4705, %v4860
        %v4931 = vadd.f32 %v4706, %v4862
        %v4932 = vadd.f32 %v4707, %v4865
        %v4933 = vadd.f32 %v4708, %v4867
        %v4934 = vadd.f32 %v4709, %v4870
        %v4935 = vadd.f32 %v4710, %v4872
        %v4936 = vadd.f32 %v4711, %v4875
        %v4937 = vadd.f32 %v4712, %v4877
        %v4938 = vadd.f32 %v4713, %v4880
        %v4939 = vadd.f32 %v4714, %v4882
        %v4940 = vadd.f32 %v4715, %v4885
        %v4941 = vadd.f32 %v4716, %v4887
        %v4942 = vadd.f32 %v4717, %v4890
        %v4943 = vadd.f32 %v4718, %v4892
        %v4944 = vadd.f32 %v4719, %v4895
        %v4945 = vadd.f32 %v4720, %v4897
        %v4946 = vadd.f32 %v4721, %v4900
        %v4947 = vadd.f32 %v4722, %v4902
        %v4948 = vadd.f32 %v4723, %v4905
        %v4949 = vadd.f32 %v4724, %v4907
        %v4950 = vadd.f32 %v4725, %v4910
        %v4951 = vadd.f32 %v4726, %v4912
        %v4952 = vadd.f32 %v4727, %v4915
        %v4953 = vadd.f32 %v4728, %v4917
        %v4954 = vadd.f32 %v4729, %v4920
        %v4955 = vadd.f32 %v4730, %v4922
        %4956 = vst.msk [vmem:[#allocation2] sm:$0xff] %vm208, %v4924
        %4957 = vst.msk [vmem:[#allocation2 + $0x8] sm:$0xff] %vm208, %v4925
        %4958 = vst.msk [vmem:[#allocation2 + $0x10] sm:$0xff] %vm208, %v4926
        %4959 = vst.msk [vmem:[#allocation2 + $0x18] sm:$0xff] %vm208, %v4927
        %4960 = vst.msk [vmem:[#allocation2 + $0x20] sm:$0xff] %vm208, %v4928
        %4961 = vst.msk [vmem:[#allocation2 + $0x28] sm:$0xff] %vm208, %v4929
        %4962 = vst.msk [vmem:[#allocation2 + $0x30] sm:$0xff] %vm208, %v4930
        %4963 = vst.msk [vmem:[#allocation2 + $0x38] sm:$0xff] %vm208, %v4931
        %4964 = vst.msk [vmem:[#allocation2 + $0x40] sm:$0xff] %vm208, %v4932
        %4965 = vst.msk [vmem:[#allocation2 + $0x48] sm:$0xff] %vm208, %v4933
        %4966 = vst.msk [vmem:[#allocation2 + $0x50] sm:$0xff] %vm208, %v4934
        %4967 = vst.msk [vmem:[#allocation2 + $0x58] sm:$0xff] %vm208, %v4935
        %4968 = vst.msk [vmem:[#allocation2 + $0x60] sm:$0xff] %vm208, %v4936
        %4969 = vst.msk [vmem:[#allocation2 + $0x68] sm:$0xff] %vm208, %v4937
        %4970 = vst.msk [vmem:[#allocation2 + $0x70] sm:$0xff] %vm208, %v4938
        %4971 = vst.msk [vmem:[#allocation2 + $0x78] sm:$0xff] %vm208, %v4939
        %4972 = vst.msk [vmem:[#allocation2 + $0x80] sm:$0xff] %vm208, %v4940
        %4973 = vst.msk [vmem:[#allocation2 + $0x88] sm:$0xff] %vm208, %v4941
        %4974 = vst.msk [vmem:[#allocation2 + $0x90] sm:$0xff] %vm208, %v4942
        %4975 = vst.msk [vmem:[#allocation2 + $0x98] sm:$0xff] %vm208, %v4943
        %4976 = vst.msk [vmem:[#allocation2 + $0xa0] sm:$0xff] %vm208, %v4944
        %4977 = vst.msk [vmem:[#allocation2 + $0xa8] sm:$0xff] %vm208, %v4945
        %4978 = vst.msk [vmem:[#allocation2 + $0xb0] sm:$0xff] %vm208, %v4946
        %4979 = vst.msk [vmem:[#allocation2 + $0xb8] sm:$0xff] %vm208, %v4947
        %4980 = vst.msk [vmem:[#allocation2 + $0xc0] sm:$0xff] %vm208, %v4948
        %4981 = vst.msk [vmem:[#allocation2 + $0xc8] sm:$0xff] %vm208, %v4949
        %4982 = vst.msk [vmem:[#allocation2 + $0xd0] sm:$0xff] %vm208, %v4950
        %4983 = vst.msk [vmem:[#allocation2 + $0xd8] sm:$0xff] %vm208, %v4951
        %4984 = vst.msk [vmem:[#allocation2 + $0xe0] sm:$0xff] %vm208, %v4952
        %4985 = vst.msk [vmem:[#allocation2 + $0xe8] sm:$0xff] %vm208, %v4953
        %4986 = vst.msk [vmem:[#allocation2 + $0xf0] sm:$0xff] %vm208, %v4954
        %4987 = vst.msk [vmem:[#allocation2 + $0xf8] sm:$0xff] %vm208, %v4955
        %s4988 = scalar_lea.vmem %s1, 64
        %v4989 = vld [vmem:[%s4988] sm:$0xf]
        %v4990 = vld [vmem:[%s4988 + $0x4] sm:$0x3]
        %s4991 = scalar_lea.vmem %s200, 24
        %v4992 = vld [vmem:[%s4991] sm:$0xf]
        %v4993 = vld [vmem:[%s4991 + $0x4] sm:$0xf]
        %v4994 = vld [vmem:[%s4991 + $0xc] sm:$0xf]
        %v4995 = vld [vmem:[%s4991 + $0x10] sm:$0xf]
        %v4996 = vld [vmem:[%s4991 + $0x18] sm:$0xf]
        %v4997 = vld [vmem:[%s4991 + $0x1c] sm:$0xf]
        %v4998 = vld [vmem:[%s4991 + $0x24] sm:$0xf]
        %v4999 = vld [vmem:[%s4991 + $0x28] sm:$0xf]
        %v5000 = vld [vmem:[%s4991 + $0x30] sm:$0xf]
        %v5001 = vld [vmem:[%s4991 + $0x34] sm:$0xf]
        %v5002 = vld [vmem:[%s4991 + $0x3c] sm:$0xf]
        %v5003 = vld [vmem:[%s4991 + $0x40] sm:$0xf]
        %v5004 = vld [vmem:[%s4991 + $0x48] sm:$0xf]
        %v5005 = vld [vmem:[%s4991 + $0x4c] sm:$0xf]
        %v5006 = vld [vmem:[%s4991 + $0x54] sm:$0xf]
        %v5007 = vld [vmem:[%s4991 + $0x58] sm:$0xf]
        %v5008 = vld [vmem:[%s4991 + $0x60] sm:$0xf]
        %v5009 = vld [vmem:[%s4991 + $0x64] sm:$0xf]
        %v5010 = vld [vmem:[%s4991 + $0x6c] sm:$0xf]
        %v5011 = vld [vmem:[%s4991 + $0x70] sm:$0xf]
        %v5012 = vld [vmem:[%s4991 + $0x78] sm:$0xf]
        %v5013 = vld [vmem:[%s4991 + $0x7c] sm:$0xf]
        %v5014 = vld [vmem:[%s4991 + $0x84] sm:$0xf]
        %v5015 = vld [vmem:[%s4991 + $0x88] sm:$0xf]
        %v5016 = vld [vmem:[%s4991 + $0x90] sm:$0xf]
        %v5017 = vld [vmem:[%s4991 + $0x94] sm:$0xf]
        %v5018 = vld [vmem:[%s4991 + $0x9c] sm:$0xf]
        %v5019 = vld [vmem:[%s4991 + $0xa0] sm:$0xf]
        %v5020 = vld [vmem:[%s4991 + $0xa8] sm:$0xf]
        %v5021 = vld [vmem:[%s4991 + $0xac] sm:$0xf]
        %v5022 = vld [vmem:[%s4991 + $0xb4] sm:$0xf]
        %v5023 = vld [vmem:[%s4991 + $0xb8] sm:$0xf]
        %v5024 = vld [vmem:[#allocation2] sm:$0xff]
        %v5025 = vld [vmem:[#allocation2 + $0x8] sm:$0xff]
        %v5026 = vld [vmem:[#allocation2 + $0x10] sm:$0xff]
        %v5027 = vld [vmem:[#allocation2 + $0x18] sm:$0xff]
        %v5028 = vld [vmem:[#allocation2 + $0x20] sm:$0xff]
        %v5029 = vld [vmem:[#allocation2 + $0x28] sm:$0xff]
        %v5030 = vld [vmem:[#allocation2 + $0x30] sm:$0xff]
        %v5031 = vld [vmem:[#allocation2 + $0x38] sm:$0xff]
        %v5032 = vld [vmem:[#allocation2 + $0x40] sm:$0xff]
        %v5033 = vld [vmem:[#allocation2 + $0x48] sm:$0xff]
        %v5034 = vld [vmem:[#allocation2 + $0x50] sm:$0xff]
        %v5035 = vld [vmem:[#allocation2 + $0x58] sm:$0xff]
        %v5036 = vld [vmem:[#allocation2 + $0x60] sm:$0xff]
        %v5037 = vld [vmem:[#allocation2 + $0x68] sm:$0xff]
        %v5038 = vld [vmem:[#allocation2 + $0x70] sm:$0xff]
        %v5039 = vld [vmem:[#allocation2 + $0x78] sm:$0xff]
        %v5040 = vld [vmem:[#allocation2 + $0x80] sm:$0xff]
        %v5041 = vld [vmem:[#allocation2 + $0x88] sm:$0xff]
        %v5042 = vld [vmem:[#allocation2 + $0x90] sm:$0xff]
        %v5043 = vld [vmem:[#allocation2 + $0x98] sm:$0xff]
        %v5044 = vld [vmem:[#allocation2 + $0xa0] sm:$0xff]
        %v5045 = vld [vmem:[#allocation2 + $0xa8] sm:$0xff]
        %v5046 = vld [vmem:[#allocation2 + $0xb0] sm:$0xff]
        %v5047 = vld [vmem:[#allocation2 + $0xb8] sm:$0xff]
        %v5048 = vld [vmem:[#allocation2 + $0xc0] sm:$0xff]
        %v5049 = vld [vmem:[#allocation2 + $0xc8] sm:$0xff]
        %v5050 = vld [vmem:[#allocation2 + $0xd0] sm:$0xff]
        %v5051 = vld [vmem:[#allocation2 + $0xd8] sm:$0xff]
        %v5052 = vld [vmem:[#allocation2 + $0xe0] sm:$0xff]
        %v5053 = vld [vmem:[#allocation2 + $0xe8] sm:$0xff]
        %v5054 = vld [vmem:[#allocation2 + $0xf0] sm:$0xff]
        %v5055 = vld [vmem:[#allocation2 + $0xf8] sm:$0xff]
        %v5088 = vunpack.c.l.b16 %v4992
        %v5089 = vunpack.c.l.b16 %v4993
        %v5090 = vunpack.c.l.b16 %v4994
        %v5091 = vunpack.c.l.b16 %v4995
        %v5092 = vunpack.c.l.b16 %v4996
        %v5093 = vunpack.c.l.b16 %v4997
        %v5094 = vunpack.c.l.b16 %v4998
        %v5095 = vunpack.c.l.b16 %v4999
        %v5096 = vunpack.c.l.b16 %v5000
        %v5097 = vunpack.c.l.b16 %v5001
        %v5098 = vunpack.c.l.b16 %v5002
        %v5099 = vunpack.c.l.b16 %v5003
        %v5100 = vunpack.c.l.b16 %v5004
        %v5101 = vunpack.c.l.b16 %v5005
        %v5102 = vunpack.c.l.b16 %v5006
        %v5103 = vunpack.c.l.b16 %v5007
        %v5104 = vunpack.c.l.b16 %v5008
        %v5105 = vunpack.c.l.b16 %v5009
        %v5106 = vunpack.c.l.b16 %v5010
        %v5107 = vunpack.c.l.b16 %v5011
        %v5108 = vunpack.c.l.b16 %v5012
        %v5109 = vunpack.c.l.b16 %v5013
        %v5110 = vunpack.c.l.b16 %v5014
        %v5111 = vunpack.c.l.b16 %v5015
        %v5112 = vunpack.c.l.b16 %v5016
        %v5113 = vunpack.c.l.b16 %v5017
        %v5114 = vunpack.c.l.b16 %v5018
        %v5115 = vunpack.c.l.b16 %v5019
        %v5116 = vunpack.c.l.b16 %v5020
        %v5117 = vunpack.c.l.b16 %v5021
        %v5118 = vunpack.c.l.b16 %v5022
        %v5119 = vunpack.c.l.b16 %v5023
        %v5120 = vpack.c.b16 %v5089, %v5088
        %v5121 = vpack.c.b16 %v5091, %v5090
        %v5122 = vpack.c.b16 %v5093, %v5092
        %v5123 = vpack.c.b16 %v5095, %v5094
        %v5124 = vpack.c.b16 %v5097, %v5096
        %v5125 = vpack.c.b16 %v5099, %v5098
        %v5126 = vpack.c.b16 %v5101, %v5100
        %v5127 = vpack.c.b16 %v5103, %v5102
        %v5128 = vpack.c.b16 %v5105, %v5104
        %v5129 = vpack.c.b16 %v5107, %v5106
        %v5130 = vpack.c.b16 %v5109, %v5108
        %v5131 = vpack.c.b16 %v5111, %v5110
        %v5132 = vpack.c.b16 %v5113, %v5112
        %v5133 = vpack.c.b16 %v5115, %v5114
        %v5134 = vpack.c.b16 %v5117, %v5116
        %v5135 = vpack.c.b16 %v5119, %v5118
        %v5138 = vunpack.c.l.b16 %v4989
        %v5139 = vunpack.c.l.b16 %v4990
        %v5140 = vpack.c.b16 %v5139, %v5138
        %v5142 = vsel %vm392, %v5120, 0
        %v5145 = vsel %vm392, %v5121, 0
        %v5148 = vsel %vm392, %v5122, 0
        %v5151 = vsel %vm392, %v5123, 0
        %v5154 = vsel %vm392, %v5124, 0
        %v5157 = vsel %vm392, %v5125, 0
        %v5160 = vsel %vm392, %v5126, 0
        %v5163 = vsel %vm392, %v5127, 0
        %v5166 = vsel %vm392, %v5128, 0
        %v5169 = vsel %vm392, %v5129, 0
        %v5172 = vsel %vm392, %v5130, 0
        %v5175 = vsel %vm392, %v5131, 0
        %v5178 = vsel %vm392, %v5132, 0
        %v5181 = vsel %vm392, %v5133, 0
        %v5184 = vsel %vm392, %v5134, 0
        %v5187 = vsel %vm392, %v5135, 0
        %v5190 = vsel %vm441, %v5140, 0
        %5192 = vmatpush.bf16.msra.mxu0 0
        %5193 = vmatpush.bf16.msra.mxu0 0
        %5194 = vmatpush.bf16.msra.mxu0 0
        %5195 = vmatpush.bf16.msra.mxu0 0
        %5196 = vmatpush.bf16.msra.mxu0 0
        %5197 = vmatpush.bf16.msra.mxu0 0
        %5198 = vmatpush.bf16.msra.mxu0 0
        %5199 = vmatpush.bf16.msra.mxu0 %v5190
        %5200 = vmatmul.bf16.gmra.mxu0 %v5142
        %v5201 = vpop.f32.mrf.mxu0
        %v5202 = vadd.f32 0.0, %v5201
        %v5203 = vpop.f32.mrf.mxu0
        %v5204 = vadd.f32 0.0, %v5203
        %5205 = vmatmul.bf16.gmra.mxu0 %v5145
        %v5206 = vpop.f32.mrf.mxu0
        %v5207 = vadd.f32 0.0, %v5206
        %v5208 = vpop.f32.mrf.mxu0
        %v5209 = vadd.f32 0.0, %v5208
        %5210 = vmatmul.bf16.gmra.mxu0 %v5148
        %v5211 = vpop.f32.mrf.mxu0
        %v5212 = vadd.f32 0.0, %v5211
        %v5213 = vpop.f32.mrf.mxu0
        %v5214 = vadd.f32 0.0, %v5213
        %5215 = vmatmul.bf16.gmra.mxu0 %v5151
        %v5216 = vpop.f32.mrf.mxu0
        %v5217 = vadd.f32 0.0, %v5216
        %v5218 = vpop.f32.mrf.mxu0
        %v5219 = vadd.f32 0.0, %v5218
        %5220 = vmatmul.bf16.gmra.mxu0 %v5154
        %v5221 = vpop.f32.mrf.mxu0
        %v5222 = vadd.f32 0.0, %v5221
        %v5223 = vpop.f32.mrf.mxu0
        %v5224 = vadd.f32 0.0, %v5223
        %5225 = vmatmul.bf16.gmra.mxu0 %v5157
        %v5226 = vpop.f32.mrf.mxu0
        %v5227 = vadd.f32 0.0, %v5226
        %v5228 = vpop.f32.mrf.mxu0
        %v5229 = vadd.f32 0.0, %v5228
        %5230 = vmatmul.bf16.gmra.mxu0 %v5160
        %v5231 = vpop.f32.mrf.mxu0
        %v5232 = vadd.f32 0.0, %v5231
        %v5233 = vpop.f32.mrf.mxu0
        %v5234 = vadd.f32 0.0, %v5233
        %5235 = vmatmul.bf16.gmra.mxu0 %v5163
        %v5236 = vpop.f32.mrf.mxu0
        %v5237 = vadd.f32 0.0, %v5236
        %v5238 = vpop.f32.mrf.mxu0
        %v5239 = vadd.f32 0.0, %v5238
        %5240 = vmatmul.bf16.gmra.mxu0 %v5166
        %v5241 = vpop.f32.mrf.mxu0
        %v5242 = vadd.f32 0.0, %v5241
        %v5243 = vpop.f32.mrf.mxu0
        %v5244 = vadd.f32 0.0, %v5243
        %5245 = vmatmul.bf16.gmra.mxu0 %v5169
        %v5246 = vpop.f32.mrf.mxu0
        %v5247 = vadd.f32 0.0, %v5246
        %v5248 = vpop.f32.mrf.mxu0
        %v5249 = vadd.f32 0.0, %v5248
        %5250 = vmatmul.bf16.gmra.mxu0 %v5172
        %v5251 = vpop.f32.mrf.mxu0
        %v5252 = vadd.f32 0.0, %v5251
        %v5253 = vpop.f32.mrf.mxu0
        %v5254 = vadd.f32 0.0, %v5253
        %5255 = vmatmul.bf16.gmra.mxu0 %v5175
        %v5256 = vpop.f32.mrf.mxu0
        %v5257 = vadd.f32 0.0, %v5256
        %v5258 = vpop.f32.mrf.mxu0
        %v5259 = vadd.f32 0.0, %v5258
        %5260 = vmatmul.bf16.gmra.mxu0 %v5178
        %v5261 = vpop.f32.mrf.mxu0
        %v5262 = vadd.f32 0.0, %v5261
        %v5263 = vpop.f32.mrf.mxu0
        %v5264 = vadd.f32 0.0, %v5263
        %5265 = vmatmul.bf16.gmra.mxu0 %v5181
        %v5266 = vpop.f32.mrf.mxu0
        %v5267 = vadd.f32 0.0, %v5266
        %v5268 = vpop.f32.mrf.mxu0
        %v5269 = vadd.f32 0.0, %v5268
        %5270 = vmatmul.bf16.gmra.mxu0 %v5184
        %v5271 = vpop.f32.mrf.mxu0
        %v5272 = vadd.f32 0.0, %v5271
        %v5273 = vpop.f32.mrf.mxu0
        %v5274 = vadd.f32 0.0, %v5273
        %5275 = vmatmul.bf16.gmra.mxu0 %v5187
        %v5276 = vpop.f32.mrf.mxu0
        %v5277 = vadd.f32 0.0, %v5276
        %v5278 = vpop.f32.mrf.mxu0
        %v5279 = vadd.f32 0.0, %v5278
        %5280 = vdwg.mxu0
        %v5281 = vadd.f32 %v5024, %v5202
        %v5282 = vadd.f32 %v5025, %v5204
        %v5283 = vadd.f32 %v5026, %v5207
        %v5284 = vadd.f32 %v5027, %v5209
        %v5285 = vadd.f32 %v5028, %v5212
        %v5286 = vadd.f32 %v5029, %v5214
        %v5287 = vadd.f32 %v5030, %v5217
        %v5288 = vadd.f32 %v5031, %v5219
        %v5289 = vadd.f32 %v5032, %v5222
        %v5290 = vadd.f32 %v5033, %v5224
        %v5291 = vadd.f32 %v5034, %v5227
        %v5292 = vadd.f32 %v5035, %v5229
        %v5293 = vadd.f32 %v5036, %v5232
        %v5294 = vadd.f32 %v5037, %v5234
        %v5295 = vadd.f32 %v5038, %v5237
        %v5296 = vadd.f32 %v5039, %v5239
        %v5297 = vadd.f32 %v5040, %v5242
        %v5298 = vadd.f32 %v5041, %v5244
        %v5299 = vadd.f32 %v5042, %v5247
        %v5300 = vadd.f32 %v5043, %v5249
        %v5301 = vadd.f32 %v5044, %v5252
        %v5302 = vadd.f32 %v5045, %v5254
        %v5303 = vadd.f32 %v5046, %v5257
        %v5304 = vadd.f32 %v5047, %v5259
        %v5305 = vadd.f32 %v5048, %v5262
        %v5306 = vadd.f32 %v5049, %v5264
        %v5307 = vadd.f32 %v5050, %v5267
        %v5308 = vadd.f32 %v5051, %v5269
        %v5309 = vadd.f32 %v5052, %v5272
        %v5310 = vadd.f32 %v5053, %v5274
        %v5311 = vadd.f32 %v5054, %v5277
        %v5312 = vadd.f32 %v5055, %v5279
        %5313 = vst.msk [vmem:[#allocation2] sm:$0xff] %vm208, %v5281
        %5314 = vst.msk [vmem:[#allocation2 + $0x8] sm:$0xff] %vm208, %v5282
        %5315 = vst.msk [vmem:[#allocation2 + $0x10] sm:$0xff] %vm208, %v5283
        %5316 = vst.msk [vmem:[#allocation2 + $0x18] sm:$0xff] %vm208, %v5284
        %5317 = vst.msk [vmem:[#allocation2 + $0x20] sm:$0xff] %vm208, %v5285
        %5318 = vst.msk [vmem:[#allocation2 + $0x28] sm:$0xff] %vm208, %v5286
        %5319 = vst.msk [vmem:[#allocation2 + $0x30] sm:$0xff] %vm208, %v5287
        %5320 = vst.msk [vmem:[#allocation2 + $0x38] sm:$0xff] %vm208, %v5288
        %5321 = vst.msk [vmem:[#allocation2 + $0x40] sm:$0xff] %vm208, %v5289
        %5322 = vst.msk [vmem:[#allocation2 + $0x48] sm:$0xff] %vm208, %v5290
        %5323 = vst.msk [vmem:[#allocation2 + $0x50] sm:$0xff] %vm208, %v5291
        %5324 = vst.msk [vmem:[#allocation2 + $0x58] sm:$0xff] %vm208, %v5292
        %5325 = vst.msk [vmem:[#allocation2 + $0x60] sm:$0xff] %vm208, %v5293
        %5326 = vst.msk [vmem:[#allocation2 + $0x68] sm:$0xff] %vm208, %v5294
        %5327 = vst.msk [vmem:[#allocation2 + $0x70] sm:$0xff] %vm208, %v5295
        %5328 = vst.msk [vmem:[#allocation2 + $0x78] sm:$0xff] %vm208, %v5296
        %5329 = vst.msk [vmem:[#allocation2 + $0x80] sm:$0xff] %vm208, %v5297
        %5330 = vst.msk [vmem:[#allocation2 + $0x88] sm:$0xff] %vm208, %v5298
        %5331 = vst.msk [vmem:[#allocation2 + $0x90] sm:$0xff] %vm208, %v5299
        %5332 = vst.msk [vmem:[#allocation2 + $0x98] sm:$0xff] %vm208, %v5300
        %5333 = vst.msk [vmem:[#allocation2 + $0xa0] sm:$0xff] %vm208, %v5301
        %5334 = vst.msk [vmem:[#allocation2 + $0xa8] sm:$0xff] %vm208, %v5302
        %5335 = vst.msk [vmem:[#allocation2 + $0xb0] sm:$0xff] %vm208, %v5303
        %5336 = vst.msk [vmem:[#allocation2 + $0xb8] sm:$0xff] %vm208, %v5304
        %5337 = vst.msk [vmem:[#allocation2 + $0xc0] sm:$0xff] %vm208, %v5305
        %5338 = vst.msk [vmem:[#allocation2 + $0xc8] sm:$0xff] %vm208, %v5306
        %5339 = vst.msk [vmem:[#allocation2 + $0xd0] sm:$0xff] %vm208, %v5307
        %5340 = vst.msk [vmem:[#allocation2 + $0xd8] sm:$0xff] %vm208, %v5308
        %5341 = vst.msk [vmem:[#allocation2 + $0xe0] sm:$0xff] %vm208, %v5309
        %5342 = vst.msk [vmem:[#allocation2 + $0xe8] sm:$0xff] %vm208, %v5310
        %5343 = vst.msk [vmem:[#allocation2 + $0xf0] sm:$0xff] %vm208, %v5311
        %5344 = vst.msk [vmem:[#allocation2 + $0xf8] sm:$0xff] %vm208, %v5312
        %s5345 = scalar_lea.vmem %s1, 72
        %v5346 = vld [vmem:[%s5345] sm:$0xf]
        %v5347 = vld [vmem:[%s5345 + $0x4] sm:$0x3]
        %v5348 = vld [vmem:[%s4991] sm:$0xf]
        %v5349 = vld [vmem:[%s4991 + $0x4] sm:$0xf]
        %v5350 = vld [vmem:[%s4991 + $0x8] sm:$0x1]
        %v5351 = vld [vmem:[%s4991 + $0xc] sm:$0xf]
        %v5352 = vld [vmem:[%s4991 + $0x10] sm:$0xf]
        %v5353 = vld [vmem:[%s4991 + $0x14] sm:$0x1]
        %v5354 = vld [vmem:[%s4991 + $0x18] sm:$0xf]
        %v5355 = vld [vmem:[%s4991 + $0x1c] sm:$0xf]
        %v5356 = vld [vmem:[%s4991 + $0x20] sm:$0x1]
        %v5357 = vld [vmem:[%s4991 + $0x24] sm:$0xf]
        %v5358 = vld [vmem:[%s4991 + $0x28] sm:$0xf]
        %v5359 = vld [vmem:[%s4991 + $0x2c] sm:$0x1]
        %v5360 = vld [vmem:[%s4991 + $0x30] sm:$0xf]
        %v5361 = vld [vmem:[%s4991 + $0x34] sm:$0xf]
        %v5362 = vld [vmem:[%s4991 + $0x38] sm:$0x1]
        %v5363 = vld [vmem:[%s4991 + $0x3c] sm:$0xf]
        %v5364 = vld [vmem:[%s4991 + $0x40] sm:$0xf]
        %v5365 = vld [vmem:[%s4991 + $0x44] sm:$0x1]
        %v5366 = vld [vmem:[%s4991 + $0x48] sm:$0xf]
        %v5367 = vld [vmem:[%s4991 + $0x4c] sm:$0xf]
        %v5368 = vld [vmem:[%s4991 + $0x50] sm:$0x1]
        %v5369 = vld [vmem:[%s4991 + $0x54] sm:$0xf]
        %v5370 = vld [vmem:[%s4991 + $0x58] sm:$0xf]
        %v5371 = vld [vmem:[%s4991 + $0x5c] sm:$0x1]
        %v5372 = vld [vmem:[%s4991 + $0x60] sm:$0xf]
        %v5373 = vld [vmem:[%s4991 + $0x64] sm:$0xf]
        %v5374 = vld [vmem:[%s4991 + $0x68] sm:$0x1]
        %v5375 = vld [vmem:[%s4991 + $0x6c] sm:$0xf]
        %v5376 = vld [vmem:[%s4991 + $0x70] sm:$0xf]
        %v5377 = vld [vmem:[%s4991 + $0x74] sm:$0x1]
        %v5378 = vld [vmem:[%s4991 + $0x78] sm:$0xf]
        %v5379 = vld [vmem:[%s4991 + $0x7c] sm:$0xf]
        %v5380 = vld [vmem:[%s4991 + $0x80] sm:$0x1]
        %v5381 = vld [vmem:[%s4991 + $0x84] sm:$0xf]
        %v5382 = vld [vmem:[%s4991 + $0x88] sm:$0xf]
        %v5383 = vld [vmem:[%s4991 + $0x8c] sm:$0x1]
        %v5384 = vld [vmem:[%s4991 + $0x90] sm:$0xf]
        %v5385 = vld [vmem:[%s4991 + $0x94] sm:$0xf]
        %v5386 = vld [vmem:[%s4991 + $0x98] sm:$0x1]
        %v5387 = vld [vmem:[%s4991 + $0x9c] sm:$0xf]
        %v5388 = vld [vmem:[%s4991 + $0xa0] sm:$0xf]
        %v5389 = vld [vmem:[%s4991 + $0xa4] sm:$0x1]
        %v5390 = vld [vmem:[%s4991 + $0xa8] sm:$0xf]
        %v5391 = vld [vmem:[%s4991 + $0xac] sm:$0xf]
        %v5392 = vld [vmem:[%s4991 + $0xb0] sm:$0x1]
        %v5393 = vld [vmem:[%s4991 + $0xb4] sm:$0xf]
        %v5394 = vld [vmem:[%s4991 + $0xb8] sm:$0xf]
        %v5395 = vld [vmem:[%s4991 + $0xbc] sm:$0x1]
        %v5397 = vshrl.u32 %v5348, 16
        %v5399 = vrot.slane %v5397, 4
        %v5400 = vshll.u32 %v5348, 16
        %v5402 = vrot.slane %v5400, 5
        %v5403 = vor.u32 %v5399, %v5402
        %v5404 = vrot.slane %v5403, 4
        %v5406 = vshll.u32 %v5349, 16
        %v5408 = vrot.slane %v5406, 5
        %v5409 = vsel %vm651, %v5404, %v5408
        %v5410 = vshrl.u32 %v5349, 16
        %v5412 = vrot.slane %v5410, 4
        %v5413 = vor.u32 %v5412, %v5408
        %v5414 = vrot.slane %v5413, 4
        %v5416 = vshll.u32 %v5350, 16
        %v5418 = vrot.slane %v5416, 5
        %v5419 = vsel %vm651, %v5414, %v5418
        %v5421 = vshrl.u32 %v5351, 16
        %v5423 = vrot.slane %v5421, 4
        %v5424 = vshll.u32 %v5351, 16
        %v5426 = vrot.slane %v5424, 5
        %v5427 = vor.u32 %v5423, %v5426
        %v5428 = vrot.slane %v5427, 4
        %v5430 = vshll.u32 %v5352, 16
        %v5432 = vrot.slane %v5430, 5
        %v5433 = vsel %vm651, %v5428, %v5432
        %v5434 = vshrl.u32 %v5352, 16
        %v5436 = vrot.slane %v5434, 4
        %v5437 = vor.u32 %v5436, %v5432
        %v5438 = vrot.slane %v5437, 4
        %v5440 = vshll.u32 %v5353, 16
        %v5442 = vrot.slane %v5440, 5
        %v5443 = vsel %vm651, %v5438, %v5442
        %v5445 = vshrl.u32 %v5354, 16
        %v5447 = vrot.slane %v5445, 4
        %v5448 = vshll.u32 %v5354, 16
        %v5450 = vrot.slane %v5448, 5
        %v5451 = vor.u32 %v5447, %v5450
        %v5452 = vrot.slane %v5451, 4
        %v5454 = vshll.u32 %v5355, 16
        %v5456 = vrot.slane %v5454, 5
        %v5457 = vsel %vm651, %v5452, %v5456
        %v5458 = vshrl.u32 %v5355, 16
        %v5460 = vrot.slane %v5458, 4
        %v5461 = vor.u32 %v5460, %v5456
        %v5462 = vrot.slane %v5461, 4
        %v5464 = vshll.u32 %v5356, 16
        %v5466 = vrot.slane %v5464, 5
        %v5467 = vsel %vm651, %v5462, %v5466
        %v5469 = vshrl.u32 %v5357, 16
        %v5471 = vrot.slane %v5469, 4
        %v5472 = vshll.u32 %v5357, 16
        %v5474 = vrot.slane %v5472, 5
        %v5475 = vor.u32 %v5471, %v5474
        %v5476 = vrot.slane %v5475, 4
        %v5478 = vshll.u32 %v5358, 16
        %v5480 = vrot.slane %v5478, 5
        %v5481 = vsel %vm651, %v5476, %v5480
        %v5482 = vshrl.u32 %v5358, 16
        %v5484 = vrot.slane %v5482, 4
        %v5485 = vor.u32 %v5484, %v5480
        %v5486 = vrot.slane %v5485, 4
        %v5488 = vshll.u32 %v5359, 16
        %v5490 = vrot.slane %v5488, 5
        %v5491 = vsel %vm651, %v5486, %v5490
        %v5493 = vshrl.u32 %v5360, 16
        %v5495 = vrot.slane %v5493, 4
        %v5496 = vshll.u32 %v5360, 16
        %v5498 = vrot.slane %v5496, 5
        %v5499 = vor.u32 %v5495, %v5498
        %v5500 = vrot.slane %v5499, 4
        %v5502 = vshll.u32 %v5361, 16
        %v5504 = vrot.slane %v5502, 5
        %v5505 = vsel %vm651, %v5500, %v5504
        %v5506 = vshrl.u32 %v5361, 16
        %v5508 = vrot.slane %v5506, 4
        %v5509 = vor.u32 %v5508, %v5504
        %v5510 = vrot.slane %v5509, 4
        %v5512 = vshll.u32 %v5362, 16
        %v5514 = vrot.slane %v5512, 5
        %v5515 = vsel %vm651, %v5510, %v5514
        %v5517 = vshrl.u32 %v5363, 16
        %v5519 = vrot.slane %v5517, 4
        %v5520 = vshll.u32 %v5363, 16
        %v5522 = vrot.slane %v5520, 5
        %v5523 = vor.u32 %v5519, %v5522
        %v5524 = vrot.slane %v5523, 4
        %v5526 = vshll.u32 %v5364, 16
        %v5528 = vrot.slane %v5526, 5
        %v5529 = vsel %vm651, %v5524, %v5528
        %v5530 = vshrl.u32 %v5364, 16
        %v5532 = vrot.slane %v5530, 4
        %v5533 = vor.u32 %v5532, %v5528
        %v5534 = vrot.slane %v5533, 4
        %v5536 = vshll.u32 %v5365, 16
        %v5538 = vrot.slane %v5536, 5
        %v5539 = vsel %vm651, %v5534, %v5538
        %v5541 = vshrl.u32 %v5366, 16
        %v5543 = vrot.slane %v5541, 4
        %v5544 = vshll.u32 %v5366, 16
        %v5546 = vrot.slane %v5544, 5
        %v5547 = vor.u32 %v5543, %v5546
        %v5548 = vrot.slane %v5547, 4
        %v5550 = vshll.u32 %v5367, 16
        %v5552 = vrot.slane %v5550, 5
        %v5553 = vsel %vm651, %v5548, %v5552
        %v5554 = vshrl.u32 %v5367, 16
        %v5556 = vrot.slane %v5554, 4
        %v5557 = vor.u32 %v5556, %v5552
        %v5558 = vrot.slane %v5557, 4
        %v5560 = vshll.u32 %v5368, 16
        %v5562 = vrot.slane %v5560, 5
        %v5563 = vsel %vm651, %v5558, %v5562
        %v5565 = vshrl.u32 %v5369, 16
        %v5567 = vrot.slane %v5565, 4
        %v5568 = vshll.u32 %v5369, 16
        %v5570 = vrot.slane %v5568, 5
        %v5571 = vor.u32 %v5567, %v5570
        %v5572 = vrot.slane %v5571, 4
        %v5574 = vshll.u32 %v5370, 16
        %v5576 = vrot.slane %v5574, 5
        %v5577 = vsel %vm651, %v5572, %v5576
        %v5578 = vshrl.u32 %v5370, 16
        %v5580 = vrot.slane %v5578, 4
        %v5581 = vor.u32 %v5580, %v5576
        %v5582 = vrot.slane %v5581, 4
        %v5584 = vshll.u32 %v5371, 16
        %v5586 = vrot.slane %v5584, 5
        %v5587 = vsel %vm651, %v5582, %v5586
        %v5589 = vshrl.u32 %v5372, 16
        %v5591 = vrot.slane %v5589, 4
        %v5592 = vshll.u32 %v5372, 16
        %v5594 = vrot.slane %v5592, 5
        %v5595 = vor.u32 %v5591, %v5594
        %v5596 = vrot.slane %v5595, 4
        %v5598 = vshll.u32 %v5373, 16
        %v5600 = vrot.slane %v5598, 5
        %v5601 = vsel %vm651, %v5596, %v5600
        %v5602 = vshrl.u32 %v5373, 16
        %v5604 = vrot.slane %v5602, 4
        %v5605 = vor.u32 %v5604, %v5600
        %v5606 = vrot.slane %v5605, 4
        %v5608 = vshll.u32 %v5374, 16
        %v5610 = vrot.slane %v5608, 5
        %v5611 = vsel %vm651, %v5606, %v5610
        %v5613 = vshrl.u32 %v5375, 16
        %v5615 = vrot.slane %v5613, 4
        %v5616 = vshll.u32 %v5375, 16
        %v5618 = vrot.slane %v5616, 5
        %v5619 = vor.u32 %v5615, %v5618
        %v5620 = vrot.slane %v5619, 4
        %v5622 = vshll.u32 %v5376, 16
        %v5624 = vrot.slane %v5622, 5
        %v5625 = vsel %vm651, %v5620, %v5624
        %v5626 = vshrl.u32 %v5376, 16
        %v5628 = vrot.slane %v5626, 4
        %v5629 = vor.u32 %v5628, %v5624
        %v5630 = vrot.slane %v5629, 4
        %v5632 = vshll.u32 %v5377, 16
        %v5634 = vrot.slane %v5632, 5
        %v5635 = vsel %vm651, %v5630, %v5634
        %v5637 = vshrl.u32 %v5378, 16
        %v5639 = vrot.slane %v5637, 4
        %v5640 = vshll.u32 %v5378, 16
        %v5642 = vrot.slane %v5640, 5
        %v5643 = vor.u32 %v5639, %v5642
        %v5644 = vrot.slane %v5643, 4
        %v5646 = vshll.u32 %v5379, 16
        %v5648 = vrot.slane %v5646, 5
        %v5649 = vsel %vm651, %v5644, %v5648
        %v5650 = vshrl.u32 %v5379, 16
        %v5652 = vrot.slane %v5650, 4
        %v5653 = vor.u32 %v5652, %v5648
        %v5654 = vrot.slane %v5653, 4
        %v5656 = vshll.u32 %v5380, 16
        %v5658 = vrot.slane %v5656, 5
        %v5659 = vsel %vm651, %v5654, %v5658
        %v5661 = vshrl.u32 %v5381, 16
        %v5663 = vrot.slane %v5661, 4
        %v5664 = vshll.u32 %v5381, 16
        %v5666 = vrot.slane %v5664, 5
        %v5667 = vor.u32 %v5663, %v5666
        %v5668 = vrot.slane %v5667, 4
        %v5670 = vshll.u32 %v5382, 16
        %v5672 = vrot.slane %v5670, 5
        %v5673 = vsel %vm651, %v5668, %v5672
        %v5674 = vshrl.u32 %v5382, 16
        %v5676 = vrot.slane %v5674, 4
        %v5677 = vor.u32 %v5676, %v5672
        %v5678 = vrot.slane %v5677, 4
        %v5680 = vshll.u32 %v5383, 16
        %v5682 = vrot.slane %v5680, 5
        %v5683 = vsel %vm651, %v5678, %v5682
        %v5685 = vshrl.u32 %v5384, 16
        %v5687 = vrot.slane %v5685, 4
        %v5688 = vshll.u32 %v5384, 16
        %v5690 = vrot.slane %v5688, 5
        %v5691 = vor.u32 %v5687, %v5690
        %v5692 = vrot.slane %v5691, 4
        %v5694 = vshll.u32 %v5385, 16
        %v5696 = vrot.slane %v5694, 5
        %v5697 = vsel %vm651, %v5692, %v5696
        %v5698 = vshrl.u32 %v5385, 16
        %v5700 = vrot.slane %v5698, 4
        %v5701 = vor.u32 %v5700, %v5696
        %v5702 = vrot.slane %v5701, 4
        %v5704 = vshll.u32 %v5386, 16
        %v5706 = vrot.slane %v5704, 5
        %v5707 = vsel %vm651, %v5702, %v5706
        %v5709 = vshrl.u32 %v5387, 16
        %v5711 = vrot.slane %v5709, 4
        %v5712 = vshll.u32 %v5387, 16
        %v5714 = vrot.slane %v5712, 5
        %v5715 = vor.u32 %v5711, %v5714
        %v5716 = vrot.slane %v5715, 4
        %v5718 = vshll.u32 %v5388, 16
        %v5720 = vrot.slane %v5718, 5
        %v5721 = vsel %vm651, %v5716, %v5720
        %v5722 = vshrl.u32 %v5388, 16
        %v5724 = vrot.slane %v5722, 4
        %v5725 = vor.u32 %v5724, %v5720
        %v5726 = vrot.slane %v5725, 4
        %v5728 = vshll.u32 %v5389, 16
        %v5730 = vrot.slane %v5728, 5
        %v5731 = vsel %vm651, %v5726, %v5730
        %v5733 = vshrl.u32 %v5390, 16
        %v5735 = vrot.slane %v5733, 4
        %v5736 = vshll.u32 %v5390, 16
        %v5738 = vrot.slane %v5736, 5
        %v5739 = vor.u32 %v5735, %v5738
        %v5740 = vrot.slane %v5739, 4
        %v5742 = vshll.u32 %v5391, 16
        %v5744 = vrot.slane %v5742, 5
        %v5745 = vsel %vm651, %v5740, %v5744
        %v5746 = vshrl.u32 %v5391, 16
        %v5748 = vrot.slane %v5746, 4
        %v5749 = vor.u32 %v5748, %v5744
        %v5750 = vrot.slane %v5749, 4
        %v5752 = vshll.u32 %v5392, 16
        %v5754 = vrot.slane %v5752, 5
        %v5755 = vsel %vm651, %v5750, %v5754
        %v5757 = vshrl.u32 %v5393, 16
        %v5759 = vrot.slane %v5757, 4
        %v5760 = vshll.u32 %v5393, 16
        %v5762 = vrot.slane %v5760, 5
        %v5763 = vor.u32 %v5759, %v5762
        %v5764 = vrot.slane %v5763, 4
        %v5766 = vshll.u32 %v5394, 16
        %v5768 = vrot.slane %v5766, 5
        %v5769 = vsel %vm651, %v5764, %v5768
        %v5770 = vshrl.u32 %v5394, 16
        %v5772 = vrot.slane %v5770, 4
        %v5773 = vor.u32 %v5772, %v5768
        %v5774 = vrot.slane %v5773, 4
        %v5776 = vshll.u32 %v5395, 16
        %v5778 = vrot.slane %v5776, 5
        %v5779 = vsel %vm651, %v5774, %v5778
        %v5780 = vld [vmem:[#allocation2] sm:$0xff]
        %v5781 = vld [vmem:[#allocation2 + $0x8] sm:$0xff]
        %v5782 = vld [vmem:[#allocation2 + $0x10] sm:$0xff]
        %v5783 = vld [vmem:[#allocation2 + $0x18] sm:$0xff]
        %v5784 = vld [vmem:[#allocation2 + $0x20] sm:$0xff]
        %v5785 = vld [vmem:[#allocation2 + $0x28] sm:$0xff]
        %v5786 = vld [vmem:[#allocation2 + $0x30] sm:$0xff]
        %v5787 = vld [vmem:[#allocation2 + $0x38] sm:$0xff]
        %v5788 = vld [vmem:[#allocation2 + $0x40] sm:$0xff]
        %v5789 = vld [vmem:[#allocation2 + $0x48] sm:$0xff]
        %v5790 = vld [vmem:[#allocation2 + $0x50] sm:$0xff]
        %v5791 = vld [vmem:[#allocation2 + $0x58] sm:$0xff]
        %v5792 = vld [vmem:[#allocation2 + $0x60] sm:$0xff]
        %v5793 = vld [vmem:[#allocation2 + $0x68] sm:$0xff]
        %v5794 = vld [vmem:[#allocation2 + $0x70] sm:$0xff]
        %v5795 = vld [vmem:[#allocation2 + $0x78] sm:$0xff]
        %v5796 = vld [vmem:[#allocation2 + $0x80] sm:$0xff]
        %v5797 = vld [vmem:[#allocation2 + $0x88] sm:$0xff]
        %v5798 = vld [vmem:[#allocation2 + $0x90] sm:$0xff]
        %v5799 = vld [vmem:[#allocation2 + $0x98] sm:$0xff]
        %v5800 = vld [vmem:[#allocation2 + $0xa0] sm:$0xff]
        %v5801 = vld [vmem:[#allocation2 + $0xa8] sm:$0xff]
        %v5802 = vld [vmem:[#allocation2 + $0xb0] sm:$0xff]
        %v5803 = vld [vmem:[#allocation2 + $0xb8] sm:$0xff]
        %v5804 = vld [vmem:[#allocation2 + $0xc0] sm:$0xff]
        %v5805 = vld [vmem:[#allocation2 + $0xc8] sm:$0xff]
        %v5806 = vld [vmem:[#allocation2 + $0xd0] sm:$0xff]
        %v5807 = vld [vmem:[#allocation2 + $0xd8] sm:$0xff]
        %v5808 = vld [vmem:[#allocation2 + $0xe0] sm:$0xff]
        %v5809 = vld [vmem:[#allocation2 + $0xe8] sm:$0xff]
        %v5810 = vld [vmem:[#allocation2 + $0xf0] sm:$0xff]
        %v5811 = vld [vmem:[#allocation2 + $0xf8] sm:$0xff]
        %v5812 = vunpack.c.l.b16 %v5409
        %v5813 = vunpack.c.l.b16 %v5419
        %v5814 = vunpack.c.l.b16 %v5433
        %v5815 = vunpack.c.l.b16 %v5443
        %v5816 = vunpack.c.l.b16 %v5457
        %v5817 = vunpack.c.l.b16 %v5467
        %v5818 = vunpack.c.l.b16 %v5481
        %v5819 = vunpack.c.l.b16 %v5491
        %v5820 = vunpack.c.l.b16 %v5505
        %v5821 = vunpack.c.l.b16 %v5515
        %v5822 = vunpack.c.l.b16 %v5529
        %v5823 = vunpack.c.l.b16 %v5539
        %v5824 = vunpack.c.l.b16 %v5553
        %v5825 = vunpack.c.l.b16 %v5563
        %v5826 = vunpack.c.l.b16 %v5577
        %v5827 = vunpack.c.l.b16 %v5587
        %v5828 = vunpack.c.l.b16 %v5601
        %v5829 = vunpack.c.l.b16 %v5611
        %v5830 = vunpack.c.l.b16 %v5625
        %v5831 = vunpack.c.l.b16 %v5635
        %v5832 = vunpack.c.l.b16 %v5649
        %v5833 = vunpack.c.l.b16 %v5659
        %v5834 = vunpack.c.l.b16 %v5673
        %v5835 = vunpack.c.l.b16 %v5683
        %v5836 = vunpack.c.l.b16 %v5697
        %v5837 = vunpack.c.l.b16 %v5707
        %v5838 = vunpack.c.l.b16 %v5721
        %v5839 = vunpack.c.l.b16 %v5731
        %v5840 = vunpack.c.l.b16 %v5745
        %v5841 = vunpack.c.l.b16 %v5755
        %v5842 = vunpack.c.l.b16 %v5769
        %v5843 = vunpack.c.l.b16 %v5779
        %v5844 = vpack.c.b16 %v5813, %v5812
        %v5845 = vpack.c.b16 %v5815, %v5814
        %v5846 = vpack.c.b16 %v5817, %v5816
        %v5847 = vpack.c.b16 %v5819, %v5818
        %v5848 = vpack.c.b16 %v5821, %v5820
        %v5849 = vpack.c.b16 %v5823, %v5822
        %v5850 = vpack.c.b16 %v5825, %v5824
        %v5851 = vpack.c.b16 %v5827, %v5826
        %v5852 = vpack.c.b16 %v5829, %v5828
        %v5853 = vpack.c.b16 %v5831, %v5830
        %v5854 = vpack.c.b16 %v5833, %v5832
        %v5855 = vpack.c.b16 %v5835, %v5834
        %v5856 = vpack.c.b16 %v5837, %v5836
        %v5857 = vpack.c.b16 %v5839, %v5838
        %v5858 = vpack.c.b16 %v5841, %v5840
        %v5859 = vpack.c.b16 %v5843, %v5842
        %v5862 = vunpack.c.l.b16 %v5346
        %v5863 = vunpack.c.l.b16 %v5347
        %v5864 = vpack.c.b16 %v5863, %v5862
        %v5866 = vsel %vm392, %v5844, 0
        %v5869 = vsel %vm392, %v5845, 0
        %v5872 = vsel %vm392, %v5846, 0
        %v5875 = vsel %vm392, %v5847, 0
        %v5878 = vsel %vm392, %v5848, 0
        %v5881 = vsel %vm392, %v5849, 0
        %v5884 = vsel %vm392, %v5850, 0
        %v5887 = vsel %vm392, %v5851, 0
        %v5890 = vsel %vm392, %v5852, 0
        %v5893 = vsel %vm392, %v5853, 0
        %v5896 = vsel %vm392, %v5854, 0
        %v5899 = vsel %vm392, %v5855, 0
        %v5902 = vsel %vm392, %v5856, 0
        %v5905 = vsel %vm392, %v5857, 0
        %v5908 = vsel %vm392, %v5858, 0
        %v5911 = vsel %vm392, %v5859, 0
        %v5914 = vsel %vm441, %v5864, 0
        %5916 = vmatpush.bf16.msra.mxu0 0
        %5917 = vmatpush.bf16.msra.mxu0 0
        %5918 = vmatpush.bf16.msra.mxu0 0
        %5919 = vmatpush.bf16.msra.mxu0 0
        %5920 = vmatpush.bf16.msra.mxu0 0
        %5921 = vmatpush.bf16.msra.mxu0 0
        %5922 = vmatpush.bf16.msra.mxu0 0
        %5923 = vmatpush.bf16.msra.mxu0 %v5914
        %5924 = vmatmul.bf16.gmra.mxu0 %v5866
        %v5925 = vpop.f32.mrf.mxu0
        %v5926 = vadd.f32 0.0, %v5925
        %v5927 = vpop.f32.mrf.mxu0
        %v5928 = vadd.f32 0.0, %v5927
        %5929 = vmatmul.bf16.gmra.mxu0 %v5869
        %v5930 = vpop.f32.mrf.mxu0
        %v5931 = vadd.f32 0.0, %v5930
        %v5932 = vpop.f32.mrf.mxu0
        %v5933 = vadd.f32 0.0, %v5932
        %5934 = vmatmul.bf16.gmra.mxu0 %v5872
        %v5935 = vpop.f32.mrf.mxu0
        %v5936 = vadd.f32 0.0, %v5935
        %v5937 = vpop.f32.mrf.mxu0
        %v5938 = vadd.f32 0.0, %v5937
        %5939 = vmatmul.bf16.gmra.mxu0 %v5875
        %v5940 = vpop.f32.mrf.mxu0
        %v5941 = vadd.f32 0.0, %v5940
        %v5942 = vpop.f32.mrf.mxu0
        %v5943 = vadd.f32 0.0, %v5942
        %5944 = vmatmul.bf16.gmra.mxu0 %v5878
        %v5945 = vpop.f32.mrf.mxu0
        %v5946 = vadd.f32 0.0, %v5945
        %v5947 = vpop.f32.mrf.mxu0
        %v5948 = vadd.f32 0.0, %v5947
        %5949 = vmatmul.bf16.gmra.mxu0 %v5881
        %v5950 = vpop.f32.mrf.mxu0
        %v5951 = vadd.f32 0.0, %v5950
        %v5952 = vpop.f32.mrf.mxu0
        %v5953 = vadd.f32 0.0, %v5952
        %5954 = vmatmul.bf16.gmra.mxu0 %v5884
        %v5955 = vpop.f32.mrf.mxu0
        %v5956 = vadd.f32 0.0, %v5955
        %v5957 = vpop.f32.mrf.mxu0
        %v5958 = vadd.f32 0.0, %v5957
        %5959 = vmatmul.bf16.gmra.mxu0 %v5887
        %v5960 = vpop.f32.mrf.mxu0
        %v5961 = vadd.f32 0.0, %v5960
        %v5962 = vpop.f32.mrf.mxu0
        %v5963 = vadd.f32 0.0, %v5962
        %5964 = vmatmul.bf16.gmra.mxu0 %v5890
        %v5965 = vpop.f32.mrf.mxu0
        %v5966 = vadd.f32 0.0, %v5965
        %v5967 = vpop.f32.mrf.mxu0
        %v5968 = vadd.f32 0.0, %v5967
        %5969 = vmatmul.bf16.gmra.mxu0 %v5893
        %v5970 = vpop.f32.mrf.mxu0
        %v5971 = vadd.f32 0.0, %v5970
        %v5972 = vpop.f32.mrf.mxu0
        %v5973 = vadd.f32 0.0, %v5972
        %5974 = vmatmul.bf16.gmra.mxu0 %v5896
        %v5975 = vpop.f32.mrf.mxu0
        %v5976 = vadd.f32 0.0, %v5975
        %v5977 = vpop.f32.mrf.mxu0
        %v5978 = vadd.f32 0.0, %v5977
        %5979 = vmatmul.bf16.gmra.mxu0 %v5899
        %v5980 = vpop.f32.mrf.mxu0
        %v5981 = vadd.f32 0.0, %v5980
        %v5982 = vpop.f32.mrf.mxu0
        %v5983 = vadd.f32 0.0, %v5982
        %5984 = vmatmul.bf16.gmra.mxu0 %v5902
        %v5985 = vpop.f32.mrf.mxu0
        %v5986 = vadd.f32 0.0, %v5985
        %v5987 = vpop.f32.mrf.mxu0
        %v5988 = vadd.f32 0.0, %v5987
        %5989 = vmatmul.bf16.gmra.mxu0 %v5905
        %v5990 = vpop.f32.mrf.mxu0
        %v5991 = vadd.f32 0.0, %v5990
        %v5992 = vpop.f32.mrf.mxu0
        %v5993 = vadd.f32 0.0, %v5992
        %5994 = vmatmul.bf16.gmra.mxu0 %v5908
        %v5995 = vpop.f32.mrf.mxu0
        %v5996 = vadd.f32 0.0, %v5995
        %v5997 = vpop.f32.mrf.mxu0
        %v5998 = vadd.f32 0.0, %v5997
        %5999 = vmatmul.bf16.gmra.mxu0 %v5911
        %v6000 = vpop.f32.mrf.mxu0
        %v6001 = vadd.f32 0.0, %v6000
        %v6002 = vpop.f32.mrf.mxu0
        %v6003 = vadd.f32 0.0, %v6002
        %6004 = vdwg.mxu0
        %v6005 = vadd.f32 %v5780, %v5926
        %v6006 = vadd.f32 %v5781, %v5928
        %v6007 = vadd.f32 %v5782, %v5931
        %v6008 = vadd.f32 %v5783, %v5933
        %v6009 = vadd.f32 %v5784, %v5936
        %v6010 = vadd.f32 %v5785, %v5938
        %v6011 = vadd.f32 %v5786, %v5941
        %v6012 = vadd.f32 %v5787, %v5943
        %v6013 = vadd.f32 %v5788, %v5946
        %v6014 = vadd.f32 %v5789, %v5948
        %v6015 = vadd.f32 %v5790, %v5951
        %v6016 = vadd.f32 %v5791, %v5953
        %v6017 = vadd.f32 %v5792, %v5956
        %v6018 = vadd.f32 %v5793, %v5958
        %v6019 = vadd.f32 %v5794, %v5961
        %v6020 = vadd.f32 %v5795, %v5963
        %v6021 = vadd.f32 %v5796, %v5966
        %v6022 = vadd.f32 %v5797, %v5968
        %v6023 = vadd.f32 %v5798, %v5971
        %v6024 = vadd.f32 %v5799, %v5973
        %v6025 = vadd.f32 %v5800, %v5976
        %v6026 = vadd.f32 %v5801, %v5978
        %v6027 = vadd.f32 %v5802, %v5981
        %v6028 = vadd.f32 %v5803, %v5983
        %v6029 = vadd.f32 %v5804, %v5986
        %v6030 = vadd.f32 %v5805, %v5988
        %v6031 = vadd.f32 %v5806, %v5991
        %v6032 = vadd.f32 %v5807, %v5993
        %v6033 = vadd.f32 %v5808, %v5996
        %v6034 = vadd.f32 %v5809, %v5998
        %v6035 = vadd.f32 %v5810, %v6001
        %v6036 = vadd.f32 %v5811, %v6003
        %6037 = vst.msk [vmem:[#allocation2] sm:$0xff] %vm208, %v6005
        %6038 = vst.msk [vmem:[#allocation2 + $0x8] sm:$0xff] %vm208, %v6006
        %6039 = vst.msk [vmem:[#allocation2 + $0x10] sm:$0xff] %vm208, %v6007
        %6040 = vst.msk [vmem:[#allocation2 + $0x18] sm:$0xff] %vm208, %v6008
        %6041 = vst.msk [vmem:[#allocation2 + $0x20] sm:$0xff] %vm208, %v6009
        %6042 = vst.msk [vmem:[#allocation2 + $0x28] sm:$0xff] %vm208, %v6010
        %6043 = vst.msk [vmem:[#allocation2 + $0x30] sm:$0xff] %vm208, %v6011
        %6044 = vst.msk [vmem:[#allocation2 + $0x38] sm:$0xff] %vm208, %v6012
        %6045 = vst.msk [vmem:[#allocation2 + $0x40] sm:$0xff] %vm208, %v6013
        %6046 = vst.msk [vmem:[#allocation2 + $0x48] sm:$0xff] %vm208, %v6014
        %6047 = vst.msk [vmem:[#allocation2 + $0x50] sm:$0xff] %vm208, %v6015
        %6048 = vst.msk [vmem:[#allocation2 + $0x58] sm:$0xff] %vm208, %v6016
        %6049 = vst.msk [vmem:[#allocation2 + $0x60] sm:$0xff] %vm208, %v6017
        %6050 = vst.msk [vmem:[#allocation2 + $0x68] sm:$0xff] %vm208, %v6018
        %6051 = vst.msk [vmem:[#allocation2 + $0x70] sm:$0xff] %vm208, %v6019
        %6052 = vst.msk [vmem:[#allocation2 + $0x78] sm:$0xff] %vm208, %v6020
        %6053 = vst.msk [vmem:[#allocation2 + $0x80] sm:$0xff] %vm208, %v6021
        %6054 = vst.msk [vmem:[#allocation2 + $0x88] sm:$0xff] %vm208, %v6022
        %6055 = vst.msk [vmem:[#allocation2 + $0x90] sm:$0xff] %vm208, %v6023
        %6056 = vst.msk [vmem:[#allocation2 + $0x98] sm:$0xff] %vm208, %v6024
        %6057 = vst.msk [vmem:[#allocation2 + $0xa0] sm:$0xff] %vm208, %v6025
        %6058 = vst.msk [vmem:[#allocation2 + $0xa8] sm:$0xff] %vm208, %v6026
        %6059 = vst.msk [vmem:[#allocation2 + $0xb0] sm:$0xff] %vm208, %v6027
        %6060 = vst.msk [vmem:[#allocation2 + $0xb8] sm:$0xff] %vm208, %v6028
        %6061 = vst.msk [vmem:[#allocation2 + $0xc0] sm:$0xff] %vm208, %v6029
        %6062 = vst.msk [vmem:[#allocation2 + $0xc8] sm:$0xff] %vm208, %v6030
        %6063 = vst.msk [vmem:[#allocation2 + $0xd0] sm:$0xff] %vm208, %v6031
        %6064 = vst.msk [vmem:[#allocation2 + $0xd8] sm:$0xff] %vm208, %v6032
        %6065 = vst.msk [vmem:[#allocation2 + $0xe0] sm:$0xff] %vm208, %v6033
        %6066 = vst.msk [vmem:[#allocation2 + $0xe8] sm:$0xff] %vm208, %v6034
        %6067 = vst.msk [vmem:[#allocation2 + $0xf0] sm:$0xff] %vm208, %v6035
        %6068 = vst.msk [vmem:[#allocation2 + $0xf8] sm:$0xff] %vm208, %v6036
        %s6069 = scalar_lea.vmem %s1, 80
        %v6070 = vld [vmem:[%s6069] sm:$0xf]
        %v6071 = vld [vmem:[%s6069 + $0x4] sm:$0x3]
        %v6072 = vld [vmem:[%s4991] sm:$0xe]
        %v6073 = vld [vmem:[%s4991 + $0x4] sm:$0xf]
        %v6074 = vld [vmem:[%s4991 + $0x8] sm:$0x1]
        %v6075 = vld [vmem:[%s4991 + $0xc] sm:$0xe]
        %v6076 = vld [vmem:[%s4991 + $0x10] sm:$0xf]
        %v6077 = vld [vmem:[%s4991 + $0x14] sm:$0x1]
        %v6078 = vld [vmem:[%s4991 + $0x18] sm:$0xe]
        %v6079 = vld [vmem:[%s4991 + $0x1c] sm:$0xf]
        %v6080 = vld [vmem:[%s4991 + $0x20] sm:$0x1]
        %v6081 = vld [vmem:[%s4991 + $0x24] sm:$0xe]
        %v6082 = vld [vmem:[%s4991 + $0x28] sm:$0xf]
        %v6083 = vld [vmem:[%s4991 + $0x2c] sm:$0x1]
        %v6084 = vld [vmem:[%s4991 + $0x30] sm:$0xe]
        %v6085 = vld [vmem:[%s4991 + $0x34] sm:$0xf]
        %v6086 = vld [vmem:[%s4991 + $0x38] sm:$0x1]
        %v6087 = vld [vmem:[%s4991 + $0x3c] sm:$0xe]
        %v6088 = vld [vmem:[%s4991 + $0x40] sm:$0xf]
        %v6089 = vld [vmem:[%s4991 + $0x44] sm:$0x1]
        %v6090 = vld [vmem:[%s4991 + $0x48] sm:$0xe]
        %v6091 = vld [vmem:[%s4991 + $0x4c] sm:$0xf]
        %v6092 = vld [vmem:[%s4991 + $0x50] sm:$0x1]
        %v6093 = vld [vmem:[%s4991 + $0x54] sm:$0xe]
        %v6094 = vld [vmem:[%s4991 + $0x58] sm:$0xf]
        %v6095 = vld [vmem:[%s4991 + $0x5c] sm:$0x1]
        %v6096 = vld [vmem:[%s4991 + $0x60] sm:$0xe]
        %v6097 = vld [vmem:[%s4991 + $0x64] sm:$0xf]
        %v6098 = vld [vmem:[%s4991 + $0x68] sm:$0x1]
        %v6099 = vld [vmem:[%s4991 + $0x6c] sm:$0xe]
        %v6100 = vld [vmem:[%s4991 + $0x70] sm:$0xf]
        %v6101 = vld [vmem:[%s4991 + $0x74] sm:$0x1]
        %v6102 = vld [vmem:[%s4991 + $0x78] sm:$0xe]
        %v6103 = vld [vmem:[%s4991 + $0x7c] sm:$0xf]
        %v6104 = vld [vmem:[%s4991 + $0x80] sm:$0x1]
        %v6105 = vld [vmem:[%s4991 + $0x84] sm:$0xe]
        %v6106 = vld [vmem:[%s4991 + $0x88] sm:$0xf]
        %v6107 = vld [vmem:[%s4991 + $0x8c] sm:$0x1]
        %v6108 = vld [vmem:[%s4991 + $0x90] sm:$0xe]
        %v6109 = vld [vmem:[%s4991 + $0x94] sm:$0xf]
        %v6110 = vld [vmem:[%s4991 + $0x98] sm:$0x1]
        %v6111 = vld [vmem:[%s4991 + $0x9c] sm:$0xe]
        %v6112 = vld [vmem:[%s4991 + $0xa0] sm:$0xf]
        %v6113 = vld [vmem:[%s4991 + $0xa4] sm:$0x1]
        %v6114 = vld [vmem:[%s4991 + $0xa8] sm:$0xe]
        %v6115 = vld [vmem:[%s4991 + $0xac] sm:$0xf]
        %v6116 = vld [vmem:[%s4991 + $0xb0] sm:$0x1]
        %v6117 = vld [vmem:[%s4991 + $0xb4] sm:$0xe]
        %v6118 = vld [vmem:[%s4991 + $0xb8] sm:$0xf]
        %v6119 = vld [vmem:[%s4991 + $0xbc] sm:$0x1]
        %v6168 = vrot.slane %v6072, 5
        %v6169 = vrot.slane %v6168, 4
        %v6170 = vrot.slane %v6073, 5
        %v6171 = vsel %vm1426, %v6169, %v6170
        %v6172 = vrot.slane %v6170, 4
        %v6173 = vrot.slane %v6074, 5
        %v6174 = vsel %vm1426, %v6172, %v6173
        %v6175 = vrot.slane %v6075, 5
        %v6176 = vrot.slane %v6175, 4
        %v6177 = vrot.slane %v6076, 5
        %v6178 = vsel %vm1426, %v6176, %v6177
        %v6179 = vrot.slane %v6177, 4
        %v6180 = vrot.slane %v6077, 5
        %v6181 = vsel %vm1426, %v6179, %v6180
        %v6182 = vrot.slane %v6078, 5
        %v6183 = vrot.slane %v6182, 4
        %v6184 = vrot.slane %v6079, 5
        %v6185 = vsel %vm1426, %v6183, %v6184
        %v6186 = vrot.slane %v6184, 4
        %v6187 = vrot.slane %v6080, 5
        %v6188 = vsel %vm1426, %v6186, %v6187
        %v6189 = vrot.slane %v6081, 5
        %v6190 = vrot.slane %v6189, 4
        %v6191 = vrot.slane %v6082, 5
        %v6192 = vsel %vm1426, %v6190, %v6191
        %v6193 = vrot.slane %v6191, 4
        %v6194 = vrot.slane %v6083, 5
        %v6195 = vsel %vm1426, %v6193, %v6194
        %v6196 = vrot.slane %v6084, 5
        %v6197 = vrot.slane %v6196, 4
        %v6198 = vrot.slane %v6085, 5
        %v6199 = vsel %vm1426, %v6197, %v6198
        %v6200 = vrot.slane %v6198, 4
        %v6201 = vrot.slane %v6086, 5
        %v6202 = vsel %vm1426, %v6200, %v6201
        %v6203 = vrot.slane %v6087, 5
        %v6204 = vrot.slane %v6203, 4
        %v6205 = vrot.slane %v6088, 5
        %v6206 = vsel %vm1426, %v6204, %v6205
        %v6207 = vrot.slane %v6205, 4
        %v6208 = vrot.slane %v6089, 5
        %v6209 = vsel %vm1426, %v6207, %v6208
        %v6210 = vrot.slane %v6090, 5
        %v6211 = vrot.slane %v6210, 4
        %v6212 = vrot.slane %v6091, 5
        %v6213 = vsel %vm1426, %v6211, %v6212
        %v6214 = vrot.slane %v6212, 4
        %v6215 = vrot.slane %v6092, 5
        %v6216 = vsel %vm1426, %v6214, %v6215
        %v6217 = vrot.slane %v6093, 5
        %v6218 = vrot.slane %v6217, 4
        %v6219 = vrot.slane %v6094, 5
        %v6220 = vsel %vm1426, %v6218, %v6219
        %v6221 = vrot.slane %v6219, 4
        %v6222 = vrot.slane %v6095, 5
        %v6223 = vsel %vm1426, %v6221, %v6222
        %v6224 = vrot.slane %v6096, 5
        %v6225 = vrot.slane %v6224, 4
        %v6226 = vrot.slane %v6097, 5
        %v6227 = vsel %vm1426, %v6225, %v6226
        %v6228 = vrot.slane %v6226, 4
        %v6229 = vrot.slane %v6098, 5
        %v6230 = vsel %vm1426, %v6228, %v6229
        %v6231 = vrot.slane %v6099, 5
        %v6232 = vrot.slane %v6231, 4
        %v6233 = vrot.slane %v6100, 5
        %v6234 = vsel %vm1426, %v6232, %v6233
        %v6235 = vrot.slane %v6233, 4
        %v6236 = vrot.slane %v6101, 5
        %v6237 = vsel %vm1426, %v6235, %v6236
        %v6238 = vrot.slane %v6102, 5
        %v6239 = vrot.slane %v6238, 4
        %v6240 = vrot.slane %v6103, 5
        %v6241 = vsel %vm1426, %v6239, %v6240
        %v6242 = vrot.slane %v6240, 4
        %v6243 = vrot.slane %v6104, 5
        %v6244 = vsel %vm1426, %v6242, %v6243
        %v6245 = vrot.slane %v6105, 5
        %v6246 = vrot.slane %v6245, 4
        %v6247 = vrot.slane %v6106, 5
        %v6248 = vsel %vm1426, %v6246, %v6247
        %v6249 = vrot.slane %v6247, 4
        %v6250 = vrot.slane %v6107, 5
        %v6251 = vsel %vm1426, %v6249, %v6250
        %v6252 = vrot.slane %v6108, 5
        %v6253 = vrot.slane %v6252, 4
        %v6254 = vrot.slane %v6109, 5
        %v6255 = vsel %vm1426, %v6253, %v6254
        %v6256 = vrot.slane %v6254, 4
        %v6257 = vrot.slane %v6110, 5
        %v6258 = vsel %vm1426, %v6256, %v6257
        %v6259 = vrot.slane %v6111, 5
        %v6260 = vrot.slane %v6259, 4
        %v6261 = vrot.slane %v6112, 5
        %v6262 = vsel %vm1426, %v6260, %v6261
        %v6263 = vrot.slane %v6261, 4
        %v6264 = vrot.slane %v6113, 5
        %v6265 = vsel %vm1426, %v6263, %v6264
        %v6266 = vrot.slane %v6114, 5
        %v6267 = vrot.slane %v6266, 4
        %v6268 = vrot.slane %v6115, 5
        %v6269 = vsel %vm1426, %v6267, %v6268
        %v6270 = vrot.slane %v6268, 4
        %v6271 = vrot.slane %v6116, 5
        %v6272 = vsel %vm1426, %v6270, %v6271
        %v6273 = vrot.slane %v6117, 5
        %v6274 = vrot.slane %v6273, 4
        %v6275 = vrot.slane %v6118, 5
        %v6276 = vsel %vm1426, %v6274, %v6275
        %v6277 = vrot.slane %v6275, 4
        %v6278 = vrot.slane %v6119, 5
        %v6279 = vsel %vm1426, %v6277, %v6278
        %v6280 = vld [vmem:[#allocation2] sm:$0xff]
        %v6281 = vld [vmem:[#allocation2 + $0x8] sm:$0xff]
        %v6282 = vld [vmem:[#allocation2 + $0x10] sm:$0xff]
        %v6283 = vld [vmem:[#allocation2 + $0x18] sm:$0xff]
        %v6284 = vld [vmem:[#allocation2 + $0x20] sm:$0xff]
        %v6285 = vld [vmem:[#allocation2 + $0x28] sm:$0xff]
        %v6286 = vld [vmem:[#allocation2 + $0x30] sm:$0xff]
        %v6287 = vld [vmem:[#allocation2 + $0x38] sm:$0xff]
        %v6288 = vld [vmem:[#allocation2 + $0x40] sm:$0xff]
        %v6289 = vld [vmem:[#allocation2 + $0x48] sm:$0xff]
        %v6290 = vld [vmem:[#allocation2 + $0x50] sm:$0xff]
        %v6291 = vld [vmem:[#allocation2 + $0x58] sm:$0xff]
        %v6292 = vld [vmem:[#allocation2 + $0x60] sm:$0xff]
        %v6293 = vld [vmem:[#allocation2 + $0x68] sm:$0xff]
        %v6294 = vld [vmem:[#allocation2 + $0x70] sm:$0xff]
        %v6295 = vld [vmem:[#allocation2 + $0x78] sm:$0xff]
        %v6296 = vld [vmem:[#allocation2 + $0x80] sm:$0xff]
        %v6297 = vld [vmem:[#allocation2 + $0x88] sm:$0xff]
        %v6298 = vld [vmem:[#allocation2 + $0x90] sm:$0xff]
        %v6299 = vld [vmem:[#allocation2 + $0x98] sm:$0xff]
        %v6300 = vld [vmem:[#allocation2 + $0xa0] sm:$0xff]
        %v6301 = vld [vmem:[#allocation2 + $0xa8] sm:$0xff]
        %v6302 = vld [vmem:[#allocation2 + $0xb0] sm:$0xff]
        %v6303 = vld [vmem:[#allocation2 + $0xb8] sm:$0xff]
        %v6304 = vld [vmem:[#allocation2 + $0xc0] sm:$0xff]
        %v6305 = vld [vmem:[#allocation2 + $0xc8] sm:$0xff]
        %v6306 = vld [vmem:[#allocation2 + $0xd0] sm:$0xff]
        %v6307 = vld [vmem:[#allocation2 + $0xd8] sm:$0xff]
        %v6308 = vld [vmem:[#allocation2 + $0xe0] sm:$0xff]
        %v6309 = vld [vmem:[#allocation2 + $0xe8] sm:$0xff]
        %v6310 = vld [vmem:[#allocation2 + $0xf0] sm:$0xff]
        %v6311 = vld [vmem:[#allocation2 + $0xf8] sm:$0xff]
        %v6312 = vunpack.c.l.b16 %v6171
        %v6313 = vunpack.c.l.b16 %v6174
        %v6314 = vunpack.c.l.b16 %v6178
        %v6315 = vunpack.c.l.b16 %v6181
        %v6316 = vunpack.c.l.b16 %v6185
        %v6317 = vunpack.c.l.b16 %v6188
        %v6318 = vunpack.c.l.b16 %v6192
        %v6319 = vunpack.c.l.b16 %v6195
        %v6320 = vunpack.c.l.b16 %v6199
        %v6321 = vunpack.c.l.b16 %v6202
        %v6322 = vunpack.c.l.b16 %v6206
        %v6323 = vunpack.c.l.b16 %v6209
        %v6324 = vunpack.c.l.b16 %v6213
        %v6325 = vunpack.c.l.b16 %v6216
        %v6326 = vunpack.c.l.b16 %v6220
        %v6327 = vunpack.c.l.b16 %v6223
        %v6328 = vunpack.c.l.b16 %v6227
        %v6329 = vunpack.c.l.b16 %v6230
        %v6330 = vunpack.c.l.b16 %v6234
        %v6331 = vunpack.c.l.b16 %v6237
        %v6332 = vunpack.c.l.b16 %v6241
        %v6333 = vunpack.c.l.b16 %v6244
        %v6334 = vunpack.c.l.b16 %v6248
        %v6335 = vunpack.c.l.b16 %v6251
        %v6336 = vunpack.c.l.b16 %v6255
        %v6337 = vunpack.c.l.b16 %v6258
        %v6338 = vunpack.c.l.b16 %v6262
        %v6339 = vunpack.c.l.b16 %v6265
        %v6340 = vunpack.c.l.b16 %v6269
        %v6341 = vunpack.c.l.b16 %v6272
        %v6342 = vunpack.c.l.b16 %v6276
        %v6343 = vunpack.c.l.b16 %v6279
        %v6344 = vpack.c.b16 %v6313, %v6312
        %v6345 = vpack.c.b16 %v6315, %v6314
        %v6346 = vpack.c.b16 %v6317, %v6316
        %v6347 = vpack.c.b16 %v6319, %v6318
        %v6348 = vpack.c.b16 %v6321, %v6320
        %v6349 = vpack.c.b16 %v6323, %v6322
        %v6350 = vpack.c.b16 %v6325, %v6324
        %v6351 = vpack.c.b16 %v6327, %v6326
        %v6352 = vpack.c.b16 %v6329, %v6328
        %v6353 = vpack.c.b16 %v6331, %v6330
        %v6354 = vpack.c.b16 %v6333, %v6332
        %v6355 = vpack.c.b16 %v6335, %v6334
        %v6356 = vpack.c.b16 %v6337, %v6336
        %v6357 = vpack.c.b16 %v6339, %v6338
        %v6358 = vpack.c.b16 %v6341, %v6340
        %v6359 = vpack.c.b16 %v6343, %v6342
        %v6362 = vunpack.c.l.b16 %v6070
        %v6363 = vunpack.c.l.b16 %v6071
        %v6364 = vpack.c.b16 %v6363, %v6362
        %v6366 = vsel %vm392, %v6344, 0
        %v6369 = vsel %vm392, %v6345, 0
        %v6372 = vsel %vm392, %v6346, 0
        %v6375 = vsel %vm392, %v6347, 0
        %v6378 = vsel %vm392, %v6348, 0
        %v6381 = vsel %vm392, %v6349, 0
        %v6384 = vsel %vm392, %v6350, 0
        %v6387 = vsel %vm392, %v6351, 0
        %v6390 = vsel %vm392, %v6352, 0
        %v6393 = vsel %vm392, %v6353, 0
        %v6396 = vsel %vm392, %v6354, 0
        %v6399 = vsel %vm392, %v6355, 0
        %v6402 = vsel %vm392, %v6356, 0
        %v6405 = vsel %vm392, %v6357, 0
        %v6408 = vsel %vm392, %v6358, 0
        %v6411 = vsel %vm392, %v6359, 0
        %v6414 = vsel %vm441, %v6364, 0
        %6416 = vmatpush.bf16.msra.mxu0 0
        %6417 = vmatpush.bf16.msra.mxu0 0
        %6418 = vmatpush.bf16.msra.mxu0 0
        %6419 = vmatpush.bf16.msra.mxu0 0
        %6420 = vmatpush.bf16.msra.mxu0 0
        %6421 = vmatpush.bf16.msra.mxu0 0
        %6422 = vmatpush.bf16.msra.mxu0 0
        %6423 = vmatpush.bf16.msra.mxu0 %v6414
        %6424 = vmatmul.bf16.gmra.mxu0 %v6366
        %v6425 = vpop.f32.mrf.mxu0
        %v6426 = vadd.f32 0.0, %v6425
        %v6427 = vpop.f32.mrf.mxu0
        %v6428 = vadd.f32 0.0, %v6427
        %6429 = vmatmul.bf16.gmra.mxu0 %v6369
        %v6430 = vpop.f32.mrf.mxu0
        %v6431 = vadd.f32 0.0, %v6430
        %v6432 = vpop.f32.mrf.mxu0
        %v6433 = vadd.f32 0.0, %v6432
        %6434 = vmatmul.bf16.gmra.mxu0 %v6372
        %v6435 = vpop.f32.mrf.mxu0
        %v6436 = vadd.f32 0.0, %v6435
        %v6437 = vpop.f32.mrf.mxu0
        %v6438 = vadd.f32 0.0, %v6437
        %6439 = vmatmul.bf16.gmra.mxu0 %v6375
        %v6440 = vpop.f32.mrf.mxu0
        %v6441 = vadd.f32 0.0, %v6440
        %v6442 = vpop.f32.mrf.mxu0
        %v6443 = vadd.f32 0.0, %v6442
        %6444 = vmatmul.bf16.gmra.mxu0 %v6378
        %v6445 = vpop.f32.mrf.mxu0
        %v6446 = vadd.f32 0.0, %v6445
        %v6447 = vpop.f32.mrf.mxu0
        %v6448 = vadd.f32 0.0, %v6447
        %6449 = vmatmul.bf16.gmra.mxu0 %v6381
        %v6450 = vpop.f32.mrf.mxu0
        %v6451 = vadd.f32 0.0, %v6450
        %v6452 = vpop.f32.mrf.mxu0
        %v6453 = vadd.f32 0.0, %v6452
        %6454 = vmatmul.bf16.gmra.mxu0 %v6384
        %v6455 = vpop.f32.mrf.mxu0
        %v6456 = vadd.f32 0.0, %v6455
        %v6457 = vpop.f32.mrf.mxu0
        %v6458 = vadd.f32 0.0, %v6457
        %6459 = vmatmul.bf16.gmra.mxu0 %v6387
        %v6460 = vpop.f32.mrf.mxu0
        %v6461 = vadd.f32 0.0, %v6460
        %v6462 = vpop.f32.mrf.mxu0
        %v6463 = vadd.f32 0.0, %v6462
        %6464 = vmatmul.bf16.gmra.mxu0 %v6390
        %v6465 = vpop.f32.mrf.mxu0
        %v6466 = vadd.f32 0.0, %v6465
        %v6467 = vpop.f32.mrf.mxu0
        %v6468 = vadd.f32 0.0, %v6467
        %6469 = vmatmul.bf16.gmra.mxu0 %v6393
        %v6470 = vpop.f32.mrf.mxu0
        %v6471 = vadd.f32 0.0, %v6470
        %v6472 = vpop.f32.mrf.mxu0
        %v6473 = vadd.f32 0.0, %v6472
        %6474 = vmatmul.bf16.gmra.mxu0 %v6396
        %v6475 = vpop.f32.mrf.mxu0
        %v6476 = vadd.f32 0.0, %v6475
        %v6477 = vpop.f32.mrf.mxu0
        %v6478 = vadd.f32 0.0, %v6477
        %6479 = vmatmul.bf16.gmra.mxu0 %v6399
        %v6480 = vpop.f32.mrf.mxu0
        %v6481 = vadd.f32 0.0, %v6480
        %v6482 = vpop.f32.mrf.mxu0
        %v6483 = vadd.f32 0.0, %v6482
        %6484 = vmatmul.bf16.gmra.mxu0 %v6402
        %v6485 = vpop.f32.mrf.mxu0
        %v6486 = vadd.f32 0.0, %v6485
        %v6487 = vpop.f32.mrf.mxu0
        %v6488 = vadd.f32 0.0, %v6487
        %6489 = vmatmul.bf16.gmra.mxu0 %v6405
        %v6490 = vpop.f32.mrf.mxu0
        %v6491 = vadd.f32 0.0, %v6490
        %v6492 = vpop.f32.mrf.mxu0
        %v6493 = vadd.f32 0.0, %v6492
        %6494 = vmatmul.bf16.gmra.mxu0 %v6408
        %v6495 = vpop.f32.mrf.mxu0
        %v6496 = vadd.f32 0.0, %v6495
        %v6497 = vpop.f32.mrf.mxu0
        %v6498 = vadd.f32 0.0, %v6497
        %6499 = vmatmul.bf16.gmra.mxu0 %v6411
        %v6500 = vpop.f32.mrf.mxu0
        %v6501 = vadd.f32 0.0, %v6500
        %v6502 = vpop.f32.mrf.mxu0
        %v6503 = vadd.f32 0.0, %v6502
        %6504 = vdwg.mxu0
        %v6505 = vadd.f32 %v6280, %v6426
        %v6506 = vadd.f32 %v6281, %v6428
        %v6507 = vadd.f32 %v6282, %v6431
        %v6508 = vadd.f32 %v6283, %v6433
        %v6509 = vadd.f32 %v6284, %v6436
        %v6510 = vadd.f32 %v6285, %v6438
        %v6511 = vadd.f32 %v6286, %v6441
        %v6512 = vadd.f32 %v6287, %v6443
        %v6513 = vadd.f32 %v6288, %v6446
        %v6514 = vadd.f32 %v6289, %v6448
        %v6515 = vadd.f32 %v6290, %v6451
        %v6516 = vadd.f32 %v6291, %v6453
        %v6517 = vadd.f32 %v6292, %v6456
        %v6518 = vadd.f32 %v6293, %v6458
        %v6519 = vadd.f32 %v6294, %v6461
        %v6520 = vadd.f32 %v6295, %v6463
        %v6521 = vadd.f32 %v6296, %v6466
        %v6522 = vadd.f32 %v6297, %v6468
        %v6523 = vadd.f32 %v6298, %v6471
        %v6524 = vadd.f32 %v6299, %v6473
        %v6525 = vadd.f32 %v6300, %v6476
        %v6526 = vadd.f32 %v6301, %v6478
        %v6527 = vadd.f32 %v6302, %v6481
        %v6528 = vadd.f32 %v6303, %v6483
        %v6529 = vadd.f32 %v6304, %v6486
        %v6530 = vadd.f32 %v6305, %v6488
        %v6531 = vadd.f32 %v6306, %v6491
        %v6532 = vadd.f32 %v6307, %v6493
        %v6533 = vadd.f32 %v6308, %v6496
        %v6534 = vadd.f32 %v6309, %v6498
        %v6535 = vadd.f32 %v6310, %v6501
        %v6536 = vadd.f32 %v6311, %v6503
        %6537 = vst.msk [vmem:[#allocation2] sm:$0xff] %vm208, %v6505
        %6538 = vst.msk [vmem:[#allocation2 + $0x8] sm:$0xff] %vm208, %v6506
        %6539 = vst.msk [vmem:[#allocation2 + $0x10] sm:$0xff] %vm208, %v6507
        %6540 = vst.msk [vmem:[#allocation2 + $0x18] sm:$0xff] %vm208, %v6508
        %6541 = vst.msk [vmem:[#allocation2 + $0x20] sm:$0xff] %vm208, %v6509
        %6542 = vst.msk [vmem:[#allocation2 + $0x28] sm:$0xff] %vm208, %v6510
        %6543 = vst.msk [vmem:[#allocation2 + $0x30] sm:$0xff] %vm208, %v6511
        %6544 = vst.msk [vmem:[#allocation2 + $0x38] sm:$0xff] %vm208, %v6512
        %6545 = vst.msk [vmem:[#allocation2 + $0x40] sm:$0xff] %vm208, %v6513
        %6546 = vst.msk [vmem:[#allocation2 + $0x48] sm:$0xff] %vm208, %v6514
        %6547 = vst.msk [vmem:[#allocation2 + $0x50] sm:$0xff] %vm208, %v6515
        %6548 = vst.msk [vmem:[#allocation2 + $0x58] sm:$0xff] %vm208, %v6516
        %6549 = vst.msk [vmem:[#allocation2 + $0x60] sm:$0xff] %vm208, %v6517
        %6550 = vst.msk [vmem:[#allocation2 + $0x68] sm:$0xff] %vm208, %v6518
        %6551 = vst.msk [vmem:[#allocation2 + $0x70] sm:$0xff] %vm208, %v6519
        %6552 = vst.msk [vmem:[#allocation2 + $0x78] sm:$0xff] %vm208, %v6520
        %6553 = vst.msk [vmem:[#allocation2 + $0x80] sm:$0xff] %vm208, %v6521
        %6554 = vst.msk [vmem:[#allocation2 + $0x88] sm:$0xff] %vm208, %v6522
        %6555 = vst.msk [vmem:[#allocation2 + $0x90] sm:$0xff] %vm208, %v6523
        %6556 = vst.msk [vmem:[#allocation2 + $0x98] sm:$0xff] %vm208, %v6524
        %6557 = vst.msk [vmem:[#allocation2 + $0xa0] sm:$0xff] %vm208, %v6525
        %6558 = vst.msk [vmem:[#allocation2 + $0xa8] sm:$0xff] %vm208, %v6526
        %6559 = vst.msk [vmem:[#allocation2 + $0xb0] sm:$0xff] %vm208, %v6527
        %6560 = vst.msk [vmem:[#allocation2 + $0xb8] sm:$0xff] %vm208, %v6528
        %6561 = vst.msk [vmem:[#allocation2 + $0xc0] sm:$0xff] %vm208, %v6529
        %6562 = vst.msk [vmem:[#allocation2 + $0xc8] sm:$0xff] %vm208, %v6530
        %6563 = vst.msk [vmem:[#allocation2 + $0xd0] sm:$0xff] %vm208, %v6531
        %6564 = vst.msk [vmem:[#allocation2 + $0xd8] sm:$0xff] %vm208, %v6532
        %6565 = vst.msk [vmem:[#allocation2 + $0xe0] sm:$0xff] %vm208, %v6533
        %6566 = vst.msk [vmem:[#allocation2 + $0xe8] sm:$0xff] %vm208, %v6534
        %6567 = vst.msk [vmem:[#allocation2 + $0xf0] sm:$0xff] %vm208, %v6535
        %6568 = vst.msk [vmem:[#allocation2 + $0xf8] sm:$0xff] %vm208, %v6536
        %s6569 = scalar_lea.vmem %s1, 88
        %v6570 = vld [vmem:[%s6569] sm:$0xf]
        %v6571 = vld [vmem:[%s6569 + $0x4] sm:$0x3]
        %v6572 = vld [vmem:[%s4991] sm:$0xe]
        %v6573 = vld [vmem:[%s4991 + $0x4] sm:$0xf]
        %v6574 = vld [vmem:[%s4991 + $0x8] sm:$0x3]
        %v6575 = vld [vmem:[%s4991 + $0xc] sm:$0xe]
        %v6576 = vld [vmem:[%s4991 + $0x10] sm:$0xf]
        %v6577 = vld [vmem:[%s4991 + $0x14] sm:$0x3]
        %v6578 = vld [vmem:[%s4991 + $0x18] sm:$0xe]
        %v6579 = vld [vmem:[%s4991 + $0x1c] sm:$0xf]
        %v6580 = vld [vmem:[%s4991 + $0x20] sm:$0x3]
        %v6581 = vld [vmem:[%s4991 + $0x24] sm:$0xe]
        %v6582 = vld [vmem:[%s4991 + $0x28] sm:$0xf]
        %v6583 = vld [vmem:[%s4991 + $0x2c] sm:$0x3]
        %v6584 = vld [vmem:[%s4991 + $0x30] sm:$0xe]
        %v6585 = vld [vmem:[%s4991 + $0x34] sm:$0xf]
        %v6586 = vld [vmem:[%s4991 + $0x38] sm:$0x3]
        %v6587 = vld [vmem:[%s4991 + $0x3c] sm:$0xe]
        %v6588 = vld [vmem:[%s4991 + $0x40] sm:$0xf]
        %v6589 = vld [vmem:[%s4991 + $0x44] sm:$0x3]
        %v6590 = vld [vmem:[%s4991 + $0x48] sm:$0xe]
        %v6591 = vld [vmem:[%s4991 + $0x4c] sm:$0xf]
        %v6592 = vld [vmem:[%s4991 + $0x50] sm:$0x3]
        %v6593 = vld [vmem:[%s4991 + $0x54] sm:$0xe]
        %v6594 = vld [vmem:[%s4991 + $0x58] sm:$0xf]
        %v6595 = vld [vmem:[%s4991 + $0x5c] sm:$0x3]
        %v6596 = vld [vmem:[%s4991 + $0x60] sm:$0xe]
        %v6597 = vld [vmem:[%s4991 + $0x64] sm:$0xf]
        %v6598 = vld [vmem:[%s4991 + $0x68] sm:$0x3]
        %v6599 = vld [vmem:[%s4991 + $0x6c] sm:$0xe]
        %v6600 = vld [vmem:[%s4991 + $0x70] sm:$0xf]
        %v6601 = vld [vmem:[%s4991 + $0x74] sm:$0x3]
        %v6602 = vld [vmem:[%s4991 + $0x78] sm:$0xe]
        %v6603 = vld [vmem:[%s4991 + $0x7c] sm:$0xf]
        %v6604 = vld [vmem:[%s4991 + $0x80] sm:$0x3]
        %v6605 = vld [vmem:[%s4991 + $0x84] sm:$0xe]
        %v6606 = vld [vmem:[%s4991 + $0x88] sm:$0xf]
        %v6607 = vld [vmem:[%s4991 + $0x8c] sm:$0x3]
        %v6608 = vld [vmem:[%s4991 + $0x90] sm:$0xe]
        %v6609 = vld [vmem:[%s4991 + $0x94] sm:$0xf]
        %v6610 = vld [vmem:[%s4991 + $0x98] sm:$0x3]
        %v6611 = vld [vmem:[%s4991 + $0x9c] sm:$0xe]
        %v6612 = vld [vmem:[%s4991 + $0xa0] sm:$0xf]
        %v6613 = vld [vmem:[%s4991 + $0xa4] sm:$0x3]
        %v6614 = vld [vmem:[%s4991 + $0xa8] sm:$0xe]
        %v6615 = vld [vmem:[%s4991 + $0xac] sm:$0xf]
        %v6616 = vld [vmem:[%s4991 + $0xb0] sm:$0x3]
        %v6617 = vld [vmem:[%s4991 + $0xb4] sm:$0xe]
        %v6618 = vld [vmem:[%s4991 + $0xb8] sm:$0xf]
        %v6619 = vld [vmem:[%s4991 + $0xbc] sm:$0x3]
        %v6621 = vshrl.u32 %v6572, 16
        %v6623 = vrot.slane %v6621, 5
        %v6624 = vshll.u32 %v6572, 16
        %v6626 = vrot.slane %v6624, 6
        %v6627 = vor.u32 %v6623, %v6626
        %v6628 = vrot.slane %v6627, 4
        %v6630 = vshrl.u32 %v6573, 16
        %v6632 = vrot.slane %v6630, 5
        %v6633 = vshll.u32 %v6573, 16
        %v6635 = vrot.slane %v6633, 6
        %v6636 = vor.u32 %v6632, %v6635
        %v6637 = vsel %vm1881, %v6628, %v6636
        %v6638 = vrot.slane %v6636, 4
        %v6640 = vshrl.u32 %v6574, 16
        %v6642 = vrot.slane %v6640, 5
        %v6643 = vshll.u32 %v6574, 16
        %v6645 = vrot.slane %v6643, 6
        %v6646 = vor.u32 %v6642, %v6645
        %v6647 = vsel %vm1881, %v6638, %v6646
        %v6649 = vshrl.u32 %v6575, 16
        %v6651 = vrot.slane %v6649, 5
        %v6652 = vshll.u32 %v6575, 16
        %v6654 = vrot.slane %v6652, 6
        %v6655 = vor.u32 %v6651, %v6654
        %v6656 = vrot.slane %v6655, 4
        %v6658 = vshrl.u32 %v6576, 16
        %v6660 = vrot.slane %v6658, 5
        %v6661 = vshll.u32 %v6576, 16
        %v6663 = vrot.slane %v6661, 6
        %v6664 = vor.u32 %v6660, %v6663
        %v6665 = vsel %vm1881, %v6656, %v6664
        %v6666 = vrot.slane %v6664, 4
        %v6668 = vshrl.u32 %v6577, 16
        %v6670 = vrot.slane %v6668, 5
        %v6671 = vshll.u32 %v6577, 16
        %v6673 = vrot.slane %v6671, 6
        %v6674 = vor.u32 %v6670, %v6673
        %v6675 = vsel %vm1881, %v6666, %v6674
        %v6677 = vshrl.u32 %v6578, 16
        %v6679 = vrot.slane %v6677, 5
        %v6680 = vshll.u32 %v6578, 16
        %v6682 = vrot.slane %v6680, 6
        %v6683 = vor.u32 %v6679, %v6682
        %v6684 = vrot.slane %v6683, 4
        %v6686 = vshrl.u32 %v6579, 16
        %v6688 = vrot.slane %v6686, 5
        %v6689 = vshll.u32 %v6579, 16
        %v6691 = vrot.slane %v6689, 6
        %v6692 = vor.u32 %v6688, %v6691
        %v6693 = vsel %vm1881, %v6684, %v6692
        %v6694 = vrot.slane %v6692, 4
        %v6696 = vshrl.u32 %v6580, 16
        %v6698 = vrot.slane %v6696, 5
        %v6699 = vshll.u32 %v6580, 16
        %v6701 = vrot.slane %v6699, 6
        %v6702 = vor.u32 %v6698, %v6701
        %v6703 = vsel %vm1881, %v6694, %v6702
        %v6705 = vshrl.u32 %v6581, 16
        %v6707 = vrot.slane %v6705, 5
        %v6708 = vshll.u32 %v6581, 16
        %v6710 = vrot.slane %v6708, 6
        %v6711 = vor.u32 %v6707, %v6710
        %v6712 = vrot.slane %v6711, 4
        %v6714 = vshrl.u32 %v6582, 16
        %v6716 = vrot.slane %v6714, 5
        %v6717 = vshll.u32 %v6582, 16
        %v6719 = vrot.slane %v6717, 6
        %v6720 = vor.u32 %v6716, %v6719
        %v6721 = vsel %vm1881, %v6712, %v6720
        %v6722 = vrot.slane %v6720, 4
        %v6724 = vshrl.u32 %v6583, 16
        %v6726 = vrot.slane %v6724, 5
        %v6727 = vshll.u32 %v6583, 16
        %v6729 = vrot.slane %v6727, 6
        %v6730 = vor.u32 %v6726, %v6729
        %v6731 = vsel %vm1881, %v6722, %v6730
        %v6733 = vshrl.u32 %v6584, 16
        %v6735 = vrot.slane %v6733, 5
        %v6736 = vshll.u32 %v6584, 16
        %v6738 = vrot.slane %v6736, 6
        %v6739 = vor.u32 %v6735, %v6738
        %v6740 = vrot.slane %v6739, 4
        %v6742 = vshrl.u32 %v6585, 16
        %v6744 = vrot.slane %v6742, 5
        %v6745 = vshll.u32 %v6585, 16
        %v6747 = vrot.slane %v6745, 6
        %v6748 = vor.u32 %v6744, %v6747
        %v6749 = vsel %vm1881, %v6740, %v6748
        %v6750 = vrot.slane %v6748, 4
        %v6752 = vshrl.u32 %v6586, 16
        %v6754 = vrot.slane %v6752, 5
        %v6755 = vshll.u32 %v6586, 16
        %v6757 = vrot.slane %v6755, 6
        %v6758 = vor.u32 %v6754, %v6757
        %v6759 = vsel %vm1881, %v6750, %v6758
        %v6761 = vshrl.u32 %v6587, 16
        %v6763 = vrot.slane %v6761, 5
        %v6764 = vshll.u32 %v6587, 16
        %v6766 = vrot.slane %v6764, 6
        %v6767 = vor.u32 %v6763, %v6766
        %v6768 = vrot.slane %v6767, 4
        %v6770 = vshrl.u32 %v6588, 16
        %v6772 = vrot.slane %v6770, 5
        %v6773 = vshll.u32 %v6588, 16
        %v6775 = vrot.slane %v6773, 6
        %v6776 = vor.u32 %v6772, %v6775
        %v6777 = vsel %vm1881, %v6768, %v6776
        %v6778 = vrot.slane %v6776, 4
        %v6780 = vshrl.u32 %v6589, 16
        %v6782 = vrot.slane %v6780, 5
        %v6783 = vshll.u32 %v6589, 16
        %v6785 = vrot.slane %v6783, 6
        %v6786 = vor.u32 %v6782, %v6785
        %v6787 = vsel %vm1881, %v6778, %v6786
        %v6789 = vshrl.u32 %v6590, 16
        %v6791 = vrot.slane %v6789, 5
        %v6792 = vshll.u32 %v6590, 16
        %v6794 = vrot.slane %v6792, 6
        %v6795 = vor.u32 %v6791, %v6794
        %v6796 = vrot.slane %v6795, 4
        %v6798 = vshrl.u32 %v6591, 16
        %v6800 = vrot.slane %v6798, 5
        %v6801 = vshll.u32 %v6591, 16
        %v6803 = vrot.slane %v6801, 6
        %v6804 = vor.u32 %v6800, %v6803
        %v6805 = vsel %vm1881, %v6796, %v6804
        %v6806 = vrot.slane %v6804, 4
        %v6808 = vshrl.u32 %v6592, 16
        %v6810 = vrot.slane %v6808, 5
        %v6811 = vshll.u32 %v6592, 16
        %v6813 = vrot.slane %v6811, 6
        %v6814 = vor.u32 %v6810, %v6813
        %v6815 = vsel %vm1881, %v6806, %v6814
        %v6817 = vshrl.u32 %v6593, 16
        %v6819 = vrot.slane %v6817, 5
        %v6820 = vshll.u32 %v6593, 16
        %v6822 = vrot.slane %v6820, 6
        %v6823 = vor.u32 %v6819, %v6822
        %v6824 = vrot.slane %v6823, 4
        %v6826 = vshrl.u32 %v6594, 16
        %v6828 = vrot.slane %v6826, 5
        %v6829 = vshll.u32 %v6594, 16
        %v6831 = vrot.slane %v6829, 6
        %v6832 = vor.u32 %v6828, %v6831
        %v6833 = vsel %vm1881, %v6824, %v6832
        %v6834 = vrot.slane %v6832, 4
        %v6836 = vshrl.u32 %v6595, 16
        %v6838 = vrot.slane %v6836, 5
        %v6839 = vshll.u32 %v6595, 16
        %v6841 = vrot.slane %v6839, 6
        %v6842 = vor.u32 %v6838, %v6841
        %v6843 = vsel %vm1881, %v6834, %v6842
        %v6845 = vshrl.u32 %v6596, 16
        %v6847 = vrot.slane %v6845, 5
        %v6848 = vshll.u32 %v6596, 16
        %v6850 = vrot.slane %v6848, 6
        %v6851 = vor.u32 %v6847, %v6850
        %v6852 = vrot.slane %v6851, 4
        %v6854 = vshrl.u32 %v6597, 16
        %v6856 = vrot.slane %v6854, 5
        %v6857 = vshll.u32 %v6597, 16
        %v6859 = vrot.slane %v6857, 6
        %v6860 = vor.u32 %v6856, %v6859
        %v6861 = vsel %vm1881, %v6852, %v6860
        %v6862 = vrot.slane %v6860, 4
        %v6864 = vshrl.u32 %v6598, 16
        %v6866 = vrot.slane %v6864, 5
        %v6867 = vshll.u32 %v6598, 16
        %v6869 = vrot.slane %v6867, 6
        %v6870 = vor.u32 %v6866, %v6869
        %v6871 = vsel %vm1881, %v6862, %v6870
        %v6873 = vshrl.u32 %v6599, 16
        %v6875 = vrot.slane %v6873, 5
        %v6876 = vshll.u32 %v6599, 16
        %v6878 = vrot.slane %v6876, 6
        %v6879 = vor.u32 %v6875, %v6878
        %v6880 = vrot.slane %v6879, 4
        %v6882 = vshrl.u32 %v6600, 16
        %v6884 = vrot.slane %v6882, 5
        %v6885 = vshll.u32 %v6600, 16
        %v6887 = vrot.slane %v6885, 6
        %v6888 = vor.u32 %v6884, %v6887
        %v6889 = vsel %vm1881, %v6880, %v6888
        %v6890 = vrot.slane %v6888, 4
        %v6892 = vshrl.u32 %v6601, 16
        %v6894 = vrot.slane %v6892, 5
        %v6895 = vshll.u32 %v6601, 16
        %v6897 = vrot.slane %v6895, 6
        %v6898 = vor.u32 %v6894, %v6897
        %v6899 = vsel %vm1881, %v6890, %v6898
        %v6901 = vshrl.u32 %v6602, 16
        %v6903 = vrot.slane %v6901, 5
        %v6904 = vshll.u32 %v6602, 16
        %v6906 = vrot.slane %v6904, 6
        %v6907 = vor.u32 %v6903, %v6906
        %v6908 = vrot.slane %v6907, 4
        %v6910 = vshrl.u32 %v6603, 16
        %v6912 = vrot.slane %v6910, 5
        %v6913 = vshll.u32 %v6603, 16
        %v6915 = vrot.slane %v6913, 6
        %v6916 = vor.u32 %v6912, %v6915
        %v6917 = vsel %vm1881, %v6908, %v6916
        %v6918 = vrot.slane %v6916, 4
        %v6920 = vshrl.u32 %v6604, 16
        %v6922 = vrot.slane %v6920, 5
        %v6923 = vshll.u32 %v6604, 16
        %v6925 = vrot.slane %v6923, 6
        %v6926 = vor.u32 %v6922, %v6925
        %v6927 = vsel %vm1881, %v6918, %v6926
        %v6929 = vshrl.u32 %v6605, 16
        %v6931 = vrot.slane %v6929, 5
        %v6932 = vshll.u32 %v6605, 16
        %v6934 = vrot.slane %v6932, 6
        %v6935 = vor.u32 %v6931, %v6934
        %v6936 = vrot.slane %v6935, 4
        %v6938 = vshrl.u32 %v6606, 16
        %v6940 = vrot.slane %v6938, 5
        %v6941 = vshll.u32 %v6606, 16
        %v6943 = vrot.slane %v6941, 6
        %v6944 = vor.u32 %v6940, %v6943
        %v6945 = vsel %vm1881, %v6936, %v6944
        %v6946 = vrot.slane %v6944, 4
        %v6948 = vshrl.u32 %v6607, 16
        %v6950 = vrot.slane %v6948, 5
        %v6951 = vshll.u32 %v6607, 16
        %v6953 = vrot.slane %v6951, 6
        %v6954 = vor.u32 %v6950, %v6953
        %v6955 = vsel %vm1881, %v6946, %v6954
        %v6957 = vshrl.u32 %v6608, 16
        %v6959 = vrot.slane %v6957, 5
        %v6960 = vshll.u32 %v6608, 16
        %v6962 = vrot.slane %v6960, 6
        %v6963 = vor.u32 %v6959, %v6962
        %v6964 = vrot.slane %v6963, 4
        %v6966 = vshrl.u32 %v6609, 16
        %v6968 = vrot.slane %v6966, 5
        %v6969 = vshll.u32 %v6609, 16
        %v6971 = vrot.slane %v6969, 6
        %v6972 = vor.u32 %v6968, %v6971
        %v6973 = vsel %vm1881, %v6964, %v6972
        %v6974 = vrot.slane %v6972, 4
        %v6976 = vshrl.u32 %v6610, 16
        %v6978 = vrot.slane %v6976, 5
        %v6979 = vshll.u32 %v6610, 16
        %v6981 = vrot.slane %v6979, 6
        %v6982 = vor.u32 %v6978, %v6981
        %v6983 = vsel %vm1881, %v6974, %v6982
        %v6985 = vshrl.u32 %v6611, 16
        %v6987 = vrot.slane %v6985, 5
        %v6988 = vshll.u32 %v6611, 16
        %v6990 = vrot.slane %v6988, 6
        %v6991 = vor.u32 %v6987, %v6990
        %v6992 = vrot.slane %v6991, 4
        %v6994 = vshrl.u32 %v6612, 16
        %v6996 = vrot.slane %v6994, 5
        %v6997 = vshll.u32 %v6612, 16
        %v6999 = vrot.slane %v6997, 6
        %v7000 = vor.u32 %v6996, %v6999
        %v7001 = vsel %vm1881, %v6992, %v7000
        %v7002 = vrot.slane %v7000, 4
        %v7004 = vshrl.u32 %v6613, 16
        %v7006 = vrot.slane %v7004, 5
        %v7007 = vshll.u32 %v6613, 16
        %v7009 = vrot.slane %v7007, 6
        %v7010 = vor.u32 %v7006, %v7009
        %v7011 = vsel %vm1881, %v7002, %v7010
        %v7013 = vshrl.u32 %v6614, 16
        %v7015 = vrot.slane %v7013, 5
        %v7016 = vshll.u32 %v6614, 16
        %v7018 = vrot.slane %v7016, 6
        %v7019 = vor.u32 %v7015, %v7018
        %v7020 = vrot.slane %v7019, 4
        %v7022 = vshrl.u32 %v6615, 16
        %v7024 = vrot.slane %v7022, 5
        %v7025 = vshll.u32 %v6615, 16
        %v7027 = vrot.slane %v7025, 6
        %v7028 = vor.u32 %v7024, %v7027
        %v7029 = vsel %vm1881, %v7020, %v7028
        %v7030 = vrot.slane %v7028, 4
        %v7032 = vshrl.u32 %v6616, 16
        %v7034 = vrot.slane %v7032, 5
        %v7035 = vshll.u32 %v6616, 16
        %v7037 = vrot.slane %v7035, 6
        %v7038 = vor.u32 %v7034, %v7037
        %v7039 = vsel %vm1881, %v7030, %v7038
        %v7041 = vshrl.u32 %v6617, 16
        %v7043 = vrot.slane %v7041, 5
        %v7044 = vshll.u32 %v6617, 16
        %v7046 = vrot.slane %v7044, 6
        %v7047 = vor.u32 %v7043, %v7046
        %v7048 = vrot.slane %v7047, 4
        %v7050 = vshrl.u32 %v6618, 16
        %v7052 = vrot.slane %v7050, 5
        %v7053 = vshll.u32 %v6618, 16
        %v7055 = vrot.slane %v7053, 6
        %v7056 = vor.u32 %v7052, %v7055
        %v7057 = vsel %vm1881, %v7048, %v7056
        %v7058 = vrot.slane %v7056, 4
        %v7060 = vshrl.u32 %v6619, 16
        %v7062 = vrot.slane %v7060, 5
        %v7063 = vshll.u32 %v6619, 16
        %v7065 = vrot.slane %v7063, 6
        %v7066 = vor.u32 %v7062, %v7065
        %v7067 = vsel %vm1881, %v7058, %v7066
        %v7068 = vld [vmem:[#allocation2] sm:$0xff]
        %v7069 = vld [vmem:[#allocation2 + $0x8] sm:$0xff]
        %v7070 = vld [vmem:[#allocation2 + $0x10] sm:$0xff]
        %v7071 = vld [vmem:[#allocation2 + $0x18] sm:$0xff]
        %v7072 = vld [vmem:[#allocation2 + $0x20] sm:$0xff]
        %v7073 = vld [vmem:[#allocation2 + $0x28] sm:$0xff]
        %v7074 = vld [vmem:[#allocation2 + $0x30] sm:$0xff]
        %v7075 = vld [vmem:[#allocation2 + $0x38] sm:$0xff]
        %v7076 = vld [vmem:[#allocation2 + $0x40] sm:$0xff]
        %v7077 = vld [vmem:[#allocation2 + $0x48] sm:$0xff]
        %v7078 = vld [vmem:[#allocation2 + $0x50] sm:$0xff]
        %v7079 = vld [vmem:[#allocation2 + $0x58] sm:$0xff]
        %v7080 = vld [vmem:[#allocation2 + $0x60] sm:$0xff]
        %v7081 = vld [vmem:[#allocation2 + $0x68] sm:$0xff]
        %v7082 = vld [vmem:[#allocation2 + $0x70] sm:$0xff]
        %v7083 = vld [vmem:[#allocation2 + $0x78] sm:$0xff]
        %v7084 = vld [vmem:[#allocation2 + $0x80] sm:$0xff]
        %v7085 = vld [vmem:[#allocation2 + $0x88] sm:$0xff]
        %v7086 = vld [vmem:[#allocation2 + $0x90] sm:$0xff]
        %v7087 = vld [vmem:[#allocation2 + $0x98] sm:$0xff]
        %v7088 = vld [vmem:[#allocation2 + $0xa0] sm:$0xff]
        %v7089 = vld [vmem:[#allocation2 + $0xa8] sm:$0xff]
        %v7090 = vld [vmem:[#allocation2 + $0xb0] sm:$0xff]
        %v7091 = vld [vmem:[#allocation2 + $0xb8] sm:$0xff]
        %v7092 = vld [vmem:[#allocation2 + $0xc0] sm:$0xff]
        %v7093 = vld [vmem:[#allocation2 + $0xc8] sm:$0xff]
        %v7094 = vld [vmem:[#allocation2 + $0xd0] sm:$0xff]
        %v7095 = vld [vmem:[#allocation2 + $0xd8] sm:$0xff]
        %v7096 = vld [vmem:[#allocation2 + $0xe0] sm:$0xff]
        %v7097 = vld [vmem:[#allocation2 + $0xe8] sm:$0xff]
        %v7098 = vld [vmem:[#allocation2 + $0xf0] sm:$0xff]
        %v7099 = vld [vmem:[#allocation2 + $0xf8] sm:$0xff]
        %v7100 = vunpack.c.l.b16 %v6637
        %v7101 = vunpack.c.l.b16 %v6647
        %v7102 = vunpack.c.l.b16 %v6665
        %v7103 = vunpack.c.l.b16 %v6675
        %v7104 = vunpack.c.l.b16 %v6693
        %v7105 = vunpack.c.l.b16 %v6703
        %v7106 = vunpack.c.l.b16 %v6721
        %v7107 = vunpack.c.l.b16 %v6731
        %v7108 = vunpack.c.l.b16 %v6749
        %v7109 = vunpack.c.l.b16 %v6759
        %v7110 = vunpack.c.l.b16 %v6777
        %v7111 = vunpack.c.l.b16 %v6787
        %v7112 = vunpack.c.l.b16 %v6805
        %v7113 = vunpack.c.l.b16 %v6815
        %v7114 = vunpack.c.l.b16 %v6833
        %v7115 = vunpack.c.l.b16 %v6843
        %v7116 = vunpack.c.l.b16 %v6861
        %v7117 = vunpack.c.l.b16 %v6871
        %v7118 = vunpack.c.l.b16 %v6889
        %v7119 = vunpack.c.l.b16 %v6899
        %v7120 = vunpack.c.l.b16 %v6917
        %v7121 = vunpack.c.l.b16 %v6927
        %v7122 = vunpack.c.l.b16 %v6945
        %v7123 = vunpack.c.l.b16 %v6955
        %v7124 = vunpack.c.l.b16 %v6973
        %v7125 = vunpack.c.l.b16 %v6983
        %v7126 = vunpack.c.l.b16 %v7001
        %v7127 = vunpack.c.l.b16 %v7011
        %v7128 = vunpack.c.l.b16 %v7029
        %v7129 = vunpack.c.l.b16 %v7039
        %v7130 = vunpack.c.l.b16 %v7057
        %v7131 = vunpack.c.l.b16 %v7067
        %v7132 = vpack.c.b16 %v7101, %v7100
        %v7133 = vpack.c.b16 %v7103, %v7102
        %v7134 = vpack.c.b16 %v7105, %v7104
        %v7135 = vpack.c.b16 %v7107, %v7106
        %v7136 = vpack.c.b16 %v7109, %v7108
        %v7137 = vpack.c.b16 %v7111, %v7110
        %v7138 = vpack.c.b16 %v7113, %v7112
        %v7139 = vpack.c.b16 %v7115, %v7114
        %v7140 = vpack.c.b16 %v7117, %v7116
        %v7141 = vpack.c.b16 %v7119, %v7118
        %v7142 = vpack.c.b16 %v7121, %v7120
        %v7143 = vpack.c.b16 %v7123, %v7122
        %v7144 = vpack.c.b16 %v7125, %v7124
        %v7145 = vpack.c.b16 %v7127, %v7126
        %v7146 = vpack.c.b16 %v7129, %v7128
        %v7147 = vpack.c.b16 %v7131, %v7130
        %v7150 = vunpack.c.l.b16 %v6570
        %v7151 = vunpack.c.l.b16 %v6571
        %v7152 = vpack.c.b16 %v7151, %v7150
        %v7154 = vsel %vm392, %v7132, 0
        %v7157 = vsel %vm392, %v7133, 0
        %v7160 = vsel %vm392, %v7134, 0
        %v7163 = vsel %vm392, %v7135, 0
        %v7166 = vsel %vm392, %v7136, 0
        %v7169 = vsel %vm392, %v7137, 0
        %v7172 = vsel %vm392, %v7138, 0
        %v7175 = vsel %vm392, %v7139, 0
        %v7178 = vsel %vm392, %v7140, 0
        %v7181 = vsel %vm392, %v7141, 0
        %v7184 = vsel %vm392, %v7142, 0
        %v7187 = vsel %vm392, %v7143, 0
        %v7190 = vsel %vm392, %v7144, 0
        %v7193 = vsel %vm392, %v7145, 0
        %v7196 = vsel %vm392, %v7146, 0
        %v7199 = vsel %vm392, %v7147, 0
        %v7202 = vsel %vm441, %v7152, 0
        %7204 = vmatpush.bf16.msra.mxu0 0
        %7205 = vmatpush.bf16.msra.mxu0 0
        %7206 = vmatpush.bf16.msra.mxu0 0
        %7207 = vmatpush.bf16.msra.mxu0 0
        %7208 = vmatpush.bf16.msra.mxu0 0
        %7209 = vmatpush.bf16.msra.mxu0 0
        %7210 = vmatpush.bf16.msra.mxu0 0
        %7211 = vmatpush.bf16.msra.mxu0 %v7202
        %7212 = vmatmul.bf16.gmra.mxu0 %v7154
        %v7213 = vpop.f32.mrf.mxu0
        %v7214 = vadd.f32 0.0, %v7213
        %v7215 = vpop.f32.mrf.mxu0
        %v7216 = vadd.f32 0.0, %v7215
        %7217 = vmatmul.bf16.gmra.mxu0 %v7157
        %v7218 = vpop.f32.mrf.mxu0
        %v7219 = vadd.f32 0.0, %v7218
        %v7220 = vpop.f32.mrf.mxu0
        %v7221 = vadd.f32 0.0, %v7220
        %7222 = vmatmul.bf16.gmra.mxu0 %v7160
        %v7223 = vpop.f32.mrf.mxu0
        %v7224 = vadd.f32 0.0, %v7223
        %v7225 = vpop.f32.mrf.mxu0
        %v7226 = vadd.f32 0.0, %v7225
        %7227 = vmatmul.bf16.gmra.mxu0 %v7163
        %v7228 = vpop.f32.mrf.mxu0
        %v7229 = vadd.f32 0.0, %v7228
        %v7230 = vpop.f32.mrf.mxu0
        %v7231 = vadd.f32 0.0, %v7230
        %7232 = vmatmul.bf16.gmra.mxu0 %v7166
        %v7233 = vpop.f32.mrf.mxu0
        %v7234 = vadd.f32 0.0, %v7233
        %v7235 = vpop.f32.mrf.mxu0
        %v7236 = vadd.f32 0.0, %v7235
        %7237 = vmatmul.bf16.gmra.mxu0 %v7169
        %v7238 = vpop.f32.mrf.mxu0
        %v7239 = vadd.f32 0.0, %v7238
        %v7240 = vpop.f32.mrf.mxu0
        %v7241 = vadd.f32 0.0, %v7240
        %7242 = vmatmul.bf16.gmra.mxu0 %v7172
        %v7243 = vpop.f32.mrf.mxu0
        %v7244 = vadd.f32 0.0, %v7243
        %v7245 = vpop.f32.mrf.mxu0
        %v7246 = vadd.f32 0.0, %v7245
        %7247 = vmatmul.bf16.gmra.mxu0 %v7175
        %v7248 = vpop.f32.mrf.mxu0
        %v7249 = vadd.f32 0.0, %v7248
        %v7250 = vpop.f32.mrf.mxu0
        %v7251 = vadd.f32 0.0, %v7250
        %7252 = vmatmul.bf16.gmra.mxu0 %v7178
        %v7253 = vpop.f32.mrf.mxu0
        %v7254 = vadd.f32 0.0, %v7253
        %v7255 = vpop.f32.mrf.mxu0
        %v7256 = vadd.f32 0.0, %v7255
        %7257 = vmatmul.bf16.gmra.mxu0 %v7181
        %v7258 = vpop.f32.mrf.mxu0
        %v7259 = vadd.f32 0.0, %v7258
        %v7260 = vpop.f32.mrf.mxu0
        %v7261 = vadd.f32 0.0, %v7260
        %7262 = vmatmul.bf16.gmra.mxu0 %v7184
        %v7263 = vpop.f32.mrf.mxu0
        %v7264 = vadd.f32 0.0, %v7263
        %v7265 = vpop.f32.mrf.mxu0
        %v7266 = vadd.f32 0.0, %v7265
        %7267 = vmatmul.bf16.gmra.mxu0 %v7187
        %v7268 = vpop.f32.mrf.mxu0
        %v7269 = vadd.f32 0.0, %v7268
        %v7270 = vpop.f32.mrf.mxu0
        %v7271 = vadd.f32 0.0, %v7270
        %7272 = vmatmul.bf16.gmra.mxu0 %v7190
        %v7273 = vpop.f32.mrf.mxu0
        %v7274 = vadd.f32 0.0, %v7273
        %v7275 = vpop.f32.mrf.mxu0
        %v7276 = vadd.f32 0.0, %v7275
        %7277 = vmatmul.bf16.gmra.mxu0 %v7193
        %v7278 = vpop.f32.mrf.mxu0
        %v7279 = vadd.f32 0.0, %v7278
        %v7280 = vpop.f32.mrf.mxu0
        %v7281 = vadd.f32 0.0, %v7280
        %7282 = vmatmul.bf16.gmra.mxu0 %v7196
        %v7283 = vpop.f32.mrf.mxu0
        %v7284 = vadd.f32 0.0, %v7283
        %v7285 = vpop.f32.mrf.mxu0
        %v7286 = vadd.f32 0.0, %v7285
        %7287 = vmatmul.bf16.gmra.mxu0 %v7199
        %v7288 = vpop.f32.mrf.mxu0
        %v7289 = vadd.f32 0.0, %v7288
        %v7290 = vpop.f32.mrf.mxu0
        %v7291 = vadd.f32 0.0, %v7290
        %7292 = vdwg.mxu0
        %v7293 = vadd.f32 %v7068, %v7214
        %v7294 = vadd.f32 %v7069, %v7216
        %v7295 = vadd.f32 %v7070, %v7219
        %v7296 = vadd.f32 %v7071, %v7221
        %v7297 = vadd.f32 %v7072, %v7224
        %v7298 = vadd.f32 %v7073, %v7226
        %v7299 = vadd.f32 %v7074, %v7229
        %v7300 = vadd.f32 %v7075, %v7231
        %v7301 = vadd.f32 %v7076, %v7234
        %v7302 = vadd.f32 %v7077, %v7236
        %v7303 = vadd.f32 %v7078, %v7239
        %v7304 = vadd.f32 %v7079, %v7241
        %v7305 = vadd.f32 %v7080, %v7244
        %v7306 = vadd.f32 %v7081, %v7246
        %v7307 = vadd.f32 %v7082, %v7249
        %v7308 = vadd.f32 %v7083, %v7251
        %v7309 = vadd.f32 %v7084, %v7254
        %v7310 = vadd.f32 %v7085, %v7256
        %v7311 = vadd.f32 %v7086, %v7259
        %v7312 = vadd.f32 %v7087, %v7261
        %v7313 = vadd.f32 %v7088, %v7264
        %v7314 = vadd.f32 %v7089, %v7266
        %v7315 = vadd.f32 %v7090, %v7269
        %v7316 = vadd.f32 %v7091, %v7271
        %v7317 = vadd.f32 %v7092, %v7274
        %v7318 = vadd.f32 %v7093, %v7276
        %v7319 = vadd.f32 %v7094, %v7279
        %v7320 = vadd.f32 %v7095, %v7281
        %v7321 = vadd.f32 %v7096, %v7284
        %v7322 = vadd.f32 %v7097, %v7286
        %v7323 = vadd.f32 %v7098, %v7289
        %v7324 = vadd.f32 %v7099, %v7291
        %7325 = vst.msk [vmem:[#allocation2] sm:$0xff] %vm208, %v7293
        %7326 = vst.msk [vmem:[#allocation2 + $0x8] sm:$0xff] %vm208, %v7294
        %7327 = vst.msk [vmem:[#allocation2 + $0x10] sm:$0xff] %vm208, %v7295
        %7328 = vst.msk [vmem:[#allocation2 + $0x18] sm:$0xff] %vm208, %v7296
        %7329 = vst.msk [vmem:[#allocation2 + $0x20] sm:$0xff] %vm208, %v7297
        %7330 = vst.msk [vmem:[#allocation2 + $0x28] sm:$0xff] %vm208, %v7298
        %7331 = vst.msk [vmem:[#allocation2 + $0x30] sm:$0xff] %vm208, %v7299
        %7332 = vst.msk [vmem:[#allocation2 + $0x38] sm:$0xff] %vm208, %v7300
        %7333 = vst.msk [vmem:[#allocation2 + $0x40] sm:$0xff] %vm208, %v7301
        %7334 = vst.msk [vmem:[#allocation2 + $0x48] sm:$0xff] %vm208, %v7302
        %7335 = vst.msk [vmem:[#allocation2 + $0x50] sm:$0xff] %vm208, %v7303
        %7336 = vst.msk [vmem:[#allocation2 + $0x58] sm:$0xff] %vm208, %v7304
        %7337 = vst.msk [vmem:[#allocation2 + $0x60] sm:$0xff] %vm208, %v7305
        %7338 = vst.msk [vmem:[#allocation2 + $0x68] sm:$0xff] %vm208, %v7306
        %7339 = vst.msk [vmem:[#allocation2 + $0x70] sm:$0xff] %vm208, %v7307
        %7340 = vst.msk [vmem:[#allocation2 + $0x78] sm:$0xff] %vm208, %v7308
        %7341 = vst.msk [vmem:[#allocation2 + $0x80] sm:$0xff] %vm208, %v7309
        %7342 = vst.msk [vmem:[#allocation2 + $0x88] sm:$0xff] %vm208, %v7310
        %7343 = vst.msk [vmem:[#allocation2 + $0x90] sm:$0xff] %vm208, %v7311
        %7344 = vst.msk [vmem:[#allocation2 + $0x98] sm:$0xff] %vm208, %v7312
        %7345 = vst.msk [vmem:[#allocation2 + $0xa0] sm:$0xff] %vm208, %v7313
        %7346 = vst.msk [vmem:[#allocation2 + $0xa8] sm:$0xff] %vm208, %v7314
        %7347 = vst.msk [vmem:[#allocation2 + $0xb0] sm:$0xff] %vm208, %v7315
        %7348 = vst.msk [vmem:[#allocation2 + $0xb8] sm:$0xff] %vm208, %v7316
        %7349 = vst.msk [vmem:[#allocation2 + $0xc0] sm:$0xff] %vm208, %v7317
        %7350 = vst.msk [vmem:[#allocation2 + $0xc8] sm:$0xff] %vm208, %v7318
        %7351 = vst.msk [vmem:[#allocation2 + $0xd0] sm:$0xff] %vm208, %v7319
        %7352 = vst.msk [vmem:[#allocation2 + $0xd8] sm:$0xff] %vm208, %v7320
        %7353 = vst.msk [vmem:[#allocation2 + $0xe0] sm:$0xff] %vm208, %v7321
        %7354 = vst.msk [vmem:[#allocation2 + $0xe8] sm:$0xff] %vm208, %v7322
        %7355 = vst.msk [vmem:[#allocation2 + $0xf0] sm:$0xff] %vm208, %v7323
        %7356 = vst.msk [vmem:[#allocation2 + $0xf8] sm:$0xff] %vm208, %v7324
        %s7357 = scalar_lea.vmem %s1, 96
        %v7358 = vld [vmem:[%s7357] sm:$0xf]
        %v7359 = vld [vmem:[%s7357 + $0x4] sm:$0x3]
        %s7360 = scalar_lea.vmem %s200, 36
        %v7361 = vld [vmem:[%s7360] sm:$0xf]
        %v7362 = vld [vmem:[%s7360 + $0x4] sm:$0xf]
        %v7363 = vld [vmem:[%s7360 + $0xc] sm:$0xf]
        %v7364 = vld [vmem:[%s7360 + $0x10] sm:$0xf]
        %v7365 = vld [vmem:[%s7360 + $0x18] sm:$0xf]
        %v7366 = vld [vmem:[%s7360 + $0x1c] sm:$0xf]
        %v7367 = vld [vmem:[%s7360 + $0x24] sm:$0xf]
        %v7368 = vld [vmem:[%s7360 + $0x28] sm:$0xf]
        %v7369 = vld [vmem:[%s7360 + $0x30] sm:$0xf]
        %v7370 = vld [vmem:[%s7360 + $0x34] sm:$0xf]
        %v7371 = vld [vmem:[%s7360 + $0x3c] sm:$0xf]
        %v7372 = vld [vmem:[%s7360 + $0x40] sm:$0xf]
        %v7373 = vld [vmem:[%s7360 + $0x48] sm:$0xf]
        %v7374 = vld [vmem:[%s7360 + $0x4c] sm:$0xf]
        %v7375 = vld [vmem:[%s7360 + $0x54] sm:$0xf]
        %v7376 = vld [vmem:[%s7360 + $0x58] sm:$0xf]
        %v7377 = vld [vmem:[%s7360 + $0x60] sm:$0xf]
        %v7378 = vld [vmem:[%s7360 + $0x64] sm:$0xf]
        %v7379 = vld [vmem:[%s7360 + $0x6c] sm:$0xf]
        %v7380 = vld [vmem:[%s7360 + $0x70] sm:$0xf]
        %v7381 = vld [vmem:[%s7360 + $0x78] sm:$0xf]
        %v7382 = vld [vmem:[%s7360 + $0x7c] sm:$0xf]
        %v7383 = vld [vmem:[%s7360 + $0x84] sm:$0xf]
        %v7384 = vld [vmem:[%s7360 + $0x88] sm:$0xf]
        %v7385 = vld [vmem:[%s7360 + $0x90] sm:$0xf]
        %v7386 = vld [vmem:[%s7360 + $0x94] sm:$0xf]
        %v7387 = vld [vmem:[%s7360 + $0x9c] sm:$0xf]
        %v7388 = vld [vmem:[%s7360 + $0xa0] sm:$0xf]
        %v7389 = vld [vmem:[%s7360 + $0xa8] sm:$0xf]
        %v7390 = vld [vmem:[%s7360 + $0xac] sm:$0xf]
        %v7391 = vld [vmem:[%s7360 + $0xb4] sm:$0xf]
        %v7392 = vld [vmem:[%s7360 + $0xb8] sm:$0xf]
        %v7393 = vld [vmem:[#allocation2] sm:$0xff]
        %v7394 = vld [vmem:[#allocation2 + $0x8] sm:$0xff]
        %v7395 = vld [vmem:[#allocation2 + $0x10] sm:$0xff]
        %v7396 = vld [vmem:[#allocation2 + $0x18] sm:$0xff]
        %v7397 = vld [vmem:[#allocation2 + $0x20] sm:$0xff]
        %v7398 = vld [vmem:[#allocation2 + $0x28] sm:$0xff]
        %v7399 = vld [vmem:[#allocation2 + $0x30] sm:$0xff]
        %v7400 = vld [vmem:[#allocation2 + $0x38] sm:$0xff]
        %v7401 = vld [vmem:[#allocation2 + $0x40] sm:$0xff]
        %v7402 = vld [vmem:[#allocation2 + $0x48] sm:$0xff]
        %v7403 = vld [vmem:[#allocation2 + $0x50] sm:$0xff]
        %v7404 = vld [vmem:[#allocation2 + $0x58] sm:$0xff]
        %v7405 = vld [vmem:[#allocation2 + $0x60] sm:$0xff]
        %v7406 = vld [vmem:[#allocation2 + $0x68] sm:$0xff]
        %v7407 = vld [vmem:[#allocation2 + $0x70] sm:$0xff]
        %v7408 = vld [vmem:[#allocation2 + $0x78] sm:$0xff]
        %v7409 = vld [vmem:[#allocation2 + $0x80] sm:$0xff]
        %v7410 = vld [vmem:[#allocation2 + $0x88] sm:$0xff]
        %v7411 = vld [vmem:[#allocation2 + $0x90] sm:$0xff]
        %v7412 = vld [vmem:[#allocation2 + $0x98] sm:$0xff]
        %v7413 = vld [vmem:[#allocation2 + $0xa0] sm:$0xff]
        %v7414 = vld [vmem:[#allocation2 + $0xa8] sm:$0xff]
        %v7415 = vld [vmem:[#allocation2 + $0xb0] sm:$0xff]
        %v7416 = vld [vmem:[#allocation2 + $0xb8] sm:$0xff]
        %v7417 = vld [vmem:[#allocation2 + $0xc0] sm:$0xff]
        %v7418 = vld [vmem:[#allocation2 + $0xc8] sm:$0xff]
        %v7419 = vld [vmem:[#allocation2 + $0xd0] sm:$0xff]
        %v7420 = vld [vmem:[#allocation2 + $0xd8] sm:$0xff]
        %v7421 = vld [vmem:[#allocation2 + $0xe0] sm:$0xff]
        %v7422 = vld [vmem:[#allocation2 + $0xe8] sm:$0xff]
        %v7423 = vld [vmem:[#allocation2 + $0xf0] sm:$0xff]
        %v7424 = vld [vmem:[#allocation2 + $0xf8] sm:$0xff]
        %v7457 = vunpack.c.l.b16 %v7361
        %v7458 = vunpack.c.l.b16 %v7362
        %v7459 = vunpack.c.l.b16 %v7363
        %v7460 = vunpack.c.l.b16 %v7364
        %v7461 = vunpack.c.l.b16 %v7365
        %v7462 = vunpack.c.l.b16 %v7366
        %v7463 = vunpack.c.l.b16 %v7367
        %v7464 = vunpack.c.l.b16 %v7368
        %v7465 = vunpack.c.l.b16 %v7369
        %v7466 = vunpack.c.l.b16 %v7370
        %v7467 = vunpack.c.l.b16 %v7371
        %v7468 = vunpack.c.l.b16 %v7372
        %v7469 = vunpack.c.l.b16 %v7373
        %v7470 = vunpack.c.l.b16 %v7374
        %v7471 = vunpack.c.l.b16 %v7375
        %v7472 = vunpack.c.l.b16 %v7376
        %v7473 = vunpack.c.l.b16 %v7377
        %v7474 = vunpack.c.l.b16 %v7378
        %v7475 = vunpack.c.l.b16 %v7379
        %v7476 = vunpack.c.l.b16 %v7380
        %v7477 = vunpack.c.l.b16 %v7381
        %v7478 = vunpack.c.l.b16 %v7382
        %v7479 = vunpack.c.l.b16 %v7383
        %v7480 = vunpack.c.l.b16 %v7384
        %v7481 = vunpack.c.l.b16 %v7385
        %v7482 = vunpack.c.l.b16 %v7386
        %v7483 = vunpack.c.l.b16 %v7387
        %v7484 = vunpack.c.l.b16 %v7388
        %v7485 = vunpack.c.l.b16 %v7389
        %v7486 = vunpack.c.l.b16 %v7390
        %v7487 = vunpack.c.l.b16 %v7391
        %v7488 = vunpack.c.l.b16 %v7392
        %v7489 = vpack.c.b16 %v7458, %v7457
        %v7490 = vpack.c.b16 %v7460, %v7459
        %v7491 = vpack.c.b16 %v7462, %v7461
        %v7492 = vpack.c.b16 %v7464, %v7463
        %v7493 = vpack.c.b16 %v7466, %v7465
        %v7494 = vpack.c.b16 %v7468, %v7467
        %v7495 = vpack.c.b16 %v7470, %v7469
        %v7496 = vpack.c.b16 %v7472, %v7471
        %v7497 = vpack.c.b16 %v7474, %v7473
        %v7498 = vpack.c.b16 %v7476, %v7475
        %v7499 = vpack.c.b16 %v7478, %v7477
        %v7500 = vpack.c.b16 %v7480, %v7479
        %v7501 = vpack.c.b16 %v7482, %v7481
        %v7502 = vpack.c.b16 %v7484, %v7483
        %v7503 = vpack.c.b16 %v7486, %v7485
        %v7504 = vpack.c.b16 %v7488, %v7487
        %v7507 = vunpack.c.l.b16 %v7358
        %v7508 = vunpack.c.l.b16 %v7359
        %v7509 = vpack.c.b16 %v7508, %v7507
        %v7511 = vsel %vm392, %v7489, 0
        %v7514 = vsel %vm392, %v7490, 0
        %v7517 = vsel %vm392, %v7491, 0
        %v7520 = vsel %vm392, %v7492, 0
        %v7523 = vsel %vm392, %v7493, 0
        %v7526 = vsel %vm392, %v7494, 0
        %v7529 = vsel %vm392, %v7495, 0
        %v7532 = vsel %vm392, %v7496, 0
        %v7535 = vsel %vm392, %v7497, 0
        %v7538 = vsel %vm392, %v7498, 0
        %v7541 = vsel %vm392, %v7499, 0
        %v7544 = vsel %vm392, %v7500, 0
        %v7547 = vsel %vm392, %v7501, 0
        %v7550 = vsel %vm392, %v7502, 0
        %v7553 = vsel %vm392, %v7503, 0
        %v7556 = vsel %vm392, %v7504, 0
        %v7559 = vsel %vm441, %v7509, 0
        %7561 = vmatpush.bf16.msra.mxu0 0
        %7562 = vmatpush.bf16.msra.mxu0 0
        %7563 = vmatpush.bf16.msra.mxu0 0
        %7564 = vmatpush.bf16.msra.mxu0 0
        %7565 = vmatpush.bf16.msra.mxu0 0
        %7566 = vmatpush.bf16.msra.mxu0 0
        %7567 = vmatpush.bf16.msra.mxu0 0
        %7568 = vmatpush.bf16.msra.mxu0 %v7559
        %7569 = vmatmul.bf16.gmra.mxu0 %v7511
        %v7570 = vpop.f32.mrf.mxu0
        %v7571 = vadd.f32 0.0, %v7570
        %v7572 = vpop.f32.mrf.mxu0
        %v7573 = vadd.f32 0.0, %v7572
        %7574 = vmatmul.bf16.gmra.mxu0 %v7514
        %v7575 = vpop.f32.mrf.mxu0
        %v7576 = vadd.f32 0.0, %v7575
        %v7577 = vpop.f32.mrf.mxu0
        %v7578 = vadd.f32 0.0, %v7577
        %7579 = vmatmul.bf16.gmra.mxu0 %v7517
        %v7580 = vpop.f32.mrf.mxu0
        %v7581 = vadd.f32 0.0, %v7580
        %v7582 = vpop.f32.mrf.mxu0
        %v7583 = vadd.f32 0.0, %v7582
        %7584 = vmatmul.bf16.gmra.mxu0 %v7520
        %v7585 = vpop.f32.mrf.mxu0
        %v7586 = vadd.f32 0.0, %v7585
        %v7587 = vpop.f32.mrf.mxu0
        %v7588 = vadd.f32 0.0, %v7587
        %7589 = vmatmul.bf16.gmra.mxu0 %v7523
        %v7590 = vpop.f32.mrf.mxu0
        %v7591 = vadd.f32 0.0, %v7590
        %v7592 = vpop.f32.mrf.mxu0
        %v7593 = vadd.f32 0.0, %v7592
        %7594 = vmatmul.bf16.gmra.mxu0 %v7526
        %v7595 = vpop.f32.mrf.mxu0
        %v7596 = vadd.f32 0.0, %v7595
        %v7597 = vpop.f32.mrf.mxu0
        %v7598 = vadd.f32 0.0, %v7597
        %7599 = vmatmul.bf16.gmra.mxu0 %v7529
        %v7600 = vpop.f32.mrf.mxu0
        %v7601 = vadd.f32 0.0, %v7600
        %v7602 = vpop.f32.mrf.mxu0
        %v7603 = vadd.f32 0.0, %v7602
        %7604 = vmatmul.bf16.gmra.mxu0 %v7532
        %v7605 = vpop.f32.mrf.mxu0
        %v7606 = vadd.f32 0.0, %v7605
        %v7607 = vpop.f32.mrf.mxu0
        %v7608 = vadd.f32 0.0, %v7607
        %7609 = vmatmul.bf16.gmra.mxu0 %v7535
        %v7610 = vpop.f32.mrf.mxu0
        %v7611 = vadd.f32 0.0, %v7610
        %v7612 = vpop.f32.mrf.mxu0
        %v7613 = vadd.f32 0.0, %v7612
        %7614 = vmatmul.bf16.gmra.mxu0 %v7538
        %v7615 = vpop.f32.mrf.mxu0
        %v7616 = vadd.f32 0.0, %v7615
        %v7617 = vpop.f32.mrf.mxu0
        %v7618 = vadd.f32 0.0, %v7617
        %7619 = vmatmul.bf16.gmra.mxu0 %v7541
        %v7620 = vpop.f32.mrf.mxu0
        %v7621 = vadd.f32 0.0, %v7620
        %v7622 = vpop.f32.mrf.mxu0
        %v7623 = vadd.f32 0.0, %v7622
        %7624 = vmatmul.bf16.gmra.mxu0 %v7544
        %v7625 = vpop.f32.mrf.mxu0
        %v7626 = vadd.f32 0.0, %v7625
        %v7627 = vpop.f32.mrf.mxu0
        %v7628 = vadd.f32 0.0, %v7627
        %7629 = vmatmul.bf16.gmra.mxu0 %v7547
        %v7630 = vpop.f32.mrf.mxu0
        %v7631 = vadd.f32 0.0, %v7630
        %v7632 = vpop.f32.mrf.mxu0
        %v7633 = vadd.f32 0.0, %v7632
        %7634 = vmatmul.bf16.gmra.mxu0 %v7550
        %v7635 = vpop.f32.mrf.mxu0
        %v7636 = vadd.f32 0.0, %v7635
        %v7637 = vpop.f32.mrf.mxu0
        %v7638 = vadd.f32 0.0, %v7637
        %7639 = vmatmul.bf16.gmra.mxu0 %v7553
        %v7640 = vpop.f32.mrf.mxu0
        %v7641 = vadd.f32 0.0, %v7640
        %v7642 = vpop.f32.mrf.mxu0
        %v7643 = vadd.f32 0.0, %v7642
        %7644 = vmatmul.bf16.gmra.mxu0 %v7556
        %v7645 = vpop.f32.mrf.mxu0
        %v7646 = vadd.f32 0.0, %v7645
        %v7647 = vpop.f32.mrf.mxu0
        %v7648 = vadd.f32 0.0, %v7647
        %7649 = vdwg.mxu0
        %v7650 = vadd.f32 %v7393, %v7571
        %v7651 = vadd.f32 %v7394, %v7573
        %v7652 = vadd.f32 %v7395, %v7576
        %v7653 = vadd.f32 %v7396, %v7578
        %v7654 = vadd.f32 %v7397, %v7581
        %v7655 = vadd.f32 %v7398, %v7583
        %v7656 = vadd.f32 %v7399, %v7586
        %v7657 = vadd.f32 %v7400, %v7588
        %v7658 = vadd.f32 %v7401, %v7591
        %v7659 = vadd.f32 %v7402, %v7593
        %v7660 = vadd.f32 %v7403, %v7596
        %v7661 = vadd.f32 %v7404, %v7598
        %v7662 = vadd.f32 %v7405, %v7601
        %v7663 = vadd.f32 %v7406, %v7603
        %v7664 = vadd.f32 %v7407, %v7606
        %v7665 = vadd.f32 %v7408, %v7608
        %v7666 = vadd.f32 %v7409, %v7611
        %v7667 = vadd.f32 %v7410, %v7613
        %v7668 = vadd.f32 %v7411, %v7616
        %v7669 = vadd.f32 %v7412, %v7618
        %v7670 = vadd.f32 %v7413, %v7621
        %v7671 = vadd.f32 %v7414, %v7623
        %v7672 = vadd.f32 %v7415, %v7626
        %v7673 = vadd.f32 %v7416, %v7628
        %v7674 = vadd.f32 %v7417, %v7631
        %v7675 = vadd.f32 %v7418, %v7633
        %v7676 = vadd.f32 %v7419, %v7636
        %v7677 = vadd.f32 %v7420, %v7638
        %v7678 = vadd.f32 %v7421, %v7641
        %v7679 = vadd.f32 %v7422, %v7643
        %v7680 = vadd.f32 %v7423, %v7646
        %v7681 = vadd.f32 %v7424, %v7648
        %7682 = vst.msk [vmem:[#allocation2] sm:$0xff] %vm208, %v7650
        %7683 = vst.msk [vmem:[#allocation2 + $0x8] sm:$0xff] %vm208, %v7651
        %7684 = vst.msk [vmem:[#allocation2 + $0x10] sm:$0xff] %vm208, %v7652
        %7685 = vst.msk [vmem:[#allocation2 + $0x18] sm:$0xff] %vm208, %v7653
        %7686 = vst.msk [vmem:[#allocation2 + $0x20] sm:$0xff] %vm208, %v7654
        %7687 = vst.msk [vmem:[#allocation2 + $0x28] sm:$0xff] %vm208, %v7655
        %7688 = vst.msk [vmem:[#allocation2 + $0x30] sm:$0xff] %vm208, %v7656
        %7689 = vst.msk [vmem:[#allocation2 + $0x38] sm:$0xff] %vm208, %v7657
        %7690 = vst.msk [vmem:[#allocation2 + $0x40] sm:$0xff] %vm208, %v7658
        %7691 = vst.msk [vmem:[#allocation2 + $0x48] sm:$0xff] %vm208, %v7659
        %7692 = vst.msk [vmem:[#allocation2 + $0x50] sm:$0xff] %vm208, %v7660
        %7693 = vst.msk [vmem:[#allocation2 + $0x58] sm:$0xff] %vm208, %v7661
        %7694 = vst.msk [vmem:[#allocation2 + $0x60] sm:$0xff] %vm208, %v7662
        %7695 = vst.msk [vmem:[#allocation2 + $0x68] sm:$0xff] %vm208, %v7663
        %7696 = vst.msk [vmem:[#allocation2 + $0x70] sm:$0xff] %vm208, %v7664
        %7697 = vst.msk [vmem:[#allocation2 + $0x78] sm:$0xff] %vm208, %v7665
        %7698 = vst.msk [vmem:[#allocation2 + $0x80] sm:$0xff] %vm208, %v7666
        %7699 = vst.msk [vmem:[#allocation2 + $0x88] sm:$0xff] %vm208, %v7667
        %7700 = vst.msk [vmem:[#allocation2 + $0x90] sm:$0xff] %vm208, %v7668
        %7701 = vst.msk [vmem:[#allocation2 + $0x98] sm:$0xff] %vm208, %v7669
        %7702 = vst.msk [vmem:[#allocation2 + $0xa0] sm:$0xff] %vm208, %v7670
        %7703 = vst.msk [vmem:[#allocation2 + $0xa8] sm:$0xff] %vm208, %v7671
        %7704 = vst.msk [vmem:[#allocation2 + $0xb0] sm:$0xff] %vm208, %v7672
        %7705 = vst.msk [vmem:[#allocation2 + $0xb8] sm:$0xff] %vm208, %v7673
        %7706 = vst.msk [vmem:[#allocation2 + $0xc0] sm:$0xff] %vm208, %v7674
        %7707 = vst.msk [vmem:[#allocation2 + $0xc8] sm:$0xff] %vm208, %v7675
        %7708 = vst.msk [vmem:[#allocation2 + $0xd0] sm:$0xff] %vm208, %v7676
        %7709 = vst.msk [vmem:[#allocation2 + $0xd8] sm:$0xff] %vm208, %v7677
        %7710 = vst.msk [vmem:[#allocation2 + $0xe0] sm:$0xff] %vm208, %v7678
        %7711 = vst.msk [vmem:[#allocation2 + $0xe8] sm:$0xff] %vm208, %v7679
        %7712 = vst.msk [vmem:[#allocation2 + $0xf0] sm:$0xff] %vm208, %v7680
        %7713 = vst.msk [vmem:[#allocation2 + $0xf8] sm:$0xff] %vm208, %v7681
        %s7714 = scalar_lea.vmem %s1, 104
        %v7715 = vld [vmem:[%s7714] sm:$0xf]
        %v7716 = vld [vmem:[%s7714 + $0x4] sm:$0x3]
        %v7717 = vld [vmem:[%s7360] sm:$0xf]
        %v7718 = vld [vmem:[%s7360 + $0x4] sm:$0xf]
        %v7719 = vld [vmem:[%s7360 + $0x8] sm:$0x1]
        %v7720 = vld [vmem:[%s7360 + $0xc] sm:$0xf]
        %v7721 = vld [vmem:[%s7360 + $0x10] sm:$0xf]
        %v7722 = vld [vmem:[%s7360 + $0x14] sm:$0x1]
        %v7723 = vld [vmem:[%s7360 + $0x18] sm:$0xf]
        %v7724 = vld [vmem:[%s7360 + $0x1c] sm:$0xf]
        %v7725 = vld [vmem:[%s7360 + $0x20] sm:$0x1]
        %v7726 = vld [vmem:[%s7360 + $0x24] sm:$0xf]
        %v7727 = vld [vmem:[%s7360 + $0x28] sm:$0xf]
        %v7728 = vld [vmem:[%s7360 + $0x2c] sm:$0x1]
        %v7729 = vld [vmem:[%s7360 + $0x30] sm:$0xf]
        %v7730 = vld [vmem:[%s7360 + $0x34] sm:$0xf]
        %v7731 = vld [vmem:[%s7360 + $0x38] sm:$0x1]
        %v7732 = vld [vmem:[%s7360 + $0x3c] sm:$0xf]
        %v7733 = vld [vmem:[%s7360 + $0x40] sm:$0xf]
        %v7734 = vld [vmem:[%s7360 + $0x44] sm:$0x1]
        %v7735 = vld [vmem:[%s7360 + $0x48] sm:$0xf]
        %v7736 = vld [vmem:[%s7360 + $0x4c] sm:$0xf]
        %v7737 = vld [vmem:[%s7360 + $0x50] sm:$0x1]
        %v7738 = vld [vmem:[%s7360 + $0x54] sm:$0xf]
        %v7739 = vld [vmem:[%s7360 + $0x58] sm:$0xf]
        %v7740 = vld [vmem:[%s7360 + $0x5c] sm:$0x1]
        %v7741 = vld [vmem:[%s7360 + $0x60] sm:$0xf]
        %v7742 = vld [vmem:[%s7360 + $0x64] sm:$0xf]
        %v7743 = vld [vmem:[%s7360 + $0x68] sm:$0x1]
        %v7744 = vld [vmem:[%s7360 + $0x6c] sm:$0xf]
        %v7745 = vld [vmem:[%s7360 + $0x70] sm:$0xf]
        %v7746 = vld [vmem:[%s7360 + $0x74] sm:$0x1]
        %v7747 = vld [vmem:[%s7360 + $0x78] sm:$0xf]
        %v7748 = vld [vmem:[%s7360 + $0x7c] sm:$0xf]
        %v7749 = vld [vmem:[%s7360 + $0x80] sm:$0x1]
        %v7750 = vld [vmem:[%s7360 + $0x84] sm:$0xf]
        %v7751 = vld [vmem:[%s7360 + $0x88] sm:$0xf]
        %v7752 = vld [vmem:[%s7360 + $0x8c] sm:$0x1]
        %v7753 = vld [vmem:[%s7360 + $0x90] sm:$0xf]
        %v7754 = vld [vmem:[%s7360 + $0x94] sm:$0xf]
        %v7755 = vld [vmem:[%s7360 + $0x98] sm:$0x1]
        %v7756 = vld [vmem:[%s7360 + $0x9c] sm:$0xf]
        %v7757 = vld [vmem:[%s7360 + $0xa0] sm:$0xf]
        %v7758 = vld [vmem:[%s7360 + $0xa4] sm:$0x1]
        %v7759 = vld [vmem:[%s7360 + $0xa8] sm:$0xf]
        %v7760 = vld [vmem:[%s7360 + $0xac] sm:$0xf]
        %v7761 = vld [vmem:[%s7360 + $0xb0] sm:$0x1]
        %v7762 = vld [vmem:[%s7360 + $0xb4] sm:$0xf]
        %v7763 = vld [vmem:[%s7360 + $0xb8] sm:$0xf]
        %v7764 = vld [vmem:[%s7360 + $0xbc] sm:$0x1]
        %v7766 = vshrl.u32 %v7717, 16
        %v7768 = vrot.slane %v7766, 4
        %v7769 = vshll.u32 %v7717, 16
        %v7771 = vrot.slane %v7769, 5
        %v7772 = vor.u32 %v7768, %v7771
        %v7773 = vrot.slane %v7772, 4
        %v7775 = vshll.u32 %v7718, 16
        %v7777 = vrot.slane %v7775, 5
        %v7778 = vsel %vm651, %v7773, %v7777
        %v7779 = vshrl.u32 %v7718, 16
        %v7781 = vrot.slane %v7779, 4
        %v7782 = vor.u32 %v7781, %v7777
        %v7783 = vrot.slane %v7782, 4
        %v7785 = vshll.u32 %v7719, 16
        %v7787 = vrot.slane %v7785, 5
        %v7788 = vsel %vm651, %v7783, %v7787
        %v7790 = vshrl.u32 %v7720, 16
        %v7792 = vrot.slane %v7790, 4
        %v7793 = vshll.u32 %v7720, 16
        %v7795 = vrot.slane %v7793, 5
        %v7796 = vor.u32 %v7792, %v7795
        %v7797 = vrot.slane %v7796, 4
        %v7799 = vshll.u32 %v7721, 16
        %v7801 = vrot.slane %v7799, 5
        %v7802 = vsel %vm651, %v7797, %v7801
        %v7803 = vshrl.u32 %v7721, 16
        %v7805 = vrot.slane %v7803, 4
        %v7806 = vor.u32 %v7805, %v7801
        %v7807 = vrot.slane %v7806, 4
        %v7809 = vshll.u32 %v7722, 16
        %v7811 = vrot.slane %v7809, 5
        %v7812 = vsel %vm651, %v7807, %v7811
        %v7814 = vshrl.u32 %v7723, 16
        %v7816 = vrot.slane %v7814, 4
        %v7817 = vshll.u32 %v7723, 16
        %v7819 = vrot.slane %v7817, 5
        %v7820 = vor.u32 %v7816, %v7819
        %v7821 = vrot.slane %v7820, 4
        %v7823 = vshll.u32 %v7724, 16
        %v7825 = vrot.slane %v7823, 5
        %v7826 = vsel %vm651, %v7821, %v7825
        %v7827 = vshrl.u32 %v7724, 16
        %v7829 = vrot.slane %v7827, 4
        %v7830 = vor.u32 %v7829, %v7825
        %v7831 = vrot.slane %v7830, 4
        %v7833 = vshll.u32 %v7725, 16
        %v7835 = vrot.slane %v7833, 5
        %v7836 = vsel %vm651, %v7831, %v7835
        %v7838 = vshrl.u32 %v7726, 16
        %v7840 = vrot.slane %v7838, 4
        %v7841 = vshll.u32 %v7726, 16
        %v7843 = vrot.slane %v7841, 5
        %v7844 = vor.u32 %v7840, %v7843
        %v7845 = vrot.slane %v7844, 4
        %v7847 = vshll.u32 %v7727, 16
        %v7849 = vrot.slane %v7847, 5
        %v7850 = vsel %vm651, %v7845, %v7849
        %v7851 = vshrl.u32 %v7727, 16
        %v7853 = vrot.slane %v7851, 4
        %v7854 = vor.u32 %v7853, %v7849
        %v7855 = vrot.slane %v7854, 4
        %v7857 = vshll.u32 %v7728, 16
        %v7859 = vrot.slane %v7857, 5
        %v7860 = vsel %vm651, %v7855, %v7859
        %v7862 = vshrl.u32 %v7729, 16
        %v7864 = vrot.slane %v7862, 4
        %v7865 = vshll.u32 %v7729, 16
        %v7867 = vrot.slane %v7865, 5
        %v7868 = vor.u32 %v7864, %v7867
        %v7869 = vrot.slane %v7868, 4
        %v7871 = vshll.u32 %v7730, 16
        %v7873 = vrot.slane %v7871, 5
        %v7874 = vsel %vm651, %v7869, %v7873
        %v7875 = vshrl.u32 %v7730, 16
        %v7877 = vrot.slane %v7875, 4
        %v7878 = vor.u32 %v7877, %v7873
        %v7879 = vrot.slane %v7878, 4
        %v7881 = vshll.u32 %v7731, 16
        %v7883 = vrot.slane %v7881, 5
        %v7884 = vsel %vm651, %v7879, %v7883
        %v7886 = vshrl.u32 %v7732, 16
        %v7888 = vrot.slane %v7886, 4
        %v7889 = vshll.u32 %v7732, 16
        %v7891 = vrot.slane %v7889, 5
        %v7892 = vor.u32 %v7888, %v7891
        %v7893 = vrot.slane %v7892, 4
        %v7895 = vshll.u32 %v7733, 16
        %v7897 = vrot.slane %v7895, 5
        %v7898 = vsel %vm651, %v7893, %v7897
        %v7899 = vshrl.u32 %v7733, 16
        %v7901 = vrot.slane %v7899, 4
        %v7902 = vor.u32 %v7901, %v7897
        %v7903 = vrot.slane %v7902, 4
        %v7905 = vshll.u32 %v7734, 16
        %v7907 = vrot.slane %v7905, 5
        %v7908 = vsel %vm651, %v7903, %v7907
        %v7910 = vshrl.u32 %v7735, 16
        %v7912 = vrot.slane %v7910, 4
        %v7913 = vshll.u32 %v7735, 16
        %v7915 = vrot.slane %v7913, 5
        %v7916 = vor.u32 %v7912, %v7915
        %v7917 = vrot.slane %v7916, 4
        %v7919 = vshll.u32 %v7736, 16
        %v7921 = vrot.slane %v7919, 5
        %v7922 = vsel %vm651, %v7917, %v7921
        %v7923 = vshrl.u32 %v7736, 16
        %v7925 = vrot.slane %v7923, 4
        %v7926 = vor.u32 %v7925, %v7921
        %v7927 = vrot.slane %v7926, 4
        %v7929 = vshll.u32 %v7737, 16
        %v7931 = vrot.slane %v7929, 5
        %v7932 = vsel %vm651, %v7927, %v7931
        %v7934 = vshrl.u32 %v7738, 16
        %v7936 = vrot.slane %v7934, 4
        %v7937 = vshll.u32 %v7738, 16
        %v7939 = vrot.slane %v7937, 5
        %v7940 = vor.u32 %v7936, %v7939
        %v7941 = vrot.slane %v7940, 4
        %v7943 = vshll.u32 %v7739, 16
        %v7945 = vrot.slane %v7943, 5
        %v7946 = vsel %vm651, %v7941, %v7945
        %v7947 = vshrl.u32 %v7739, 16
        %v7949 = vrot.slane %v7947, 4
        %v7950 = vor.u32 %v7949, %v7945
        %v7951 = vrot.slane %v7950, 4
        %v7953 = vshll.u32 %v7740, 16
        %v7955 = vrot.slane %v7953, 5
        %v7956 = vsel %vm651, %v7951, %v7955
        %v7958 = vshrl.u32 %v7741, 16
        %v7960 = vrot.slane %v7958, 4
        %v7961 = vshll.u32 %v7741, 16
        %v7963 = vrot.slane %v7961, 5
        %v7964 = vor.u32 %v7960, %v7963
        %v7965 = vrot.slane %v7964, 4
        %v7967 = vshll.u32 %v7742, 16
        %v7969 = vrot.slane %v7967, 5
        %v7970 = vsel %vm651, %v7965, %v7969
        %v7971 = vshrl.u32 %v7742, 16
        %v7973 = vrot.slane %v7971, 4
        %v7974 = vor.u32 %v7973, %v7969
        %v7975 = vrot.slane %v7974, 4
        %v7977 = vshll.u32 %v7743, 16
        %v7979 = vrot.slane %v7977, 5
        %v7980 = vsel %vm651, %v7975, %v7979
        %v7982 = vshrl.u32 %v7744, 16
        %v7984 = vrot.slane %v7982, 4
        %v7985 = vshll.u32 %v7744, 16
        %v7987 = vrot.slane %v7985, 5
        %v7988 = vor.u32 %v7984, %v7987
        %v7989 = vrot.slane %v7988, 4
        %v7991 = vshll.u32 %v7745, 16
        %v7993 = vrot.slane %v7991, 5
        %v7994 = vsel %vm651, %v7989, %v7993
        %v7995 = vshrl.u32 %v7745, 16
        %v7997 = vrot.slane %v7995, 4
        %v7998 = vor.u32 %v7997, %v7993
        %v7999 = vrot.slane %v7998, 4
        %v8001 = vshll.u32 %v7746, 16
        %v8003 = vrot.slane %v8001, 5
        %v8004 = vsel %vm651, %v7999, %v8003
        %v8006 = vshrl.u32 %v7747, 16
        %v8008 = vrot.slane %v8006, 4
        %v8009 = vshll.u32 %v7747, 16
        %v8011 = vrot.slane %v8009, 5
        %v8012 = vor.u32 %v8008, %v8011
        %v8013 = vrot.slane %v8012, 4
        %v8015 = vshll.u32 %v7748, 16
        %v8017 = vrot.slane %v8015, 5
        %v8018 = vsel %vm651, %v8013, %v8017
        %v8019 = vshrl.u32 %v7748, 16
        %v8021 = vrot.slane %v8019, 4
        %v8022 = vor.u32 %v8021, %v8017
        %v8023 = vrot.slane %v8022, 4
        %v8025 = vshll.u32 %v7749, 16
        %v8027 = vrot.slane %v8025, 5
        %v8028 = vsel %vm651, %v8023, %v8027
        %v8030 = vshrl.u32 %v7750, 16
        %v8032 = vrot.slane %v8030, 4
        %v8033 = vshll.u32 %v7750, 16
        %v8035 = vrot.slane %v8033, 5
        %v8036 = vor.u32 %v8032, %v8035
        %v8037 = vrot.slane %v8036, 4
        %v8039 = vshll.u32 %v7751, 16
        %v8041 = vrot.slane %v8039, 5
        %v8042 = vsel %vm651, %v8037, %v8041
        %v8043 = vshrl.u32 %v7751, 16
        %v8045 = vrot.slane %v8043, 4
        %v8046 = vor.u32 %v8045, %v8041
        %v8047 = vrot.slane %v8046, 4
        %v8049 = vshll.u32 %v7752, 16
        %v8051 = vrot.slane %v8049, 5
        %v8052 = vsel %vm651, %v8047, %v8051
        %v8054 = vshrl.u32 %v7753, 16
        %v8056 = vrot.slane %v8054, 4
        %v8057 = vshll.u32 %v7753, 16
        %v8059 = vrot.slane %v8057, 5
        %v8060 = vor.u32 %v8056, %v8059
        %v8061 = vrot.slane %v8060, 4
        %v8063 = vshll.u32 %v7754, 16
        %v8065 = vrot.slane %v8063, 5
        %v8066 = vsel %vm651, %v8061, %v8065
        %v8067 = vshrl.u32 %v7754, 16
        %v8069 = vrot.slane %v8067, 4
        %v8070 = vor.u32 %v8069, %v8065
        %v8071 = vrot.slane %v8070, 4
        %v8073 = vshll.u32 %v7755, 16
        %v8075 = vrot.slane %v8073, 5
        %v8076 = vsel %vm651, %v8071, %v8075
        %v8078 = vshrl.u32 %v7756, 16
        %v8080 = vrot.slane %v8078, 4
        %v8081 = vshll.u32 %v7756, 16
        %v8083 = vrot.slane %v8081, 5
        %v8084 = vor.u32 %v8080, %v8083
        %v8085 = vrot.slane %v8084, 4
        %v8087 = vshll.u32 %v7757, 16
        %v8089 = vrot.slane %v8087, 5
        %v8090 = vsel %vm651, %v8085, %v8089
        %v8091 = vshrl.u32 %v7757, 16
        %v8093 = vrot.slane %v8091, 4
        %v8094 = vor.u32 %v8093, %v8089
        %v8095 = vrot.slane %v8094, 4
        %v8097 = vshll.u32 %v7758, 16
        %v8099 = vrot.slane %v8097, 5
        %v8100 = vsel %vm651, %v8095, %v8099
        %v8102 = vshrl.u32 %v7759, 16
        %v8104 = vrot.slane %v8102, 4
        %v8105 = vshll.u32 %v7759, 16
        %v8107 = vrot.slane %v8105, 5
        %v8108 = vor.u32 %v8104, %v8107
        %v8109 = vrot.slane %v8108, 4
        %v8111 = vshll.u32 %v7760, 16
        %v8113 = vrot.slane %v8111, 5
        %v8114 = vsel %vm651, %v8109, %v8113
        %v8115 = vshrl.u32 %v7760, 16
        %v8117 = vrot.slane %v8115, 4
        %v8118 = vor.u32 %v8117, %v8113
        %v8119 = vrot.slane %v8118, 4
        %v8121 = vshll.u32 %v7761, 16
        %v8123 = vrot.slane %v8121, 5
        %v8124 = vsel %vm651, %v8119, %v8123
        %v8126 = vshrl.u32 %v7762, 16
        %v8128 = vrot.slane %v8126, 4
        %v8129 = vshll.u32 %v7762, 16
        %v8131 = vrot.slane %v8129, 5
        %v8132 = vor.u32 %v8128, %v8131
        %v8133 = vrot.slane %v8132, 4
        %v8135 = vshll.u32 %v7763, 16
        %v8137 = vrot.slane %v8135, 5
        %v8138 = vsel %vm651, %v8133, %v8137
        %v8139 = vshrl.u32 %v7763, 16
        %v8141 = vrot.slane %v8139, 4
        %v8142 = vor.u32 %v8141, %v8137
        %v8143 = vrot.slane %v8142, 4
        %v8145 = vshll.u32 %v7764, 16
        %v8147 = vrot.slane %v8145, 5
        %v8148 = vsel %vm651, %v8143, %v8147
        %v8149 = vld [vmem:[#allocation2] sm:$0xff]
        %v8150 = vld [vmem:[#allocation2 + $0x8] sm:$0xff]
        %v8151 = vld [vmem:[#allocation2 + $0x10] sm:$0xff]
        %v8152 = vld [vmem:[#allocation2 + $0x18] sm:$0xff]
        %v8153 = vld [vmem:[#allocation2 + $0x20] sm:$0xff]
        %v8154 = vld [vmem:[#allocation2 + $0x28] sm:$0xff]
        %v8155 = vld [vmem:[#allocation2 + $0x30] sm:$0xff]
        %v8156 = vld [vmem:[#allocation2 + $0x38] sm:$0xff]
        %v8157 = vld [vmem:[#allocation2 + $0x40] sm:$0xff]
        %v8158 = vld [vmem:[#allocation2 + $0x48] sm:$0xff]
        %v8159 = vld [vmem:[#allocation2 + $0x50] sm:$0xff]
        %v8160 = vld [vmem:[#allocation2 + $0x58] sm:$0xff]
        %v8161 = vld [vmem:[#allocation2 + $0x60] sm:$0xff]
        %v8162 = vld [vmem:[#allocation2 + $0x68] sm:$0xff]
        %v8163 = vld [vmem:[#allocation2 + $0x70] sm:$0xff]
        %v8164 = vld [vmem:[#allocation2 + $0x78] sm:$0xff]
        %v8165 = vld [vmem:[#allocation2 + $0x80] sm:$0xff]
        %v8166 = vld [vmem:[#allocation2 + $0x88] sm:$0xff]
        %v8167 = vld [vmem:[#allocation2 + $0x90] sm:$0xff]
        %v8168 = vld [vmem:[#allocation2 + $0x98] sm:$0xff]
        %v8169 = vld [vmem:[#allocation2 + $0xa0] sm:$0xff]
        %v8170 = vld [vmem:[#allocation2 + $0xa8] sm:$0xff]
        %v8171 = vld [vmem:[#allocation2 + $0xb0] sm:$0xff]
        %v8172 = vld [vmem:[#allocation2 + $0xb8] sm:$0xff]
        %v8173 = vld [vmem:[#allocation2 + $0xc0] sm:$0xff]
        %v8174 = vld [vmem:[#allocation2 + $0xc8] sm:$0xff]
        %v8175 = vld [vmem:[#allocation2 + $0xd0] sm:$0xff]
        %v8176 = vld [vmem:[#allocation2 + $0xd8] sm:$0xff]
        %v8177 = vld [vmem:[#allocation2 + $0xe0] sm:$0xff]
        %v8178 = vld [vmem:[#allocation2 + $0xe8] sm:$0xff]
        %v8179 = vld [vmem:[#allocation2 + $0xf0] sm:$0xff]
        %v8180 = vld [vmem:[#allocation2 + $0xf8] sm:$0xff]
        %v8181 = vunpack.c.l.b16 %v7778
        %v8182 = vunpack.c.l.b16 %v7788
        %v8183 = vunpack.c.l.b16 %v7802
        %v8184 = vunpack.c.l.b16 %v7812
        %v8185 = vunpack.c.l.b16 %v7826
        %v8186 = vunpack.c.l.b16 %v7836
        %v8187 = vunpack.c.l.b16 %v7850
        %v8188 = vunpack.c.l.b16 %v7860
        %v8189 = vunpack.c.l.b16 %v7874
        %v8190 = vunpack.c.l.b16 %v7884
        %v8191 = vunpack.c.l.b16 %v7898
        %v8192 = vunpack.c.l.b16 %v7908
        %v8193 = vunpack.c.l.b16 %v7922
        %v8194 = vunpack.c.l.b16 %v7932
        %v8195 = vunpack.c.l.b16 %v7946
        %v8196 = vunpack.c.l.b16 %v7956
        %v8197 = vunpack.c.l.b16 %v7970
        %v8198 = vunpack.c.l.b16 %v7980
        %v8199 = vunpack.c.l.b16 %v7994
        %v8200 = vunpack.c.l.b16 %v8004
        %v8201 = vunpack.c.l.b16 %v8018
        %v8202 = vunpack.c.l.b16 %v8028
        %v8203 = vunpack.c.l.b16 %v8042
        %v8204 = vunpack.c.l.b16 %v8052
        %v8205 = vunpack.c.l.b16 %v8066
        %v8206 = vunpack.c.l.b16 %v8076
        %v8207 = vunpack.c.l.b16 %v8090
        %v8208 = vunpack.c.l.b16 %v8100
        %v8209 = vunpack.c.l.b16 %v8114
        %v8210 = vunpack.c.l.b16 %v8124
        %v8211 = vunpack.c.l.b16 %v8138
        %v8212 = vunpack.c.l.b16 %v8148
        %v8213 = vpack.c.b16 %v8182, %v8181
        %v8214 = vpack.c.b16 %v8184, %v8183
        %v8215 = vpack.c.b16 %v8186, %v8185
        %v8216 = vpack.c.b16 %v8188, %v8187
        %v8217 = vpack.c.b16 %v8190, %v8189
        %v8218 = vpack.c.b16 %v8192, %v8191
        %v8219 = vpack.c.b16 %v8194, %v8193
        %v8220 = vpack.c.b16 %v8196, %v8195
        %v8221 = vpack.c.b16 %v8198, %v8197
        %v8222 = vpack.c.b16 %v8200, %v8199
        %v8223 = vpack.c.b16 %v8202, %v8201
        %v8224 = vpack.c.b16 %v8204, %v8203
        %v8225 = vpack.c.b16 %v8206, %v8205
        %v8226 = vpack.c.b16 %v8208, %v8207
        %v8227 = vpack.c.b16 %v8210, %v8209
        %v8228 = vpack.c.b16 %v8212, %v8211
        %v8231 = vunpack.c.l.b16 %v7715
        %v8232 = vunpack.c.l.b16 %v7716
        %v8233 = vpack.c.b16 %v8232, %v8231
        %v8235 = vsel %vm392, %v8213, 0
        %v8238 = vsel %vm392, %v8214, 0
        %v8241 = vsel %vm392, %v8215, 0
        %v8244 = vsel %vm392, %v8216, 0
        %v8247 = vsel %vm392, %v8217, 0
        %v8250 = vsel %vm392, %v8218, 0
        %v8253 = vsel %vm392, %v8219, 0
        %v8256 = vsel %vm392, %v8220, 0
        %v8259 = vsel %vm392, %v8221, 0
        %v8262 = vsel %vm392, %v8222, 0
        %v8265 = vsel %vm392, %v8223, 0
        %v8268 = vsel %vm392, %v8224, 0
        %v8271 = vsel %vm392, %v8225, 0
        %v8274 = vsel %vm392, %v8226, 0
        %v8277 = vsel %vm392, %v8227, 0
        %v8280 = vsel %vm392, %v8228, 0
        %v8283 = vsel %vm441, %v8233, 0
        %8285 = vmatpush.bf16.msra.mxu0 0
        %8286 = vmatpush.bf16.msra.mxu0 0
        %8287 = vmatpush.bf16.msra.mxu0 0
        %8288 = vmatpush.bf16.msra.mxu0 0
        %8289 = vmatpush.bf16.msra.mxu0 0
        %8290 = vmatpush.bf16.msra.mxu0 0
        %8291 = vmatpush.bf16.msra.mxu0 0
        %8292 = vmatpush.bf16.msra.mxu0 %v8283
        %8293 = vmatmul.bf16.gmra.mxu0 %v8235
        %v8294 = vpop.f32.mrf.mxu0
        %v8295 = vadd.f32 0.0, %v8294
        %v8296 = vpop.f32.mrf.mxu0
        %v8297 = vadd.f32 0.0, %v8296
        %8298 = vmatmul.bf16.gmra.mxu0 %v8238
        %v8299 = vpop.f32.mrf.mxu0
        %v8300 = vadd.f32 0.0, %v8299
        %v8301 = vpop.f32.mrf.mxu0
        %v8302 = vadd.f32 0.0, %v8301
        %8303 = vmatmul.bf16.gmra.mxu0 %v8241
        %v8304 = vpop.f32.mrf.mxu0
        %v8305 = vadd.f32 0.0, %v8304
        %v8306 = vpop.f32.mrf.mxu0
        %v8307 = vadd.f32 0.0, %v8306
        %8308 = vmatmul.bf16.gmra.mxu0 %v8244
        %v8309 = vpop.f32.mrf.mxu0
        %v8310 = vadd.f32 0.0, %v8309
        %v8311 = vpop.f32.mrf.mxu0
        %v8312 = vadd.f32 0.0, %v8311
        %8313 = vmatmul.bf16.gmra.mxu0 %v8247
        %v8314 = vpop.f32.mrf.mxu0
        %v8315 = vadd.f32 0.0, %v8314
        %v8316 = vpop.f32.mrf.mxu0
        %v8317 = vadd.f32 0.0, %v8316
        %8318 = vmatmul.bf16.gmra.mxu0 %v8250
        %v8319 = vpop.f32.mrf.mxu0
        %v8320 = vadd.f32 0.0, %v8319
        %v8321 = vpop.f32.mrf.mxu0
        %v8322 = vadd.f32 0.0, %v8321
        %8323 = vmatmul.bf16.gmra.mxu0 %v8253
        %v8324 = vpop.f32.mrf.mxu0
        %v8325 = vadd.f32 0.0, %v8324
        %v8326 = vpop.f32.mrf.mxu0
        %v8327 = vadd.f32 0.0, %v8326
        %8328 = vmatmul.bf16.gmra.mxu0 %v8256
        %v8329 = vpop.f32.mrf.mxu0
        %v8330 = vadd.f32 0.0, %v8329
        %v8331 = vpop.f32.mrf.mxu0
        %v8332 = vadd.f32 0.0, %v8331
        %8333 = vmatmul.bf16.gmra.mxu0 %v8259
        %v8334 = vpop.f32.mrf.mxu0
        %v8335 = vadd.f32 0.0, %v8334
        %v8336 = vpop.f32.mrf.mxu0
        %v8337 = vadd.f32 0.0, %v8336
        %8338 = vmatmul.bf16.gmra.mxu0 %v8262
        %v8339 = vpop.f32.mrf.mxu0
        %v8340 = vadd.f32 0.0, %v8339
        %v8341 = vpop.f32.mrf.mxu0
        %v8342 = vadd.f32 0.0, %v8341
        %8343 = vmatmul.bf16.gmra.mxu0 %v8265
        %v8344 = vpop.f32.mrf.mxu0
        %v8345 = vadd.f32 0.0, %v8344
        %v8346 = vpop.f32.mrf.mxu0
        %v8347 = vadd.f32 0.0, %v8346
        %8348 = vmatmul.bf16.gmra.mxu0 %v8268
        %v8349 = vpop.f32.mrf.mxu0
        %v8350 = vadd.f32 0.0, %v8349
        %v8351 = vpop.f32.mrf.mxu0
        %v8352 = vadd.f32 0.0, %v8351
        %8353 = vmatmul.bf16.gmra.mxu0 %v8271
        %v8354 = vpop.f32.mrf.mxu0
        %v8355 = vadd.f32 0.0, %v8354
        %v8356 = vpop.f32.mrf.mxu0
        %v8357 = vadd.f32 0.0, %v8356
        %8358 = vmatmul.bf16.gmra.mxu0 %v8274
        %v8359 = vpop.f32.mrf.mxu0
        %v8360 = vadd.f32 0.0, %v8359
        %v8361 = vpop.f32.mrf.mxu0
        %v8362 = vadd.f32 0.0, %v8361
        %8363 = vmatmul.bf16.gmra.mxu0 %v8277
        %v8364 = vpop.f32.mrf.mxu0
        %v8365 = vadd.f32 0.0, %v8364
        %v8366 = vpop.f32.mrf.mxu0
        %v8367 = vadd.f32 0.0, %v8366
        %8368 = vmatmul.bf16.gmra.mxu0 %v8280
        %v8369 = vpop.f32.mrf.mxu0
        %v8370 = vadd.f32 0.0, %v8369
        %v8371 = vpop.f32.mrf.mxu0
        %v8372 = vadd.f32 0.0, %v8371
        %8373 = vdwg.mxu0
        %v8374 = vadd.f32 %v8149, %v8295
        %v8375 = vadd.f32 %v8150, %v8297
        %v8376 = vadd.f32 %v8151, %v8300
        %v8377 = vadd.f32 %v8152, %v8302
        %v8378 = vadd.f32 %v8153, %v8305
        %v8379 = vadd.f32 %v8154, %v8307
        %v8380 = vadd.f32 %v8155, %v8310
        %v8381 = vadd.f32 %v8156, %v8312
        %v8382 = vadd.f32 %v8157, %v8315
        %v8383 = vadd.f32 %v8158, %v8317
        %v8384 = vadd.f32 %v8159, %v8320
        %v8385 = vadd.f32 %v8160, %v8322
        %v8386 = vadd.f32 %v8161, %v8325
        %v8387 = vadd.f32 %v8162, %v8327
        %v8388 = vadd.f32 %v8163, %v8330
        %v8389 = vadd.f32 %v8164, %v8332
        %v8390 = vadd.f32 %v8165, %v8335
        %v8391 = vadd.f32 %v8166, %v8337
        %v8392 = vadd.f32 %v8167, %v8340
        %v8393 = vadd.f32 %v8168, %v8342
        %v8394 = vadd.f32 %v8169, %v8345
        %v8395 = vadd.f32 %v8170, %v8347
        %v8396 = vadd.f32 %v8171, %v8350
        %v8397 = vadd.f32 %v8172, %v8352
        %v8398 = vadd.f32 %v8173, %v8355
        %v8399 = vadd.f32 %v8174, %v8357
        %v8400 = vadd.f32 %v8175, %v8360
        %v8401 = vadd.f32 %v8176, %v8362
        %v8402 = vadd.f32 %v8177, %v8365
        %v8403 = vadd.f32 %v8178, %v8367
        %v8404 = vadd.f32 %v8179, %v8370
        %v8405 = vadd.f32 %v8180, %v8372
        %8406 = vst.msk [vmem:[#allocation2] sm:$0xff] %vm208, %v8374
        %8407 = vst.msk [vmem:[#allocation2 + $0x8] sm:$0xff] %vm208, %v8375
        %8408 = vst.msk [vmem:[#allocation2 + $0x10] sm:$0xff] %vm208, %v8376
        %8409 = vst.msk [vmem:[#allocation2 + $0x18] sm:$0xff] %vm208, %v8377
        %8410 = vst.msk [vmem:[#allocation2 + $0x20] sm:$0xff] %vm208, %v8378
        %8411 = vst.msk [vmem:[#allocation2 + $0x28] sm:$0xff] %vm208, %v8379
        %8412 = vst.msk [vmem:[#allocation2 + $0x30] sm:$0xff] %vm208, %v8380
        %8413 = vst.msk [vmem:[#allocation2 + $0x38] sm:$0xff] %vm208, %v8381
        %8414 = vst.msk [vmem:[#allocation2 + $0x40] sm:$0xff] %vm208, %v8382
        %8415 = vst.msk [vmem:[#allocation2 + $0x48] sm:$0xff] %vm208, %v8383
        %8416 = vst.msk [vmem:[#allocation2 + $0x50] sm:$0xff] %vm208, %v8384
        %8417 = vst.msk [vmem:[#allocation2 + $0x58] sm:$0xff] %vm208, %v8385
        %8418 = vst.msk [vmem:[#allocation2 + $0x60] sm:$0xff] %vm208, %v8386
        %8419 = vst.msk [vmem:[#allocation2 + $0x68] sm:$0xff] %vm208, %v8387
        %8420 = vst.msk [vmem:[#allocation2 + $0x70] sm:$0xff] %vm208, %v8388
        %8421 = vst.msk [vmem:[#allocation2 + $0x78] sm:$0xff] %vm208, %v8389
        %8422 = vst.msk [vmem:[#allocation2 + $0x80] sm:$0xff] %vm208, %v8390
        %8423 = vst.msk [vmem:[#allocation2 + $0x88] sm:$0xff] %vm208, %v8391
        %8424 = vst.msk [vmem:[#allocation2 + $0x90] sm:$0xff] %vm208, %v8392
        %8425 = vst.msk [vmem:[#allocation2 + $0x98] sm:$0xff] %vm208, %v8393
        %8426 = vst.msk [vmem:[#allocation2 + $0xa0] sm:$0xff] %vm208, %v8394
        %8427 = vst.msk [vmem:[#allocation2 + $0xa8] sm:$0xff] %vm208, %v8395
        %8428 = vst.msk [vmem:[#allocation2 + $0xb0] sm:$0xff] %vm208, %v8396
        %8429 = vst.msk [vmem:[#allocation2 + $0xb8] sm:$0xff] %vm208, %v8397
        %8430 = vst.msk [vmem:[#allocation2 + $0xc0] sm:$0xff] %vm208, %v8398
        %8431 = vst.msk [vmem:[#allocation2 + $0xc8] sm:$0xff] %vm208, %v8399
        %8432 = vst.msk [vmem:[#allocation2 + $0xd0] sm:$0xff] %vm208, %v8400
        %8433 = vst.msk [vmem:[#allocation2 + $0xd8] sm:$0xff] %vm208, %v8401
        %8434 = vst.msk [vmem:[#allocation2 + $0xe0] sm:$0xff] %vm208, %v8402
        %8435 = vst.msk [vmem:[#allocation2 + $0xe8] sm:$0xff] %vm208, %v8403
        %8436 = vst.msk [vmem:[#allocation2 + $0xf0] sm:$0xff] %vm208, %v8404
        %8437 = vst.msk [vmem:[#allocation2 + $0xf8] sm:$0xff] %vm208, %v8405
        %s8438 = scalar_lea.vmem %s1, 112
        %v8439 = vld [vmem:[%s8438] sm:$0xf]
        %v8440 = vld [vmem:[%s8438 + $0x4] sm:$0x3]
        %v8441 = vld [vmem:[%s7360] sm:$0xe]
        %v8442 = vld [vmem:[%s7360 + $0x4] sm:$0xf]
        %v8443 = vld [vmem:[%s7360 + $0x8] sm:$0x1]
        %v8444 = vld [vmem:[%s7360 + $0xc] sm:$0xe]
        %v8445 = vld [vmem:[%s7360 + $0x10] sm:$0xf]
        %v8446 = vld [vmem:[%s7360 + $0x14] sm:$0x1]
        %v8447 = vld [vmem:[%s7360 + $0x18] sm:$0xe]
        %v8448 = vld [vmem:[%s7360 + $0x1c] sm:$0xf]
        %v8449 = vld [vmem:[%s7360 + $0x20] sm:$0x1]
        %v8450 = vld [vmem:[%s7360 + $0x24] sm:$0xe]
        %v8451 = vld [vmem:[%s7360 + $0x28] sm:$0xf]
        %v8452 = vld [vmem:[%s7360 + $0x2c] sm:$0x1]
        %v8453 = vld [vmem:[%s7360 + $0x30] sm:$0xe]
        %v8454 = vld [vmem:[%s7360 + $0x34] sm:$0xf]
        %v8455 = vld [vmem:[%s7360 + $0x38] sm:$0x1]
        %v8456 = vld [vmem:[%s7360 + $0x3c] sm:$0xe]
        %v8457 = vld [vmem:[%s7360 + $0x40] sm:$0xf]
        %v8458 = vld [vmem:[%s7360 + $0x44] sm:$0x1]
        %v8459 = vld [vmem:[%s7360 + $0x48] sm:$0xe]
        %v8460 = vld [vmem:[%s7360 + $0x4c] sm:$0xf]
        %v8461 = vld [vmem:[%s7360 + $0x50] sm:$0x1]
        %v8462 = vld [vmem:[%s7360 + $0x54] sm:$0xe]
        %v8463 = vld [vmem:[%s7360 + $0x58] sm:$0xf]
        %v8464 = vld [vmem:[%s7360 + $0x5c] sm:$0x1]
        %v8465 = vld [vmem:[%s7360 + $0x60] sm:$0xe]
        %v8466 = vld [vmem:[%s7360 + $0x64] sm:$0xf]
        %v8467 = vld [vmem:[%s7360 + $0x68] sm:$0x1]
        %v8468 = vld [vmem:[%s7360 + $0x6c] sm:$0xe]
        %v8469 = vld [vmem:[%s7360 + $0x70] sm:$0xf]
        %v8470 = vld [vmem:[%s7360 + $0x74] sm:$0x1]
        %v8471 = vld [vmem:[%s7360 + $0x78] sm:$0xe]
        %v8472 = vld [vmem:[%s7360 + $0x7c] sm:$0xf]
        %v8473 = vld [vmem:[%s7360 + $0x80] sm:$0x1]
        %v8474 = vld [vmem:[%s7360 + $0x84] sm:$0xe]
        %v8475 = vld [vmem:[%s7360 + $0x88] sm:$0xf]
        %v8476 = vld [vmem:[%s7360 + $0x8c] sm:$0x1]
        %v8477 = vld [vmem:[%s7360 + $0x90] sm:$0xe]
        %v8478 = vld [vmem:[%s7360 + $0x94] sm:$0xf]
        %v8479 = vld [vmem:[%s7360 + $0x98] sm:$0x1]
        %v8480 = vld [vmem:[%s7360 + $0x9c] sm:$0xe]
        %v8481 = vld [vmem:[%s7360 + $0xa0] sm:$0xf]
        %v8482 = vld [vmem:[%s7360 + $0xa4] sm:$0x1]
        %v8483 = vld [vmem:[%s7360 + $0xa8] sm:$0xe]
        %v8484 = vld [vmem:[%s7360 + $0xac] sm:$0xf]
        %v8485 = vld [vmem:[%s7360 + $0xb0] sm:$0x1]
        %v8486 = vld [vmem:[%s7360 + $0xb4] sm:$0xe]
        %v8487 = vld [vmem:[%s7360 + $0xb8] sm:$0xf]
        %v8488 = vld [vmem:[%s7360 + $0xbc] sm:$0x1]
        %v8537 = vrot.slane %v8441, 5
        %v8538 = vrot.slane %v8537, 4
        %v8539 = vrot.slane %v8442, 5
        %v8540 = vsel %vm1426, %v8538, %v8539
        %v8541 = vrot.slane %v8539, 4
        %v8542 = vrot.slane %v8443, 5
        %v8543 = vsel %vm1426, %v8541, %v8542
        %v8544 = vrot.slane %v8444, 5
        %v8545 = vrot.slane %v8544, 4
        %v8546 = vrot.slane %v8445, 5
        %v8547 = vsel %vm1426, %v8545, %v8546
        %v8548 = vrot.slane %v8546, 4
        %v8549 = vrot.slane %v8446, 5
        %v8550 = vsel %vm1426, %v8548, %v8549
        %v8551 = vrot.slane %v8447, 5
        %v8552 = vrot.slane %v8551, 4
        %v8553 = vrot.slane %v8448, 5
        %v8554 = vsel %vm1426, %v8552, %v8553
        %v8555 = vrot.slane %v8553, 4
        %v8556 = vrot.slane %v8449, 5
        %v8557 = vsel %vm1426, %v8555, %v8556
        %v8558 = vrot.slane %v8450, 5
        %v8559 = vrot.slane %v8558, 4
        %v8560 = vrot.slane %v8451, 5
        %v8561 = vsel %vm1426, %v8559, %v8560
        %v8562 = vrot.slane %v8560, 4
        %v8563 = vrot.slane %v8452, 5
        %v8564 = vsel %vm1426, %v8562, %v8563
        %v8565 = vrot.slane %v8453, 5
        %v8566 = vrot.slane %v8565, 4
        %v8567 = vrot.slane %v8454, 5
        %v8568 = vsel %vm1426, %v8566, %v8567
        %v8569 = vrot.slane %v8567, 4
        %v8570 = vrot.slane %v8455, 5
        %v8571 = vsel %vm1426, %v8569, %v8570
        %v8572 = vrot.slane %v8456, 5
        %v8573 = vrot.slane %v8572, 4
        %v8574 = vrot.slane %v8457, 5
        %v8575 = vsel %vm1426, %v8573, %v8574
        %v8576 = vrot.slane %v8574, 4
        %v8577 = vrot.slane %v8458, 5
        %v8578 = vsel %vm1426, %v8576, %v8577
        %v8579 = vrot.slane %v8459, 5
        %v8580 = vrot.slane %v8579, 4
        %v8581 = vrot.slane %v8460, 5
        %v8582 = vsel %vm1426, %v8580, %v8581
        %v8583 = vrot.slane %v8581, 4
        %v8584 = vrot.slane %v8461, 5
        %v8585 = vsel %vm1426, %v8583, %v8584
        %v8586 = vrot.slane %v8462, 5
        %v8587 = vrot.slane %v8586, 4
        %v8588 = vrot.slane %v8463, 5
        %v8589 = vsel %vm1426, %v8587, %v8588
        %v8590 = vrot.slane %v8588, 4
        %v8591 = vrot.slane %v8464, 5
        %v8592 = vsel %vm1426, %v8590, %v8591
        %v8593 = vrot.slane %v8465, 5
        %v8594 = vrot.slane %v8593, 4
        %v8595 = vrot.slane %v8466, 5
        %v8596 = vsel %vm1426, %v8594, %v8595
        %v8597 = vrot.slane %v8595, 4
        %v8598 = vrot.slane %v8467, 5
        %v8599 = vsel %vm1426, %v8597, %v8598
        %v8600 = vrot.slane %v8468, 5
        %v8601 = vrot.slane %v8600, 4
        %v8602 = vrot.slane %v8469, 5
        %v8603 = vsel %vm1426, %v8601, %v8602
        %v8604 = vrot.slane %v8602, 4
        %v8605 = vrot.slane %v8470, 5
        %v8606 = vsel %vm1426, %v8604, %v8605
        %v8607 = vrot.slane %v8471, 5
        %v8608 = vrot.slane %v8607, 4
        %v8609 = vrot.slane %v8472, 5
        %v8610 = vsel %vm1426, %v8608, %v8609
        %v8611 = vrot.slane %v8609, 4
        %v8612 = vrot.slane %v8473, 5
        %v8613 = vsel %vm1426, %v8611, %v8612
        %v8614 = vrot.slane %v8474, 5
        %v8615 = vrot.slane %v8614, 4
        %v8616 = vrot.slane %v8475, 5
        %v8617 = vsel %vm1426, %v8615, %v8616
        %v8618 = vrot.slane %v8616, 4
        %v8619 = vrot.slane %v8476, 5
        %v8620 = vsel %vm1426, %v8618, %v8619
        %v8621 = vrot.slane %v8477, 5
        %v8622 = vrot.slane %v8621, 4
        %v8623 = vrot.slane %v8478, 5
        %v8624 = vsel %vm1426, %v8622, %v8623
        %v8625 = vrot.slane %v8623, 4
        %v8626 = vrot.slane %v8479, 5
        %v8627 = vsel %vm1426, %v8625, %v8626
        %v8628 = vrot.slane %v8480, 5
        %v8629 = vrot.slane %v8628, 4
        %v8630 = vrot.slane %v8481, 5
        %v8631 = vsel %vm1426, %v8629, %v8630
        %v8632 = vrot.slane %v8630, 4
        %v8633 = vrot.slane %v8482, 5
        %v8634 = vsel %vm1426, %v8632, %v8633
        %v8635 = vrot.slane %v8483, 5
        %v8636 = vrot.slane %v8635, 4
        %v8637 = vrot.slane %v8484, 5
        %v8638 = vsel %vm1426, %v8636, %v8637
        %v8639 = vrot.slane %v8637, 4
        %v8640 = vrot.slane %v8485, 5
        %v8641 = vsel %vm1426, %v8639, %v8640
        %v8642 = vrot.slane %v8486, 5
        %v8643 = vrot.slane %v8642, 4
        %v8644 = vrot.slane %v8487, 5
        %v8645 = vsel %vm1426, %v8643, %v8644
        %v8646 = vrot.slane %v8644, 4
        %v8647 = vrot.slane %v8488, 5
        %v8648 = vsel %vm1426, %v8646, %v8647
        %v8649 = vld [vmem:[#allocation2] sm:$0xff]
        %v8650 = vld [vmem:[#allocation2 + $0x8] sm:$0xff]
        %v8651 = vld [vmem:[#allocation2 + $0x10] sm:$0xff]
        %v8652 = vld [vmem:[#allocation2 + $0x18] sm:$0xff]
        %v8653 = vld [vmem:[#allocation2 + $0x20] sm:$0xff]
        %v8654 = vld [vmem:[#allocation2 + $0x28] sm:$0xff]
        %v8655 = vld [vmem:[#allocation2 + $0x30] sm:$0xff]
        %v8656 = vld [vmem:[#allocation2 + $0x38] sm:$0xff]
        %v8657 = vld [vmem:[#allocation2 + $0x40] sm:$0xff]
        %v8658 = vld [vmem:[#allocation2 + $0x48] sm:$0xff]
        %v8659 = vld [vmem:[#allocation2 + $0x50] sm:$0xff]
        %v8660 = vld [vmem:[#allocation2 + $0x58] sm:$0xff]
        %v8661 = vld [vmem:[#allocation2 + $0x60] sm:$0xff]
        %v8662 = vld [vmem:[#allocation2 + $0x68] sm:$0xff]
        %v8663 = vld [vmem:[#allocation2 + $0x70] sm:$0xff]
        %v8664 = vld [vmem:[#allocation2 + $0x78] sm:$0xff]
        %v8665 = vld [vmem:[#allocation2 + $0x80] sm:$0xff]
        %v8666 = vld [vmem:[#allocation2 + $0x88] sm:$0xff]
        %v8667 = vld [vmem:[#allocation2 + $0x90] sm:$0xff]
        %v8668 = vld [vmem:[#allocation2 + $0x98] sm:$0xff]
        %v8669 = vld [vmem:[#allocation2 + $0xa0] sm:$0xff]
        %v8670 = vld [vmem:[#allocation2 + $0xa8] sm:$0xff]
        %v8671 = vld [vmem:[#allocation2 + $0xb0] sm:$0xff]
        %v8672 = vld [vmem:[#allocation2 + $0xb8] sm:$0xff]
        %v8673 = vld [vmem:[#allocation2 + $0xc0] sm:$0xff]
        %v8674 = vld [vmem:[#allocation2 + $0xc8] sm:$0xff]
        %v8675 = vld [vmem:[#allocation2 + $0xd0] sm:$0xff]
        %v8676 = vld [vmem:[#allocation2 + $0xd8] sm:$0xff]
        %v8677 = vld [vmem:[#allocation2 + $0xe0] sm:$0xff]
        %v8678 = vld [vmem:[#allocation2 + $0xe8] sm:$0xff]
        %v8679 = vld [vmem:[#allocation2 + $0xf0] sm:$0xff]
        %v8680 = vld [vmem:[#allocation2 + $0xf8] sm:$0xff]
        %v8681 = vunpack.c.l.b16 %v8540
        %v8682 = vunpack.c.l.b16 %v8543
        %v8683 = vunpack.c.l.b16 %v8547
        %v8684 = vunpack.c.l.b16 %v8550
        %v8685 = vunpack.c.l.b16 %v8554
        %v8686 = vunpack.c.l.b16 %v8557
        %v8687 = vunpack.c.l.b16 %v8561
        %v8688 = vunpack.c.l.b16 %v8564
        %v8689 = vunpack.c.l.b16 %v8568
        %v8690 = vunpack.c.l.b16 %v8571
        %v8691 = vunpack.c.l.b16 %v8575
        %v8692 = vunpack.c.l.b16 %v8578
        %v8693 = vunpack.c.l.b16 %v8582
        %v8694 = vunpack.c.l.b16 %v8585
        %v8695 = vunpack.c.l.b16 %v8589
        %v8696 = vunpack.c.l.b16 %v8592
        %v8697 = vunpack.c.l.b16 %v8596
        %v8698 = vunpack.c.l.b16 %v8599
        %v8699 = vunpack.c.l.b16 %v8603
        %v8700 = vunpack.c.l.b16 %v8606
        %v8701 = vunpack.c.l.b16 %v8610
        %v8702 = vunpack.c.l.b16 %v8613
        %v8703 = vunpack.c.l.b16 %v8617
        %v8704 = vunpack.c.l.b16 %v8620
        %v8705 = vunpack.c.l.b16 %v8624
        %v8706 = vunpack.c.l.b16 %v8627
        %v8707 = vunpack.c.l.b16 %v8631
        %v8708 = vunpack.c.l.b16 %v8634
        %v8709 = vunpack.c.l.b16 %v8638
        %v8710 = vunpack.c.l.b16 %v8641
        %v8711 = vunpack.c.l.b16 %v8645
        %v8712 = vunpack.c.l.b16 %v8648
        %v8713 = vpack.c.b16 %v8682, %v8681
        %v8714 = vpack.c.b16 %v8684, %v8683
        %v8715 = vpack.c.b16 %v8686, %v8685
        %v8716 = vpack.c.b16 %v8688, %v8687
        %v8717 = vpack.c.b16 %v8690, %v8689
        %v8718 = vpack.c.b16 %v8692, %v8691
        %v8719 = vpack.c.b16 %v8694, %v8693
        %v8720 = vpack.c.b16 %v8696, %v8695
        %v8721 = vpack.c.b16 %v8698, %v8697
        %v8722 = vpack.c.b16 %v8700, %v8699
        %v8723 = vpack.c.b16 %v8702, %v8701
        %v8724 = vpack.c.b16 %v8704, %v8703
        %v8725 = vpack.c.b16 %v8706, %v8705
        %v8726 = vpack.c.b16 %v8708, %v8707
        %v8727 = vpack.c.b16 %v8710, %v8709
        %v8728 = vpack.c.b16 %v8712, %v8711
        %v8731 = vunpack.c.l.b16 %v8439
        %v8732 = vunpack.c.l.b16 %v8440
        %v8733 = vpack.c.b16 %v8732, %v8731
        %v8735 = vsel %vm392, %v8713, 0
        %v8738 = vsel %vm392, %v8714, 0
        %v8741 = vsel %vm392, %v8715, 0
        %v8744 = vsel %vm392, %v8716, 0
        %v8747 = vsel %vm392, %v8717, 0
        %v8750 = vsel %vm392, %v8718, 0
        %v8753 = vsel %vm392, %v8719, 0
        %v8756 = vsel %vm392, %v8720, 0
        %v8759 = vsel %vm392, %v8721, 0
        %v8762 = vsel %vm392, %v8722, 0
        %v8765 = vsel %vm392, %v8723, 0
        %v8768 = vsel %vm392, %v8724, 0
        %v8771 = vsel %vm392, %v8725, 0
        %v8774 = vsel %vm392, %v8726, 0
        %v8777 = vsel %vm392, %v8727, 0
        %v8780 = vsel %vm392, %v8728, 0
        %v8783 = vsel %vm441, %v8733, 0
        %8785 = vmatpush.bf16.msra.mxu0 0
        %8786 = vmatpush.bf16.msra.mxu0 0
        %8787 = vmatpush.bf16.msra.mxu0 0
        %8788 = vmatpush.bf16.msra.mxu0 0
        %8789 = vmatpush.bf16.msra.mxu0 0
        %8790 = vmatpush.bf16.msra.mxu0 0
        %8791 = vmatpush.bf16.msra.mxu0 0
        %8792 = vmatpush.bf16.msra.mxu0 %v8783
        %8793 = vmatmul.bf16.gmra.mxu0 %v8735
        %v8794 = vpop.f32.mrf.mxu0
        %v8795 = vadd.f32 0.0, %v8794
        %v8796 = vpop.f32.mrf.mxu0
        %v8797 = vadd.f32 0.0, %v8796
        %8798 = vmatmul.bf16.gmra.mxu0 %v8738
        %v8799 = vpop.f32.mrf.mxu0
        %v8800 = vadd.f32 0.0, %v8799
        %v8801 = vpop.f32.mrf.mxu0
        %v8802 = vadd.f32 0.0, %v8801
        %8803 = vmatmul.bf16.gmra.mxu0 %v8741
        %v8804 = vpop.f32.mrf.mxu0
        %v8805 = vadd.f32 0.0, %v8804
        %v8806 = vpop.f32.mrf.mxu0
        %v8807 = vadd.f32 0.0, %v8806
        %8808 = vmatmul.bf16.gmra.mxu0 %v8744
        %v8809 = vpop.f32.mrf.mxu0
        %v8810 = vadd.f32 0.0, %v8809
        %v8811 = vpop.f32.mrf.mxu0
        %v8812 = vadd.f32 0.0, %v8811
        %8813 = vmatmul.bf16.gmra.mxu0 %v8747
        %v8814 = vpop.f32.mrf.mxu0
        %v8815 = vadd.f32 0.0, %v8814
        %v8816 = vpop.f32.mrf.mxu0
        %v8817 = vadd.f32 0.0, %v8816
        %8818 = vmatmul.bf16.gmra.mxu0 %v8750
        %v8819 = vpop.f32.mrf.mxu0
        %v8820 = vadd.f32 0.0, %v8819
        %v8821 = vpop.f32.mrf.mxu0
        %v8822 = vadd.f32 0.0, %v8821
        %8823 = vmatmul.bf16.gmra.mxu0 %v8753
        %v8824 = vpop.f32.mrf.mxu0
        %v8825 = vadd.f32 0.0, %v8824
        %v8826 = vpop.f32.mrf.mxu0
        %v8827 = vadd.f32 0.0, %v8826
        %8828 = vmatmul.bf16.gmra.mxu0 %v8756
        %v8829 = vpop.f32.mrf.mxu0
        %v8830 = vadd.f32 0.0, %v8829
        %v8831 = vpop.f32.mrf.mxu0
        %v8832 = vadd.f32 0.0, %v8831
        %8833 = vmatmul.bf16.gmra.mxu0 %v8759
        %v8834 = vpop.f32.mrf.mxu0
        %v8835 = vadd.f32 0.0, %v8834
        %v8836 = vpop.f32.mrf.mxu0
        %v8837 = vadd.f32 0.0, %v8836
        %8838 = vmatmul.bf16.gmra.mxu0 %v8762
        %v8839 = vpop.f32.mrf.mxu0
        %v8840 = vadd.f32 0.0, %v8839
        %v8841 = vpop.f32.mrf.mxu0
        %v8842 = vadd.f32 0.0, %v8841
        %8843 = vmatmul.bf16.gmra.mxu0 %v8765
        %v8844 = vpop.f32.mrf.mxu0
        %v8845 = vadd.f32 0.0, %v8844
        %v8846 = vpop.f32.mrf.mxu0
        %v8847 = vadd.f32 0.0, %v8846
        %8848 = vmatmul.bf16.gmra.mxu0 %v8768
        %v8849 = vpop.f32.mrf.mxu0
        %v8850 = vadd.f32 0.0, %v8849
        %v8851 = vpop.f32.mrf.mxu0
        %v8852 = vadd.f32 0.0, %v8851
        %8853 = vmatmul.bf16.gmra.mxu0 %v8771
        %v8854 = vpop.f32.mrf.mxu0
        %v8855 = vadd.f32 0.0, %v8854
        %v8856 = vpop.f32.mrf.mxu0
        %v8857 = vadd.f32 0.0, %v8856
        %8858 = vmatmul.bf16.gmra.mxu0 %v8774
        %v8859 = vpop.f32.mrf.mxu0
        %v8860 = vadd.f32 0.0, %v8859
        %v8861 = vpop.f32.mrf.mxu0
        %v8862 = vadd.f32 0.0, %v8861
        %8863 = vmatmul.bf16.gmra.mxu0 %v8777
        %v8864 = vpop.f32.mrf.mxu0
        %v8865 = vadd.f32 0.0, %v8864
        %v8866 = vpop.f32.mrf.mxu0
        %v8867 = vadd.f32 0.0, %v8866
        %8868 = vmatmul.bf16.gmra.mxu0 %v8780
        %v8869 = vpop.f32.mrf.mxu0
        %v8870 = vadd.f32 0.0, %v8869
        %v8871 = vpop.f32.mrf.mxu0
        %v8872 = vadd.f32 0.0, %v8871
        %8873 = vdwg.mxu0
        %v8874 = vadd.f32 %v8649, %v8795
        %v8875 = vadd.f32 %v8650, %v8797
        %v8876 = vadd.f32 %v8651, %v8800
        %v8877 = vadd.f32 %v8652, %v8802
        %v8878 = vadd.f32 %v8653, %v8805
        %v8879 = vadd.f32 %v8654, %v8807
        %v8880 = vadd.f32 %v8655, %v8810
        %v8881 = vadd.f32 %v8656, %v8812
        %v8882 = vadd.f32 %v8657, %v8815
        %v8883 = vadd.f32 %v8658, %v8817
        %v8884 = vadd.f32 %v8659, %v8820
        %v8885 = vadd.f32 %v8660, %v8822
        %v8886 = vadd.f32 %v8661, %v8825
        %v8887 = vadd.f32 %v8662, %v8827
        %v8888 = vadd.f32 %v8663, %v8830
        %v8889 = vadd.f32 %v8664, %v8832
        %v8890 = vadd.f32 %v8665, %v8835
        %v8891 = vadd.f32 %v8666, %v8837
        %v8892 = vadd.f32 %v8667, %v8840
        %v8893 = vadd.f32 %v8668, %v8842
        %v8894 = vadd.f32 %v8669, %v8845
        %v8895 = vadd.f32 %v8670, %v8847
        %v8896 = vadd.f32 %v8671, %v8850
        %v8897 = vadd.f32 %v8672, %v8852
        %v8898 = vadd.f32 %v8673, %v8855
        %v8899 = vadd.f32 %v8674, %v8857
        %v8900 = vadd.f32 %v8675, %v8860
        %v8901 = vadd.f32 %v8676, %v8862
        %v8902 = vadd.f32 %v8677, %v8865
        %v8903 = vadd.f32 %v8678, %v8867
        %v8904 = vadd.f32 %v8679, %v8870
        %v8905 = vadd.f32 %v8680, %v8872
        %8906 = vst.msk [vmem:[#allocation2] sm:$0xff] %vm208, %v8874
        %8907 = vst.msk [vmem:[#allocation2 + $0x8] sm:$0xff] %vm208, %v8875
        %8908 = vst.msk [vmem:[#allocation2 + $0x10] sm:$0xff] %vm208, %v8876
        %8909 = vst.msk [vmem:[#allocation2 + $0x18] sm:$0xff] %vm208, %v8877
        %8910 = vst.msk [vmem:[#allocation2 + $0x20] sm:$0xff] %vm208, %v8878
        %8911 = vst.msk [vmem:[#allocation2 + $0x28] sm:$0xff] %vm208, %v8879
        %8912 = vst.msk [vmem:[#allocation2 + $0x30] sm:$0xff] %vm208, %v8880
        %8913 = vst.msk [vmem:[#allocation2 + $0x38] sm:$0xff] %vm208, %v8881
        %8914 = vst.msk [vmem:[#allocation2 + $0x40] sm:$0xff] %vm208, %v8882
        %8915 = vst.msk [vmem:[#allocation2 + $0x48] sm:$0xff] %vm208, %v8883
        %8916 = vst.msk [vmem:[#allocation2 + $0x50] sm:$0xff] %vm208, %v8884
        %8917 = vst.msk [vmem:[#allocation2 + $0x58] sm:$0xff] %vm208, %v8885
        %8918 = vst.msk [vmem:[#allocation2 + $0x60] sm:$0xff] %vm208, %v8886
        %8919 = vst.msk [vmem:[#allocation2 + $0x68] sm:$0xff] %vm208, %v8887
        %8920 = vst.msk [vmem:[#allocation2 + $0x70] sm:$0xff] %vm208, %v8888
        %8921 = vst.msk [vmem:[#allocation2 + $0x78] sm:$0xff] %vm208, %v8889
        %8922 = vst.msk [vmem:[#allocation2 + $0x80] sm:$0xff] %vm208, %v8890
        %8923 = vst.msk [vmem:[#allocation2 + $0x88] sm:$0xff] %vm208, %v8891
        %8924 = vst.msk [vmem:[#allocation2 + $0x90] sm:$0xff] %vm208, %v8892
        %8925 = vst.msk [vmem:[#allocation2 + $0x98] sm:$0xff] %vm208, %v8893
        %8926 = vst.msk [vmem:[#allocation2 + $0xa0] sm:$0xff] %vm208, %v8894
        %8927 = vst.msk [vmem:[#allocation2 + $0xa8] sm:$0xff] %vm208, %v8895
        %8928 = vst.msk [vmem:[#allocation2 + $0xb0] sm:$0xff] %vm208, %v8896
        %8929 = vst.msk [vmem:[#allocation2 + $0xb8] sm:$0xff] %vm208, %v8897
        %8930 = vst.msk [vmem:[#allocation2 + $0xc0] sm:$0xff] %vm208, %v8898
        %8931 = vst.msk [vmem:[#allocation2 + $0xc8] sm:$0xff] %vm208, %v8899
        %8932 = vst.msk [vmem:[#allocation2 + $0xd0] sm:$0xff] %vm208, %v8900
        %8933 = vst.msk [vmem:[#allocation2 + $0xd8] sm:$0xff] %vm208, %v8901
        %8934 = vst.msk [vmem:[#allocation2 + $0xe0] sm:$0xff] %vm208, %v8902
        %8935 = vst.msk [vmem:[#allocation2 + $0xe8] sm:$0xff] %vm208, %v8903
        %8936 = vst.msk [vmem:[#allocation2 + $0xf0] sm:$0xff] %vm208, %v8904
        %8937 = vst.msk [vmem:[#allocation2 + $0xf8] sm:$0xff] %vm208, %v8905
        %s8938 = scalar_lea.vmem %s1, 120
        %v8939 = vld [vmem:[%s8938] sm:$0xf]
        %v8940 = vld [vmem:[%s8938 + $0x4] sm:$0x3]
        %v8941 = vld [vmem:[%s7360] sm:$0xe]
        %v8942 = vld [vmem:[%s7360 + $0x4] sm:$0xf]
        %v8943 = vld [vmem:[%s7360 + $0x8] sm:$0x3]
        %v8944 = vld [vmem:[%s7360 + $0xc] sm:$0xe]
        %v8945 = vld [vmem:[%s7360 + $0x10] sm:$0xf]
        %v8946 = vld [vmem:[%s7360 + $0x14] sm:$0x3]
        %v8947 = vld [vmem:[%s7360 + $0x18] sm:$0xe]
        %v8948 = vld [vmem:[%s7360 + $0x1c] sm:$0xf]
        %v8949 = vld [vmem:[%s7360 + $0x20] sm:$0x3]
        %v8950 = vld [vmem:[%s7360 + $0x24] sm:$0xe]
        %v8951 = vld [vmem:[%s7360 + $0x28] sm:$0xf]
        %v8952 = vld [vmem:[%s7360 + $0x2c] sm:$0x3]
        %v8953 = vld [vmem:[%s7360 + $0x30] sm:$0xe]
        %v8954 = vld [vmem:[%s7360 + $0x34] sm:$0xf]
        %v8955 = vld [vmem:[%s7360 + $0x38] sm:$0x3]
        %v8956 = vld [vmem:[%s7360 + $0x3c] sm:$0xe]
        %v8957 = vld [vmem:[%s7360 + $0x40] sm:$0xf]
        %v8958 = vld [vmem:[%s7360 + $0x44] sm:$0x3]
        %v8959 = vld [vmem:[%s7360 + $0x48] sm:$0xe]
        %v8960 = vld [vmem:[%s7360 + $0x4c] sm:$0xf]
        %v8961 = vld [vmem:[%s7360 + $0x50] sm:$0x3]
        %v8962 = vld [vmem:[%s7360 + $0x54] sm:$0xe]
        %v8963 = vld [vmem:[%s7360 + $0x58] sm:$0xf]
        %v8964 = vld [vmem:[%s7360 + $0x5c] sm:$0x3]
        %v8965 = vld [vmem:[%s7360 + $0x60] sm:$0xe]
        %v8966 = vld [vmem:[%s7360 + $0x64] sm:$0xf]
        %v8967 = vld [vmem:[%s7360 + $0x68] sm:$0x3]
        %v8968 = vld [vmem:[%s7360 + $0x6c] sm:$0xe]
        %v8969 = vld [vmem:[%s7360 + $0x70] sm:$0xf]
        %v8970 = vld [vmem:[%s7360 + $0x74] sm:$0x3]
        %v8971 = vld [vmem:[%s7360 + $0x78] sm:$0xe]
        %v8972 = vld [vmem:[%s7360 + $0x7c] sm:$0xf]
        %v8973 = vld [vmem:[%s7360 + $0x80] sm:$0x3]
        %v8974 = vld [vmem:[%s7360 + $0x84] sm:$0xe]
        %v8975 = vld [vmem:[%s7360 + $0x88] sm:$0xf]
        %v8976 = vld [vmem:[%s7360 + $0x8c] sm:$0x3]
        %v8977 = vld [vmem:[%s7360 + $0x90] sm:$0xe]
        %v8978 = vld [vmem:[%s7360 + $0x94] sm:$0xf]
        %v8979 = vld [vmem:[%s7360 + $0x98] sm:$0x3]
        %v8980 = vld [vmem:[%s7360 + $0x9c] sm:$0xe]
        %v8981 = vld [vmem:[%s7360 + $0xa0] sm:$0xf]
        %v8982 = vld [vmem:[%s7360 + $0xa4] sm:$0x3]
        %v8983 = vld [vmem:[%s7360 + $0xa8] sm:$0xe]
        %v8984 = vld [vmem:[%s7360 + $0xac] sm:$0xf]
        %v8985 = vld [vmem:[%s7360 + $0xb0] sm:$0x3]
        %v8986 = vld [vmem:[%s7360 + $0xb4] sm:$0xe]
        %v8987 = vld [vmem:[%s7360 + $0xb8] sm:$0xf]
        %v8988 = vld [vmem:[%s7360 + $0xbc] sm:$0x3]
        %v8990 = vshrl.u32 %v8941, 16
        %v8992 = vrot.slane %v8990, 5
        %v8993 = vshll.u32 %v8941, 16
        %v8995 = vrot.slane %v8993, 6
        %v8996 = vor.u32 %v8992, %v8995
        %v8997 = vrot.slane %v8996, 4
        %v8999 = vshrl.u32 %v8942, 16
        %v9001 = vrot.slane %v8999, 5
        %v9002 = vshll.u32 %v8942, 16
        %v9004 = vrot.slane %v9002, 6
        %v9005 = vor.u32 %v9001, %v9004
        %v9006 = vsel %vm1881, %v8997, %v9005
        %v9007 = vrot.slane %v9005, 4
        %v9009 = vshrl.u32 %v8943, 16
        %v9011 = vrot.slane %v9009, 5
        %v9012 = vshll.u32 %v8943, 16
        %v9014 = vrot.slane %v9012, 6
        %v9015 = vor.u32 %v9011, %v9014
        %v9016 = vsel %vm1881, %v9007, %v9015
        %v9018 = vshrl.u32 %v8944, 16
        %v9020 = vrot.slane %v9018, 5
        %v9021 = vshll.u32 %v8944, 16
        %v9023 = vrot.slane %v9021, 6
        %v9024 = vor.u32 %v9020, %v9023
        %v9025 = vrot.slane %v9024, 4
        %v9027 = vshrl.u32 %v8945, 16
        %v9029 = vrot.slane %v9027, 5
        %v9030 = vshll.u32 %v8945, 16
        %v9032 = vrot.slane %v9030, 6
        %v9033 = vor.u32 %v9029, %v9032
        %v9034 = vsel %vm1881, %v9025, %v9033
        %v9035 = vrot.slane %v9033, 4
        %v9037 = vshrl.u32 %v8946, 16
        %v9039 = vrot.slane %v9037, 5
        %v9040 = vshll.u32 %v8946, 16
        %v9042 = vrot.slane %v9040, 6
        %v9043 = vor.u32 %v9039, %v9042
        %v9044 = vsel %vm1881, %v9035, %v9043
        %v9046 = vshrl.u32 %v8947, 16
        %v9048 = vrot.slane %v9046, 5
        %v9049 = vshll.u32 %v8947, 16
        %v9051 = vrot.slane %v9049, 6
        %v9052 = vor.u32 %v9048, %v9051
        %v9053 = vrot.slane %v9052, 4
        %v9055 = vshrl.u32 %v8948, 16
        %v9057 = vrot.slane %v9055, 5
        %v9058 = vshll.u32 %v8948, 16
        %v9060 = vrot.slane %v9058, 6
        %v9061 = vor.u32 %v9057, %v9060
        %v9062 = vsel %vm1881, %v9053, %v9061
        %v9063 = vrot.slane %v9061, 4
        %v9065 = vshrl.u32 %v8949, 16
        %v9067 = vrot.slane %v9065, 5
        %v9068 = vshll.u32 %v8949, 16
        %v9070 = vrot.slane %v9068, 6
        %v9071 = vor.u32 %v9067, %v9070
        %v9072 = vsel %vm1881, %v9063, %v9071
        %v9074 = vshrl.u32 %v8950, 16
        %v9076 = vrot.slane %v9074, 5
        %v9077 = vshll.u32 %v8950, 16
        %v9079 = vrot.slane %v9077, 6
        %v9080 = vor.u32 %v9076, %v9079
        %v9081 = vrot.slane %v9080, 4
        %v9083 = vshrl.u32 %v8951, 16
        %v9085 = vrot.slane %v9083, 5
        %v9086 = vshll.u32 %v8951, 16
        %v9088 = vrot.slane %v9086, 6
        %v9089 = vor.u32 %v9085, %v9088
        %v9090 = vsel %vm1881, %v9081, %v9089
        %v9091 = vrot.slane %v9089, 4
        %v9093 = vshrl.u32 %v8952, 16
        %v9095 = vrot.slane %v9093, 5
        %v9096 = vshll.u32 %v8952, 16
        %v9098 = vrot.slane %v9096, 6
        %v9099 = vor.u32 %v9095, %v9098
        %v9100 = vsel %vm1881, %v9091, %v9099
        %v9102 = vshrl.u32 %v8953, 16
        %v9104 = vrot.slane %v9102, 5
        %v9105 = vshll.u32 %v8953, 16
        %v9107 = vrot.slane %v9105, 6
        %v9108 = vor.u32 %v9104, %v9107
        %v9109 = vrot.slane %v9108, 4
        %v9111 = vshrl.u32 %v8954, 16
        %v9113 = vrot.slane %v9111, 5
        %v9114 = vshll.u32 %v8954, 16
        %v9116 = vrot.slane %v9114, 6
        %v9117 = vor.u32 %v9113, %v9116
        %v9118 = vsel %vm1881, %v9109, %v9117
        %v9119 = vrot.slane %v9117, 4
        %v9121 = vshrl.u32 %v8955, 16
        %v9123 = vrot.slane %v9121, 5
        %v9124 = vshll.u32 %v8955, 16
        %v9126 = vrot.slane %v9124, 6
        %v9127 = vor.u32 %v9123, %v9126
        %v9128 = vsel %vm1881, %v9119, %v9127
        %v9130 = vshrl.u32 %v8956, 16
        %v9132 = vrot.slane %v9130, 5
        %v9133 = vshll.u32 %v8956, 16
        %v9135 = vrot.slane %v9133, 6
        %v9136 = vor.u32 %v9132, %v9135
        %v9137 = vrot.slane %v9136, 4
        %v9139 = vshrl.u32 %v8957, 16
        %v9141 = vrot.slane %v9139, 5
        %v9142 = vshll.u32 %v8957, 16
        %v9144 = vrot.slane %v9142, 6
        %v9145 = vor.u32 %v9141, %v9144
        %v9146 = vsel %vm1881, %v9137, %v9145
        %v9147 = vrot.slane %v9145, 4
        %v9149 = vshrl.u32 %v8958, 16
        %v9151 = vrot.slane %v9149, 5
        %v9152 = vshll.u32 %v8958, 16
        %v9154 = vrot.slane %v9152, 6
        %v9155 = vor.u32 %v9151, %v9154
        %v9156 = vsel %vm1881, %v9147, %v9155
        %v9158 = vshrl.u32 %v8959, 16
        %v9160 = vrot.slane %v9158, 5
        %v9161 = vshll.u32 %v8959, 16
        %v9163 = vrot.slane %v9161, 6
        %v9164 = vor.u32 %v9160, %v9163
        %v9165 = vrot.slane %v9164, 4
        %v9167 = vshrl.u32 %v8960, 16
        %v9169 = vrot.slane %v9167, 5
        %v9170 = vshll.u32 %v8960, 16
        %v9172 = vrot.slane %v9170, 6
        %v9173 = vor.u32 %v9169, %v9172
        %v9174 = vsel %vm1881, %v9165, %v9173
        %v9175 = vrot.slane %v9173, 4
        %v9177 = vshrl.u32 %v8961, 16
        %v9179 = vrot.slane %v9177, 5
        %v9180 = vshll.u32 %v8961, 16
        %v9182 = vrot.slane %v9180, 6
        %v9183 = vor.u32 %v9179, %v9182
        %v9184 = vsel %vm1881, %v9175, %v9183
        %v9186 = vshrl.u32 %v8962, 16
        %v9188 = vrot.slane %v9186, 5
        %v9189 = vshll.u32 %v8962, 16
        %v9191 = vrot.slane %v9189, 6
        %v9192 = vor.u32 %v9188, %v9191
        %v9193 = vrot.slane %v9192, 4
        %v9195 = vshrl.u32 %v8963, 16
        %v9197 = vrot.slane %v9195, 5
        %v9198 = vshll.u32 %v8963, 16
        %v9200 = vrot.slane %v9198, 6
        %v9201 = vor.u32 %v9197, %v9200
        %v9202 = vsel %vm1881, %v9193, %v9201
        %v9203 = vrot.slane %v9201, 4
        %v9205 = vshrl.u32 %v8964, 16
        %v9207 = vrot.slane %v9205, 5
        %v9208 = vshll.u32 %v8964, 16
        %v9210 = vrot.slane %v9208, 6
        %v9211 = vor.u32 %v9207, %v9210
        %v9212 = vsel %vm1881, %v9203, %v9211
        %v9214 = vshrl.u32 %v8965, 16
        %v9216 = vrot.slane %v9214, 5
        %v9217 = vshll.u32 %v8965, 16
        %v9219 = vrot.slane %v9217, 6
        %v9220 = vor.u32 %v9216, %v9219
        %v9221 = vrot.slane %v9220, 4
        %v9223 = vshrl.u32 %v8966, 16
        %v9225 = vrot.slane %v9223, 5
        %v9226 = vshll.u32 %v8966, 16
        %v9228 = vrot.slane %v9226, 6
        %v9229 = vor.u32 %v9225, %v9228
        %v9230 = vsel %vm1881, %v9221, %v9229
        %v9231 = vrot.slane %v9229, 4
        %v9233 = vshrl.u32 %v8967, 16
        %v9235 = vrot.slane %v9233, 5
        %v9236 = vshll.u32 %v8967, 16
        %v9238 = vrot.slane %v9236, 6
        %v9239 = vor.u32 %v9235, %v9238
        %v9240 = vsel %vm1881, %v9231, %v9239
        %v9242 = vshrl.u32 %v8968, 16
        %v9244 = vrot.slane %v9242, 5
        %v9245 = vshll.u32 %v8968, 16
        %v9247 = vrot.slane %v9245, 6
        %v9248 = vor.u32 %v9244, %v9247
        %v9249 = vrot.slane %v9248, 4
        %v9251 = vshrl.u32 %v8969, 16
        %v9253 = vrot.slane %v9251, 5
        %v9254 = vshll.u32 %v8969, 16
        %v9256 = vrot.slane %v9254, 6
        %v9257 = vor.u32 %v9253, %v9256
        %v9258 = vsel %vm1881, %v9249, %v9257
        %v9259 = vrot.slane %v9257, 4
        %v9261 = vshrl.u32 %v8970, 16
        %v9263 = vrot.slane %v9261, 5
        %v9264 = vshll.u32 %v8970, 16
        %v9266 = vrot.slane %v9264, 6
        %v9267 = vor.u32 %v9263, %v9266
        %v9268 = vsel %vm1881, %v9259, %v9267
        %v9270 = vshrl.u32 %v8971, 16
        %v9272 = vrot.slane %v9270, 5
        %v9273 = vshll.u32 %v8971, 16
        %v9275 = vrot.slane %v9273, 6
        %v9276 = vor.u32 %v9272, %v9275
        %v9277 = vrot.slane %v9276, 4
        %v9279 = vshrl.u32 %v8972, 16
        %v9281 = vrot.slane %v9279, 5
        %v9282 = vshll.u32 %v8972, 16
        %v9284 = vrot.slane %v9282, 6
        %v9285 = vor.u32 %v9281, %v9284
        %v9286 = vsel %vm1881, %v9277, %v9285
        %v9287 = vrot.slane %v9285, 4
        %v9289 = vshrl.u32 %v8973, 16
        %v9291 = vrot.slane %v9289, 5
        %v9292 = vshll.u32 %v8973, 16
        %v9294 = vrot.slane %v9292, 6
        %v9295 = vor.u32 %v9291, %v9294
        %v9296 = vsel %vm1881, %v9287, %v9295
        %v9298 = vshrl.u32 %v8974, 16
        %v9300 = vrot.slane %v9298, 5
        %v9301 = vshll.u32 %v8974, 16
        %v9303 = vrot.slane %v9301, 6
        %v9304 = vor.u32 %v9300, %v9303
        %v9305 = vrot.slane %v9304, 4
        %v9307 = vshrl.u32 %v8975, 16
        %v9309 = vrot.slane %v9307, 5
        %v9310 = vshll.u32 %v8975, 16
        %v9312 = vrot.slane %v9310, 6
        %v9313 = vor.u32 %v9309, %v9312
        %v9314 = vsel %vm1881, %v9305, %v9313
        %v9315 = vrot.slane %v9313, 4
        %v9317 = vshrl.u32 %v8976, 16
        %v9319 = vrot.slane %v9317, 5
        %v9320 = vshll.u32 %v8976, 16
        %v9322 = vrot.slane %v9320, 6
        %v9323 = vor.u32 %v9319, %v9322
        %v9324 = vsel %vm1881, %v9315, %v9323
        %v9326 = vshrl.u32 %v8977, 16
        %v9328 = vrot.slane %v9326, 5
        %v9329 = vshll.u32 %v8977, 16
        %v9331 = vrot.slane %v9329, 6
        %v9332 = vor.u32 %v9328, %v9331
        %v9333 = vrot.slane %v9332, 4
        %v9335 = vshrl.u32 %v8978, 16
        %v9337 = vrot.slane %v9335, 5
        %v9338 = vshll.u32 %v8978, 16
        %v9340 = vrot.slane %v9338, 6
        %v9341 = vor.u32 %v9337, %v9340
        %v9342 = vsel %vm1881, %v9333, %v9341
        %v9343 = vrot.slane %v9341, 4
        %v9345 = vshrl.u32 %v8979, 16
        %v9347 = vrot.slane %v9345, 5
        %v9348 = vshll.u32 %v8979, 16
        %v9350 = vrot.slane %v9348, 6
        %v9351 = vor.u32 %v9347, %v9350
        %v9352 = vsel %vm1881, %v9343, %v9351
        %v9354 = vshrl.u32 %v8980, 16
        %v9356 = vrot.slane %v9354, 5
        %v9357 = vshll.u32 %v8980, 16
        %v9359 = vrot.slane %v9357, 6
        %v9360 = vor.u32 %v9356, %v9359
        %v9361 = vrot.slane %v9360, 4
        %v9363 = vshrl.u32 %v8981, 16
        %v9365 = vrot.slane %v9363, 5
        %v9366 = vshll.u32 %v8981, 16
        %v9368 = vrot.slane %v9366, 6
        %v9369 = vor.u32 %v9365, %v9368
        %v9370 = vsel %vm1881, %v9361, %v9369
        %v9371 = vrot.slane %v9369, 4
        %v9373 = vshrl.u32 %v8982, 16
        %v9375 = vrot.slane %v9373, 5
        %v9376 = vshll.u32 %v8982, 16
        %v9378 = vrot.slane %v9376, 6
        %v9379 = vor.u32 %v9375, %v9378
        %v9380 = vsel %vm1881, %v9371, %v9379
        %v9382 = vshrl.u32 %v8983, 16
        %v9384 = vrot.slane %v9382, 5
        %v9385 = vshll.u32 %v8983, 16
        %v9387 = vrot.slane %v9385, 6
        %v9388 = vor.u32 %v9384, %v9387
        %v9389 = vrot.slane %v9388, 4
        %v9391 = vshrl.u32 %v8984, 16
        %v9393 = vrot.slane %v9391, 5
        %v9394 = vshll.u32 %v8984, 16
        %v9396 = vrot.slane %v9394, 6
        %v9397 = vor.u32 %v9393, %v9396
        %v9398 = vsel %vm1881, %v9389, %v9397
        %v9399 = vrot.slane %v9397, 4
        %v9401 = vshrl.u32 %v8985, 16
        %v9403 = vrot.slane %v9401, 5
        %v9404 = vshll.u32 %v8985, 16
        %v9406 = vrot.slane %v9404, 6
        %v9407 = vor.u32 %v9403, %v9406
        %v9408 = vsel %vm1881, %v9399, %v9407
        %v9410 = vshrl.u32 %v8986, 16
        %v9412 = vrot.slane %v9410, 5
        %v9413 = vshll.u32 %v8986, 16
        %v9415 = vrot.slane %v9413, 6
        %v9416 = vor.u32 %v9412, %v9415
        %v9417 = vrot.slane %v9416, 4
        %v9419 = vshrl.u32 %v8987, 16
        %v9421 = vrot.slane %v9419, 5
        %v9422 = vshll.u32 %v8987, 16
        %v9424 = vrot.slane %v9422, 6
        %v9425 = vor.u32 %v9421, %v9424
        %v9426 = vsel %vm1881, %v9417, %v9425
        %v9427 = vrot.slane %v9425, 4
        %v9429 = vshrl.u32 %v8988, 16
        %v9431 = vrot.slane %v9429, 5
        %v9432 = vshll.u32 %v8988, 16
        %v9434 = vrot.slane %v9432, 6
        %v9435 = vor.u32 %v9431, %v9434
        %v9436 = vsel %vm1881, %v9427, %v9435
        %v9437 = vld [vmem:[#allocation2] sm:$0xff]
        %v9438 = vld [vmem:[#allocation2 + $0x8] sm:$0xff]
        %v9439 = vld [vmem:[#allocation2 + $0x10] sm:$0xff]
        %v9440 = vld [vmem:[#allocation2 + $0x18] sm:$0xff]
        %v9441 = vld [vmem:[#allocation2 + $0x20] sm:$0xff]
        %v9442 = vld [vmem:[#allocation2 + $0x28] sm:$0xff]
        %v9443 = vld [vmem:[#allocation2 + $0x30] sm:$0xff]
        %v9444 = vld [vmem:[#allocation2 + $0x38] sm:$0xff]
        %v9445 = vld [vmem:[#allocation2 + $0x40] sm:$0xff]
        %v9446 = vld [vmem:[#allocation2 + $0x48] sm:$0xff]
        %v9447 = vld [vmem:[#allocation2 + $0x50] sm:$0xff]
        %v9448 = vld [vmem:[#allocation2 + $0x58] sm:$0xff]
        %v9449 = vld [vmem:[#allocation2 + $0x60] sm:$0xff]
        %v9450 = vld [vmem:[#allocation2 + $0x68] sm:$0xff]
        %v9451 = vld [vmem:[#allocation2 + $0x70] sm:$0xff]
        %v9452 = vld [vmem:[#allocation2 + $0x78] sm:$0xff]
        %v9453 = vld [vmem:[#allocation2 + $0x80] sm:$0xff]
        %v9454 = vld [vmem:[#allocation2 + $0x88] sm:$0xff]
        %v9455 = vld [vmem:[#allocation2 + $0x90] sm:$0xff]
        %v9456 = vld [vmem:[#allocation2 + $0x98] sm:$0xff]
        %v9457 = vld [vmem:[#allocation2 + $0xa0] sm:$0xff]
        %v9458 = vld [vmem:[#allocation2 + $0xa8] sm:$0xff]
        %v9459 = vld [vmem:[#allocation2 + $0xb0] sm:$0xff]
        %v9460 = vld [vmem:[#allocation2 + $0xb8] sm:$0xff]
        %v9461 = vld [vmem:[#allocation2 + $0xc0] sm:$0xff]
        %v9462 = vld [vmem:[#allocation2 + $0xc8] sm:$0xff]
        %v9463 = vld [vmem:[#allocation2 + $0xd0] sm:$0xff]
        %v9464 = vld [vmem:[#allocation2 + $0xd8] sm:$0xff]
        %v9465 = vld [vmem:[#allocation2 + $0xe0] sm:$0xff]
        %v9466 = vld [vmem:[#allocation2 + $0xe8] sm:$0xff]
        %v9467 = vld [vmem:[#allocation2 + $0xf0] sm:$0xff]
        %v9468 = vld [vmem:[#allocation2 + $0xf8] sm:$0xff]
        %v9469 = vunpack.c.l.b16 %v9006
        %v9470 = vunpack.c.l.b16 %v9016
        %v9471 = vunpack.c.l.b16 %v9034
        %v9472 = vunpack.c.l.b16 %v9044
        %v9473 = vunpack.c.l.b16 %v9062
        %v9474 = vunpack.c.l.b16 %v9072
        %v9475 = vunpack.c.l.b16 %v9090
        %v9476 = vunpack.c.l.b16 %v9100
        %v9477 = vunpack.c.l.b16 %v9118
        %v9478 = vunpack.c.l.b16 %v9128
        %v9479 = vunpack.c.l.b16 %v9146
        %v9480 = vunpack.c.l.b16 %v9156
        %v9481 = vunpack.c.l.b16 %v9174
        %v9482 = vunpack.c.l.b16 %v9184
        %v9483 = vunpack.c.l.b16 %v9202
        %v9484 = vunpack.c.l.b16 %v9212
        %v9485 = vunpack.c.l.b16 %v9230
        %v9486 = vunpack.c.l.b16 %v9240
        %v9487 = vunpack.c.l.b16 %v9258
        %v9488 = vunpack.c.l.b16 %v9268
        %v9489 = vunpack.c.l.b16 %v9286
        %v9490 = vunpack.c.l.b16 %v9296
        %v9491 = vunpack.c.l.b16 %v9314
        %v9492 = vunpack.c.l.b16 %v9324
        %v9493 = vunpack.c.l.b16 %v9342
        %v9494 = vunpack.c.l.b16 %v9352
        %v9495 = vunpack.c.l.b16 %v9370
        %v9496 = vunpack.c.l.b16 %v9380
        %v9497 = vunpack.c.l.b16 %v9398
        %v9498 = vunpack.c.l.b16 %v9408
        %v9499 = vunpack.c.l.b16 %v9426
        %v9500 = vunpack.c.l.b16 %v9436
        %v9501 = vpack.c.b16 %v9470, %v9469
        %v9502 = vpack.c.b16 %v9472, %v9471
        %v9503 = vpack.c.b16 %v9474, %v9473
        %v9504 = vpack.c.b16 %v9476, %v9475
        %v9505 = vpack.c.b16 %v9478, %v9477
        %v9506 = vpack.c.b16 %v9480, %v9479
        %v9507 = vpack.c.b16 %v9482, %v9481
        %v9508 = vpack.c.b16 %v9484, %v9483
        %v9509 = vpack.c.b16 %v9486, %v9485
        %v9510 = vpack.c.b16 %v9488, %v9487
        %v9511 = vpack.c.b16 %v9490, %v9489
        %v9512 = vpack.c.b16 %v9492, %v9491
        %v9513 = vpack.c.b16 %v9494, %v9493
        %v9514 = vpack.c.b16 %v9496, %v9495
        %v9515 = vpack.c.b16 %v9498, %v9497
        %v9516 = vpack.c.b16 %v9500, %v9499
        %v9519 = vunpack.c.l.b16 %v8939
        %v9520 = vunpack.c.l.b16 %v8940
        %v9521 = vpack.c.b16 %v9520, %v9519
        %v9523 = vsel %vm392, %v9501, 0
        %v9526 = vsel %vm392, %v9502, 0
        %v9529 = vsel %vm392, %v9503, 0
        %v9532 = vsel %vm392, %v9504, 0
        %v9535 = vsel %vm392, %v9505, 0
        %v9538 = vsel %vm392, %v9506, 0
        %v9541 = vsel %vm392, %v9507, 0
        %v9544 = vsel %vm392, %v9508, 0
        %v9547 = vsel %vm392, %v9509, 0
        %v9550 = vsel %vm392, %v9510, 0
        %v9553 = vsel %vm392, %v9511, 0
        %v9556 = vsel %vm392, %v9512, 0
        %v9559 = vsel %vm392, %v9513, 0
        %v9562 = vsel %vm392, %v9514, 0
        %v9565 = vsel %vm392, %v9515, 0
        %v9568 = vsel %vm392, %v9516, 0
        %v9571 = vsel %vm441, %v9521, 0
        %9573 = vmatpush.bf16.msra.mxu0 0
        %9574 = vmatpush.bf16.msra.mxu0 0
        %9575 = vmatpush.bf16.msra.mxu0 0
        %9576 = vmatpush.bf16.msra.mxu0 0
        %9577 = vmatpush.bf16.msra.mxu0 0
        %9578 = vmatpush.bf16.msra.mxu0 0
        %9579 = vmatpush.bf16.msra.mxu0 0
        %9580 = vmatpush.bf16.msra.mxu0 %v9571
        %9581 = vmatmul.bf16.gmra.mxu0 %v9523
        %v9582 = vpop.f32.mrf.mxu0
        %v9583 = vadd.f32 0.0, %v9582
        %v9584 = vpop.f32.mrf.mxu0
        %v9585 = vadd.f32 0.0, %v9584
        %9586 = vmatmul.bf16.gmra.mxu0 %v9526
        %v9587 = vpop.f32.mrf.mxu0
        %v9588 = vadd.f32 0.0, %v9587
        %v9589 = vpop.f32.mrf.mxu0
        %v9590 = vadd.f32 0.0, %v9589
        %9591 = vmatmul.bf16.gmra.mxu0 %v9529
        %v9592 = vpop.f32.mrf.mxu0
        %v9593 = vadd.f32 0.0, %v9592
        %v9594 = vpop.f32.mrf.mxu0
        %v9595 = vadd.f32 0.0, %v9594
        %9596 = vmatmul.bf16.gmra.mxu0 %v9532
        %v9597 = vpop.f32.mrf.mxu0
        %v9598 = vadd.f32 0.0, %v9597
        %v9599 = vpop.f32.mrf.mxu0
        %v9600 = vadd.f32 0.0, %v9599
        %9601 = vmatmul.bf16.gmra.mxu0 %v9535
        %v9602 = vpop.f32.mrf.mxu0
        %v9603 = vadd.f32 0.0, %v9602
        %v9604 = vpop.f32.mrf.mxu0
        %v9605 = vadd.f32 0.0, %v9604
        %9606 = vmatmul.bf16.gmra.mxu0 %v9538
        %v9607 = vpop.f32.mrf.mxu0
        %v9608 = vadd.f32 0.0, %v9607
        %v9609 = vpop.f32.mrf.mxu0
        %v9610 = vadd.f32 0.0, %v9609
        %9611 = vmatmul.bf16.gmra.mxu0 %v9541
        %v9612 = vpop.f32.mrf.mxu0
        %v9613 = vadd.f32 0.0, %v9612
        %v9614 = vpop.f32.mrf.mxu0
        %v9615 = vadd.f32 0.0, %v9614
        %9616 = vmatmul.bf16.gmra.mxu0 %v9544
        %v9617 = vpop.f32.mrf.mxu0
        %v9618 = vadd.f32 0.0, %v9617
        %v9619 = vpop.f32.mrf.mxu0
        %v9620 = vadd.f32 0.0, %v9619
        %9621 = vmatmul.bf16.gmra.mxu0 %v9547
        %v9622 = vpop.f32.mrf.mxu0
        %v9623 = vadd.f32 0.0, %v9622
        %v9624 = vpop.f32.mrf.mxu0
        %v9625 = vadd.f32 0.0, %v9624
        %9626 = vmatmul.bf16.gmra.mxu0 %v9550
        %v9627 = vpop.f32.mrf.mxu0
        %v9628 = vadd.f32 0.0, %v9627
        %v9629 = vpop.f32.mrf.mxu0
        %v9630 = vadd.f32 0.0, %v9629
        %9631 = vmatmul.bf16.gmra.mxu0 %v9553
        %v9632 = vpop.f32.mrf.mxu0
        %v9633 = vadd.f32 0.0, %v9632
        %v9634 = vpop.f32.mrf.mxu0
        %v9635 = vadd.f32 0.0, %v9634
        %9636 = vmatmul.bf16.gmra.mxu0 %v9556
        %v9637 = vpop.f32.mrf.mxu0
        %v9638 = vadd.f32 0.0, %v9637
        %v9639 = vpop.f32.mrf.mxu0
        %v9640 = vadd.f32 0.0, %v9639
        %9641 = vmatmul.bf16.gmra.mxu0 %v9559
        %v9642 = vpop.f32.mrf.mxu0
        %v9643 = vadd.f32 0.0, %v9642
        %v9644 = vpop.f32.mrf.mxu0
        %v9645 = vadd.f32 0.0, %v9644
        %9646 = vmatmul.bf16.gmra.mxu0 %v9562
        %v9647 = vpop.f32.mrf.mxu0
        %v9648 = vadd.f32 0.0, %v9647
        %v9649 = vpop.f32.mrf.mxu0
        %v9650 = vadd.f32 0.0, %v9649
        %9651 = vmatmul.bf16.gmra.mxu0 %v9565
        %v9652 = vpop.f32.mrf.mxu0
        %v9653 = vadd.f32 0.0, %v9652
        %v9654 = vpop.f32.mrf.mxu0
        %v9655 = vadd.f32 0.0, %v9654
        %9656 = vmatmul.bf16.gmra.mxu0 %v9568
        %v9657 = vpop.f32.mrf.mxu0
        %v9658 = vadd.f32 0.0, %v9657
        %v9659 = vpop.f32.mrf.mxu0
        %v9660 = vadd.f32 0.0, %v9659
        %9661 = vdwg.mxu0
        %v9662 = vadd.f32 %v9437, %v9583
        %v9663 = vadd.f32 %v9438, %v9585
        %v9664 = vadd.f32 %v9439, %v9588
        %v9665 = vadd.f32 %v9440, %v9590
        %v9666 = vadd.f32 %v9441, %v9593
        %v9667 = vadd.f32 %v9442, %v9595
        %v9668 = vadd.f32 %v9443, %v9598
        %v9669 = vadd.f32 %v9444, %v9600
        %v9670 = vadd.f32 %v9445, %v9603
        %v9671 = vadd.f32 %v9446, %v9605
        %v9672 = vadd.f32 %v9447, %v9608
        %v9673 = vadd.f32 %v9448, %v9610
        %v9674 = vadd.f32 %v9449, %v9613
        %v9675 = vadd.f32 %v9450, %v9615
        %v9676 = vadd.f32 %v9451, %v9618
        %v9677 = vadd.f32 %v9452, %v9620
        %v9678 = vadd.f32 %v9453, %v9623
        %v9679 = vadd.f32 %v9454, %v9625
        %v9680 = vadd.f32 %v9455, %v9628
        %v9681 = vadd.f32 %v9456, %v9630
        %v9682 = vadd.f32 %v9457, %v9633
        %v9683 = vadd.f32 %v9458, %v9635
        %v9684 = vadd.f32 %v9459, %v9638
        %v9685 = vadd.f32 %v9460, %v9640
        %v9686 = vadd.f32 %v9461, %v9643
        %v9687 = vadd.f32 %v9462, %v9645
        %v9688 = vadd.f32 %v9463, %v9648
        %v9689 = vadd.f32 %v9464, %v9650
        %v9690 = vadd.f32 %v9465, %v9653
        %v9691 = vadd.f32 %v9466, %v9655
        %v9692 = vadd.f32 %v9467, %v9658
        %v9693 = vadd.f32 %v9468, %v9660
        %9694 = vst.msk [vmem:[#allocation2] sm:$0xff] %vm208, %v9662
        %9695 = vst.msk [vmem:[#allocation2 + $0x8] sm:$0xff] %vm208, %v9663
        %9696 = vst.msk [vmem:[#allocation2 + $0x10] sm:$0xff] %vm208, %v9664
        %9697 = vst.msk [vmem:[#allocation2 + $0x18] sm:$0xff] %vm208, %v9665
        %9698 = vst.msk [vmem:[#allocation2 + $0x20] sm:$0xff] %vm208, %v9666
        %9699 = vst.msk [vmem:[#allocation2 + $0x28] sm:$0xff] %vm208, %v9667
        %9700 = vst.msk [vmem:[#allocation2 + $0x30] sm:$0xff] %vm208, %v9668
        %9701 = vst.msk [vmem:[#allocation2 + $0x38] sm:$0xff] %vm208, %v9669
        %9702 = vst.msk [vmem:[#allocation2 + $0x40] sm:$0xff] %vm208, %v9670
        %9703 = vst.msk [vmem:[#allocation2 + $0x48] sm:$0xff] %vm208, %v9671
        %9704 = vst.msk [vmem:[#allocation2 + $0x50] sm:$0xff] %vm208, %v9672
        %9705 = vst.msk [vmem:[#allocation2 + $0x58] sm:$0xff] %vm208, %v9673
        %9706 = vst.msk [vmem:[#allocation2 + $0x60] sm:$0xff] %vm208, %v9674
        %9707 = vst.msk [vmem:[#allocation2 + $0x68] sm:$0xff] %vm208, %v9675
        %9708 = vst.msk [vmem:[#allocation2 + $0x70] sm:$0xff] %vm208, %v9676
        %9709 = vst.msk [vmem:[#allocation2 + $0x78] sm:$0xff] %vm208, %v9677
        %9710 = vst.msk [vmem:[#allocation2 + $0x80] sm:$0xff] %vm208, %v9678
        %9711 = vst.msk [vmem:[#allocation2 + $0x88] sm:$0xff] %vm208, %v9679
        %9712 = vst.msk [vmem:[#allocation2 + $0x90] sm:$0xff] %vm208, %v9680
        %9713 = vst.msk [vmem:[#allocation2 + $0x98] sm:$0xff] %vm208, %v9681
        %9714 = vst.msk [vmem:[#allocation2 + $0xa0] sm:$0xff] %vm208, %v9682
        %9715 = vst.msk [vmem:[#allocation2 + $0xa8] sm:$0xff] %vm208, %v9683
        %9716 = vst.msk [vmem:[#allocation2 + $0xb0] sm:$0xff] %vm208, %v9684
        %9717 = vst.msk [vmem:[#allocation2 + $0xb8] sm:$0xff] %vm208, %v9685
        %9718 = vst.msk [vmem:[#allocation2 + $0xc0] sm:$0xff] %vm208, %v9686
        %9719 = vst.msk [vmem:[#allocation2 + $0xc8] sm:$0xff] %vm208, %v9687
        %9720 = vst.msk [vmem:[#allocation2 + $0xd0] sm:$0xff] %vm208, %v9688
        %9721 = vst.msk [vmem:[#allocation2 + $0xd8] sm:$0xff] %vm208, %v9689
        %9722 = vst.msk [vmem:[#allocation2 + $0xe0] sm:$0xff] %vm208, %v9690
        %9723 = vst.msk [vmem:[#allocation2 + $0xe8] sm:$0xff] %vm208, %v9691
        %9724 = vst.msk [vmem:[#allocation2 + $0xf0] sm:$0xff] %vm208, %v9692
        %9725 = vst.msk [vmem:[#allocation2 + $0xf8] sm:$0xff] %vm208, %v9693
        %v9726 = vld [vmem:[#allocation2] sm:$0xff]
        %v9727 = vld [vmem:[#allocation2 + $0x8] sm:$0xff]
        %v9728 = vld [vmem:[#allocation2 + $0x10] sm:$0xff]
        %v9729 = vld [vmem:[#allocation2 + $0x18] sm:$0xff]
        %v9730 = vld [vmem:[#allocation2 + $0x20] sm:$0xff]
        %v9731 = vld [vmem:[#allocation2 + $0x28] sm:$0xff]
        %v9732 = vld [vmem:[#allocation2 + $0x30] sm:$0xff]
        %v9733 = vld [vmem:[#allocation2 + $0x38] sm:$0xff]
        %v9734 = vld [vmem:[#allocation2 + $0x40] sm:$0xff]
        %v9735 = vld [vmem:[#allocation2 + $0x48] sm:$0xff]
        %v9736 = vld [vmem:[#allocation2 + $0x50] sm:$0xff]
        %v9737 = vld [vmem:[#allocation2 + $0x58] sm:$0xff]
        %v9738 = vld [vmem:[#allocation2 + $0x60] sm:$0xff]
        %v9739 = vld [vmem:[#allocation2 + $0x68] sm:$0xff]
        %v9740 = vld [vmem:[#allocation2 + $0x70] sm:$0xff]
        %v9741 = vld [vmem:[#allocation2 + $0x78] sm:$0xff]
        %v9742 = vld [vmem:[#allocation2 + $0x80] sm:$0xff]
        %v9743 = vld [vmem:[#allocation2 + $0x88] sm:$0xff]
        %v9744 = vld [vmem:[#allocation2 + $0x90] sm:$0xff]
        %v9745 = vld [vmem:[#allocation2 + $0x98] sm:$0xff]
        %v9746 = vld [vmem:[#allocation2 + $0xa0] sm:$0xff]
        %v9747 = vld [vmem:[#allocation2 + $0xa8] sm:$0xff]
        %v9748 = vld [vmem:[#allocation2 + $0xb0] sm:$0xff]
        %v9749 = vld [vmem:[#allocation2 + $0xb8] sm:$0xff]
        %v9750 = vld [vmem:[#allocation2 + $0xc0] sm:$0xff]
        %v9751 = vld [vmem:[#allocation2 + $0xc8] sm:$0xff]
        %v9752 = vld [vmem:[#allocation2 + $0xd0] sm:$0xff]
        %v9753 = vld [vmem:[#allocation2 + $0xd8] sm:$0xff]
        %v9754 = vld [vmem:[#allocation2 + $0xe0] sm:$0xff]
        %v9755 = vld [vmem:[#allocation2 + $0xe8] sm:$0xff]
        %v9756 = vld [vmem:[#allocation2 + $0xf0] sm:$0xff]
        %v9757 = vld [vmem:[#allocation2 + $0xf8] sm:$0xff]
        %v9758 = vmax.f32 %v9726, 0.0
        %v9759 = vmax.f32 %v9727, 0.0
        %v9760 = vmax.f32 %v9728, 0.0
        %v9761 = vmax.f32 %v9729, 0.0
        %v9762 = vmax.f32 %v9730, 0.0
        %v9763 = vmax.f32 %v9731, 0.0
        %v9764 = vmax.f32 %v9732, 0.0
        %v9765 = vmax.f32 %v9733, 0.0
        %v9766 = vmax.f32 %v9734, 0.0
        %v9767 = vmax.f32 %v9735, 0.0
        %v9768 = vmax.f32 %v9736, 0.0
        %v9769 = vmax.f32 %v9737, 0.0
        %v9770 = vmax.f32 %v9738, 0.0
        %v9771 = vmax.f32 %v9739, 0.0
        %v9772 = vmax.f32 %v9740, 0.0
        %v9773 = vmax.f32 %v9741, 0.0
        %v9774 = vmax.f32 %v9742, 0.0
        %v9775 = vmax.f32 %v9743, 0.0
        %v9776 = vmax.f32 %v9744, 0.0
        %v9777 = vmax.f32 %v9745, 0.0
        %v9778 = vmax.f32 %v9746, 0.0
        %v9779 = vmax.f32 %v9747, 0.0
        %v9780 = vmax.f32 %v9748, 0.0
        %v9781 = vmax.f32 %v9749, 0.0
        %v9782 = vmax.f32 %v9750, 0.0
        %v9783 = vmax.f32 %v9751, 0.0
        %v9784 = vmax.f32 %v9752, 0.0
        %v9785 = vmax.f32 %v9753, 0.0
        %v9786 = vmax.f32 %v9754, 0.0
        %v9787 = vmax.f32 %v9755, 0.0
        %v9788 = vmax.f32 %v9756, 0.0
        %v9789 = vmax.f32 %v9757, 0.0
        %v9790 = vpack.c.bf16 %v9758, %v9758
        %v9791 = vpack.c.bf16 %v9759, %v9759
        %v9792 = vpack.c.bf16 %v9760, %v9760
        %v9793 = vpack.c.bf16 %v9761, %v9761
        %v9794 = vpack.c.bf16 %v9762, %v9762
        %v9795 = vpack.c.bf16 %v9763, %v9763
        %v9796 = vpack.c.bf16 %v9764, %v9764
        %v9797 = vpack.c.bf16 %v9765, %v9765
        %v9798 = vpack.c.bf16 %v9766, %v9766
        %v9799 = vpack.c.bf16 %v9767, %v9767
        %v9800 = vpack.c.bf16 %v9768, %v9768
        %v9801 = vpack.c.bf16 %v9769, %v9769
        %v9802 = vpack.c.bf16 %v9770, %v9770
        %v9803 = vpack.c.bf16 %v9771, %v9771
        %v9804 = vpack.c.bf16 %v9772, %v9772
        %v9805 = vpack.c.bf16 %v9773, %v9773
        %v9806 = vpack.c.bf16 %v9774, %v9774
        %v9807 = vpack.c.bf16 %v9775, %v9775
        %v9808 = vpack.c.bf16 %v9776, %v9776
        %v9809 = vpack.c.bf16 %v9777, %v9777
        %v9810 = vpack.c.bf16 %v9778, %v9778
        %v9811 = vpack.c.bf16 %v9779, %v9779
        %v9812 = vpack.c.bf16 %v9780, %v9780
        %v9813 = vpack.c.bf16 %v9781, %v9781
        %v9814 = vpack.c.bf16 %v9782, %v9782
        %v9815 = vpack.c.bf16 %v9783, %v9783
        %v9816 = vpack.c.bf16 %v9784, %v9784
        %v9817 = vpack.c.bf16 %v9785, %v9785
        %v9818 = vpack.c.bf16 %v9786, %v9786
        %v9819 = vpack.c.bf16 %v9787, %v9787
        %v9820 = vpack.c.bf16 %v9788, %v9788
        %v9821 = vpack.c.bf16 %v9789, %v9789
        %vm9822 = vcmask 519168
        %9823 = vst.msk [vmem:[%s190] sm:$0xf] %vm9822, %v9790
        %9824 = vst.msk [vmem:[%s190 + $0x4] sm:$0xf] %vm9822, %v9791
        %9825 = vst.msk [vmem:[%s190 + $0x8] sm:$0xf] %vm9822, %v9792
        %9826 = vst.msk [vmem:[%s190 + $0xc] sm:$0xf] %vm9822, %v9793
        %9827 = vst.msk [vmem:[%s190 + $0x10] sm:$0xf] %vm9822, %v9794
        %9828 = vst.msk [vmem:[%s190 + $0x14] sm:$0xf] %vm9822, %v9795
        %9829 = vst.msk [vmem:[%s190 + $0x18] sm:$0xf] %vm9822, %v9796
        %9830 = vst.msk [vmem:[%s190 + $0x1c] sm:$0xf] %vm9822, %v9797
        %9831 = vst.msk [vmem:[%s190 + $0x20] sm:$0xf] %vm9822, %v9798
        %9832 = vst.msk [vmem:[%s190 + $0x24] sm:$0xf] %vm9822, %v9799
        %9833 = vst.msk [vmem:[%s190 + $0x28] sm:$0xf] %vm9822, %v9800
        %9834 = vst.msk [vmem:[%s190 + $0x2c] sm:$0xf] %vm9822, %v9801
        %9835 = vst.msk [vmem:[%s190 + $0x30] sm:$0xf] %vm9822, %v9802
        %9836 = vst.msk [vmem:[%s190 + $0x34] sm:$0xf] %vm9822, %v9803
        %9837 = vst.msk [vmem:[%s190 + $0x38] sm:$0xf] %vm9822, %v9804
        %9838 = vst.msk [vmem:[%s190 + $0x3c] sm:$0xf] %vm9822, %v9805
        %9839 = vst.msk [vmem:[%s190 + $0x40] sm:$0xf] %vm9822, %v9806
        %9840 = vst.msk [vmem:[%s190 + $0x44] sm:$0xf] %vm9822, %v9807
        %9841 = vst.msk [vmem:[%s190 + $0x48] sm:$0xf] %vm9822, %v9808
        %9842 = vst.msk [vmem:[%s190 + $0x4c] sm:$0xf] %vm9822, %v9809
        %9843 = vst.msk [vmem:[%s190 + $0x50] sm:$0xf] %vm9822, %v9810
        %9844 = vst.msk [vmem:[%s190 + $0x54] sm:$0xf] %vm9822, %v9811
        %9845 = vst.msk [vmem:[%s190 + $0x58] sm:$0xf] %vm9822, %v9812
        %9846 = vst.msk [vmem:[%s190 + $0x5c] sm:$0xf] %vm9822, %v9813
        %9847 = vst.msk [vmem:[%s190 + $0x60] sm:$0xf] %vm9822, %v9814
        %9848 = vst.msk [vmem:[%s190 + $0x64] sm:$0xf] %vm9822, %v9815
        %9849 = vst.msk [vmem:[%s190 + $0x68] sm:$0xf] %vm9822, %v9816
        %9850 = vst.msk [vmem:[%s190 + $0x6c] sm:$0xf] %vm9822, %v9817
        %9851 = vst.msk [vmem:[%s190 + $0x70] sm:$0xf] %vm9822, %v9818
        %9852 = vst.msk [vmem:[%s190 + $0x74] sm:$0xf] %vm9822, %v9819
        %9853 = vst.msk [vmem:[%s190 + $0x78] sm:$0xf] %vm9822, %v9820
        %9854 = vst.msk [vmem:[%s190 + $0x7c] sm:$0xf] %vm9822, %v9821
        %s9855 = sand.u32 %s109, 1
        %s9856 = scalar_lea.sflag [#allocation4], %s9855
        %s9857 = sand.u32 %s109, 1
        %s9858 = smul.addr %s9857, 128
        %s9859 = scalar_lea.vmem [#allocation3], %s9858
        // Predicated region
        $region33: #{tpu_custom_call.1} parent=31 // pred_check
          %p9860 = pneg %p119
        $region34: #{tpu_custom_call.1} parent=31 // pred_check_branch
          %9862 = sbr.rel (%p9860) target = $region36
        $region35: #{tpu_custom_call.1} parent=31 // pred_region
          %s9863 = smul.u32 16, %s22
          %9865 = vsyncadd %s9856, 0
          %s9866 = smul.addr %s9863, 2
          %s9867 = smul.addr %s21, 32
          %s9868 = sadd.s32 %s9866, %s9867
          %s9869 = smul.addr %s9868, 4
          %s9870 = scalar_lea.hbm %s3, %s9869
          %s9871 = sshll.u32 %s9859, 4
          %s9872 = int_to_ptr.vmem [resolvable:$true] %s9871
          %s9873 = sshll.u32 %s9870, 4
          %s9874 = int_to_ptr.hbm [resolvable:$true] %s9873
          %9879 = dma.vmem_to_hbm [thread:$0]  %s9872, 2048, %s9874, %s9856, 64, 64, 4
        $region36: #{tpu_custom_call.1} parent=31 // pred_fallthru
          _
      $region32: #{tpu_custom_call.1} parent=5 // pred_fallthru
        _
      %p9880 = scmp.le.s32.totalorder 2, %s12
      // Predicated region
      $region37: #{tpu_custom_call.1} parent=5 // pred_check
        %p9881 = pneg %p9880
      $region38: #{tpu_custom_call.1} parent=5 // pred_check_branch
        %9883 = sbr.rel (%p9881) target = $region40
      $region39: #{tpu_custom_call.1} parent=5 // pred_region
        %s9884 = ssub.s32 %s12, 2
        // Predicated region
        $region41: #{tpu_custom_call.1} parent=39 // pred_check
          %p9885 = pneg %p125
        $region42: #{tpu_custom_call.1} parent=39 // pred_check_branch
          %9887 = sbr.rel (%p9885) target = $region44
        $region43: #{tpu_custom_call.1} parent=39 // pred_region
          %s9888 = sand.u32 %s110, 1
          %s9889 = scalar_lea.sflag [#allocation4], %s9888
          %s9890 = sand.u32 %s110, 1
          %s9891 = smul.addr %s9890, 128
          %s9892 = scalar_lea.vmem [#allocation3], %s9891
          %9894 = dma.done %s9889, 2048
        $region44: #{tpu_custom_call.1} parent=39 // pred_fallthru
          _
      $region40: #{tpu_custom_call.1} parent=5 // pred_fallthru
        _
    $region6: #{tpu_custom_call.1} parent=1 // loop_footer
      %s16 = sadd.s32 1, %s12
    $region7: #{tpu_custom_call.1} parent=1 // loop_footer_branch
      %11 = sbr.rel target = $region3
    $region8: #{tpu_custom_call.1} parent=1 // loop_exit
      _
    %9895 = vsyncpa [#allocation4], 1
    %s9896 = scalar_lea.sflag [#allocation4], 1
    %9897 = vsyncpa %s9896, 1

</llo_original>
